<compile_context>
chip_gen: v7x
topology: tpu7x:2x2x1
jax: 0.10.0
libtpu: 0.0.40
codegen_flags: <defaults>
</compile_context>

<pallas_src>
import math
import functools

import jax
import jax.numpy as jnp
from jax.experimental import pallas as pl
from jax.experimental.pallas import tpu as pltpu


# ----------------------------- in-kernel helpers -----------------------------

def _concat_elu_last(x):
    """concat_elu over the channel (last) axis: [elu(x), elu(-x)].

    elu(x)  = x            if x > 0 else exp(x)  - 1
    elu(-x) = exp(-x) - 1  if x > 0 else -x
    so a single exp(-|x|) - 1 serves both halves (halves EUP work).
    """
    em1 = jnp.exp(-jnp.abs(x)) - 1.0
    pos = x > 0
    return jnp.concatenate([jnp.where(pos, x, em1),
                            jnp.where(pos, em1, -x)], axis=-1)


def _layer_norm(y, gamma, beta, eps=1e-5):
    mean = jnp.mean(y, axis=-1, keepdims=True)
    var = jnp.mean((y - mean) ** 2, axis=-1, keepdims=True)
    return (y - mean) * jax.lax.rsqrt(var + eps) * gamma + beta


# --------------------------------- kernel ------------------------------------

def conv_attn_kernel(x_ref, w3_ref, b3_ref, wgc_ref, bgc_ref,
                     ln1g_ref, ln1b_ref,
                     pe_ref, win_ref, wga_ref, bga_ref,
                     ln2g_ref, ln2b_ref,
                     out_ref, pad_ref, *, num_heads):
    """Fused ConvAttnBlock forward, whole batch in one program.

    x_ref:   (B, H, W, C)       NHWC input
    w3_ref:  (9*2C, C)          3x3 conv weights, im2col layout (ky, kx, cin)
    wgc_ref: (2C, 2C)           GatedConv 1x1 gate
    pe_ref:  (B*S, C)           positional encoding, tiled over batch
    win_ref: (C, 3C)            GatedAttn in_proj (applied as x @ W)
    wga_ref: (C, 2C)            GatedAttn gate
    out_ref: (B*H, W*C)         lane-dense output (row-major flatten of NHWC)
    pad_ref: (B, H+2, W+2, 2C)  VMEM scratch holding concat_elu(x) + zero halo
    """
    B, H, W, C = x_ref.shape
    S = H * W
    N = B * S
    x = x_ref[...].astype(jnp.float32)                      # (B, H, W, C)
    x_flat = x.reshape(N, C)

    # ---------------- GatedConv: concat_elu -> 3x3 conv (im2col) -------------
    # Build concat_elu(x) with a 1-pixel zero halo directly in VMEM
    # (concat_elu(0) == 0, so zero padding commutes with the nonlinearity).
    pad_ref[...] = jnp.zeros(pad_ref.shape, jnp.float32)
    pad_ref[:, 1:1 + H, 1:1 + W, :] = _concat_elu_last(x)
    cep = pad_ref[...]                                       # (B, H+2, W+2, 2C)

    # im2col: 9 shifted windows concatenated on the lane axis -> one MXU matmul
    cols = []
    for ky in range(3):
        for kx in range(3):
            win = cep[:, ky:ky + H, kx:kx + W, :]            # (B, H, W, 2C)
            cols.append(win.reshape(N, 2 * C))
    im2col = jnp.concatenate(cols, axis=-1)                  # (N, 18C)
    conv = jnp.dot(im2col, w3_ref[...],
                   preferred_element_type=jnp.float32) + b3_ref[...]   # (N, C)

    # TODO(synk): Dropout2d / attention dropout omitted (drop_prob=0.0 -> identity).
    # TODO(synk): aux input path omitted (aux_channels=None in this config).
    h2 = _concat_elu_last(conv)                              # (N, 2C)
    g = jnp.dot(h2, wgc_ref[...],
                preferred_element_type=jnp.float32) + bgc_ref[...]     # (N, 2C)
    gated = g[:, :C] * jax.nn.sigmoid(g[:, C:])

    # residual + norm_1
    y1 = _layer_norm(gated + x_flat, ln1g_ref[...], ln1b_ref[...])     # (N, C)

    # ---------------- GatedAttn: in_proj -> MHSA -> gate ---------------------
    t = y1 + pe_ref[...]
    proj = jnp.dot(t, win_ref[...], preferred_element_type=jnp.float32)  # (N, 3C)
    k = proj[:, :C]
    v = proj[:, C:2 * C]
    d = C // num_heads
    q = proj[:, 2 * C:] * (d ** -0.5)

    # Stack all (batch, head) pairs on a leading axis: (G, S, d), G = B*num_heads
    def split_heads(m):
        return jnp.stack([m[b * S:(b + 1) * S, h * d:(h + 1) * d]
                          for b in range(B) for h in range(num_heads)], axis=0)

    qh, kh, vh = split_heads(q), split_heads(k), split_heads(v)

    scores = jnp.einsum('gsd,gtd->gst', qh, kh,
                        preferred_element_type=jnp.float32)            # (G, S, S)
    scores = scores - jnp.max(scores, axis=-1, keepdims=True)
    e = jnp.exp(scores)
    p = e * pl.reciprocal(jnp.sum(e, axis=-1, keepdims=True), approx=True)
    ctx = jnp.einsum('gst,gtd->gsd', p, vh,
                     preferred_element_type=jnp.float32)               # (G, S, d)

    # Recombine: batch-major rows, head-major channels (matches PyTorch
    # combine_last_two_dim of (b, seq, heads, d)).
    attn = jnp.concatenate(
        [jnp.concatenate([ctx[b * num_heads + h] for h in range(num_heads)],
                         axis=-1)
         for b in range(B)], axis=0)                                   # (N, C)

    g2 = jnp.dot(attn, wga_ref[...],
                 preferred_element_type=jnp.float32) + bga_ref[...]    # (N, 2C)
    z = g2[:, :C] * jax.nn.sigmoid(g2[:, C:]) + y1                     # + residual
    y2 = _layer_norm(z, ln2g_ref[...], ln2b_ref[...])                  # (N, C)

    # ---------------- lane-dense output store --------------------------------
    # (N, C) -> (B*H, W*C): split leading dim (safe), slice the unit W rows,
    # concatenate on the lane axis -> unmasked 128-wide stores.
    y3 = y2.reshape(B * H, W, C)
    out_ref[...] = jnp.concatenate([y3[:, w, :] for w in range(W)], axis=-1)


# --------------------------------- glue --------------------------------------

def get_pos_enc(seq_len, num_channels):
    position = jnp.arange(seq_len, dtype=jnp.float32)
    num_timescales = num_channels // 2
    log_inc = math.log(10000.0) / (num_timescales - 1)
    inv = jnp.exp(jnp.arange(num_timescales, dtype=jnp.float32) * -log_inc)
    scaled = position[:, None] * inv[None, :]
    enc = jnp.concatenate([jnp.sin(scaled), jnp.cos(scaled)], axis=1)
    # num_channels is even in this config, so no extra pad needed
    return enc  # (S, C)


def conv_attn_block_forward(x_nchw, params, *, num_heads=4):
    B, C, H, W = x_nchw.shape
    S = H * W
    # NCHW -> NHWC once in the wrapper (8 KB relayout; module interface stays
    # NCHW-compatible with the PyTorch reference).
    x = jnp.transpose(x_nchw, (0, 2, 3, 1)).astype(jnp.float32)      # (B,H,W,C)
    pe = jnp.tile(get_pos_enc(S, C), (B, 1))                         # (B*S, C)
    w3 = params["conv_w3"].reshape(9 * 2 * C, C)                     # im2col weights

    def full(arr):
        s = arr.shape
        return pl.BlockSpec(s, lambda i, _s=s: (0,) * len(_s))

    operands = (x, w3, params["conv_b3"], params["conv_wg"], params["conv_bg"],
                params["ln1_g"], params["ln1_b"],
                pe, params["attn_win"], params["attn_wg"], params["attn_bg"],
                params["ln2_g"], params["ln2_b"])

    out = pl.pallas_call(
        functools.partial(conv_attn_kernel, num_heads=num_heads),
        out_shape=jax.ShapeDtypeStruct((B * H, W * C), jnp.float32),
        grid=(1,),
        in_specs=[full(a) for a in operands],
        out_specs=pl.BlockSpec((B * H, W * C), lambda i: (0, 0)),
        scratch_shapes=[pltpu.VMEM((B, H + 2, W + 2, 2 * C), jnp.float32)],
        compiler_params=pltpu.CompilerParams(
            dimension_semantics=("arbitrary",)),
    )(*operands)

    y = out.reshape(B, H, W, C)
    return jnp.transpose(y, (0, 3, 1, 2))   # back to NCHW


def init_params(key, C):
    ks = jax.random.split(key, 7)
    # weight_norm(g=||v||) at init is an identity reparameterization, so the
    # effective weights are drawn directly.
    return {
        # GatedConv: 3x3 conv (2C -> C) in HWIO, bias; 1x1 gate conv (2C -> 2C)
        "conv_w3": jax.random.normal(ks[0], (3, 3, 2 * C, C), jnp.float32) * 0.1,
        "conv_b3": jax.random.normal(ks[1], (1, C), jnp.float32) * 0.1,
        "conv_wg": jax.random.normal(ks[2], (2 * C, 2 * C), jnp.float32) * 0.1,
        "conv_bg": jax.random.normal(ks[3], (1, 2 * C), jnp.float32) * 0.1,
        # LayerNorm 1 (PyTorch default init: weight=1, bias=0)
        "ln1_g": jnp.ones((1, C), jnp.float32),
        "ln1_b": jnp.zeros((1, C), jnp.float32),
        # GatedAttn: in_proj Linear(C, 3C, bias=False), gate Linear(C, 2C)
        "attn_win": jax.random.normal(ks[4], (C, 3 * C), jnp.float32) * 0.1,
        "attn_wg": jax.random.normal(ks[5], (C, 2 * C), jnp.float32) * 0.1,
        "attn_bg": jax.random.normal(ks[6], (1, 2 * C), jnp.float32) * 0.1,
        # LayerNorm 2
        "ln2_g": jnp.ones((1, C), jnp.float32),
        "ln2_b": jnp.zeros((1, C), jnp.float32),
    }


if __name__ == "__main__":
    B, C, H, W = 2, 16, 8, 8        # num_channels=16, num_heads=4 -> head dim 4
    key = jax.random.PRNGKey(0)
    kx, kp = jax.random.split(key)
    x = jax.random.normal(kx, (B, C, H, W), jnp.float32)    # NCHW like PyTorch
    params = init_params(kp, C)

    out = conv_attn_block_forward(x, params, num_heads=4)
    out = jax.block_until_ready(out)
    assert out.shape == (B, C, H, W)
    assert bool(jnp.all(jnp.isfinite(out)))
    print("KERNEL_OK")
</pallas_src>

<mosaic_0001>
module attributes {stable_mosaic.version = 11 : i64} {
  func.func @conv_attn_kernel(%arg0: i32, %arg1: memref<2x8x8x16xf32, #tpu.memory_space<vmem>>, %arg2: memref<288x16xf32, #tpu.memory_space<vmem>>, %arg3: memref<1x16xf32, #tpu.memory_space<vmem>>, %arg4: memref<32x32xf32, #tpu.memory_space<vmem>>, %arg5: memref<1x32xf32, #tpu.memory_space<vmem>>, %arg6: memref<1x16xf32, #tpu.memory_space<vmem>>, %arg7: memref<1x16xf32, #tpu.memory_space<vmem>>, %arg8: memref<128x16xf32, #tpu.memory_space<vmem>>, %arg9: memref<16x48xf32, #tpu.memory_space<vmem>>, %arg10: memref<16x32xf32, #tpu.memory_space<vmem>>, %arg11: memref<1x32xf32, #tpu.memory_space<vmem>>, %arg12: memref<1x16xf32, #tpu.memory_space<vmem>>, %arg13: memref<1x16xf32, #tpu.memory_space<vmem>>, %arg14: memref<16x128xf32, #tpu.memory_space<vmem>>, %arg15: memref<2x10x10x32xf32, #tpu.memory_space<vmem>>) attributes {dimension_semantics = [#tpu.dimension_semantics<arbitrary>], iteration_bounds = array<i64: 1>, scalar_prefetch = 0 : i64, scratch_operands = 1 : i64, tpu.core_type = #tpu.core_type<tc>, window_params = [{pipeline_mode = #tpu.pipeline_mode<synchronous>, transform_indices = @transform_0, window_bounds = array<i64: 2, 8, 8, 16>}, {pipeline_mode = #tpu.pipeline_mode<synchronous>, transform_indices = @transform_1, window_bounds = array<i64: 288, 16>}, {pipeline_mode = #tpu.pipeline_mode<synchronous>, transform_indices = @transform_2, window_bounds = array<i64: 1, 16>}, {pipeline_mode = #tpu.pipeline_mode<synchronous>, transform_indices = @transform_3, window_bounds = array<i64: 32, 32>}, {pipeline_mode = #tpu.pipeline_mode<synchronous>, transform_indices = @transform_4, window_bounds = array<i64: 1, 32>}, {pipeline_mode = #tpu.pipeline_mode<synchronous>, transform_indices = @transform_5, window_bounds = array<i64: 1, 16>}, {pipeline_mode = #tpu.pipeline_mode<synchronous>, transform_indices = @transform_6, window_bounds = array<i64: 1, 16>}, {pipeline_mode = #tpu.pipeline_mode<synchronous>, transform_indices = @transform_7, window_bounds = array<i64: 128, 16>}, {pipeline_mode = #tpu.pipeline_mode<synchronous>, transform_indices = @transform_8, window_bounds = array<i64: 16, 48>}, {pipeline_mode = #tpu.pipeline_mode<synchronous>, transform_indices = @transform_9, window_bounds = array<i64: 16, 32>}, {pipeline_mode = #tpu.pipeline_mode<synchronous>, transform_indices = @transform_10, window_bounds = array<i64: 1, 32>}, {pipeline_mode = #tpu.pipeline_mode<synchronous>, transform_indices = @transform_11, window_bounds = array<i64: 1, 16>}, {pipeline_mode = #tpu.pipeline_mode<synchronous>, transform_indices = @transform_12, window_bounds = array<i64: 1, 16>}, {pipeline_mode = #tpu.pipeline_mode<synchronous>, transform_indices = @transform_13, window_bounds = array<i64: 16, 128>}]} {
    %c0 = arith.constant 0 : index
    %c0_0 = arith.constant 0 : index
    %c0_1 = arith.constant 0 : index
    %c0_2 = arith.constant 0 : index
    %0 = vector.load %arg1[%c0, %c0_0, %c0_1, %c0_2] : memref<2x8x8x16xf32, #tpu.memory_space<vmem>>, vector<2x8x8x16xf32>
    %1 = vector.shape_cast %0 : vector<2x8x8x16xf32> to vector<128x16xf32>
    %cst = arith.constant 0.000000e+00 : f32
    %2 = vector.broadcast %cst : f32 to vector<2x10x10x32xf32>
    %c0_3 = arith.constant 0 : index
    %c0_4 = arith.constant 0 : index
    %c0_5 = arith.constant 0 : index
    %c0_6 = arith.constant 0 : index
    %3 = vector.load %arg15[%c0_3, %c0_4, %c0_5, %c0_6] : memref<2x10x10x32xf32, #tpu.memory_space<vmem>>, vector<2x10x10x32xf32>
    tpu.vector_store %arg15[%c0_3, %c0_4, %c0_5, %c0_6], %2 {strides = array<i32>} : memref<2x10x10x32xf32, #tpu.memory_space<vmem>>, vector<2x10x10x32xf32>,
    %4 = math.absf %0 : vector<2x8x8x16xf32>
    %cst_7 = arith.constant 0.000000e+00 : f32
    %5 = vector.broadcast %cst_7 : f32 to vector<2x8x8x16xf32>
    %6 = arith.subf %5, %4 : vector<2x8x8x16xf32>
    %7 = math.exp %6 : vector<2x8x8x16xf32>
    %cst_8 = arith.constant 1.000000e+00 : f32
    %8 = vector.broadcast %cst_8 : f32 to vector<2x8x8x16xf32>
    %9 = arith.subf %7, %8 : vector<2x8x8x16xf32>
    %cst_9 = arith.constant 0.000000e+00 : f32
    %10 = vector.broadcast %cst_9 : f32 to vector<2x8x8x16xf32>
    %11 = arith.cmpf ogt, %0, %10 : vector<2x8x8x16xf32>
    %12 = arith.select %11, %0, %9 : vector<2x8x8x16xi1>, vector<2x8x8x16xf32>
    %cst_10 = arith.constant 0.000000e+00 : f32
    %13 = vector.broadcast %cst_10 : f32 to vector<2x8x8x16xf32>
    %14 = arith.subf %13, %0 : vector<2x8x8x16xf32>
    %15 = arith.select %11, %9, %14 : vector<2x8x8x16xi1>, vector<2x8x8x16xf32>
    %16 = tpu.concatenate %12, %15 in 3 : vector<2x8x8x16xf32>, vector<2x8x8x16xf32> -> vector<2x8x8x32xf32>
    %c0_11 = arith.constant 0 : index
    %c1 = arith.constant 1 : index
    %c1_12 = arith.constant 1 : index
    %c0_13 = arith.constant 0 : index
    %17 = vector.load %arg15[%c0_11, %c1, %c1_12, %c0_13] : memref<2x10x10x32xf32, #tpu.memory_space<vmem>>, vector<2x8x8x32xf32>
    tpu.vector_store %arg15[%c0_11, %c1, %c1_12, %c0_13], %16 {strides = array<i32>} : memref<2x10x10x32xf32, #tpu.memory_space<vmem>>, vector<2x8x8x32xf32>,
    %c0_14 = arith.constant 0 : index
    %c0_15 = arith.constant 0 : index
    %c0_16 = arith.constant 0 : index
    %c0_17 = arith.constant 0 : index
    %18 = vector.load %arg15[%c0_14, %c0_15, %c0_16, %c0_17] : memref<2x10x10x32xf32, #tpu.memory_space<vmem>>, vector<2x10x10x32xf32>
    %19 = vector.extract_strided_slice %18 {offsets = [0, 0, 0, 0], sizes = [2, 8, 8, 32], strides = [1, 1, 1, 1]} : vector<2x10x10x32xf32> to vector<2x8x8x32xf32>
    %20 = vector.shape_cast %19 : vector<2x8x8x32xf32> to vector<128x32xf32>
    %21 = vector.extract_strided_slice %18 {offsets = [0, 0, 1, 0], sizes = [2, 8, 8, 32], strides = [1, 1, 1, 1]} : vector<2x10x10x32xf32> to vector<2x8x8x32xf32>
    %22 = vector.shape_cast %21 : vector<2x8x8x32xf32> to vector<128x32xf32>
    %23 = vector.extract_strided_slice %18 {offsets = [0, 0, 2, 0], sizes = [2, 8, 8, 32], strides = [1, 1, 1, 1]} : vector<2x10x10x32xf32> to vector<2x8x8x32xf32>
    %24 = vector.shape_cast %23 : vector<2x8x8x32xf32> to vector<128x32xf32>
    %25 = vector.extract_strided_slice %18 {offsets = [0, 1, 0, 0], sizes = [2, 8, 8, 32], strides = [1, 1, 1, 1]} : vector<2x10x10x32xf32> to vector<2x8x8x32xf32>
    %26 = vector.shape_cast %25 : vector<2x8x8x32xf32> to vector<128x32xf32>
    %27 = vector.extract_strided_slice %18 {offsets = [0, 1, 1, 0], sizes = [2, 8, 8, 32], strides = [1, 1, 1, 1]} : vector<2x10x10x32xf32> to vector<2x8x8x32xf32>
    %28 = vector.shape_cast %27 : vector<2x8x8x32xf32> to vector<128x32xf32>
    %29 = vector.extract_strided_slice %18 {offsets = [0, 1, 2, 0], sizes = [2, 8, 8, 32], strides = [1, 1, 1, 1]} : vector<2x10x10x32xf32> to vector<2x8x8x32xf32>
    %30 = vector.shape_cast %29 : vector<2x8x8x32xf32> to vector<128x32xf32>
    %31 = vector.extract_strided_slice %18 {offsets = [0, 2, 0, 0], sizes = [2, 8, 8, 32], strides = [1, 1, 1, 1]} : vector<2x10x10x32xf32> to vector<2x8x8x32xf32>
    %32 = vector.shape_cast %31 : vector<2x8x8x32xf32> to vector<128x32xf32>
    %33 = vector.extract_strided_slice %18 {offsets = [0, 2, 1, 0], sizes = [2, 8, 8, 32], strides = [1, 1, 1, 1]} : vector<2x10x10x32xf32> to vector<2x8x8x32xf32>
    %34 = vector.shape_cast %33 : vector<2x8x8x32xf32> to vector<128x32xf32>
    %35 = vector.extract_strided_slice %18 {offsets = [0, 2, 2, 0], sizes = [2, 8, 8, 32], strides = [1, 1, 1, 1]} : vector<2x10x10x32xf32> to vector<2x8x8x32xf32>
    %36 = vector.shape_cast %35 : vector<2x8x8x32xf32> to vector<128x32xf32>
    %37 = tpu.concatenate %20, %22, %24, %26, %28, %30, %32, %34, %36 in 1 : vector<128x32xf32>, vector<128x32xf32>, vector<128x32xf32>, vector<128x32xf32>, vector<128x32xf32>, vector<128x32xf32>, vector<128x32xf32>, vector<128x32xf32>, vector<128x32xf32> -> vector<128x288xf32>
    %c0_18 = arith.constant 0 : index
    %c0_19 = arith.constant 0 : index
    %38 = vector.load %arg2[%c0_18, %c0_19] : memref<288x16xf32, #tpu.memory_space<vmem>>, vector<288x16xf32>
    %cst_20 = arith.constant dense<0.000000e+00> : vector<128x16xf32>
    %39 = tpu.matmul %37, %38, %cst_20 {dimension_numbers = #tpu.dot_dimension_numbers<[1], [0], [0], [1], [0, 0, 1, 1], [], []>} : vector<128x288xf32>, vector<288x16xf32>, vector<128x16xf32> -> vector<128x16xf32>
    %c0_21 = arith.constant 0 : index
    %c0_22 = arith.constant 0 : index
    %40 = vector.load %arg3[%c0_21, %c0_22] : memref<1x16xf32, #tpu.memory_space<vmem>>, vector<1x16xf32>
    %41 = vector.broadcast %40 : vector<1x16xf32> to vector<128x16xf32>
    %42 = arith.addf %39, %41 : vector<128x16xf32>
    %43 = math.absf %42 : vector<128x16xf32>
    %cst_23 = arith.constant 0.000000e+00 : f32
    %44 = vector.broadcast %cst_23 : f32 to vector<128x16xf32>
    %45 = arith.subf %44, %43 : vector<128x16xf32>
    %46 = math.exp %45 : vector<128x16xf32>
    %cst_24 = arith.constant 1.000000e+00 : f32
    %47 = vector.broadcast %cst_24 : f32 to vector<128x16xf32>
    %48 = arith.subf %46, %47 : vector<128x16xf32>
    %cst_25 = arith.constant 0.000000e+00 : f32
    %49 = vector.broadcast %cst_25 : f32 to vector<128x16xf32>
    %50 = arith.cmpf ogt, %42, %49 : vector<128x16xf32>
    %51 = arith.select %50, %42, %48 : vector<128x16xi1>, vector<128x16xf32>
    %cst_26 = arith.constant 0.000000e+00 : f32
    %52 = vector.broadcast %cst_26 : f32 to vector<128x16xf32>
    %53 = arith.subf %52, %42 : vector<128x16xf32>
    %54 = arith.select %50, %48, %53 : vector<128x16xi1>, vector<128x16xf32>
    %55 = tpu.concatenate %51, %54 in 1 : vector<128x16xf32>, vector<128x16xf32> -> vector<128x32xf32>
    %c0_27 = arith.constant 0 : index
    %c0_28 = arith.constant 0 : index
    %56 = vector.load %arg4[%c0_27, %c0_28] : memref<32x32xf32, #tpu.memory_space<vmem>>, vector<32x32xf32>
    %cst_29 = arith.constant dense<0.000000e+00> : vector<128x32xf32>
    %57 = tpu.matmul %55, %56, %cst_29 {dimension_numbers = #tpu.dot_dimension_numbers<[1], [0], [0], [1], [0, 0, 1, 1], [], []>} : vector<128x32xf32>, vector<32x32xf32>, vector<128x32xf32> -> vector<128x32xf32>
    %c0_30 = arith.constant 0 : index
    %c0_31 = arith.constant 0 : index
    %58 = vector.load %arg5[%c0_30, %c0_31] : memref<1x32xf32, #tpu.memory_space<vmem>>, vector<1x32xf32>
    %59 = vector.broadcast %58 : vector<1x32xf32> to vector<128x32xf32>
    %60 = arith.addf %57, %59 : vector<128x32xf32>
    %61 = vector.extract_strided_slice %60 {offsets = [0, 0], sizes = [128, 16], strides = [1, 1]} : vector<128x32xf32> to vector<128x16xf32>
    %62 = vector.extract_strided_slice %60 {offsets = [0, 16], sizes = [128, 16], strides = [1, 1]} : vector<128x32xf32> to vector<128x16xf32>
    %63 = arith.negf %62 : vector<128x16xf32>
    %64 = math.exp %63 : vector<128x16xf32>
    %cst_32 = arith.constant 1.000000e+00 : f32
    %65 = vector.broadcast %cst_32 : f32 to vector<128x16xf32>
    %66 = arith.addf %65, %64 : vector<128x16xf32>
    %67 = arith.divf %65, %66 : vector<128x16xf32>
    %68 = arith.mulf %61, %67 : vector<128x16xf32>
    %69 = arith.addf %68, %1 : vector<128x16xf32>
    %c0_33 = arith.constant 0 : index
    %c0_34 = arith.constant 0 : index
    %70 = vector.load %arg6[%c0_33, %c0_34] : memref<1x16xf32, #tpu.memory_space<vmem>>, vector<1x16xf32>
    %c0_35 = arith.constant 0 : index
    %c0_36 = arith.constant 0 : index
    %71 = vector.load %arg7[%c0_35, %c0_36] : memref<1x16xf32, #tpu.memory_space<vmem>>, vector<1x16xf32>
    %cst_37 = arith.constant dense<0.000000e+00> : vector<128xf32>
    %72 = vector.multi_reduction <add>, %69, %cst_37 [1] : vector<128x16xf32> to vector<128xf32>
    %73 = vector.shape_cast %72 : vector<128xf32> to vector<128x1xf32>
    %cst_38 = arith.constant 1.600000e+01 : f32
    %74 = vector.broadcast %cst_38 : f32 to vector<128x1xf32>
    %75 = arith.divf %73, %74 : vector<128x1xf32>
    %76 = vector.broadcast %75 : vector<128x1xf32> to vector<128x16xf32>
    %77 = arith.subf %69, %76 : vector<128x16xf32>
    %78 = arith.mulf %77, %77 : vector<128x16xf32>
    %cst_39 = arith.constant dense<0.000000e+00> : vector<128xf32>
    %79 = vector.multi_reduction <add>, %78, %cst_39 [1] : vector<128x16xf32> to vector<128xf32>
    %80 = vector.shape_cast %79 : vector<128xf32> to vector<128x1xf32>
    %cst_40 = arith.constant 1.600000e+01 : f32
    %81 = vector.broadcast %cst_40 : f32 to vector<128x1xf32>
    %82 = arith.divf %80, %81 : vector<128x1xf32>
    %83 = vector.broadcast %75 : vector<128x1xf32> to vector<128x16xf32>
    %84 = arith.subf %69, %83 : vector<128x16xf32>
    %cst_41 = arith.constant 9.99999974E-6 : f32
    %85 = vector.broadcast %cst_41 : f32 to vector<128x1xf32>
    %86 = arith.addf %82, %85 : vector<128x1xf32>
    %87 = math.rsqrt %86 : vector<128x1xf32>
    %88 = vector.broadcast %87 : vector<128x1xf32> to vector<128x16xf32>
    %89 = arith.mulf %84, %88 : vector<128x16xf32>
    %90 = vector.broadcast %70 : vector<1x16xf32> to vector<128x16xf32>
    %91 = arith.mulf %89, %90 : vector<128x16xf32>
    %92 = vector.broadcast %71 : vector<1x16xf32> to vector<128x16xf32>
    %93 = arith.addf %91, %92 : vector<128x16xf32>
    %c0_42 = arith.constant 0 : index
    %c0_43 = arith.constant 0 : index
    %94 = vector.load %arg8[%c0_42, %c0_43] : memref<128x16xf32, #tpu.memory_space<vmem>>, vector<128x16xf32>
    %95 = arith.addf %93, %94 : vector<128x16xf32>
    %c0_44 = arith.constant 0 : index
    %c0_45 = arith.constant 0 : index
    %96 = vector.load %arg9[%c0_44, %c0_45] : memref<16x48xf32, #tpu.memory_space<vmem>>, vector<16x48xf32>
    %cst_46 = arith.constant dense<0.000000e+00> : vector<128x48xf32>
    %97 = tpu.matmul %95, %96, %cst_46 {dimension_numbers = #tpu.dot_dimension_numbers<[1], [0], [0], [1], [0, 0, 1, 1], [], []>} : vector<128x16xf32>, vector<16x48xf32>, vector<128x48xf32> -> vector<128x48xf32>
    %98 = vector.extract_strided_slice %97 {offsets = [0, 0], sizes = [128, 16], strides = [1, 1]} : vector<128x48xf32> to vector<128x16xf32>
    %99 = vector.extract_strided_slice %97 {offsets = [0, 16], sizes = [128, 16], strides = [1, 1]} : vector<128x48xf32> to vector<128x16xf32>
    %100 = vector.extract_strided_slice %97 {offsets = [0, 32], sizes = [128, 16], strides = [1, 1]} : vector<128x48xf32> to vector<128x16xf32>
    %cst_47 = arith.constant 5.000000e-01 : f32
    %101 = vector.broadcast %cst_47 : f32 to vector<128x16xf32>
    %102 = arith.mulf %100, %101 : vector<128x16xf32>
    %103 = vector.extract_strided_slice %102 {offsets = [0, 0], sizes = [64, 4], strides = [1, 1]} : vector<128x16xf32> to vector<64x4xf32>
    %104 = vector.extract_strided_slice %102 {offsets = [0, 4], sizes = [64, 4], strides = [1, 1]} : vector<128x16xf32> to vector<64x4xf32>
    %105 = vector.extract_strided_slice %102 {offsets = [0, 8], sizes = [64, 4], strides = [1, 1]} : vector<128x16xf32> to vector<64x4xf32>
    %106 = vector.extract_strided_slice %102 {offsets = [0, 12], sizes = [64, 4], strides = [1, 1]} : vector<128x16xf32> to vector<64x4xf32>
    %107 = vector.extract_strided_slice %102 {offsets = [64, 0], sizes = [64, 4], strides = [1, 1]} : vector<128x16xf32> to vector<64x4xf32>
    %108 = vector.extract_strided_slice %102 {offsets = [64, 4], sizes = [64, 4], strides = [1, 1]} : vector<128x16xf32> to vector<64x4xf32>
    %109 = vector.extract_strided_slice %102 {offsets = [64, 8], sizes = [64, 4], strides = [1, 1]} : vector<128x16xf32> to vector<64x4xf32>
    %110 = vector.extract_strided_slice %102 {offsets = [64, 12], sizes = [64, 4], strides = [1, 1]} : vector<128x16xf32> to vector<64x4xf32>
    %111 = vector.shape_cast %103 : vector<64x4xf32> to vector<1x64x4xf32>
    %112 = vector.shape_cast %104 : vector<64x4xf32> to vector<1x64x4xf32>
    %113 = vector.shape_cast %105 : vector<64x4xf32> to vector<1x64x4xf32>
    %114 = vector.shape_cast %106 : vector<64x4xf32> to vector<1x64x4xf32>
    %115 = vector.shape_cast %107 : vector<64x4xf32> to vector<1x64x4xf32>
    %116 = vector.shape_cast %108 : vector<64x4xf32> to vector<1x64x4xf32>
    %117 = vector.shape_cast %109 : vector<64x4xf32> to vector<1x64x4xf32>
    %118 = vector.shape_cast %110 : vector<64x4xf32> to vector<1x64x4xf32>
    %119 = tpu.concatenate %111, %112, %113, %114, %115, %116, %117, %118 in 0 : vector<1x64x4xf32>, vector<1x64x4xf32>, vector<1x64x4xf32>, vector<1x64x4xf32>, vector<1x64x4xf32>, vector<1x64x4xf32>, vector<1x64x4xf32>, vector<1x64x4xf32> -> vector<8x64x4xf32>
    %120 = vector.extract_strided_slice %98 {offsets = [0, 0], sizes = [64, 4], strides = [1, 1]} : vector<128x16xf32> to vector<64x4xf32>
    %121 = vector.extract_strided_slice %98 {offsets = [0, 4], sizes = [64, 4], strides = [1, 1]} : vector<128x16xf32> to vector<64x4xf32>
    %122 = vector.extract_strided_slice %98 {offsets = [0, 8], sizes = [64, 4], strides = [1, 1]} : vector<128x16xf32> to vector<64x4xf32>
    %123 = vector.extract_strided_slice %98 {offsets = [0, 12], sizes = [64, 4], strides = [1, 1]} : vector<128x16xf32> to vector<64x4xf32>
    %124 = vector.extract_strided_slice %98 {offsets = [64, 0], sizes = [64, 4], strides = [1, 1]} : vector<128x16xf32> to vector<64x4xf32>
    %125 = vector.extract_strided_slice %98 {offsets = [64, 4], sizes = [64, 4], strides = [1, 1]} : vector<128x16xf32> to vector<64x4xf32>
    %126 = vector.extract_strided_slice %98 {offsets = [64, 8], sizes = [64, 4], strides = [1, 1]} : vector<128x16xf32> to vector<64x4xf32>
    %127 = vector.extract_strided_slice %98 {offsets = [64, 12], sizes = [64, 4], strides = [1, 1]} : vector<128x16xf32> to vector<64x4xf32>
    %128 = vector.shape_cast %120 : vector<64x4xf32> to vector<1x64x4xf32>
    %129 = vector.shape_cast %121 : vector<64x4xf32> to vector<1x64x4xf32>
    %130 = vector.shape_cast %122 : vector<64x4xf32> to vector<1x64x4xf32>
    %131 = vector.shape_cast %123 : vector<64x4xf32> to vector<1x64x4xf32>
    %132 = vector.shape_cast %124 : vector<64x4xf32> to vector<1x64x4xf32>
    %133 = vector.shape_cast %125 : vector<64x4xf32> to vector<1x64x4xf32>
    %134 = vector.shape_cast %126 : vector<64x4xf32> to vector<1x64x4xf32>
    %135 = vector.shape_cast %127 : vector<64x4xf32> to vector<1x64x4xf32>
    %136 = tpu.concatenate %128, %129, %130, %131, %132, %133, %134, %135 in 0 : vector<1x64x4xf32>, vector<1x64x4xf32>, vector<1x64x4xf32>, vector<1x64x4xf32>, vector<1x64x4xf32>, vector<1x64x4xf32>, vector<1x64x4xf32>, vector<1x64x4xf32> -> vector<8x64x4xf32>
    %137 = vector.extract_strided_slice %99 {offsets = [0, 0], sizes = [64, 4], strides = [1, 1]} : vector<128x16xf32> to vector<64x4xf32>
    %138 = vector.extract_strided_slice %99 {offsets = [0, 4], sizes = [64, 4], strides = [1, 1]} : vector<128x16xf32> to vector<64x4xf32>
    %139 = vector.extract_strided_slice %99 {offsets = [0, 8], sizes = [64, 4], strides = [1, 1]} : vector<128x16xf32> to vector<64x4xf32>
    %140 = vector.extract_strided_slice %99 {offsets = [0, 12], sizes = [64, 4], strides = [1, 1]} : vector<128x16xf32> to vector<64x4xf32>
    %141 = vector.extract_strided_slice %99 {offsets = [64, 0], sizes = [64, 4], strides = [1, 1]} : vector<128x16xf32> to vector<64x4xf32>
    %142 = vector.extract_strided_slice %99 {offsets = [64, 4], sizes = [64, 4], strides = [1, 1]} : vector<128x16xf32> to vector<64x4xf32>
    %143 = vector.extract_strided_slice %99 {offsets = [64, 8], sizes = [64, 4], strides = [1, 1]} : vector<128x16xf32> to vector<64x4xf32>
    %144 = vector.extract_strided_slice %99 {offsets = [64, 12], sizes = [64, 4], strides = [1, 1]} : vector<128x16xf32> to vector<64x4xf32>
    %145 = vector.shape_cast %137 : vector<64x4xf32> to vector<1x64x4xf32>
    %146 = vector.shape_cast %138 : vector<64x4xf32> to vector<1x64x4xf32>
    %147 = vector.shape_cast %139 : vector<64x4xf32> to vector<1x64x4xf32>
    %148 = vector.shape_cast %140 : vector<64x4xf32> to vector<1x64x4xf32>
    %149 = vector.shape_cast %141 : vector<64x4xf32> to vector<1x64x4xf32>
    %150 = vector.shape_cast %142 : vector<64x4xf32> to vector<1x64x4xf32>
    %151 = vector.shape_cast %143 : vector<64x4xf32> to vector<1x64x4xf32>
    %152 = vector.shape_cast %144 : vector<64x4xf32> to vector<1x64x4xf32>
    %153 = tpu.concatenate %145, %146, %147, %148, %149, %150, %151, %152 in 0 : vector<1x64x4xf32>, vector<1x64x4xf32>, vector<1x64x4xf32>, vector<1x64x4xf32>, vector<1x64x4xf32>, vector<1x64x4xf32>, vector<1x64x4xf32>, vector<1x64x4xf32> -> vector<8x64x4xf32>
    "tpu.trace_start"() <{level = 10 : i32, message = "gsd,gtd->gst"}> : () -> ()
    %cst_48 = arith.constant dense<0.000000e+00> : vector<8x64x64xf32>
    %154 = tpu.matmul %119, %136, %cst_48 {dimension_numbers = #tpu.dot_dimension_numbers<[2], [2], [1], [1], [0, 0, 0, 1, 1, 1], [0], [0]>} : vector<8x64x4xf32>, vector<8x64x4xf32>, vector<8x64x64xf32> -> vector<8x64x64xf32>
    "tpu.trace_stop"() : () -> ()
    %cst_49 = arith.constant dense<0xFF800000> : vector<8x64xf32>
    %155 = vector.multi_reduction <maximumf>, %154, %cst_49 [2] : vector<8x64x64xf32> to vector<8x64xf32>
    %156 = vector.shape_cast %155 : vector<8x64xf32> to vector<8x64x1xf32>
    %157 = vector.broadcast %156 : vector<8x64x1xf32> to vector<8x64x64xf32>
    %158 = arith.subf %154, %157 : vector<8x64x64xf32>
    %159 = math.exp %158 : vector<8x64x64xf32>
    %cst_50 = arith.constant dense<0.000000e+00> : vector<8x64xf32>
    %160 = vector.multi_reduction <add>, %159, %cst_50 [2] : vector<8x64x64xf32> to vector<8x64xf32>
    %161 = vector.shape_cast %160 : vector<8x64xf32> to vector<8x64x1xf32>
    %162 = tpu.reciprocal %161 {approx = true} : vector<8x64x1xf32> -> vector<8x64x1xf32>
    %163 = vector.broadcast %162 : vector<8x64x1xf32> to vector<8x64x64xf32>
    %164 = arith.mulf %159, %163 : vector<8x64x64xf32>
    "tpu.trace_start"() <{level = 10 : i32, message = "gst,gtd->gsd"}> : () -> ()
    %cst_51 = arith.constant dense<0.000000e+00> : vector<8x64x4xf32>
    %165 = tpu.matmul %164, %153, %cst_51 {dimension_numbers = #tpu.dot_dimension_numbers<[2], [1], [1], [2], [0, 0, 0, 1, 1, 2], [0], [0]>} : vector<8x64x64xf32>, vector<8x64x4xf32>, vector<8x64x4xf32> -> vector<8x64x4xf32>
    "tpu.trace_stop"() : () -> ()
    %166 = vector.extract_strided_slice %165 {offsets = [0, 0, 0], sizes = [1, 64, 4], strides = [1, 1, 1]} : vector<8x64x4xf32> to vector<1x64x4xf32>
    %167 = vector.shape_cast %166 : vector<1x64x4xf32> to vector<64x4xf32>
    %168 = vector.extract_strided_slice %165 {offsets = [1, 0, 0], sizes = [1, 64, 4], strides = [1, 1, 1]} : vector<8x64x4xf32> to vector<1x64x4xf32>
    %169 = vector.shape_cast %168 : vector<1x64x4xf32> to vector<64x4xf32>
    %170 = vector.extract_strided_slice %165 {offsets = [2, 0, 0], sizes = [1, 64, 4], strides = [1, 1, 1]} : vector<8x64x4xf32> to vector<1x64x4xf32>
    %171 = vector.shape_cast %170 : vector<1x64x4xf32> to vector<64x4xf32>
    %172 = vector.extract_strided_slice %165 {offsets = [3, 0, 0], sizes = [1, 64, 4], strides = [1, 1, 1]} : vector<8x64x4xf32> to vector<1x64x4xf32>
    %173 = vector.shape_cast %172 : vector<1x64x4xf32> to vector<64x4xf32>
    %174 = tpu.concatenate %167, %169, %171, %173 in 1 : vector<64x4xf32>, vector<64x4xf32>, vector<64x4xf32>, vector<64x4xf32> -> vector<64x16xf32>
    %175 = vector.extract_strided_slice %165 {offsets = [4, 0, 0], sizes = [1, 64, 4], strides = [1, 1, 1]} : vector<8x64x4xf32> to vector<1x64x4xf32>
    %176 = vector.shape_cast %175 : vector<1x64x4xf32> to vector<64x4xf32>
    %177 = vector.extract_strided_slice %165 {offsets = [5, 0, 0], sizes = [1, 64, 4], strides = [1, 1, 1]} : vector<8x64x4xf32> to vector<1x64x4xf32>
    %178 = vector.shape_cast %177 : vector<1x64x4xf32> to vector<64x4xf32>
    %179 = vector.extract_strided_slice %165 {offsets = [6, 0, 0], sizes = [1, 64, 4], strides = [1, 1, 1]} : vector<8x64x4xf32> to vector<1x64x4xf32>
    %180 = vector.shape_cast %179 : vector<1x64x4xf32> to vector<64x4xf32>
    %181 = vector.extract_strided_slice %165 {offsets = [7, 0, 0], sizes = [1, 64, 4], strides = [1, 1, 1]} : vector<8x64x4xf32> to vector<1x64x4xf32>
    %182 = vector.shape_cast %181 : vector<1x64x4xf32> to vector<64x4xf32>
    %183 = tpu.concatenate %176, %178, %180, %182 in 1 : vector<64x4xf32>, vector<64x4xf32>, vector<64x4xf32>, vector<64x4xf32> -> vector<64x16xf32>
    %184 = tpu.concatenate %174, %183 in 0 : vector<64x16xf32>, vector<64x16xf32> -> vector<128x16xf32>
    %c0_52 = arith.constant 0 : index
    %c0_53 = arith.constant 0 : index
    %185 = vector.load %arg10[%c0_52, %c0_53] : memref<16x32xf32, #tpu.memory_space<vmem>>, vector<16x32xf32>
    %cst_54 = arith.constant dense<0.000000e+00> : vector<128x32xf32>
    %186 = tpu.matmul %184, %185, %cst_54 {dimension_numbers = #tpu.dot_dimension_numbers<[1], [0], [0], [1], [0, 0, 1, 1], [], []>} : vector<128x16xf32>, vector<16x32xf32>, vector<128x32xf32> -> vector<128x32xf32>
    %c0_55 = arith.constant 0 : index
    %c0_56 = arith.constant 0 : index
    %187 = vector.load %arg11[%c0_55, %c0_56] : memref<1x32xf32, #tpu.memory_space<vmem>>, vector<1x32xf32>
    %188 = vector.broadcast %187 : vector<1x32xf32> to vector<128x32xf32>
    %189 = arith.addf %186, %188 : vector<128x32xf32>
    %190 = vector.extract_strided_slice %189 {offsets = [0, 0], sizes = [128, 16], strides = [1, 1]} : vector<128x32xf32> to vector<128x16xf32>
    %191 = vector.extract_strided_slice %189 {offsets = [0, 16], sizes = [128, 16], strides = [1, 1]} : vector<128x32xf32> to vector<128x16xf32>
    %192 = arith.negf %191 : vector<128x16xf32>
    %193 = math.exp %192 : vector<128x16xf32>
    %cst_57 = arith.constant 1.000000e+00 : f32
    %194 = vector.broadcast %cst_57 : f32 to vector<128x16xf32>
    %195 = arith.addf %194, %193 : vector<128x16xf32>
    %196 = arith.divf %194, %195 : vector<128x16xf32>
    %197 = arith.mulf %190, %196 : vector<128x16xf32>
    %198 = arith.addf %197, %93 : vector<128x16xf32>
    %c0_58 = arith.constant 0 : index
    %c0_59 = arith.constant 0 : index
    %199 = vector.load %arg12[%c0_58, %c0_59] : memref<1x16xf32, #tpu.memory_space<vmem>>, vector<1x16xf32>
    %c0_60 = arith.constant 0 : index
    %c0_61 = arith.constant 0 : index
    %200 = vector.load %arg13[%c0_60, %c0_61] : memref<1x16xf32, #tpu.memory_space<vmem>>, vector<1x16xf32>
    %cst_62 = arith.constant dense<0.000000e+00> : vector<128xf32>
    %201 = vector.multi_reduction <add>, %198, %cst_62 [1] : vector<128x16xf32> to vector<128xf32>
    %202 = vector.shape_cast %201 : vector<128xf32> to vector<128x1xf32>
    %cst_63 = arith.constant 1.600000e+01 : f32
    %203 = vector.broadcast %cst_63 : f32 to vector<128x1xf32>
    %204 = arith.divf %202, %203 : vector<128x1xf32>
    %205 = vector.broadcast %204 : vector<128x1xf32> to vector<128x16xf32>
    %206 = arith.subf %198, %205 : vector<128x16xf32>
    %207 = arith.mulf %206, %206 : vector<128x16xf32>
    %cst_64 = arith.constant dense<0.000000e+00> : vector<128xf32>
    %208 = vector.multi_reduction <add>, %207, %cst_64 [1] : vector<128x16xf32> to vector<128xf32>
    %209 = vector.shape_cast %208 : vector<128xf32> to vector<128x1xf32>
    %cst_65 = arith.constant 1.600000e+01 : f32
    %210 = vector.broadcast %cst_65 : f32 to vector<128x1xf32>
    %211 = arith.divf %209, %210 : vector<128x1xf32>
    %212 = vector.broadcast %204 : vector<128x1xf32> to vector<128x16xf32>
    %213 = arith.subf %198, %212 : vector<128x16xf32>
    %cst_66 = arith.constant 9.99999974E-6 : f32
    %214 = vector.broadcast %cst_66 : f32 to vector<128x1xf32>
    %215 = arith.addf %211, %214 : vector<128x1xf32>
    %216 = math.rsqrt %215 : vector<128x1xf32>
    %217 = vector.broadcast %216 : vector<128x1xf32> to vector<128x16xf32>
    %218 = arith.mulf %213, %217 : vector<128x16xf32>
    %219 = vector.broadcast %199 : vector<1x16xf32> to vector<128x16xf32>
    %220 = arith.mulf %218, %219 : vector<128x16xf32>
    %221 = vector.broadcast %200 : vector<1x16xf32> to vector<128x16xf32>
    %222 = arith.addf %220, %221 : vector<128x16xf32>
    %223 = vector.shape_cast %222 : vector<128x16xf32> to vector<16x8x16xf32>
    %224 = vector.extract_strided_slice %223 {offsets = [0, 0, 0], sizes = [16, 1, 16], strides = [1, 1, 1]} : vector<16x8x16xf32> to vector<16x1x16xf32>
    %225 = vector.shape_cast %224 : vector<16x1x16xf32> to vector<16x16xf32>
    %226 = vector.extract_strided_slice %223 {offsets = [0, 1, 0], sizes = [16, 1, 16], strides = [1, 1, 1]} : vector<16x8x16xf32> to vector<16x1x16xf32>
    %227 = vector.shape_cast %226 : vector<16x1x16xf32> to vector<16x16xf32>
    %228 = vector.extract_strided_slice %223 {offsets = [0, 2, 0], sizes = [16, 1, 16], strides = [1, 1, 1]} : vector<16x8x16xf32> to vector<16x1x16xf32>
    %229 = vector.shape_cast %228 : vector<16x1x16xf32> to vector<16x16xf32>
    %230 = vector.extract_strided_slice %223 {offsets = [0, 3, 0], sizes = [16, 1, 16], strides = [1, 1, 1]} : vector<16x8x16xf32> to vector<16x1x16xf32>
    %231 = vector.shape_cast %230 : vector<16x1x16xf32> to vector<16x16xf32>
    %232 = vector.extract_strided_slice %223 {offsets = [0, 4, 0], sizes = [16, 1, 16], strides = [1, 1, 1]} : vector<16x8x16xf32> to vector<16x1x16xf32>
    %233 = vector.shape_cast %232 : vector<16x1x16xf32> to vector<16x16xf32>
    %234 = vector.extract_strided_slice %223 {offsets = [0, 5, 0], sizes = [16, 1, 16], strides = [1, 1, 1]} : vector<16x8x16xf32> to vector<16x1x16xf32>
    %235 = vector.shape_cast %234 : vector<16x1x16xf32> to vector<16x16xf32>
    %236 = vector.extract_strided_slice %223 {offsets = [0, 6, 0], sizes = [16, 1, 16], strides = [1, 1, 1]} : vector<16x8x16xf32> to vector<16x1x16xf32>
    %237 = vector.shape_cast %236 : vector<16x1x16xf32> to vector<16x16xf32>
    %238 = vector.extract_strided_slice %223 {offsets = [0, 7, 0], sizes = [16, 1, 16], strides = [1, 1, 1]} : vector<16x8x16xf32> to vector<16x1x16xf32>
    %239 = vector.shape_cast %238 : vector<16x1x16xf32> to vector<16x16xf32>
    %240 = tpu.concatenate %225, %227, %229, %231, %233, %235, %237, %239 in 1 : vector<16x16xf32>, vector<16x16xf32>, vector<16x16xf32>, vector<16x16xf32>, vector<16x16xf32>, vector<16x16xf32>, vector<16x16xf32>, vector<16x16xf32> -> vector<16x128xf32>
    %c0_67 = arith.constant 0 : index
    %c0_68 = arith.constant 0 : index
    %241 = vector.load %arg14[%c0_67, %c0_68] : memref<16x128xf32, #tpu.memory_space<vmem>>, vector<16x128xf32>
    tpu.vector_store %arg14[%c0_67, %c0_68], %240 {strides = array<i32>} : memref<16x128xf32, #tpu.memory_space<vmem>>, vector<16x128xf32>,
    return
  }
  func.func @transform_0(%arg0: i32) -> (i32, i32, i32, i32) {
    %c0_i32 = arith.constant 0 : i32
    %c0_i32_0 = arith.constant 0 : i32
    %c0_i32_1 = arith.constant 0 : i32
    %c0_i32_2 = arith.constant 0 : i32
    %c0_i32_3 = arith.constant 0 : i32
    return %c0_i32, %c0_i32_0, %c0_i32_1, %c0_i32_2 : i32, i32, i32, i32
  }
  func.func @transform_1(%arg0: i32) -> (i32, i32) {
    %c0_i32 = arith.constant 0 : i32
    %c0_i32_0 = arith.constant 0 : i32
    %c0_i32_1 = arith.constant 0 : i32
    return %c0_i32, %c0_i32_0 : i32, i32
  }
  func.func @transform_2(%arg0: i32) -> (i32, i32) {
    %c0_i32 = arith.constant 0 : i32
    %c0_i32_0 = arith.constant 0 : i32
    %c0_i32_1 = arith.constant 0 : i32
    return %c0_i32, %c0_i32_0 : i32, i32
  }
  func.func @transform_3(%arg0: i32) -> (i32, i32) {
    %c0_i32 = arith.constant 0 : i32
    %c0_i32_0 = arith.constant 0 : i32
    %c0_i32_1 = arith.constant 0 : i32
    return %c0_i32, %c0_i32_0 : i32, i32
  }
  func.func @transform_4(%arg0: i32) -> (i32, i32) {
    %c0_i32 = arith.constant 0 : i32
    %c0_i32_0 = arith.constant 0 : i32
    %c0_i32_1 = arith.constant 0 : i32
    return %c0_i32, %c0_i32_0 : i32, i32
  }
  func.func @transform_5(%arg0: i32) -> (i32, i32) {
    %c0_i32 = arith.constant 0 : i32
    %c0_i32_0 = arith.constant 0 : i32
    %c0_i32_1 = arith.constant 0 : i32
    return %c0_i32, %c0_i32_0 : i32, i32
  }
  func.func @transform_6(%arg0: i32) -> (i32, i32) {
    %c0_i32 = arith.constant 0 : i32
    %c0_i32_0 = arith.constant 0 : i32
    %c0_i32_1 = arith.constant 0 : i32
    return %c0_i32, %c0_i32_0 : i32, i32
  }
  func.func @transform_7(%arg0: i32) -> (i32, i32) {
    %c0_i32 = arith.constant 0 : i32
    %c0_i32_0 = arith.constant 0 : i32
    %c0_i32_1 = arith.constant 0 : i32
    return %c0_i32, %c0_i32_0 : i32, i32
  }
  func.func @transform_8(%arg0: i32) -> (i32, i32) {
    %c0_i32 = arith.constant 0 : i32
    %c0_i32_0 = arith.constant 0 : i32
    %c0_i32_1 = arith.constant 0 : i32
    return %c0_i32, %c0_i32_0 : i32, i32
  }
  func.func @transform_9(%arg0: i32) -> (i32, i32) {
    %c0_i32 = arith.constant 0 : i32
    %c0_i32_0 = arith.constant 0 : i32
    %c0_i32_1 = arith.constant 0 : i32
    return %c0_i32, %c0_i32_0 : i32, i32
  }
  func.func @transform_10(%arg0: i32) -> (i32, i32) {
    %c0_i32 = arith.constant 0 : i32
    %c0_i32_0 = arith.constant 0 : i32
    %c0_i32_1 = arith.constant 0 : i32
    return %c0_i32, %c0_i32_0 : i32, i32
  }
  func.func @transform_11(%arg0: i32) -> (i32, i32) {
    %c0_i32 = arith.constant 0 : i32
    %c0_i32_0 = arith.constant 0 : i32
    %c0_i32_1 = arith.constant 0 : i32
    return %c0_i32, %c0_i32_0 : i32, i32
  }
  func.func @transform_12(%arg0: i32) -> (i32, i32) {
    %c0_i32 = arith.constant 0 : i32
    %c0_i32_0 = arith.constant 0 : i32
    %c0_i32_1 = arith.constant 0 : i32
    return %c0_i32, %c0_i32_0 : i32, i32
  }
  func.func @transform_13(%arg0: i32) -> (i32, i32) {
    %c0_i32 = arith.constant 0 : i32
    %c0_i32_0 = arith.constant 0 : i32
    %c0_i32_1 = arith.constant 0 : i32
    return %c0_i32, %c0_i32_0 : i32, i32
  }
}

</mosaic_0001>

<llo_original>
// kernel: tpu_custom_call.1
$region0: #{tpu_custom_call.1}
  #allocation0 [shape = 'u32[]', space=smem, size = 0x4, offset = 0x4, fixed_abs, tag = 'smem constant byte address 0x4 - core index']
  #allocation1 [shape = 'u32[144,128]{1,0:T(1,128)}', space=vmem, size = 0x12000, scoped, tag = 'internal scratch']
  #allocation2 [shape = 'f32[2,10,10,32]{3,2,1,0:T(8,128)}', space=vmem, size = 0x28000, scoped, tag = 'scratch operand']
  %s0 = inlined_call_operand.vmem [shape: f32[2,8,8,16], index: 0, kind: input, shape index: {}]
  %s1 = inlined_call_operand.vmem [shape: f32[288,16], index: 1, kind: input, shape index: {}]
  %s2 = inlined_call_operand.vmem [shape: f32[1,16], index: 2, kind: input, shape index: {}]
  %s3 = inlined_call_operand.vmem [shape: f32[32,32], index: 3, kind: input, shape index: {}]
  %s4 = inlined_call_operand.vmem [shape: f32[1,32], index: 4, kind: input, shape index: {}]
  %s5 = inlined_call_operand.vmem [shape: f32[1,16], index: 5, kind: input, shape index: {}]
  %s6 = inlined_call_operand.vmem [shape: f32[1,16], index: 6, kind: input, shape index: {}]
  %s7 = inlined_call_operand.vmem [shape: f32[128,16], index: 7, kind: input, shape index: {}]
  %s8 = inlined_call_operand.vmem [shape: f32[16,48], index: 8, kind: input, shape index: {}]
  %s9 = inlined_call_operand.vmem [shape: f32[16,32], index: 9, kind: input, shape index: {}]
  %s10 = inlined_call_operand.vmem [shape: f32[1,32], index: 10, kind: input, shape index: {}]
  %s11 = inlined_call_operand.vmem [shape: f32[1,16], index: 11, kind: input, shape index: {}]
  %s12 = inlined_call_operand.vmem [shape: f32[1,16], index: 12, kind: input, shape index: {}]
  %s13 = inlined_call_operand.hbm [shape: f32[16,128], index: 13, kind: output, shape index: {}]
  %s14 = sld [smem:[#allocation0]]
  $region62: #{tpu_custom_call.1} parent=0
    _
  %s16 = ssub.s32 1, %s14
  %s17 = scalar_select 0, %s16, %s14
  $region1: #{tpu_custom_call.1} parent=0
    #allocation3 [shape = 'u8[8192]{0}', space=vmem, size = 0x2000, scoped, tag = 'output window, operand 0, single buffered']
    #allocation4 [shape = 's32[1]{0}', space=sflag, size = 0x4, scoped, tag = 'scoped memory for tpu_custom_call.1']
    %18 = vsyncpa [#allocation4], 0
    // Predicated region
    $region2: #{tpu_custom_call.1} parent=1 // pred_check
      _
    $region3: #{tpu_custom_call.1} parent=1 // pred_check_branch
      %20 = sbr.rel (0) target = $region5
    $region4: #{tpu_custom_call.1} parent=1 // pred_region
      _
    $region5: #{tpu_custom_call.1} parent=1 // pred_fallthru
      _
    // Predicated region
    $region6: #{tpu_custom_call.1} parent=1 // pred_check
      _
    $region7: #{tpu_custom_call.1} parent=1 // pred_check_branch
      %22 = sbr.rel (0) target = $region9
    $region8: #{tpu_custom_call.1} parent=1 // pred_region
      _
    $region9: #{tpu_custom_call.1} parent=1 // pred_fallthru
      _
    // Predicated region
    $region10: #{tpu_custom_call.1} parent=1 // pred_check
      _
    $region11: #{tpu_custom_call.1} parent=1 // pred_check_branch
      %24 = sbr.rel (0) target = $region13
    $region12: #{tpu_custom_call.1} parent=1 // pred_region
      _
    $region13: #{tpu_custom_call.1} parent=1 // pred_fallthru
      _
    // Predicated region
    $region14: #{tpu_custom_call.1} parent=1 // pred_check
      _
    $region15: #{tpu_custom_call.1} parent=1 // pred_check_branch
      %26 = sbr.rel (0) target = $region17
    $region16: #{tpu_custom_call.1} parent=1 // pred_region
      _
    $region17: #{tpu_custom_call.1} parent=1 // pred_fallthru
      _
    // Predicated region
    $region18: #{tpu_custom_call.1} parent=1 // pred_check
      _
    $region19: #{tpu_custom_call.1} parent=1 // pred_check_branch
      %28 = sbr.rel (0) target = $region21
    $region20: #{tpu_custom_call.1} parent=1 // pred_region
      _
    $region21: #{tpu_custom_call.1} parent=1 // pred_fallthru
      _
    // Predicated region
    $region22: #{tpu_custom_call.1} parent=1 // pred_check
      _
    $region23: #{tpu_custom_call.1} parent=1 // pred_check_branch
      %30 = sbr.rel (0) target = $region25
    $region24: #{tpu_custom_call.1} parent=1 // pred_region
      _
    $region25: #{tpu_custom_call.1} parent=1 // pred_fallthru
      _
    // Predicated region
    $region26: #{tpu_custom_call.1} parent=1 // pred_check
      _
    $region27: #{tpu_custom_call.1} parent=1 // pred_check_branch
      %32 = sbr.rel (0) target = $region29
    $region28: #{tpu_custom_call.1} parent=1 // pred_region
      _
    $region29: #{tpu_custom_call.1} parent=1 // pred_fallthru
      _
    // Predicated region
    $region30: #{tpu_custom_call.1} parent=1 // pred_check
      _
    $region31: #{tpu_custom_call.1} parent=1 // pred_check_branch
      %34 = sbr.rel (0) target = $region33
    $region32: #{tpu_custom_call.1} parent=1 // pred_region
      _
    $region33: #{tpu_custom_call.1} parent=1 // pred_fallthru
      _
    // Predicated region
    $region34: #{tpu_custom_call.1} parent=1 // pred_check
      _
    $region35: #{tpu_custom_call.1} parent=1 // pred_check_branch
      %36 = sbr.rel (0) target = $region37
    $region36: #{tpu_custom_call.1} parent=1 // pred_region
      _
    $region37: #{tpu_custom_call.1} parent=1 // pred_fallthru
      _
    // Predicated region
    $region38: #{tpu_custom_call.1} parent=1 // pred_check
      _
    $region39: #{tpu_custom_call.1} parent=1 // pred_check_branch
      %38 = sbr.rel (0) target = $region41
    $region40: #{tpu_custom_call.1} parent=1 // pred_region
      _
    $region41: #{tpu_custom_call.1} parent=1 // pred_fallthru
      _
    // Predicated region
    $region42: #{tpu_custom_call.1} parent=1 // pred_check
      _
    $region43: #{tpu_custom_call.1} parent=1 // pred_check_branch
      %40 = sbr.rel (0) target = $region45
    $region44: #{tpu_custom_call.1} parent=1 // pred_region
      _
    $region45: #{tpu_custom_call.1} parent=1 // pred_fallthru
      _
    // Predicated region
    $region46: #{tpu_custom_call.1} parent=1 // pred_check
      _
    $region47: #{tpu_custom_call.1} parent=1 // pred_check_branch
      %42 = sbr.rel (0) target = $region49
    $region48: #{tpu_custom_call.1} parent=1 // pred_region
      _
    $region49: #{tpu_custom_call.1} parent=1 // pred_fallthru
      _
    // Predicated region
    $region50: #{tpu_custom_call.1} parent=1 // pred_check
      _
    $region51: #{tpu_custom_call.1} parent=1 // pred_check_branch
      %44 = sbr.rel (0) target = $region53
    $region52: #{tpu_custom_call.1} parent=1 // pred_region
      _
    $region53: #{tpu_custom_call.1} parent=1 // pred_fallthru
      _
    %v45 = vld [vmem:[%s0] sm:$0xff]
    %v46 = vld [vmem:[%s0 + $0x8] sm:$0xff]
    %v47 = vld [vmem:[%s0 + $0x10] sm:$0xff]
    %v48 = vld [vmem:[%s0 + $0x18] sm:$0xff]
    %v49 = vld [vmem:[%s0 + $0x20] sm:$0xff]
    %v50 = vld [vmem:[%s0 + $0x28] sm:$0xff]
    %v51 = vld [vmem:[%s0 + $0x30] sm:$0xff]
    %v52 = vld [vmem:[%s0 + $0x38] sm:$0xff]
    %v53 = vld [vmem:[%s0 + $0x40] sm:$0xff]
    %v54 = vld [vmem:[%s0 + $0x48] sm:$0xff]
    %v55 = vld [vmem:[%s0 + $0x50] sm:$0xff]
    %v56 = vld [vmem:[%s0 + $0x58] sm:$0xff]
    %v57 = vld [vmem:[%s0 + $0x60] sm:$0xff]
    %v58 = vld [vmem:[%s0 + $0x68] sm:$0xff]
    %v59 = vld [vmem:[%s0 + $0x70] sm:$0xff]
    %v60 = vld [vmem:[%s0 + $0x78] sm:$0xff]
    %vm61 = vcmask 261120
    %62 = vst.msk [vmem:[#allocation2] sm:$0xff] %vm61, 0.0
    %vm63 = vcmask 254976
    %64 = vst.msk [vmem:[#allocation2 + $0x8] sm:$0x3] %vm63, 0.0
    %65 = vst.msk [vmem:[#allocation2 + $0x10] sm:$0xff] %vm61, 0.0
    %66 = vst.msk [vmem:[#allocation2 + $0x18] sm:$0x3] %vm63, 0.0
    %67 = vst.msk [vmem:[#allocation2 + $0x20] sm:$0xff] %vm61, 0.0
    %68 = vst.msk [vmem:[#allocation2 + $0x28] sm:$0x3] %vm63, 0.0
    %69 = vst.msk [vmem:[#allocation2 + $0x30] sm:$0xff] %vm61, 0.0
    %70 = vst.msk [vmem:[#allocation2 + $0x38] sm:$0x3] %vm63, 0.0
    %71 = vst.msk [vmem:[#allocation2 + $0x40] sm:$0xff] %vm61, 0.0
    %72 = vst.msk [vmem:[#allocation2 + $0x48] sm:$0x3] %vm63, 0.0
    %73 = vst.msk [vmem:[#allocation2 + $0x50] sm:$0xff] %vm61, 0.0
    %74 = vst.msk [vmem:[#allocation2 + $0x58] sm:$0x3] %vm63, 0.0
    %75 = vst.msk [vmem:[#allocation2 + $0x60] sm:$0xff] %vm61, 0.0
    %76 = vst.msk [vmem:[#allocation2 + $0x68] sm:$0x3] %vm63, 0.0
    %77 = vst.msk [vmem:[#allocation2 + $0x70] sm:$0xff] %vm61, 0.0
    %78 = vst.msk [vmem:[#allocation2 + $0x78] sm:$0x3] %vm63, 0.0
    %79 = vst.msk [vmem:[#allocation2 + $0x80] sm:$0xff] %vm61, 0.0
    %80 = vst.msk [vmem:[#allocation2 + $0x88] sm:$0x3] %vm63, 0.0
    %81 = vst.msk [vmem:[#allocation2 + $0x90] sm:$0xff] %vm61, 0.0
    %82 = vst.msk [vmem:[#allocation2 + $0x98] sm:$0x3] %vm63, 0.0
    %83 = vst.msk [vmem:[#allocation2 + $0xa0] sm:$0xff] %vm61, 0.0
    %84 = vst.msk [vmem:[#allocation2 + $0xa8] sm:$0x3] %vm63, 0.0
    %85 = vst.msk [vmem:[#allocation2 + $0xb0] sm:$0xff] %vm61, 0.0
    %86 = vst.msk [vmem:[#allocation2 + $0xb8] sm:$0x3] %vm63, 0.0
    %87 = vst.msk [vmem:[#allocation2 + $0xc0] sm:$0xff] %vm61, 0.0
    %88 = vst.msk [vmem:[#allocation2 + $0xc8] sm:$0x3] %vm63, 0.0
    %89 = vst.msk [vmem:[#allocation2 + $0xd0] sm:$0xff] %vm61, 0.0
    %90 = vst.msk [vmem:[#allocation2 + $0xd8] sm:$0x3] %vm63, 0.0
    %91 = vst.msk [vmem:[#allocation2 + $0xe0] sm:$0xff] %vm61, 0.0
    %92 = vst.msk [vmem:[#allocation2 + $0xe8] sm:$0x3] %vm63, 0.0
    %93 = vst.msk [vmem:[#allocation2 + $0xf0] sm:$0xff] %vm61, 0.0
    %94 = vst.msk [vmem:[#allocation2 + $0xf8] sm:$0x3] %vm63, 0.0
    %95 = vst.msk [vmem:[#allocation2 + $0x100] sm:$0xff] %vm61, 0.0
    %96 = vst.msk [vmem:[#allocation2 + $0x108] sm:$0x3] %vm63, 0.0
    %97 = vst.msk [vmem:[#allocation2 + $0x110] sm:$0xff] %vm61, 0.0
    %98 = vst.msk [vmem:[#allocation2 + $0x118] sm:$0x3] %vm63, 0.0
    %99 = vst.msk [vmem:[#allocation2 + $0x120] sm:$0xff] %vm61, 0.0
    %100 = vst.msk [vmem:[#allocation2 + $0x128] sm:$0x3] %vm63, 0.0
    %101 = vst.msk [vmem:[#allocation2 + $0x130] sm:$0xff] %vm61, 0.0
    %102 = vst.msk [vmem:[#allocation2 + $0x138] sm:$0x3] %vm63, 0.0
    %v103 = vand.u32 2147483647, %v45
    %v104 = vand.u32 2147483647, %v46
    %v105 = vand.u32 2147483647, %v47
    %v106 = vand.u32 2147483647, %v48
    %v107 = vand.u32 2147483647, %v49
    %v108 = vand.u32 2147483647, %v50
    %v109 = vand.u32 2147483647, %v51
    %v110 = vand.u32 2147483647, %v52
    %v111 = vand.u32 2147483647, %v53
    %v112 = vand.u32 2147483647, %v54
    %v113 = vand.u32 2147483647, %v55
    %v114 = vand.u32 2147483647, %v56
    %v115 = vand.u32 2147483647, %v57
    %v116 = vand.u32 2147483647, %v58
    %v117 = vand.u32 2147483647, %v59
    %v118 = vand.u32 2147483647, %v60
    %v119 = vsub.f32 0.0, %v103
    %v120 = vsub.f32 0.0, %v104
    %v121 = vsub.f32 0.0, %v105
    %v122 = vsub.f32 0.0, %v106
    %v123 = vsub.f32 0.0, %v107
    %v124 = vsub.f32 0.0, %v108
    %v125 = vsub.f32 0.0, %v109
    %v126 = vsub.f32 0.0, %v110
    %v127 = vsub.f32 0.0, %v111
    %v128 = vsub.f32 0.0, %v112
    %v129 = vsub.f32 0.0, %v113
    %v130 = vsub.f32 0.0, %v114
    %v131 = vsub.f32 0.0, %v115
    %v132 = vsub.f32 0.0, %v116
    %v133 = vsub.f32 0.0, %v117
    %v134 = vsub.f32 0.0, %v118
    %v135 = vmul.f32 %v119, 1.442695
    %v136 = vpow.pop %v135
    %v137 = vmul.f32 %v120, 1.442695
    %v138 = vpow.pop %v137
    %v139 = vmul.f32 %v121, 1.442695
    %v140 = vpow.pop %v139
    %v141 = vmul.f32 %v122, 1.442695
    %v142 = vpow.pop %v141
    %v143 = vmul.f32 %v123, 1.442695
    %v144 = vpow.pop %v143
    %v145 = vmul.f32 %v124, 1.442695
    %v146 = vpow.pop %v145
    %v147 = vmul.f32 %v125, 1.442695
    %v148 = vpow.pop %v147
    %v149 = vmul.f32 %v126, 1.442695
    %v150 = vpow.pop %v149
    %v151 = vmul.f32 %v127, 1.442695
    %v152 = vpow.pop %v151
    %v153 = vmul.f32 %v128, 1.442695
    %v154 = vpow.pop %v153
    %v155 = vmul.f32 %v129, 1.442695
    %v156 = vpow.pop %v155
    %v157 = vmul.f32 %v130, 1.442695
    %v158 = vpow.pop %v157
    %v159 = vmul.f32 %v131, 1.442695
    %v160 = vpow.pop %v159
    %v161 = vmul.f32 %v132, 1.442695
    %v162 = vpow.pop %v161
    %v163 = vmul.f32 %v133, 1.442695
    %v164 = vpow.pop %v163
    %v165 = vmul.f32 %v134, 1.442695
    %v166 = vpow.pop %v165
    %v167 = vsub.f32 %v136, 1.0
    %v168 = vsub.f32 %v138, 1.0
    %v169 = vsub.f32 %v140, 1.0
    %v170 = vsub.f32 %v142, 1.0
    %v171 = vsub.f32 %v144, 1.0
    %v172 = vsub.f32 %v146, 1.0
    %v173 = vsub.f32 %v148, 1.0
    %v174 = vsub.f32 %v150, 1.0
    %v175 = vsub.f32 %v152, 1.0
    %v176 = vsub.f32 %v154, 1.0
    %v177 = vsub.f32 %v156, 1.0
    %v178 = vsub.f32 %v158, 1.0
    %v179 = vsub.f32 %v160, 1.0
    %v180 = vsub.f32 %v162, 1.0
    %v181 = vsub.f32 %v164, 1.0
    %v182 = vsub.f32 %v166, 1.0
    %vm183 = vcmp.gt.f32.partialorder %v45, 0.0
    %vm184 = vcmp.gt.f32.partialorder %v46, 0.0
    %vm185 = vcmp.gt.f32.partialorder %v47, 0.0
    %vm186 = vcmp.gt.f32.partialorder %v48, 0.0
    %vm187 = vcmp.gt.f32.partialorder %v49, 0.0
    %vm188 = vcmp.gt.f32.partialorder %v50, 0.0
    %vm189 = vcmp.gt.f32.partialorder %v51, 0.0
    %vm190 = vcmp.gt.f32.partialorder %v52, 0.0
    %vm191 = vcmp.gt.f32.partialorder %v53, 0.0
    %vm192 = vcmp.gt.f32.partialorder %v54, 0.0
    %vm193 = vcmp.gt.f32.partialorder %v55, 0.0
    %vm194 = vcmp.gt.f32.partialorder %v56, 0.0
    %vm195 = vcmp.gt.f32.partialorder %v57, 0.0
    %vm196 = vcmp.gt.f32.partialorder %v58, 0.0
    %vm197 = vcmp.gt.f32.partialorder %v59, 0.0
    %vm198 = vcmp.gt.f32.partialorder %v60, 0.0
    %v199 = vsel %vm183, %v45, %v167
    %v200 = vsel %vm184, %v46, %v168
    %v201 = vsel %vm185, %v47, %v169
    %v202 = vsel %vm186, %v48, %v170
    %v203 = vsel %vm187, %v49, %v171
    %v204 = vsel %vm188, %v50, %v172
    %v205 = vsel %vm189, %v51, %v173
    %v206 = vsel %vm190, %v52, %v174
    %v207 = vsel %vm191, %v53, %v175
    %v208 = vsel %vm192, %v54, %v176
    %v209 = vsel %vm193, %v55, %v177
    %v210 = vsel %vm194, %v56, %v178
    %v211 = vsel %vm195, %v57, %v179
    %v212 = vsel %vm196, %v58, %v180
    %v213 = vsel %vm197, %v59, %v181
    %v214 = vsel %vm198, %v60, %v182
    %v215 = vsub.f32 0.0, %v45
    %v216 = vsub.f32 0.0, %v46
    %v217 = vsub.f32 0.0, %v47
    %v218 = vsub.f32 0.0, %v48
    %v219 = vsub.f32 0.0, %v49
    %v220 = vsub.f32 0.0, %v50
    %v221 = vsub.f32 0.0, %v51
    %v222 = vsub.f32 0.0, %v52
    %v223 = vsub.f32 0.0, %v53
    %v224 = vsub.f32 0.0, %v54
    %v225 = vsub.f32 0.0, %v55
    %v226 = vsub.f32 0.0, %v56
    %v227 = vsub.f32 0.0, %v57
    %v228 = vsub.f32 0.0, %v58
    %v229 = vsub.f32 0.0, %v59
    %v230 = vsub.f32 0.0, %v60
    %v231 = vsel %vm183, %v167, %v215
    %v232 = vsel %vm184, %v168, %v216
    %v233 = vsel %vm185, %v169, %v217
    %v234 = vsel %vm186, %v170, %v218
    %v235 = vsel %vm187, %v171, %v219
    %v236 = vsel %vm188, %v172, %v220
    %v237 = vsel %vm189, %v173, %v221
    %v238 = vsel %vm190, %v174, %v222
    %v239 = vsel %vm191, %v175, %v223
    %v240 = vsel %vm192, %v176, %v224
    %v241 = vsel %vm193, %v177, %v225
    %v242 = vsel %vm194, %v178, %v226
    %v243 = vsel %vm195, %v179, %v227
    %v244 = vsel %vm196, %v180, %v228
    %v245 = vsel %vm197, %v181, %v229
    %v246 = vsel %vm198, %v182, %v230
    %263 = vrot.lane.b32.xlu0 %v231, 16
    %v264 = vpop.permute.xlu0 %263
    %265 = vrot.lane.b32.xlu0 %v232, 16
    %v266 = vpop.permute.xlu0 %265
    %267 = vrot.lane.b32.xlu0 %v233, 16
    %v268 = vpop.permute.xlu0 %267
    %269 = vrot.lane.b32.xlu0 %v234, 16
    %v270 = vpop.permute.xlu0 %269
    %271 = vrot.lane.b32.xlu0 %v235, 16
    %v272 = vpop.permute.xlu0 %271
    %273 = vrot.lane.b32.xlu0 %v236, 16
    %v274 = vpop.permute.xlu0 %273
    %275 = vrot.lane.b32.xlu0 %v237, 16
    %v276 = vpop.permute.xlu0 %275
    %277 = vrot.lane.b32.xlu0 %v238, 16
    %v278 = vpop.permute.xlu0 %277
    %279 = vrot.lane.b32.xlu0 %v239, 16
    %v280 = vpop.permute.xlu0 %279
    %281 = vrot.lane.b32.xlu0 %v240, 16
    %v282 = vpop.permute.xlu0 %281
    %283 = vrot.lane.b32.xlu0 %v241, 16
    %v284 = vpop.permute.xlu0 %283
    %285 = vrot.lane.b32.xlu0 %v242, 16
    %v286 = vpop.permute.xlu0 %285
    %287 = vrot.lane.b32.xlu0 %v243, 16
    %v288 = vpop.permute.xlu0 %287
    %289 = vrot.lane.b32.xlu0 %v244, 16
    %v290 = vpop.permute.xlu0 %289
    %291 = vrot.lane.b32.xlu0 %v245, 16
    %v292 = vpop.permute.xlu0 %291
    %293 = vrot.lane.b32.xlu0 %v246, 16
    %v294 = vpop.permute.xlu0 %293
    %vm311 = vcmask 130048
    %v312 = vsel %vm311, %v199, %v264
    %v313 = vsel %vm311, %v200, %v266
    %v314 = vsel %vm311, %v201, %v268
    %v315 = vsel %vm311, %v202, %v270
    %v316 = vsel %vm311, %v203, %v272
    %v317 = vsel %vm311, %v204, %v274
    %v318 = vsel %vm311, %v205, %v276
    %v319 = vsel %vm311, %v206, %v278
    %v320 = vsel %vm311, %v207, %v280
    %v321 = vsel %vm311, %v208, %v282
    %v322 = vsel %vm311, %v209, %v284
    %v323 = vsel %vm311, %v210, %v286
    %v324 = vsel %vm311, %v211, %v288
    %v325 = vsel %vm311, %v212, %v290
    %v326 = vsel %vm311, %v213, %v292
    %v327 = vsel %vm311, %v214, %v294
    %s328 = scalar_lea.vmem [#allocation2], 16
    %329 = vst.msk [vmem:[%s328 + $0x1] sm:$0xff] %vm61, %v312
    %330 = vst.msk [vmem:[%s328 + $0x11] sm:$0xff] %vm61, %v313
    %331 = vst.msk [vmem:[%s328 + $0x21] sm:$0xff] %vm61, %v314
    %332 = vst.msk [vmem:[%s328 + $0x31] sm:$0xff] %vm61, %v315
    %333 = vst.msk [vmem:[%s328 + $0x41] sm:$0xff] %vm61, %v316
    %334 = vst.msk [vmem:[%s328 + $0x51] sm:$0xff] %vm61, %v317
    %335 = vst.msk [vmem:[%s328 + $0x61] sm:$0xff] %vm61, %v318
    %336 = vst.msk [vmem:[%s328 + $0x71] sm:$0xff] %vm61, %v319
    %337 = vst.msk [vmem:[%s328 + $0xa1] sm:$0xff] %vm61, %v320
    %338 = vst.msk [vmem:[%s328 + $0xb1] sm:$0xff] %vm61, %v321
    %339 = vst.msk [vmem:[%s328 + $0xc1] sm:$0xff] %vm61, %v322
    %340 = vst.msk [vmem:[%s328 + $0xd1] sm:$0xff] %vm61, %v323
    %341 = vst.msk [vmem:[%s328 + $0xe1] sm:$0xff] %vm61, %v324
    %342 = vst.msk [vmem:[%s328 + $0xf1] sm:$0xff] %vm61, %v325
    %343 = vst.msk [vmem:[%s328 + $0x101] sm:$0xff] %vm61, %v326
    %344 = vst.msk [vmem:[%s328 + $0x111] sm:$0xff] %vm61, %v327
    %v345 = vld [vmem:[#allocation2] sm:$0xff]
    %v346 = vld [vmem:[#allocation2 + $0x8] sm:$0x3]
    %v347 = vld [vmem:[#allocation2 + $0x10] sm:$0xff]
    %v348 = vld [vmem:[#allocation2 + $0x18] sm:$0x3]
    %v349 = vld [vmem:[#allocation2 + $0x20] sm:$0xff]
    %v350 = vld [vmem:[#allocation2 + $0x28] sm:$0x3]
    %v351 = vld [vmem:[#allocation2 + $0x30] sm:$0xff]
    %v352 = vld [vmem:[#allocation2 + $0x38] sm:$0x3]
    %v353 = vld [vmem:[#allocation2 + $0x40] sm:$0xff]
    %v354 = vld [vmem:[#allocation2 + $0x48] sm:$0x3]
    %v355 = vld [vmem:[#allocation2 + $0x50] sm:$0xff]
    %v356 = vld [vmem:[#allocation2 + $0x58] sm:$0x3]
    %v357 = vld [vmem:[#allocation2 + $0x60] sm:$0xff]
    %v358 = vld [vmem:[#allocation2 + $0x68] sm:$0x3]
    %v359 = vld [vmem:[#allocation2 + $0x70] sm:$0xff]
    %v360 = vld [vmem:[#allocation2 + $0x78] sm:$0x3]
    %v361 = vld [vmem:[#allocation2 + $0x80] sm:$0xff]
    %v362 = vld [vmem:[#allocation2 + $0x88] sm:$0x3]
    %v363 = vld [vmem:[#allocation2 + $0x90] sm:$0xff]
    %v364 = vld [vmem:[#allocation2 + $0x98] sm:$0x3]
    %v365 = vld [vmem:[#allocation2 + $0xa0] sm:$0xff]
    %v366 = vld [vmem:[#allocation2 + $0xa8] sm:$0x3]
    %v367 = vld [vmem:[#allocation2 + $0xb0] sm:$0xff]
    %v368 = vld [vmem:[#allocation2 + $0xb8] sm:$0x3]
    %v369 = vld [vmem:[#allocation2 + $0xc0] sm:$0xff]
    %v370 = vld [vmem:[#allocation2 + $0xc8] sm:$0x3]
    %v371 = vld [vmem:[#allocation2 + $0xd0] sm:$0xff]
    %v372 = vld [vmem:[#allocation2 + $0xd8] sm:$0x3]
    %v373 = vld [vmem:[#allocation2 + $0xe0] sm:$0xff]
    %v374 = vld [vmem:[#allocation2 + $0xe8] sm:$0x3]
    %v375 = vld [vmem:[#allocation2 + $0xf0] sm:$0xff]
    %v376 = vld [vmem:[#allocation2 + $0xf8] sm:$0x3]
    %v377 = vld [vmem:[#allocation2 + $0x100] sm:$0xff]
    %v378 = vld [vmem:[#allocation2 + $0x108] sm:$0x3]
    %v379 = vld [vmem:[#allocation2 + $0x110] sm:$0xff]
    %v380 = vld [vmem:[#allocation2 + $0x118] sm:$0x3]
    %v381 = vld [vmem:[#allocation2 + $0x120] sm:$0xff]
    %v382 = vld [vmem:[#allocation2 + $0x128] sm:$0x3]
    %v383 = vld [vmem:[#allocation2 + $0x130] sm:$0xff]
    %v384 = vld [vmem:[#allocation2 + $0x138] sm:$0x3]
    %vm417 = vcmask 1046528
    %v418 = vrot.slane %v345, 1
    %v419 = vrot.slane %v346, 1
    %v420 = vsel %vm417, %v418, %v419
    %v421 = vrot.slane %v347, 1
    %v422 = vrot.slane %v348, 1
    %v423 = vsel %vm417, %v421, %v422
    %v424 = vrot.slane %v349, 1
    %v425 = vrot.slane %v350, 1
    %v426 = vsel %vm417, %v424, %v425
    %v427 = vrot.slane %v351, 1
    %v428 = vrot.slane %v352, 1
    %v429 = vsel %vm417, %v427, %v428
    %v430 = vrot.slane %v353, 1
    %v431 = vrot.slane %v354, 1
    %v432 = vsel %vm417, %v430, %v431
    %v433 = vrot.slane %v355, 1
    %v434 = vrot.slane %v356, 1
    %v435 = vsel %vm417, %v433, %v434
    %v436 = vrot.slane %v357, 1
    %v437 = vrot.slane %v358, 1
    %v438 = vsel %vm417, %v436, %v437
    %v439 = vrot.slane %v359, 1
    %v440 = vrot.slane %v360, 1
    %v441 = vsel %vm417, %v439, %v440
    %v442 = vrot.slane %v365, 1
    %v443 = vrot.slane %v366, 1
    %v444 = vsel %vm417, %v442, %v443
    %v445 = vrot.slane %v367, 1
    %v446 = vrot.slane %v368, 1
    %v447 = vsel %vm417, %v445, %v446
    %v448 = vrot.slane %v369, 1
    %v449 = vrot.slane %v370, 1
    %v450 = vsel %vm417, %v448, %v449
    %v451 = vrot.slane %v371, 1
    %v452 = vrot.slane %v372, 1
    %v453 = vsel %vm417, %v451, %v452
    %v454 = vrot.slane %v373, 1
    %v455 = vrot.slane %v374, 1
    %v456 = vsel %vm417, %v454, %v455
    %v457 = vrot.slane %v375, 1
    %v458 = vrot.slane %v376, 1
    %v459 = vsel %vm417, %v457, %v458
    %v460 = vrot.slane %v377, 1
    %v461 = vrot.slane %v378, 1
    %v462 = vsel %vm417, %v460, %v461
    %v463 = vrot.slane %v379, 1
    %v464 = vrot.slane %v380, 1
    %v465 = vsel %vm417, %v463, %v464
    %vm466 = vcmask 1045504
    %v467 = vrot.slane %v345, 2
    %v468 = vrot.slane %v346, 2
    %v469 = vsel %vm466, %v467, %v468
    %v470 = vrot.slane %v347, 2
    %v471 = vrot.slane %v348, 2
    %v472 = vsel %vm466, %v470, %v471
    %v473 = vrot.slane %v349, 2
    %v474 = vrot.slane %v350, 2
    %v475 = vsel %vm466, %v473, %v474
    %v476 = vrot.slane %v351, 2
    %v477 = vrot.slane %v352, 2
    %v478 = vsel %vm466, %v476, %v477
    %v479 = vrot.slane %v353, 2
    %v480 = vrot.slane %v354, 2
    %v481 = vsel %vm466, %v479, %v480
    %v482 = vrot.slane %v355, 2
    %v483 = vrot.slane %v356, 2
    %v484 = vsel %vm466, %v482, %v483
    %v485 = vrot.slane %v357, 2
    %v486 = vrot.slane %v358, 2
    %v487 = vsel %vm466, %v485, %v486
    %v488 = vrot.slane %v359, 2
    %v489 = vrot.slane %v360, 2
    %v490 = vsel %vm466, %v488, %v489
    %v491 = vrot.slane %v365, 2
    %v492 = vrot.slane %v366, 2
    %v493 = vsel %vm466, %v491, %v492
    %v494 = vrot.slane %v367, 2
    %v495 = vrot.slane %v368, 2
    %v496 = vsel %vm466, %v494, %v495
    %v497 = vrot.slane %v369, 2
    %v498 = vrot.slane %v370, 2
    %v499 = vsel %vm466, %v497, %v498
    %v500 = vrot.slane %v371, 2
    %v501 = vrot.slane %v372, 2
    %v502 = vsel %vm466, %v500, %v501
    %v503 = vrot.slane %v373, 2
    %v504 = vrot.slane %v374, 2
    %v505 = vsel %vm466, %v503, %v504
    %v506 = vrot.slane %v375, 2
    %v507 = vrot.slane %v376, 2
    %v508 = vsel %vm466, %v506, %v507
    %v509 = vrot.slane %v377, 2
    %v510 = vrot.slane %v378, 2
    %v511 = vsel %vm466, %v509, %v510
    %v512 = vrot.slane %v379, 2
    %v513 = vrot.slane %v380, 2
    %v514 = vsel %vm466, %v512, %v513
    %v519 = vrot.slane %v361, 1
    %v520 = vrot.slane %v362, 1
    %v521 = vsel %vm417, %v519, %v520
    %v522 = vrot.slane %v381, 1
    %v523 = vrot.slane %v382, 1
    %v524 = vsel %vm417, %v522, %v523
    %v541 = vrot.slane %v361, 2
    %v542 = vrot.slane %v362, 2
    %v543 = vsel %vm466, %v541, %v542
    %v544 = vrot.slane %v381, 2
    %v545 = vrot.slane %v382, 2
    %v546 = vsel %vm466, %v544, %v545
    %v551 = vrot.slane %v363, 1
    %v552 = vrot.slane %v364, 1
    %v553 = vsel %vm417, %v551, %v552
    %v554 = vrot.slane %v383, 1
    %v555 = vrot.slane %v384, 1
    %v556 = vsel %vm417, %v554, %v555
    %v557 = vrot.slane %v363, 2
    %v558 = vrot.slane %v364, 2
    %v559 = vsel %vm466, %v557, %v558
    %v560 = vrot.slane %v383, 2
    %v561 = vrot.slane %v384, 2
    %v562 = vsel %vm466, %v560, %v561
    %563 = vrot.lane.b32.xlu0 %v420, 32
    %v564 = vpop.permute.xlu0 %563
    %565 = vrot.lane.b32.xlu0 %v423, 32
    %v566 = vpop.permute.xlu0 %565
    %567 = vrot.lane.b32.xlu0 %v426, 32
    %v568 = vpop.permute.xlu0 %567
    %569 = vrot.lane.b32.xlu0 %v429, 32
    %v570 = vpop.permute.xlu0 %569
    %571 = vrot.lane.b32.xlu0 %v432, 32
    %v572 = vpop.permute.xlu0 %571
    %573 = vrot.lane.b32.xlu0 %v435, 32
    %v574 = vpop.permute.xlu0 %573
    %575 = vrot.lane.b32.xlu0 %v438, 32
    %v576 = vpop.permute.xlu0 %575
    %577 = vrot.lane.b32.xlu0 %v441, 32
    %v578 = vpop.permute.xlu0 %577
    %579 = vrot.lane.b32.xlu0 %v444, 32
    %v580 = vpop.permute.xlu0 %579
    %581 = vrot.lane.b32.xlu0 %v447, 32
    %v582 = vpop.permute.xlu0 %581
    %583 = vrot.lane.b32.xlu0 %v450, 32
    %v584 = vpop.permute.xlu0 %583
    %585 = vrot.lane.b32.xlu0 %v453, 32
    %v586 = vpop.permute.xlu0 %585
    %587 = vrot.lane.b32.xlu0 %v456, 32
    %v588 = vpop.permute.xlu0 %587
    %589 = vrot.lane.b32.xlu0 %v459, 32
    %v590 = vpop.permute.xlu0 %589
    %591 = vrot.lane.b32.xlu0 %v462, 32
    %v592 = vpop.permute.xlu0 %591
    %593 = vrot.lane.b32.xlu0 %v465, 32
    %v594 = vpop.permute.xlu0 %593
    %611 = vrot.lane.b32.xlu0 %v469, 64
    %v612 = vpop.permute.xlu0 %611
    %613 = vrot.lane.b32.xlu0 %v472, 64
    %v614 = vpop.permute.xlu0 %613
    %615 = vrot.lane.b32.xlu0 %v475, 64
    %v616 = vpop.permute.xlu0 %615
    %617 = vrot.lane.b32.xlu0 %v478, 64
    %v618 = vpop.permute.xlu0 %617
    %619 = vrot.lane.b32.xlu0 %v481, 64
    %v620 = vpop.permute.xlu0 %619
    %621 = vrot.lane.b32.xlu0 %v484, 64
    %v622 = vpop.permute.xlu0 %621
    %623 = vrot.lane.b32.xlu0 %v487, 64
    %v624 = vpop.permute.xlu0 %623
    %625 = vrot.lane.b32.xlu0 %v490, 64
    %v626 = vpop.permute.xlu0 %625
    %627 = vrot.lane.b32.xlu0 %v493, 64
    %v628 = vpop.permute.xlu0 %627
    %629 = vrot.lane.b32.xlu0 %v496, 64
    %v630 = vpop.permute.xlu0 %629
    %631 = vrot.lane.b32.xlu0 %v499, 64
    %v632 = vpop.permute.xlu0 %631
    %633 = vrot.lane.b32.xlu0 %v502, 64
    %v634 = vpop.permute.xlu0 %633
    %635 = vrot.lane.b32.xlu0 %v505, 64
    %v636 = vpop.permute.xlu0 %635
    %637 = vrot.lane.b32.xlu0 %v508, 64
    %v638 = vpop.permute.xlu0 %637
    %639 = vrot.lane.b32.xlu0 %v511, 64
    %v640 = vpop.permute.xlu0 %639
    %641 = vrot.lane.b32.xlu0 %v514, 64
    %v642 = vpop.permute.xlu0 %641
    %659 = vrot.lane.b32.xlu0 %v347, 96
    %v660 = vpop.permute.xlu0 %659
    %661 = vrot.lane.b32.xlu0 %v349, 96
    %v662 = vpop.permute.xlu0 %661
    %663 = vrot.lane.b32.xlu0 %v351, 96
    %v664 = vpop.permute.xlu0 %663
    %665 = vrot.lane.b32.xlu0 %v353, 96
    %v666 = vpop.permute.xlu0 %665
    %667 = vrot.lane.b32.xlu0 %v355, 96
    %v668 = vpop.permute.xlu0 %667
    %669 = vrot.lane.b32.xlu0 %v357, 96
    %v670 = vpop.permute.xlu0 %669
    %671 = vrot.lane.b32.xlu0 %v359, 96
    %v672 = vpop.permute.xlu0 %671
    %673 = vrot.lane.b32.xlu0 %v361, 96
    %v674 = vpop.permute.xlu0 %673
    %675 = vrot.lane.b32.xlu0 %v367, 96
    %v676 = vpop.permute.xlu0 %675
    %677 = vrot.lane.b32.xlu0 %v369, 96
    %v678 = vpop.permute.xlu0 %677
    %679 = vrot.lane.b32.xlu0 %v371, 96
    %v680 = vpop.permute.xlu0 %679
    %681 = vrot.lane.b32.xlu0 %v373, 96
    %v682 = vpop.permute.xlu0 %681
    %683 = vrot.lane.b32.xlu0 %v375, 96
    %v684 = vpop.permute.xlu0 %683
    %685 = vrot.lane.b32.xlu0 %v377, 96
    %v686 = vpop.permute.xlu0 %685
    %687 = vrot.lane.b32.xlu0 %v379, 96
    %v688 = vpop.permute.xlu0 %687
    %689 = vrot.lane.b32.xlu0 %v381, 96
    %v690 = vpop.permute.xlu0 %689
    %707 = vrot.lane.b32.xlu0 %v472, 32
    %v708 = vpop.permute.xlu0 %707
    %709 = vrot.lane.b32.xlu0 %v475, 32
    %v710 = vpop.permute.xlu0 %709
    %711 = vrot.lane.b32.xlu0 %v478, 32
    %v712 = vpop.permute.xlu0 %711
    %713 = vrot.lane.b32.xlu0 %v481, 32
    %v714 = vpop.permute.xlu0 %713
    %715 = vrot.lane.b32.xlu0 %v484, 32
    %v716 = vpop.permute.xlu0 %715
    %717 = vrot.lane.b32.xlu0 %v487, 32
    %v718 = vpop.permute.xlu0 %717
    %719 = vrot.lane.b32.xlu0 %v490, 32
    %v720 = vpop.permute.xlu0 %719
    %721 = vrot.lane.b32.xlu0 %v543, 32
    %v722 = vpop.permute.xlu0 %721
    %723 = vrot.lane.b32.xlu0 %v496, 32
    %v724 = vpop.permute.xlu0 %723
    %725 = vrot.lane.b32.xlu0 %v499, 32
    %v726 = vpop.permute.xlu0 %725
    %727 = vrot.lane.b32.xlu0 %v502, 32
    %v728 = vpop.permute.xlu0 %727
    %729 = vrot.lane.b32.xlu0 %v505, 32
    %v730 = vpop.permute.xlu0 %729
    %731 = vrot.lane.b32.xlu0 %v508, 32
    %v732 = vpop.permute.xlu0 %731
    %733 = vrot.lane.b32.xlu0 %v511, 32
    %v734 = vpop.permute.xlu0 %733
    %735 = vrot.lane.b32.xlu0 %v514, 32
    %v736 = vpop.permute.xlu0 %735
    %737 = vrot.lane.b32.xlu0 %v546, 32
    %v738 = vpop.permute.xlu0 %737
    %755 = vrot.lane.b32.xlu0 %v349, 64
    %v756 = vpop.permute.xlu0 %755
    %757 = vrot.lane.b32.xlu0 %v351, 64
    %v758 = vpop.permute.xlu0 %757
    %759 = vrot.lane.b32.xlu0 %v353, 64
    %v760 = vpop.permute.xlu0 %759
    %761 = vrot.lane.b32.xlu0 %v355, 64
    %v762 = vpop.permute.xlu0 %761
    %763 = vrot.lane.b32.xlu0 %v357, 64
    %v764 = vpop.permute.xlu0 %763
    %765 = vrot.lane.b32.xlu0 %v359, 64
    %v766 = vpop.permute.xlu0 %765
    %767 = vrot.lane.b32.xlu0 %v361, 64
    %v768 = vpop.permute.xlu0 %767
    %769 = vrot.lane.b32.xlu0 %v363, 64
    %v770 = vpop.permute.xlu0 %769
    %771 = vrot.lane.b32.xlu0 %v369, 64
    %v772 = vpop.permute.xlu0 %771
    %773 = vrot.lane.b32.xlu0 %v371, 64
    %v774 = vpop.permute.xlu0 %773
    %775 = vrot.lane.b32.xlu0 %v373, 64
    %v776 = vpop.permute.xlu0 %775
    %777 = vrot.lane.b32.xlu0 %v375, 64
    %v778 = vpop.permute.xlu0 %777
    %779 = vrot.lane.b32.xlu0 %v377, 64
    %v780 = vpop.permute.xlu0 %779
    %781 = vrot.lane.b32.xlu0 %v379, 64
    %v782 = vpop.permute.xlu0 %781
    %783 = vrot.lane.b32.xlu0 %v381, 64
    %v784 = vpop.permute.xlu0 %783
    %785 = vrot.lane.b32.xlu0 %v383, 64
    %v786 = vpop.permute.xlu0 %785
    %803 = vrot.lane.b32.xlu0 %v426, 96
    %v804 = vpop.permute.xlu0 %803
    %805 = vrot.lane.b32.xlu0 %v429, 96
    %v806 = vpop.permute.xlu0 %805
    %807 = vrot.lane.b32.xlu0 %v432, 96
    %v808 = vpop.permute.xlu0 %807
    %809 = vrot.lane.b32.xlu0 %v435, 96
    %v810 = vpop.permute.xlu0 %809
    %811 = vrot.lane.b32.xlu0 %v438, 96
    %v812 = vpop.permute.xlu0 %811
    %813 = vrot.lane.b32.xlu0 %v441, 96
    %v814 = vpop.permute.xlu0 %813
    %815 = vrot.lane.b32.xlu0 %v521, 96
    %v816 = vpop.permute.xlu0 %815
    %817 = vrot.lane.b32.xlu0 %v553, 96
    %v818 = vpop.permute.xlu0 %817
    %819 = vrot.lane.b32.xlu0 %v450, 96
    %v820 = vpop.permute.xlu0 %819
    %821 = vrot.lane.b32.xlu0 %v453, 96
    %v822 = vpop.permute.xlu0 %821
    %823 = vrot.lane.b32.xlu0 %v456, 96
    %v824 = vpop.permute.xlu0 %823
    %825 = vrot.lane.b32.xlu0 %v459, 96
    %v826 = vpop.permute.xlu0 %825
    %827 = vrot.lane.b32.xlu0 %v462, 96
    %v828 = vpop.permute.xlu0 %827
    %829 = vrot.lane.b32.xlu0 %v465, 96
    %v830 = vpop.permute.xlu0 %829
    %831 = vrot.lane.b32.xlu0 %v524, 96
    %v832 = vpop.permute.xlu0 %831
    %833 = vrot.lane.b32.xlu0 %v556, 96
    %v834 = vpop.permute.xlu0 %833
    %v851 = vsel %vm61, %v345, %v564
    %v852 = vsel %vm61, %v347, %v566
    %v853 = vsel %vm61, %v349, %v568
    %v854 = vsel %vm61, %v351, %v570
    %v855 = vsel %vm61, %v353, %v572
    %v856 = vsel %vm61, %v355, %v574
    %v857 = vsel %vm61, %v357, %v576
    %v858 = vsel %vm61, %v359, %v578
    %v859 = vsel %vm61, %v365, %v580
    %v860 = vsel %vm61, %v367, %v582
    %v861 = vsel %vm61, %v369, %v584
    %v862 = vsel %vm61, %v371, %v586
    %v863 = vsel %vm61, %v373, %v588
    %v864 = vsel %vm61, %v375, %v590
    %v865 = vsel %vm61, %v377, %v592
    %v866 = vsel %vm61, %v379, %v594
    %vm867 = vcmask 523264
    %v868 = vsel %vm867, %v851, %v612
    %v869 = vsel %vm867, %v852, %v614
    %v870 = vsel %vm867, %v853, %v616
    %v871 = vsel %vm867, %v854, %v618
    %v872 = vsel %vm867, %v855, %v620
    %v873 = vsel %vm867, %v856, %v622
    %v874 = vsel %vm867, %v857, %v624
    %v875 = vsel %vm867, %v858, %v626
    %v876 = vsel %vm867, %v859, %v628
    %v877 = vsel %vm867, %v860, %v630
    %v878 = vsel %vm867, %v861, %v632
    %v879 = vsel %vm867, %v862, %v634
    %v880 = vsel %vm867, %v863, %v636
    %v881 = vsel %vm867, %v864, %v638
    %v882 = vsel %vm867, %v865, %v640
    %v883 = vsel %vm867, %v866, %v642
    %vm884 = vcmask 785408
    %v885 = vsel %vm884, %v868, %v660
    %v886 = vsel %vm884, %v869, %v662
    %v887 = vsel %vm884, %v870, %v664
    %v888 = vsel %vm884, %v871, %v666
    %v889 = vsel %vm884, %v872, %v668
    %v890 = vsel %vm884, %v873, %v670
    %v891 = vsel %vm884, %v874, %v672
    %v892 = vsel %vm884, %v875, %v674
    %v893 = vsel %vm884, %v876, %v676
    %v894 = vsel %vm884, %v877, %v678
    %v895 = vsel %vm884, %v878, %v680
    %v896 = vsel %vm884, %v879, %v682
    %v897 = vsel %vm884, %v880, %v684
    %v898 = vsel %vm884, %v881, %v686
    %v899 = vsel %vm884, %v882, %v688
    %v900 = vsel %vm884, %v883, %v690
    %v901 = vsel %vm61, %v423, %v708
    %v902 = vsel %vm61, %v426, %v710
    %v903 = vsel %vm61, %v429, %v712
    %v904 = vsel %vm61, %v432, %v714
    %v905 = vsel %vm61, %v435, %v716
    %v906 = vsel %vm61, %v438, %v718
    %v907 = vsel %vm61, %v441, %v720
    %v908 = vsel %vm61, %v521, %v722
    %v909 = vsel %vm61, %v447, %v724
    %v910 = vsel %vm61, %v450, %v726
    %v911 = vsel %vm61, %v453, %v728
    %v912 = vsel %vm61, %v456, %v730
    %v913 = vsel %vm61, %v459, %v732
    %v914 = vsel %vm61, %v462, %v734
    %v915 = vsel %vm61, %v465, %v736
    %v916 = vsel %vm61, %v524, %v738
    %v917 = vsel %vm867, %v901, %v756
    %v918 = vsel %vm867, %v902, %v758
    %v919 = vsel %vm867, %v903, %v760
    %v920 = vsel %vm867, %v904, %v762
    %v921 = vsel %vm867, %v905, %v764
    %v922 = vsel %vm867, %v906, %v766
    %v923 = vsel %vm867, %v907, %v768
    %v924 = vsel %vm867, %v908, %v770
    %v925 = vsel %vm867, %v909, %v772
    %v926 = vsel %vm867, %v910, %v774
    %v927 = vsel %vm867, %v911, %v776
    %v928 = vsel %vm867, %v912, %v778
    %v929 = vsel %vm867, %v913, %v780
    %v930 = vsel %vm867, %v914, %v782
    %v931 = vsel %vm867, %v915, %v784
    %v932 = vsel %vm867, %v916, %v786
    %v933 = vsel %vm884, %v917, %v804
    %v934 = vsel %vm884, %v918, %v806
    %v935 = vsel %vm884, %v919, %v808
    %v936 = vsel %vm884, %v920, %v810
    %v937 = vsel %vm884, %v921, %v812
    %v938 = vsel %vm884, %v922, %v814
    %v939 = vsel %vm884, %v923, %v816
    %v940 = vsel %vm884, %v924, %v818
    %v941 = vsel %vm884, %v925, %v820
    %v942 = vsel %vm884, %v926, %v822
    %v943 = vsel %vm884, %v927, %v824
    %v944 = vsel %vm884, %v928, %v826
    %v945 = vsel %vm884, %v929, %v828
    %v946 = vsel %vm884, %v930, %v830
    %v947 = vsel %vm884, %v931, %v832
    %v948 = vsel %vm884, %v932, %v834
    %v949 = vld [vmem:[%s1] sm:$0xff]
    %v950 = vld [vmem:[%s1 + $0x8] sm:$0xff]
    %v951 = vld [vmem:[%s1 + $0x10] sm:$0xff]
    %v952 = vld [vmem:[%s1 + $0x18] sm:$0xff]
    %v953 = vld [vmem:[%s1 + $0x20] sm:$0xff]
    %v954 = vld [vmem:[%s1 + $0x28] sm:$0xff]
    %v955 = vld [vmem:[%s1 + $0x30] sm:$0xff]
    %v956 = vld [vmem:[%s1 + $0x38] sm:$0xff]
    %v957 = vld [vmem:[%s1 + $0x40] sm:$0xff]
    %v958 = vld [vmem:[%s1 + $0x48] sm:$0xff]
    %v959 = vld [vmem:[%s1 + $0x50] sm:$0xff]
    %v960 = vld [vmem:[%s1 + $0x58] sm:$0xff]
    %v961 = vld [vmem:[%s1 + $0x60] sm:$0xff]
    %v962 = vld [vmem:[%s1 + $0x68] sm:$0xff]
    %v963 = vld [vmem:[%s1 + $0x70] sm:$0xff]
    %v964 = vld [vmem:[%s1 + $0x78] sm:$0xff]
    %v965 = vld [vmem:[%s1 + $0x80] sm:$0xff]
    %v966 = vld [vmem:[%s1 + $0x88] sm:$0xff]
    %v967 = vld [vmem:[%s1 + $0x90] sm:$0xff]
    %v968 = vld [vmem:[%s1 + $0x98] sm:$0xff]
    %v969 = vld [vmem:[%s1 + $0xa0] sm:$0xff]
    %v970 = vld [vmem:[%s1 + $0xa8] sm:$0xff]
    %v971 = vld [vmem:[%s1 + $0xb0] sm:$0xff]
    %v972 = vld [vmem:[%s1 + $0xb8] sm:$0xff]
    %v973 = vld [vmem:[%s1 + $0xc0] sm:$0xff]
    %v974 = vld [vmem:[%s1 + $0xc8] sm:$0xff]
    %v975 = vld [vmem:[%s1 + $0xd0] sm:$0xff]
    %v976 = vld [vmem:[%s1 + $0xd8] sm:$0xff]
    %v977 = vld [vmem:[%s1 + $0xe0] sm:$0xff]
    %v978 = vld [vmem:[%s1 + $0xe8] sm:$0xff]
    %v979 = vld [vmem:[%s1 + $0xf0] sm:$0xff]
    %v980 = vld [vmem:[%s1 + $0xf8] sm:$0xff]
    %v981 = vld [vmem:[%s1 + $0x100] sm:$0xff]
    %v982 = vld [vmem:[%s1 + $0x108] sm:$0xff]
    %v983 = vld [vmem:[%s1 + $0x110] sm:$0xff]
    %v984 = vld [vmem:[%s1 + $0x118] sm:$0xff]
    %v985 = vld [vmem:[%s2] sm:$0x1]
    %v987 = vlaneseq
    %v988 = vshrl.u32 %v987, 7
    %v989 = vsub.s32 0, %v988
    %v990 = vrot.slane %v985, %v989
    %v992 = vsel %vm61, %v475, 0
    %v994 = vsel %vm61, %v478, 0
    %v996 = vsel %vm61, %v481, 0
    %v998 = vsel %vm61, %v484, 0
    %v1000 = vsel %vm61, %v487, 0
    %v1002 = vsel %vm61, %v490, 0
    %v1004 = vsel %vm61, %v543, 0
    %v1006 = vsel %vm61, %v559, 0
    %v1008 = vsel %vm61, %v499, 0
    %v1010 = vsel %vm61, %v502, 0
    %v1012 = vsel %vm61, %v505, 0
    %v1014 = vsel %vm61, %v508, 0
    %v1016 = vsel %vm61, %v511, 0
    %v1018 = vsel %vm61, %v514, 0
    %v1020 = vsel %vm61, %v546, 0
    %v1022 = vsel %vm61, %v562, 0
    %1024 = vmatprep.subr.mxu0 0.0
    %1025 = vmatpush1.msra.mxu0 %v949
    %1026 = vmatprep.subr.mxu0 0.0
    %1027 = vmatpush1.msra.mxu0 %v950
    %1028 = vmatprep.subr.mxu0 0.0
    %1029 = vmatpush1.msra.mxu0 %v951
    %1030 = vmatprep.subr.mxu0 0.0
    %1031 = vmatpush1.msra.mxu0 %v952
    %1032 = vmatprep.subr.mxu0 0.0
    %1033 = vmatpush1.msra.mxu0 %v953
    %1034 = vmatprep.subr.mxu0 0.0
    %1035 = vmatpush1.msra.mxu0 %v954
    %1036 = vmatprep.subr.mxu0 0.0
    %1037 = vmatpush1.msra.mxu0 %v955
    %1038 = vmatprep.subr.mxu0 0.0
    %1039 = vmatpush1.msra.mxu0 %v956
    %1040 = vmatprep.subr.mxu0 0.0
    %1041 = vmatpush1.msra.mxu0 %v957
    %1042 = vmatprep.subr.mxu0 0.0
    %1043 = vmatpush1.msra.mxu0 %v958
    %1044 = vmatprep.subr.mxu0 0.0
    %1045 = vmatpush1.msra.mxu0 %v959
    %1046 = vmatprep.subr.mxu0 0.0
    %1047 = vmatpush1.msra.mxu0 %v960
    %1048 = vmatprep.subr.mxu0 0.0
    %1049 = vmatpush1.msra.mxu0 %v961
    %1050 = vmatprep.subr.mxu0 0.0
    %1051 = vmatpush1.msra.mxu0 %v962
    %1052 = vmatprep.subr.mxu0 0.0
    %1053 = vmatpush1.msra.mxu0 %v963
    %1054 = vmatprep.subr.mxu0 0.0
    %1055 = vmatpush1.msra.mxu0 %v964
    %1056 = vmatprep.subr.mxu0 0.0
    %1057 = vmatpush1.msra.mxu0 %v965
    %1058 = vmatprep.subr.mxu0 0.0
    %1059 = vmatpush1.msra.mxu0 %v966
    %1060 = vmatprep.subr.mxu0 0.0
    %1061 = vmatpush1.msra.mxu0 %v967
    %1062 = vmatprep.subr.mxu0 0.0
    %1063 = vmatpush1.msra.mxu0 %v968
    %1064 = vmatprep.subr.mxu0 0.0
    %1065 = vmatpush1.msra.mxu0 %v969
    %1066 = vmatprep.subr.mxu0 0.0
    %1067 = vmatpush1.msra.mxu0 %v970
    %1068 = vmatprep.subr.mxu0 0.0
    %1069 = vmatpush1.msra.mxu0 %v971
    %1070 = vmatprep.subr.mxu0 0.0
    %1071 = vmatpush1.msra.mxu0 %v972
    %1072 = vmatprep.subr.mxu0 0.0
    %1073 = vmatpush1.msra.mxu0 %v973
    %1074 = vmatprep.subr.mxu0 0.0
    %1075 = vmatpush1.msra.mxu0 %v974
    %1076 = vmatprep.subr.mxu0 0.0
    %1077 = vmatpush1.msra.mxu0 %v975
    %1078 = vmatprep.subr.mxu0 0.0
    %1079 = vmatpush1.msra.mxu0 %v976
    %1080 = vmatprep.subr.mxu0 0.0
    %1081 = vmatpush1.msra.mxu0 %v977
    %1082 = vmatprep.subr.mxu0 0.0
    %1083 = vmatpush1.msra.mxu0 %v978
    %1084 = vmatprep.subr.mxu0 0.0
    %1085 = vmatpush1.msra.mxu0 %v979
    %1086 = vmatprep.subr.mxu0 0.0
    %1087 = vmatpush1.msra.mxu0 %v980
    %1088 = vmatprep.mubr.f32.mxu0 %v933
    %1089 = vmatmul.mubr.f32.gmra.mrb[0].mxu0 %v885
    %v1090 = vpop.f32.mrb[0].mxu0
    %v1091 = vadd.f32 %v990, %v1090
    %v1092 = vpop.f32.mrb[0].mxu0
    %1093 = vmatprep.mubr.f32.mxu0 %v934
    %1094 = vmatmul.mubr.f32.gmra.mrb[0].mxu0 %v886
    %v1095 = vpop.f32.mrb[0].mxu0
    %v1096 = vadd.f32 %v990, %v1095
    %v1097 = vpop.f32.mrb[0].mxu0
    %1098 = vmatprep.mubr.f32.mxu0 %v935
    %1099 = vmatmul.mubr.f32.gmra.mrb[0].mxu0 %v887
    %v1100 = vpop.f32.mrb[0].mxu0
    %v1101 = vadd.f32 %v990, %v1100
    %v1102 = vpop.f32.mrb[0].mxu0
    %1103 = vmatprep.mubr.f32.mxu0 %v936
    %1104 = vmatmul.mubr.f32.gmra.mrb[0].mxu0 %v888
    %v1105 = vpop.f32.mrb[0].mxu0
    %v1106 = vadd.f32 %v990, %v1105
    %v1107 = vpop.f32.mrb[0].mxu0
    %1108 = vmatprep.mubr.f32.mxu0 %v937
    %1109 = vmatmul.mubr.f32.gmra.mrb[0].mxu0 %v889
    %v1110 = vpop.f32.mrb[0].mxu0
    %v1111 = vadd.f32 %v990, %v1110
    %v1112 = vpop.f32.mrb[0].mxu0
    %1113 = vmatprep.mubr.f32.mxu0 %v938
    %1114 = vmatmul.mubr.f32.gmra.mrb[0].mxu0 %v890
    %v1115 = vpop.f32.mrb[0].mxu0
    %v1116 = vadd.f32 %v990, %v1115
    %v1117 = vpop.f32.mrb[0].mxu0
    %1118 = vmatprep.mubr.f32.mxu0 %v939
    %1119 = vmatmul.mubr.f32.gmra.mrb[0].mxu0 %v891
    %v1120 = vpop.f32.mrb[0].mxu0
    %v1121 = vadd.f32 %v990, %v1120
    %v1122 = vpop.f32.mrb[0].mxu0
    %1123 = vmatprep.mubr.f32.mxu0 %v940
    %1124 = vmatmul.mubr.f32.gmra.mrb[0].mxu0 %v892
    %v1125 = vpop.f32.mrb[0].mxu0
    %v1126 = vadd.f32 %v990, %v1125
    %v1127 = vpop.f32.mrb[0].mxu0
    %1128 = vmatprep.mubr.f32.mxu0 %v941
    %1129 = vmatmul.mubr.f32.gmra.mrb[0].mxu0 %v893
    %v1130 = vpop.f32.mrb[0].mxu0
    %v1131 = vadd.f32 %v990, %v1130
    %v1132 = vpop.f32.mrb[0].mxu0
    %1133 = vmatprep.mubr.f32.mxu0 %v942
    %1134 = vmatmul.mubr.f32.gmra.mrb[0].mxu0 %v894
    %v1135 = vpop.f32.mrb[0].mxu0
    %v1136 = vadd.f32 %v990, %v1135
    %v1137 = vpop.f32.mrb[0].mxu0
    %1138 = vmatprep.mubr.f32.mxu0 %v943
    %1139 = vmatmul.mubr.f32.gmra.mrb[0].mxu0 %v895
    %v1140 = vpop.f32.mrb[0].mxu0
    %v1141 = vadd.f32 %v990, %v1140
    %v1142 = vpop.f32.mrb[0].mxu0
    %1143 = vmatprep.mubr.f32.mxu0 %v944
    %1144 = vmatmul.mubr.f32.gmra.mrb[0].mxu0 %v896
    %v1145 = vpop.f32.mrb[0].mxu0
    %v1146 = vadd.f32 %v990, %v1145
    %v1147 = vpop.f32.mrb[0].mxu0
    %1148 = vmatprep.mubr.f32.mxu0 %v945
    %1149 = vmatmul.mubr.f32.gmra.mrb[0].mxu0 %v897
    %v1150 = vpop.f32.mrb[0].mxu0
    %v1151 = vadd.f32 %v990, %v1150
    %v1152 = vpop.f32.mrb[0].mxu0
    %1153 = vmatprep.mubr.f32.mxu0 %v946
    %1154 = vmatmul.mubr.f32.gmra.mrb[0].mxu0 %v898
    %v1155 = vpop.f32.mrb[0].mxu0
    %v1156 = vadd.f32 %v990, %v1155
    %v1157 = vpop.f32.mrb[0].mxu0
    %1158 = vmatprep.mubr.f32.mxu0 %v947
    %1159 = vmatmul.mubr.f32.gmra.mrb[0].mxu0 %v899
    %v1160 = vpop.f32.mrb[0].mxu0
    %v1161 = vadd.f32 %v990, %v1160
    %v1162 = vpop.f32.mrb[0].mxu0
    %1163 = vmatprep.mubr.f32.mxu0 %v948
    %1164 = vmatmul.mubr.f32.gmra.mrb[0].mxu0 %v900
    %v1165 = vpop.f32.mrb[0].mxu0
    %v1166 = vadd.f32 %v990, %v1165
    %v1167 = vpop.f32.mrb[0].mxu0
    %1168 = vdwg.mxu0
    %1169 = vmatprep.subr.mxu0 0.0
    %1170 = vmatpush1.msra.mxu0 %v981
    %1171 = vmatprep.subr.mxu0 0.0
    %1172 = vmatpush1.msra.mxu0 %v982
    %1173 = vmatprep.subr.mxu0 0.0
    %1174 = vmatpush1.msra.mxu0 %v983
    %1175 = vmatprep.subr.mxu0 0.0
    %1176 = vmatpush1.msra.mxu0 %v984
    %1177 = vmatprep.subr.mxu0 0.0
    %1178 = vmatpush1.msra.mxu0 0.0
    %1179 = vmatprep.subr.mxu0 0.0
    %1180 = vmatpush1.msra.mxu0 0.0
    %1181 = vmatprep.subr.mxu0 0.0
    %1182 = vmatpush1.msra.mxu0 0.0
    %1183 = vmatprep.subr.mxu0 0.0
    %1184 = vmatpush1.msra.mxu0 0.0
    %1185 = vmatprep.subr.mxu0 0.0
    %1186 = vmatpush1.msra.mxu0 0.0
    %1187 = vmatprep.subr.mxu0 0.0
    %1188 = vmatpush1.msra.mxu0 0.0
    %1189 = vmatprep.subr.mxu0 0.0
    %1190 = vmatpush1.msra.mxu0 0.0
    %1191 = vmatprep.subr.mxu0 0.0
    %1192 = vmatpush1.msra.mxu0 0.0
    %1193 = vmatprep.subr.mxu0 0.0
    %1194 = vmatpush1.msra.mxu0 0.0
    %1195 = vmatprep.subr.mxu0 0.0
    %1196 = vmatpush1.msra.mxu0 0.0
    %1197 = vmatprep.subr.mxu0 0.0
    %1198 = vmatpush1.msra.mxu0 0.0
    %1199 = vmatprep.subr.mxu0 0.0
    %1200 = vmatpush1.msra.mxu0 0.0
    %1201 = vmatprep.subr.mxu0 0.0
    %1202 = vmatpush1.msra.mxu0 0.0
    %1203 = vmatprep.subr.mxu0 0.0
    %1204 = vmatpush1.msra.mxu0 0.0
    %1205 = vmatprep.subr.mxu0 0.0
    %1206 = vmatpush1.msra.mxu0 0.0
    %1207 = vmatprep.subr.mxu0 0.0
    %1208 = vmatpush1.msra.mxu0 0.0
    %1209 = vmatprep.subr.mxu0 0.0
    %1210 = vmatpush1.msra.mxu0 0.0
    %1211 = vmatprep.subr.mxu0 0.0
    %1212 = vmatpush1.msra.mxu0 0.0
    %1213 = vmatprep.subr.mxu0 0.0
    %1214 = vmatpush1.msra.mxu0 0.0
    %1215 = vmatprep.subr.mxu0 0.0
    %1216 = vmatpush1.msra.mxu0 0.0
    %1217 = vmatprep.subr.mxu0 0.0
    %1218 = vmatpush1.msra.mxu0 0.0
    %1219 = vmatprep.subr.mxu0 0.0
    %1220 = vmatpush1.msra.mxu0 0.0
    %1221 = vmatprep.subr.mxu0 0.0
    %1222 = vmatpush1.msra.mxu0 0.0
    %1223 = vmatprep.subr.mxu0 0.0
    %1224 = vmatpush1.msra.mxu0 0.0
    %1225 = vmatprep.subr.mxu0 0.0
    %1226 = vmatpush1.msra.mxu0 0.0
    %1227 = vmatprep.subr.mxu0 0.0
    %1228 = vmatpush1.msra.mxu0 0.0
    %1229 = vmatprep.subr.mxu0 0.0
    %1230 = vmatpush1.msra.mxu0 0.0
    %1231 = vmatprep.subr.mxu0 0.0
    %1232 = vmatpush1.msra.mxu0 0.0
    %1233 = vmatprep.mubr.f32.mxu0 0.0
    %1234 = vmatmul.mubr.f32.gmra.mrb[0].mxu0 %v992
    %v1235 = vpop.f32.mrb[0].mxu0
    %v1236 = vadd.f32 %v1091, %v1235
    %v1237 = vpop.f32.mrb[0].mxu0
    %1238 = vmatprep.mubr.f32.mxu0 0.0
    %1239 = vmatmul.mubr.f32.gmra.mrb[0].mxu0 %v994
    %v1240 = vpop.f32.mrb[0].mxu0
    %v1241 = vadd.f32 %v1096, %v1240
    %v1242 = vpop.f32.mrb[0].mxu0
    %1243 = vmatprep.mubr.f32.mxu0 0.0
    %1244 = vmatmul.mubr.f32.gmra.mrb[0].mxu0 %v996
    %v1245 = vpop.f32.mrb[0].mxu0
    %v1246 = vadd.f32 %v1101, %v1245
    %v1247 = vpop.f32.mrb[0].mxu0
    %1248 = vmatprep.mubr.f32.mxu0 0.0
    %1249 = vmatmul.mubr.f32.gmra.mrb[0].mxu0 %v998
    %v1250 = vpop.f32.mrb[0].mxu0
    %v1251 = vadd.f32 %v1106, %v1250
    %v1252 = vpop.f32.mrb[0].mxu0
    %1253 = vmatprep.mubr.f32.mxu0 0.0
    %1254 = vmatmul.mubr.f32.gmra.mrb[0].mxu0 %v1000
    %v1255 = vpop.f32.mrb[0].mxu0
    %v1256 = vadd.f32 %v1111, %v1255
    %v1257 = vpop.f32.mrb[0].mxu0
    %1258 = vmatprep.mubr.f32.mxu0 0.0
    %1259 = vmatmul.mubr.f32.gmra.mrb[0].mxu0 %v1002
    %v1260 = vpop.f32.mrb[0].mxu0
    %v1261 = vadd.f32 %v1116, %v1260
    %v1262 = vpop.f32.mrb[0].mxu0
    %1263 = vmatprep.mubr.f32.mxu0 0.0
    %1264 = vmatmul.mubr.f32.gmra.mrb[0].mxu0 %v1004
    %v1265 = vpop.f32.mrb[0].mxu0
    %v1266 = vadd.f32 %v1121, %v1265
    %v1267 = vpop.f32.mrb[0].mxu0
    %1268 = vmatprep.mubr.f32.mxu0 0.0
    %1269 = vmatmul.mubr.f32.gmra.mrb[0].mxu0 %v1006
    %v1270 = vpop.f32.mrb[0].mxu0
    %v1271 = vadd.f32 %v1126, %v1270
    %v1272 = vpop.f32.mrb[0].mxu0
    %1273 = vmatprep.mubr.f32.mxu0 0.0
    %1274 = vmatmul.mubr.f32.gmra.mrb[0].mxu0 %v1008
    %v1275 = vpop.f32.mrb[0].mxu0
    %v1276 = vadd.f32 %v1131, %v1275
    %v1277 = vpop.f32.mrb[0].mxu0
    %1278 = vmatprep.mubr.f32.mxu0 0.0
    %1279 = vmatmul.mubr.f32.gmra.mrb[0].mxu0 %v1010
    %v1280 = vpop.f32.mrb[0].mxu0
    %v1281 = vadd.f32 %v1136, %v1280
    %v1282 = vpop.f32.mrb[0].mxu0
    %1283 = vmatprep.mubr.f32.mxu0 0.0
    %1284 = vmatmul.mubr.f32.gmra.mrb[0].mxu0 %v1012
    %v1285 = vpop.f32.mrb[0].mxu0
    %v1286 = vadd.f32 %v1141, %v1285
    %v1287 = vpop.f32.mrb[0].mxu0
    %1288 = vmatprep.mubr.f32.mxu0 0.0
    %1289 = vmatmul.mubr.f32.gmra.mrb[0].mxu0 %v1014
    %v1290 = vpop.f32.mrb[0].mxu0
    %v1291 = vadd.f32 %v1146, %v1290
    %v1292 = vpop.f32.mrb[0].mxu0
    %1293 = vmatprep.mubr.f32.mxu0 0.0
    %1294 = vmatmul.mubr.f32.gmra.mrb[0].mxu0 %v1016
    %v1295 = vpop.f32.mrb[0].mxu0
    %v1296 = vadd.f32 %v1151, %v1295
    %v1297 = vpop.f32.mrb[0].mxu0
    %1298 = vmatprep.mubr.f32.mxu0 0.0
    %1299 = vmatmul.mubr.f32.gmra.mrb[0].mxu0 %v1018
    %v1300 = vpop.f32.mrb[0].mxu0
    %v1301 = vadd.f32 %v1156, %v1300
    %v1302 = vpop.f32.mrb[0].mxu0
    %1303 = vmatprep.mubr.f32.mxu0 0.0
    %1304 = vmatmul.mubr.f32.gmra.mrb[0].mxu0 %v1020
    %v1305 = vpop.f32.mrb[0].mxu0
    %v1306 = vadd.f32 %v1161, %v1305
    %v1307 = vpop.f32.mrb[0].mxu0
    %1308 = vmatprep.mubr.f32.mxu0 0.0
    %1309 = vmatmul.mubr.f32.gmra.mrb[0].mxu0 %v1022
    %v1310 = vpop.f32.mrb[0].mxu0
    %v1311 = vadd.f32 %v1166, %v1310
    %v1312 = vpop.f32.mrb[0].mxu0
    %1313 = vdwg.mxu0
    %v1314 = vand.u32 2147483647, %v1236
    %v1315 = vand.u32 2147483647, %v1241
    %v1316 = vand.u32 2147483647, %v1246
    %v1317 = vand.u32 2147483647, %v1251
    %v1318 = vand.u32 2147483647, %v1256
    %v1319 = vand.u32 2147483647, %v1261
    %v1320 = vand.u32 2147483647, %v1266
    %v1321 = vand.u32 2147483647, %v1271
    %v1322 = vand.u32 2147483647, %v1276
    %v1323 = vand.u32 2147483647, %v1281
    %v1324 = vand.u32 2147483647, %v1286
    %v1325 = vand.u32 2147483647, %v1291
    %v1326 = vand.u32 2147483647, %v1296
    %v1327 = vand.u32 2147483647, %v1301
    %v1328 = vand.u32 2147483647, %v1306
    %v1329 = vand.u32 2147483647, %v1311
    %v1330 = vsub.f32 0.0, %v1314
    %v1331 = vsub.f32 0.0, %v1315
    %v1332 = vsub.f32 0.0, %v1316
    %v1333 = vsub.f32 0.0, %v1317
    %v1334 = vsub.f32 0.0, %v1318
    %v1335 = vsub.f32 0.0, %v1319
    %v1336 = vsub.f32 0.0, %v1320
    %v1337 = vsub.f32 0.0, %v1321
    %v1338 = vsub.f32 0.0, %v1322
    %v1339 = vsub.f32 0.0, %v1323
    %v1340 = vsub.f32 0.0, %v1324
    %v1341 = vsub.f32 0.0, %v1325
    %v1342 = vsub.f32 0.0, %v1326
    %v1343 = vsub.f32 0.0, %v1327
    %v1344 = vsub.f32 0.0, %v1328
    %v1345 = vsub.f32 0.0, %v1329
    %v1346 = vmul.f32 %v1330, 1.442695
    %v1347 = vpow.pop %v1346
    %v1348 = vmul.f32 %v1331, 1.442695
    %v1349 = vpow.pop %v1348
    %v1350 = vmul.f32 %v1332, 1.442695
    %v1351 = vpow.pop %v1350
    %v1352 = vmul.f32 %v1333, 1.442695
    %v1353 = vpow.pop %v1352
    %v1354 = vmul.f32 %v1334, 1.442695
    %v1355 = vpow.pop %v1354
    %v1356 = vmul.f32 %v1335, 1.442695
    %v1357 = vpow.pop %v1356
    %v1358 = vmul.f32 %v1336, 1.442695
    %v1359 = vpow.pop %v1358
    %v1360 = vmul.f32 %v1337, 1.442695
    %v1361 = vpow.pop %v1360
    %v1362 = vmul.f32 %v1338, 1.442695
    %v1363 = vpow.pop %v1362
    %v1364 = vmul.f32 %v1339, 1.442695
    %v1365 = vpow.pop %v1364
    %v1366 = vmul.f32 %v1340, 1.442695
    %v1367 = vpow.pop %v1366
    %v1368 = vmul.f32 %v1341, 1.442695
    %v1369 = vpow.pop %v1368
    %v1370 = vmul.f32 %v1342, 1.442695
    %v1371 = vpow.pop %v1370
    %v1372 = vmul.f32 %v1343, 1.442695
    %v1373 = vpow.pop %v1372
    %v1374 = vmul.f32 %v1344, 1.442695
    %v1375 = vpow.pop %v1374
    %v1376 = vmul.f32 %v1345, 1.442695
    %v1377 = vpow.pop %v1376
    %v1378 = vsub.f32 %v1347, 1.0
    %v1379 = vsub.f32 %v1349, 1.0
    %v1380 = vsub.f32 %v1351, 1.0
    %v1381 = vsub.f32 %v1353, 1.0
    %v1382 = vsub.f32 %v1355, 1.0
    %v1383 = vsub.f32 %v1357, 1.0
    %v1384 = vsub.f32 %v1359, 1.0
    %v1385 = vsub.f32 %v1361, 1.0
    %v1386 = vsub.f32 %v1363, 1.0
    %v1387 = vsub.f32 %v1365, 1.0
    %v1388 = vsub.f32 %v1367, 1.0
    %v1389 = vsub.f32 %v1369, 1.0
    %v1390 = vsub.f32 %v1371, 1.0
    %v1391 = vsub.f32 %v1373, 1.0
    %v1392 = vsub.f32 %v1375, 1.0
    %v1393 = vsub.f32 %v1377, 1.0
    %vm1394 = vcmp.gt.f32.partialorder %v1236, 0.0
    %vm1395 = vcmp.gt.f32.partialorder %v1241, 0.0
    %vm1396 = vcmp.gt.f32.partialorder %v1246, 0.0
    %vm1397 = vcmp.gt.f32.partialorder %v1251, 0.0
    %vm1398 = vcmp.gt.f32.partialorder %v1256, 0.0
    %vm1399 = vcmp.gt.f32.partialorder %v1261, 0.0
    %vm1400 = vcmp.gt.f32.partialorder %v1266, 0.0
    %vm1401 = vcmp.gt.f32.partialorder %v1271, 0.0
    %vm1402 = vcmp.gt.f32.partialorder %v1276, 0.0
    %vm1403 = vcmp.gt.f32.partialorder %v1281, 0.0
    %vm1404 = vcmp.gt.f32.partialorder %v1286, 0.0
    %vm1405 = vcmp.gt.f32.partialorder %v1291, 0.0
    %vm1406 = vcmp.gt.f32.partialorder %v1296, 0.0
    %vm1407 = vcmp.gt.f32.partialorder %v1301, 0.0
    %vm1408 = vcmp.gt.f32.partialorder %v1306, 0.0
    %vm1409 = vcmp.gt.f32.partialorder %v1311, 0.0
    %v1410 = vsel %vm1394, %v1236, %v1378
    %v1411 = vsel %vm1395, %v1241, %v1379
    %v1412 = vsel %vm1396, %v1246, %v1380
    %v1413 = vsel %vm1397, %v1251, %v1381
    %v1414 = vsel %vm1398, %v1256, %v1382
    %v1415 = vsel %vm1399, %v1261, %v1383
    %v1416 = vsel %vm1400, %v1266, %v1384
    %v1417 = vsel %vm1401, %v1271, %v1385
    %v1418 = vsel %vm1402, %v1276, %v1386
    %v1419 = vsel %vm1403, %v1281, %v1387
    %v1420 = vsel %vm1404, %v1286, %v1388
    %v1421 = vsel %vm1405, %v1291, %v1389
    %v1422 = vsel %vm1406, %v1296, %v1390
    %v1423 = vsel %vm1407, %v1301, %v1391
    %v1424 = vsel %vm1408, %v1306, %v1392
    %v1425 = vsel %vm1409, %v1311, %v1393
    %v1426 = vsub.f32 0.0, %v1236
    %v1427 = vsub.f32 0.0, %v1241
    %v1428 = vsub.f32 0.0, %v1246
    %v1429 = vsub.f32 0.0, %v1251
    %v1430 = vsub.f32 0.0, %v1256
    %v1431 = vsub.f32 0.0, %v1261
    %v1432 = vsub.f32 0.0, %v1266
    %v1433 = vsub.f32 0.0, %v1271
    %v1434 = vsub.f32 0.0, %v1276
    %v1435 = vsub.f32 0.0, %v1281
    %v1436 = vsub.f32 0.0, %v1286
    %v1437 = vsub.f32 0.0, %v1291
    %v1438 = vsub.f32 0.0, %v1296
    %v1439 = vsub.f32 0.0, %v1301
    %v1440 = vsub.f32 0.0, %v1306
    %v1441 = vsub.f32 0.0, %v1311
    %v1442 = vsel %vm1394, %v1378, %v1426
    %v1443 = vsel %vm1395, %v1379, %v1427
    %v1444 = vsel %vm1396, %v1380, %v1428
    %v1445 = vsel %vm1397, %v1381, %v1429
    %v1446 = vsel %vm1398, %v1382, %v1430
    %v1447 = vsel %vm1399, %v1383, %v1431
    %v1448 = vsel %vm1400, %v1384, %v1432
    %v1449 = vsel %vm1401, %v1385, %v1433
    %v1450 = vsel %vm1402, %v1386, %v1434
    %v1451 = vsel %vm1403, %v1387, %v1435
    %v1452 = vsel %vm1404, %v1388, %v1436
    %v1453 = vsel %vm1405, %v1389, %v1437
    %v1454 = vsel %vm1406, %v1390, %v1438
    %v1455 = vsel %vm1407, %v1391, %v1439
    %v1456 = vsel %vm1408, %v1392, %v1440
    %v1457 = vsel %vm1409, %v1393, %v1441
    %1474 = vrot.lane.b32.xlu0 %v1442, 16
    %v1475 = vpop.permute.xlu0 %1474
    %1476 = vrot.lane.b32.xlu0 %v1443, 16
    %v1477 = vpop.permute.xlu0 %1476
    %1478 = vrot.lane.b32.xlu0 %v1444, 16
    %v1479 = vpop.permute.xlu0 %1478
    %1480 = vrot.lane.b32.xlu0 %v1445, 16
    %v1481 = vpop.permute.xlu0 %1480
    %1482 = vrot.lane.b32.xlu0 %v1446, 16
    %v1483 = vpop.permute.xlu0 %1482
    %1484 = vrot.lane.b32.xlu0 %v1447, 16
    %v1485 = vpop.permute.xlu0 %1484
    %1486 = vrot.lane.b32.xlu0 %v1448, 16
    %v1487 = vpop.permute.xlu0 %1486
    %1488 = vrot.lane.b32.xlu0 %v1449, 16
    %v1489 = vpop.permute.xlu0 %1488
    %1490 = vrot.lane.b32.xlu0 %v1450, 16
    %v1491 = vpop.permute.xlu0 %1490
    %1492 = vrot.lane.b32.xlu0 %v1451, 16
    %v1493 = vpop.permute.xlu0 %1492
    %1494 = vrot.lane.b32.xlu0 %v1452, 16
    %v1495 = vpop.permute.xlu0 %1494
    %1496 = vrot.lane.b32.xlu0 %v1453, 16
    %v1497 = vpop.permute.xlu0 %1496
    %1498 = vrot.lane.b32.xlu0 %v1454, 16
    %v1499 = vpop.permute.xlu0 %1498
    %1500 = vrot.lane.b32.xlu0 %v1455, 16
    %v1501 = vpop.permute.xlu0 %1500
    %1502 = vrot.lane.b32.xlu0 %v1456, 16
    %v1503 = vpop.permute.xlu0 %1502
    %1504 = vrot.lane.b32.xlu0 %v1457, 16
    %v1505 = vpop.permute.xlu0 %1504
    %v1522 = vsel %vm311, %v1410, %v1475
    %v1523 = vsel %vm311, %v1411, %v1477
    %v1524 = vsel %vm311, %v1412, %v1479
    %v1525 = vsel %vm311, %v1413, %v1481
    %v1526 = vsel %vm311, %v1414, %v1483
    %v1527 = vsel %vm311, %v1415, %v1485
    %v1528 = vsel %vm311, %v1416, %v1487
    %v1529 = vsel %vm311, %v1417, %v1489
    %v1530 = vsel %vm311, %v1418, %v1491
    %v1531 = vsel %vm311, %v1419, %v1493
    %v1532 = vsel %vm311, %v1420, %v1495
    %v1533 = vsel %vm311, %v1421, %v1497
    %v1534 = vsel %vm311, %v1422, %v1499
    %v1535 = vsel %vm311, %v1423, %v1501
    %v1536 = vsel %vm311, %v1424, %v1503
    %v1537 = vsel %vm311, %v1425, %v1505
    %v1538 = vld [vmem:[%s3] sm:$0xff]
    %v1539 = vld [vmem:[%s3 + $0x8] sm:$0xff]
    %v1540 = vld [vmem:[%s3 + $0x10] sm:$0xff]
    %v1541 = vld [vmem:[%s3 + $0x18] sm:$0xff]
    %v1542 = vld [vmem:[%s4] sm:$0x1]
    %v1544 = vlaneseq
    %v1545 = vshrl.u32 %v1544, 7
    %v1546 = vsub.s32 0, %v1545
    %v1547 = vrot.slane %v1542, %v1546
    %v1550 = vsel %vm61, %v1522, 0
    %v1553 = vsel %vm61, %v1523, 0
    %v1556 = vsel %vm61, %v1524, 0
    %v1559 = vsel %vm61, %v1525, 0
    %v1562 = vsel %vm61, %v1526, 0
    %v1565 = vsel %vm61, %v1527, 0
    %v1568 = vsel %vm61, %v1528, 0
    %v1571 = vsel %vm61, %v1529, 0
    %v1574 = vsel %vm61, %v1530, 0
    %v1577 = vsel %vm61, %v1531, 0
    %v1580 = vsel %vm61, %v1532, 0
    %v1583 = vsel %vm61, %v1533, 0
    %v1586 = vsel %vm61, %v1534, 0
    %v1589 = vsel %vm61, %v1535, 0
    %v1592 = vsel %vm61, %v1536, 0
    %v1595 = vsel %vm61, %v1537, 0
    %1597 = vmatprep.subr.mxu0 0.0
    %1598 = vmatpush1.msra.mxu0 %v1538
    %1599 = vmatprep.subr.mxu0 0.0
    %1600 = vmatpush1.msra.mxu0 %v1539
    %1601 = vmatprep.subr.mxu0 0.0
    %1602 = vmatpush1.msra.mxu0 %v1540
    %1603 = vmatprep.subr.mxu0 0.0
    %1604 = vmatpush1.msra.mxu0 %v1541
    %1605 = vmatprep.subr.mxu0 0.0
    %1606 = vmatpush1.msra.mxu0 0.0
    %1607 = vmatprep.subr.mxu0 0.0
    %1608 = vmatpush1.msra.mxu0 0.0
    %1609 = vmatprep.subr.mxu0 0.0
    %1610 = vmatpush1.msra.mxu0 0.0
    %1611 = vmatprep.subr.mxu0 0.0
    %1612 = vmatpush1.msra.mxu0 0.0
    %1613 = vmatprep.subr.mxu0 0.0
    %1614 = vmatpush1.msra.mxu0 0.0
    %1615 = vmatprep.subr.mxu0 0.0
    %1616 = vmatpush1.msra.mxu0 0.0
    %1617 = vmatprep.subr.mxu0 0.0
    %1618 = vmatpush1.msra.mxu0 0.0
    %1619 = vmatprep.subr.mxu0 0.0
    %1620 = vmatpush1.msra.mxu0 0.0
    %1621 = vmatprep.subr.mxu0 0.0
    %1622 = vmatpush1.msra.mxu0 0.0
    %1623 = vmatprep.subr.mxu0 0.0
    %1624 = vmatpush1.msra.mxu0 0.0
    %1625 = vmatprep.subr.mxu0 0.0
    %1626 = vmatpush1.msra.mxu0 0.0
    %1627 = vmatprep.subr.mxu0 0.0
    %1628 = vmatpush1.msra.mxu0 0.0
    %1629 = vmatprep.subr.mxu0 0.0
    %1630 = vmatpush1.msra.mxu0 0.0
    %1631 = vmatprep.subr.mxu0 0.0
    %1632 = vmatpush1.msra.mxu0 0.0
    %1633 = vmatprep.subr.mxu0 0.0
    %1634 = vmatpush1.msra.mxu0 0.0
    %1635 = vmatprep.subr.mxu0 0.0
    %1636 = vmatpush1.msra.mxu0 0.0
    %1637 = vmatprep.subr.mxu0 0.0
    %1638 = vmatpush1.msra.mxu0 0.0
    %1639 = vmatprep.subr.mxu0 0.0
    %1640 = vmatpush1.msra.mxu0 0.0
    %1641 = vmatprep.subr.mxu0 0.0
    %1642 = vmatpush1.msra.mxu0 0.0
    %1643 = vmatprep.subr.mxu0 0.0
    %1644 = vmatpush1.msra.mxu0 0.0
    %1645 = vmatprep.subr.mxu0 0.0
    %1646 = vmatpush1.msra.mxu0 0.0
    %1647 = vmatprep.subr.mxu0 0.0
    %1648 = vmatpush1.msra.mxu0 0.0
    %1649 = vmatprep.subr.mxu0 0.0
    %1650 = vmatpush1.msra.mxu0 0.0
    %1651 = vmatprep.subr.mxu0 0.0
    %1652 = vmatpush1.msra.mxu0 0.0
    %1653 = vmatprep.subr.mxu0 0.0
    %1654 = vmatpush1.msra.mxu0 0.0
    %1655 = vmatprep.subr.mxu0 0.0
    %1656 = vmatpush1.msra.mxu0 0.0
    %1657 = vmatprep.subr.mxu0 0.0
    %1658 = vmatpush1.msra.mxu0 0.0
    %1659 = vmatprep.subr.mxu0 0.0
    %1660 = vmatpush1.msra.mxu0 0.0
    %1661 = vmatprep.mubr.f32.mxu0 0.0
    %1662 = vmatmul.mubr.f32.gmra.mrb[0].mxu0 %v1550
    %v1663 = vpop.f32.mrb[0].mxu0
    %v1664 = vadd.f32 %v1547, %v1663
    %v1665 = vpop.f32.mrb[0].mxu0
    %1666 = vmatprep.mubr.f32.mxu0 0.0
    %1667 = vmatmul.mubr.f32.gmra.mrb[0].mxu0 %v1553
    %v1668 = vpop.f32.mrb[0].mxu0
    %v1669 = vadd.f32 %v1547, %v1668
    %v1670 = vpop.f32.mrb[0].mxu0
    %1671 = vmatprep.mubr.f32.mxu0 0.0
    %1672 = vmatmul.mubr.f32.gmra.mrb[0].mxu0 %v1556
    %v1673 = vpop.f32.mrb[0].mxu0
    %v1674 = vadd.f32 %v1547, %v1673
    %v1675 = vpop.f32.mrb[0].mxu0
    %1676 = vmatprep.mubr.f32.mxu0 0.0
    %1677 = vmatmul.mubr.f32.gmra.mrb[0].mxu0 %v1559
    %v1678 = vpop.f32.mrb[0].mxu0
    %v1679 = vadd.f32 %v1547, %v1678
    %v1680 = vpop.f32.mrb[0].mxu0
    %1681 = vmatprep.mubr.f32.mxu0 0.0
    %1682 = vmatmul.mubr.f32.gmra.mrb[0].mxu0 %v1562
    %v1683 = vpop.f32.mrb[0].mxu0
    %v1684 = vadd.f32 %v1547, %v1683
    %v1685 = vpop.f32.mrb[0].mxu0
    %1686 = vmatprep.mubr.f32.mxu0 0.0
    %1687 = vmatmul.mubr.f32.gmra.mrb[0].mxu0 %v1565
    %v1688 = vpop.f32.mrb[0].mxu0
    %v1689 = vadd.f32 %v1547, %v1688
    %v1690 = vpop.f32.mrb[0].mxu0
    %1691 = vmatprep.mubr.f32.mxu0 0.0
    %1692 = vmatmul.mubr.f32.gmra.mrb[0].mxu0 %v1568
    %v1693 = vpop.f32.mrb[0].mxu0
    %v1694 = vadd.f32 %v1547, %v1693
    %v1695 = vpop.f32.mrb[0].mxu0
    %1696 = vmatprep.mubr.f32.mxu0 0.0
    %1697 = vmatmul.mubr.f32.gmra.mrb[0].mxu0 %v1571
    %v1698 = vpop.f32.mrb[0].mxu0
    %v1699 = vadd.f32 %v1547, %v1698
    %v1700 = vpop.f32.mrb[0].mxu0
    %1701 = vmatprep.mubr.f32.mxu0 0.0
    %1702 = vmatmul.mubr.f32.gmra.mrb[0].mxu0 %v1574
    %v1703 = vpop.f32.mrb[0].mxu0
    %v1704 = vadd.f32 %v1547, %v1703
    %v1705 = vpop.f32.mrb[0].mxu0
    %1706 = vmatprep.mubr.f32.mxu0 0.0
    %1707 = vmatmul.mubr.f32.gmra.mrb[0].mxu0 %v1577
    %v1708 = vpop.f32.mrb[0].mxu0
    %v1709 = vadd.f32 %v1547, %v1708
    %v1710 = vpop.f32.mrb[0].mxu0
    %1711 = vmatprep.mubr.f32.mxu0 0.0
    %1712 = vmatmul.mubr.f32.gmra.mrb[0].mxu0 %v1580
    %v1713 = vpop.f32.mrb[0].mxu0
    %v1714 = vadd.f32 %v1547, %v1713
    %v1715 = vpop.f32.mrb[0].mxu0
    %1716 = vmatprep.mubr.f32.mxu0 0.0
    %1717 = vmatmul.mubr.f32.gmra.mrb[0].mxu0 %v1583
    %v1718 = vpop.f32.mrb[0].mxu0
    %v1719 = vadd.f32 %v1547, %v1718
    %v1720 = vpop.f32.mrb[0].mxu0
    %1721 = vmatprep.mubr.f32.mxu0 0.0
    %1722 = vmatmul.mubr.f32.gmra.mrb[0].mxu0 %v1586
    %v1723 = vpop.f32.mrb[0].mxu0
    %v1724 = vadd.f32 %v1547, %v1723
    %v1725 = vpop.f32.mrb[0].mxu0
    %1726 = vmatprep.mubr.f32.mxu0 0.0
    %1727 = vmatmul.mubr.f32.gmra.mrb[0].mxu0 %v1589
    %v1728 = vpop.f32.mrb[0].mxu0
    %v1729 = vadd.f32 %v1547, %v1728
    %v1730 = vpop.f32.mrb[0].mxu0
    %1731 = vmatprep.mubr.f32.mxu0 0.0
    %1732 = vmatmul.mubr.f32.gmra.mrb[0].mxu0 %v1592
    %v1733 = vpop.f32.mrb[0].mxu0
    %v1734 = vadd.f32 %v1547, %v1733
    %v1735 = vpop.f32.mrb[0].mxu0
    %1736 = vmatprep.mubr.f32.mxu0 0.0
    %1737 = vmatmul.mubr.f32.gmra.mrb[0].mxu0 %v1595
    %v1738 = vpop.f32.mrb[0].mxu0
    %v1739 = vadd.f32 %v1547, %v1738
    %v1740 = vpop.f32.mrb[0].mxu0
    %1741 = vdwg.mxu0
    %v1742 = vxor.u32 %v1664, 2147483648
    %v1743 = vxor.u32 %v1669, 2147483648
    %v1744 = vxor.u32 %v1674, 2147483648
    %v1745 = vxor.u32 %v1679, 2147483648
    %v1746 = vxor.u32 %v1684, 2147483648
    %v1747 = vxor.u32 %v1689, 2147483648
    %v1748 = vxor.u32 %v1694, 2147483648
    %v1749 = vxor.u32 %v1699, 2147483648
    %v1750 = vxor.u32 %v1704, 2147483648
    %v1751 = vxor.u32 %v1709, 2147483648
    %v1752 = vxor.u32 %v1714, 2147483648
    %v1753 = vxor.u32 %v1719, 2147483648
    %v1754 = vxor.u32 %v1724, 2147483648
    %v1755 = vxor.u32 %v1729, 2147483648
    %v1756 = vxor.u32 %v1734, 2147483648
    %v1757 = vxor.u32 %v1739, 2147483648
    %v1758 = vmul.f32 %v1742, 1.442695
    %v1759 = vpow.pop %v1758
    %v1760 = vmul.f32 %v1743, 1.442695
    %v1761 = vpow.pop %v1760
    %v1762 = vmul.f32 %v1744, 1.442695
    %v1763 = vpow.pop %v1762
    %v1764 = vmul.f32 %v1745, 1.442695
    %v1765 = vpow.pop %v1764
    %v1766 = vmul.f32 %v1746, 1.442695
    %v1767 = vpow.pop %v1766
    %v1768 = vmul.f32 %v1747, 1.442695
    %v1769 = vpow.pop %v1768
    %v1770 = vmul.f32 %v1748, 1.442695
    %v1771 = vpow.pop %v1770
    %v1772 = vmul.f32 %v1749, 1.442695
    %v1773 = vpow.pop %v1772
    %v1774 = vmul.f32 %v1750, 1.442695
    %v1775 = vpow.pop %v1774
    %v1776 = vmul.f32 %v1751, 1.442695
    %v1777 = vpow.pop %v1776
    %v1778 = vmul.f32 %v1752, 1.442695
    %v1779 = vpow.pop %v1778
    %v1780 = vmul.f32 %v1753, 1.442695
    %v1781 = vpow.pop %v1780
    %v1782 = vmul.f32 %v1754, 1.442695
    %v1783 = vpow.pop %v1782
    %v1784 = vmul.f32 %v1755, 1.442695
    %v1785 = vpow.pop %v1784
    %v1786 = vmul.f32 %v1756, 1.442695
    %v1787 = vpow.pop %v1786
    %v1788 = vmul.f32 %v1757, 1.442695
    %v1789 = vpow.pop %v1788
    %v1790 = vadd.f32 %v1759, 1.0
    %v1791 = vadd.f32 %v1761, 1.0
    %v1792 = vadd.f32 %v1763, 1.0
    %v1793 = vadd.f32 %v1765, 1.0
    %v1794 = vadd.f32 %v1767, 1.0
    %v1795 = vadd.f32 %v1769, 1.0
    %v1796 = vadd.f32 %v1771, 1.0
    %v1797 = vadd.f32 %v1773, 1.0
    %v1798 = vadd.f32 %v1775, 1.0
    %v1799 = vadd.f32 %v1777, 1.0
    %v1800 = vadd.f32 %v1779, 1.0
    %v1801 = vadd.f32 %v1781, 1.0
    %v1802 = vadd.f32 %v1783, 1.0
    %v1803 = vadd.f32 %v1785, 1.0
    %v1804 = vadd.f32 %v1787, 1.0
    %v1805 = vadd.f32 %v1789, 1.0
    %v1806 = vrcp.pop %v1790
    %v1807 = vmul.f32 1.0, %v1806
    %v1808 = vrcp.pop %v1791
    %v1809 = vmul.f32 1.0, %v1808
    %v1810 = vrcp.pop %v1792
    %v1811 = vmul.f32 1.0, %v1810
    %v1812 = vrcp.pop %v1793
    %v1813 = vmul.f32 1.0, %v1812
    %v1814 = vrcp.pop %v1794
    %v1815 = vmul.f32 1.0, %v1814
    %v1816 = vrcp.pop %v1795
    %v1817 = vmul.f32 1.0, %v1816
    %v1818 = vrcp.pop %v1796
    %v1819 = vmul.f32 1.0, %v1818
    %v1820 = vrcp.pop %v1797
    %v1821 = vmul.f32 1.0, %v1820
    %v1822 = vrcp.pop %v1798
    %v1823 = vmul.f32 1.0, %v1822
    %v1824 = vrcp.pop %v1799
    %v1825 = vmul.f32 1.0, %v1824
    %v1826 = vrcp.pop %v1800
    %v1827 = vmul.f32 1.0, %v1826
    %v1828 = vrcp.pop %v1801
    %v1829 = vmul.f32 1.0, %v1828
    %v1830 = vrcp.pop %v1802
    %v1831 = vmul.f32 1.0, %v1830
    %v1832 = vrcp.pop %v1803
    %v1833 = vmul.f32 1.0, %v1832
    %v1834 = vrcp.pop %v1804
    %v1835 = vmul.f32 1.0, %v1834
    %v1836 = vrcp.pop %v1805
    %v1837 = vmul.f32 1.0, %v1836
    %1854 = vrot.lane.b32.xlu0 %v1807, 112
    %v1855 = vpop.permute.xlu0 %1854
    %1856 = vrot.lane.b32.xlu0 %v1809, 112
    %v1857 = vpop.permute.xlu0 %1856
    %1858 = vrot.lane.b32.xlu0 %v1811, 112
    %v1859 = vpop.permute.xlu0 %1858
    %1860 = vrot.lane.b32.xlu0 %v1813, 112
    %v1861 = vpop.permute.xlu0 %1860
    %1862 = vrot.lane.b32.xlu0 %v1815, 112
    %v1863 = vpop.permute.xlu0 %1862
    %1864 = vrot.lane.b32.xlu0 %v1817, 112
    %v1865 = vpop.permute.xlu0 %1864
    %1866 = vrot.lane.b32.xlu0 %v1819, 112
    %v1867 = vpop.permute.xlu0 %1866
    %1868 = vrot.lane.b32.xlu0 %v1821, 112
    %v1869 = vpop.permute.xlu0 %1868
    %1870 = vrot.lane.b32.xlu0 %v1823, 112
    %v1871 = vpop.permute.xlu0 %1870
    %1872 = vrot.lane.b32.xlu0 %v1825, 112
    %v1873 = vpop.permute.xlu0 %1872
    %1874 = vrot.lane.b32.xlu0 %v1827, 112
    %v1875 = vpop.permute.xlu0 %1874
    %1876 = vrot.lane.b32.xlu0 %v1829, 112
    %v1877 = vpop.permute.xlu0 %1876
    %1878 = vrot.lane.b32.xlu0 %v1831, 112
    %v1879 = vpop.permute.xlu0 %1878
    %1880 = vrot.lane.b32.xlu0 %v1833, 112
    %v1881 = vpop.permute.xlu0 %1880
    %1882 = vrot.lane.b32.xlu0 %v1835, 112
    %v1883 = vpop.permute.xlu0 %1882
    %1884 = vrot.lane.b32.xlu0 %v1837, 112
    %v1885 = vpop.permute.xlu0 %1884
    %v1902 = vmul.f32 %v1664, %v1855
    %v1903 = vmul.f32 %v1669, %v1857
    %v1904 = vmul.f32 %v1674, %v1859
    %v1905 = vmul.f32 %v1679, %v1861
    %v1906 = vmul.f32 %v1684, %v1863
    %v1907 = vmul.f32 %v1689, %v1865
    %v1908 = vmul.f32 %v1694, %v1867
    %v1909 = vmul.f32 %v1699, %v1869
    %v1910 = vmul.f32 %v1704, %v1871
    %v1911 = vmul.f32 %v1709, %v1873
    %v1912 = vmul.f32 %v1714, %v1875
    %v1913 = vmul.f32 %v1719, %v1877
    %v1914 = vmul.f32 %v1724, %v1879
    %v1915 = vmul.f32 %v1729, %v1881
    %v1916 = vmul.f32 %v1734, %v1883
    %v1917 = vmul.f32 %v1739, %v1885
    %v1918 = vadd.f32 %v1902, %v45
    %v1919 = vadd.f32 %v1903, %v46
    %v1920 = vadd.f32 %v1904, %v47
    %v1921 = vadd.f32 %v1905, %v48
    %v1922 = vadd.f32 %v1906, %v49
    %v1923 = vadd.f32 %v1907, %v50
    %v1924 = vadd.f32 %v1908, %v51
    %v1925 = vadd.f32 %v1909, %v52
    %v1926 = vadd.f32 %v1910, %v53
    %v1927 = vadd.f32 %v1911, %v54
    %v1928 = vadd.f32 %v1912, %v55
    %v1929 = vadd.f32 %v1913, %v56
    %v1930 = vadd.f32 %v1914, %v57
    %v1931 = vadd.f32 %v1915, %v58
    %v1932 = vadd.f32 %v1916, %v59
    %v1933 = vadd.f32 %v1917, %v60
    %v1934 = vld [vmem:[%s5] sm:$0x1]
    %v1935 = vld [vmem:[%s6] sm:$0x1]
    %v1936 = vsel %vm311, %v1918, 0.0
    %1937 = vadd.xlane.f32.xlu0 %v1936
    %v1938 = vpop.xlane.xlu0 %1937
    %v1939 = vsel %vm311, %v1919, 0.0
    %1940 = vadd.xlane.f32.xlu0 %v1939
    %v1941 = vpop.xlane.xlu0 %1940
    %v1942 = vsel %vm311, %v1920, 0.0
    %1943 = vadd.xlane.f32.xlu0 %v1942
    %v1944 = vpop.xlane.xlu0 %1943
    %v1945 = vsel %vm311, %v1921, 0.0
    %1946 = vadd.xlane.f32.xlu0 %v1945
    %v1947 = vpop.xlane.xlu0 %1946
    %v1948 = vsel %vm311, %v1922, 0.0
    %1949 = vadd.xlane.f32.xlu0 %v1948
    %v1950 = vpop.xlane.xlu0 %1949
    %v1951 = vsel %vm311, %v1923, 0.0
    %1952 = vadd.xlane.f32.xlu0 %v1951
    %v1953 = vpop.xlane.xlu0 %1952
    %v1954 = vsel %vm311, %v1924, 0.0
    %1955 = vadd.xlane.f32.xlu0 %v1954
    %v1956 = vpop.xlane.xlu0 %1955
    %v1957 = vsel %vm311, %v1925, 0.0
    %1958 = vadd.xlane.f32.xlu0 %v1957
    %v1959 = vpop.xlane.xlu0 %1958
    %v1960 = vsel %vm311, %v1926, 0.0
    %1961 = vadd.xlane.f32.xlu0 %v1960
    %v1962 = vpop.xlane.xlu0 %1961
    %v1963 = vsel %vm311, %v1927, 0.0
    %1964 = vadd.xlane.f32.xlu0 %v1963
    %v1965 = vpop.xlane.xlu0 %1964
    %v1966 = vsel %vm311, %v1928, 0.0
    %1967 = vadd.xlane.f32.xlu0 %v1966
    %v1968 = vpop.xlane.xlu0 %1967
    %v1969 = vsel %vm311, %v1929, 0.0
    %1970 = vadd.xlane.f32.xlu0 %v1969
    %v1971 = vpop.xlane.xlu0 %1970
    %v1972 = vsel %vm311, %v1930, 0.0
    %1973 = vadd.xlane.f32.xlu0 %v1972
    %v1974 = vpop.xlane.xlu0 %1973
    %v1975 = vsel %vm311, %v1931, 0.0
    %1976 = vadd.xlane.f32.xlu0 %v1975
    %v1977 = vpop.xlane.xlu0 %1976
    %v1978 = vsel %vm311, %v1932, 0.0
    %1979 = vadd.xlane.f32.xlu0 %v1978
    %v1980 = vpop.xlane.xlu0 %1979
    %v1981 = vsel %vm311, %v1933, 0.0
    %1982 = vadd.xlane.f32.xlu0 %v1981
    %v1983 = vpop.xlane.xlu0 %1982
    %v1984 = vrcp.pop 16.0
    %v1985 = vmul.f32 %v1938, %v1984
    %v1986 = vmul.f32 %v1941, %v1984
    %v1987 = vmul.f32 %v1944, %v1984
    %v1988 = vmul.f32 %v1947, %v1984
    %v1989 = vmul.f32 %v1950, %v1984
    %v1990 = vmul.f32 %v1953, %v1984
    %v1991 = vmul.f32 %v1956, %v1984
    %v1992 = vmul.f32 %v1959, %v1984
    %v1993 = vmul.f32 %v1962, %v1984
    %v1994 = vmul.f32 %v1965, %v1984
    %v1995 = vmul.f32 %v1968, %v1984
    %v1996 = vmul.f32 %v1971, %v1984
    %v1997 = vmul.f32 %v1974, %v1984
    %v1998 = vmul.f32 %v1977, %v1984
    %v1999 = vmul.f32 %v1980, %v1984
    %v2000 = vmul.f32 %v1983, %v1984
    %v2001 = vsub.f32 %v1918, %v1985
    %v2002 = vsub.f32 %v1919, %v1986
    %v2003 = vsub.f32 %v1920, %v1987
    %v2004 = vsub.f32 %v1921, %v1988
    %v2005 = vsub.f32 %v1922, %v1989
    %v2006 = vsub.f32 %v1923, %v1990
    %v2007 = vsub.f32 %v1924, %v1991
    %v2008 = vsub.f32 %v1925, %v1992
    %v2009 = vsub.f32 %v1926, %v1993
    %v2010 = vsub.f32 %v1927, %v1994
    %v2011 = vsub.f32 %v1928, %v1995
    %v2012 = vsub.f32 %v1929, %v1996
    %v2013 = vsub.f32 %v1930, %v1997
    %v2014 = vsub.f32 %v1931, %v1998
    %v2015 = vsub.f32 %v1932, %v1999
    %v2016 = vsub.f32 %v1933, %v2000
    %v2017 = vmul.f32 %v2001, %v2001
    %v2018 = vmul.f32 %v2002, %v2002
    %v2019 = vmul.f32 %v2003, %v2003
    %v2020 = vmul.f32 %v2004, %v2004
    %v2021 = vmul.f32 %v2005, %v2005
    %v2022 = vmul.f32 %v2006, %v2006
    %v2023 = vmul.f32 %v2007, %v2007
    %v2024 = vmul.f32 %v2008, %v2008
    %v2025 = vmul.f32 %v2009, %v2009
    %v2026 = vmul.f32 %v2010, %v2010
    %v2027 = vmul.f32 %v2011, %v2011
    %v2028 = vmul.f32 %v2012, %v2012
    %v2029 = vmul.f32 %v2013, %v2013
    %v2030 = vmul.f32 %v2014, %v2014
    %v2031 = vmul.f32 %v2015, %v2015
    %v2032 = vmul.f32 %v2016, %v2016
    %v2033 = vsel %vm311, %v2017, 0.0
    %2034 = vadd.xlane.f32.xlu0 %v2033
    %v2035 = vpop.xlane.xlu0 %2034
    %v2036 = vsel %vm311, %v2018, 0.0
    %2037 = vadd.xlane.f32.xlu0 %v2036
    %v2038 = vpop.xlane.xlu0 %2037
    %v2039 = vsel %vm311, %v2019, 0.0
    %2040 = vadd.xlane.f32.xlu0 %v2039
    %v2041 = vpop.xlane.xlu0 %2040
    %v2042 = vsel %vm311, %v2020, 0.0
    %2043 = vadd.xlane.f32.xlu0 %v2042
    %v2044 = vpop.xlane.xlu0 %2043
    %v2045 = vsel %vm311, %v2021, 0.0
    %2046 = vadd.xlane.f32.xlu0 %v2045
    %v2047 = vpop.xlane.xlu0 %2046
    %v2048 = vsel %vm311, %v2022, 0.0
    %2049 = vadd.xlane.f32.xlu0 %v2048
    %v2050 = vpop.xlane.xlu0 %2049
    %v2051 = vsel %vm311, %v2023, 0.0
    %2052 = vadd.xlane.f32.xlu0 %v2051
    %v2053 = vpop.xlane.xlu0 %2052
    %v2054 = vsel %vm311, %v2024, 0.0
    %2055 = vadd.xlane.f32.xlu0 %v2054
    %v2056 = vpop.xlane.xlu0 %2055
    %v2057 = vsel %vm311, %v2025, 0.0
    %2058 = vadd.xlane.f32.xlu0 %v2057
    %v2059 = vpop.xlane.xlu0 %2058
    %v2060 = vsel %vm311, %v2026, 0.0
    %2061 = vadd.xlane.f32.xlu0 %v2060
    %v2062 = vpop.xlane.xlu0 %2061
    %v2063 = vsel %vm311, %v2027, 0.0
    %2064 = vadd.xlane.f32.xlu0 %v2063
    %v2065 = vpop.xlane.xlu0 %2064
    %v2066 = vsel %vm311, %v2028, 0.0
    %2067 = vadd.xlane.f32.xlu0 %v2066
    %v2068 = vpop.xlane.xlu0 %2067
    %v2069 = vsel %vm311, %v2029, 0.0
    %2070 = vadd.xlane.f32.xlu0 %v2069
    %v2071 = vpop.xlane.xlu0 %2070
    %v2072 = vsel %vm311, %v2030, 0.0
    %2073 = vadd.xlane.f32.xlu0 %v2072
    %v2074 = vpop.xlane.xlu0 %2073
    %v2075 = vsel %vm311, %v2031, 0.0
    %2076 = vadd.xlane.f32.xlu0 %v2075
    %v2077 = vpop.xlane.xlu0 %2076
    %v2078 = vsel %vm311, %v2032, 0.0
    %2079 = vadd.xlane.f32.xlu0 %v2078
    %v2080 = vpop.xlane.xlu0 %2079
    %v2081 = vmul.f32 %v2035, %v1984
    %v2082 = vmul.f32 %v2038, %v1984
    %v2083 = vmul.f32 %v2041, %v1984
    %v2084 = vmul.f32 %v2044, %v1984
    %v2085 = vmul.f32 %v2047, %v1984
    %v2086 = vmul.f32 %v2050, %v1984
    %v2087 = vmul.f32 %v2053, %v1984
    %v2088 = vmul.f32 %v2056, %v1984
    %v2089 = vmul.f32 %v2059, %v1984
    %v2090 = vmul.f32 %v2062, %v1984
    %v2091 = vmul.f32 %v2065, %v1984
    %v2092 = vmul.f32 %v2068, %v1984
    %v2093 = vmul.f32 %v2071, %v1984
    %v2094 = vmul.f32 %v2074, %v1984
    %v2095 = vmul.f32 %v2077, %v1984
    %v2096 = vmul.f32 %v2080, %v1984
    %v2097 = vadd.f32 %v2081, 1e-05
    %v2098 = vadd.f32 %v2082, 1e-05
    %v2099 = vadd.f32 %v2083, 1e-05
    %v2100 = vadd.f32 %v2084, 1e-05
    %v2101 = vadd.f32 %v2085, 1e-05
    %v2102 = vadd.f32 %v2086, 1e-05
    %v2103 = vadd.f32 %v2087, 1e-05
    %v2104 = vadd.f32 %v2088, 1e-05
    %v2105 = vadd.f32 %v2089, 1e-05
    %v2106 = vadd.f32 %v2090, 1e-05
    %v2107 = vadd.f32 %v2091, 1e-05
    %v2108 = vadd.f32 %v2092, 1e-05
    %v2109 = vadd.f32 %v2093, 1e-05
    %v2110 = vadd.f32 %v2094, 1e-05
    %v2111 = vadd.f32 %v2095, 1e-05
    %v2112 = vadd.f32 %v2096, 1e-05
    %v2113 = vrsqrt.pop %v2097
    %v2114 = vrsqrt.pop %v2098
    %v2115 = vrsqrt.pop %v2099
    %v2116 = vrsqrt.pop %v2100
    %v2117 = vrsqrt.pop %v2101
    %v2118 = vrsqrt.pop %v2102
    %v2119 = vrsqrt.pop %v2103
    %v2120 = vrsqrt.pop %v2104
    %v2121 = vrsqrt.pop %v2105
    %v2122 = vrsqrt.pop %v2106
    %v2123 = vrsqrt.pop %v2107
    %v2124 = vrsqrt.pop %v2108
    %v2125 = vrsqrt.pop %v2109
    %v2126 = vrsqrt.pop %v2110
    %v2127 = vrsqrt.pop %v2111
    %v2128 = vrsqrt.pop %v2112
    %v2129 = vmul.f32 %v2001, %v2113
    %v2130 = vmul.f32 %v2002, %v2114
    %v2131 = vmul.f32 %v2003, %v2115
    %v2132 = vmul.f32 %v2004, %v2116
    %v2133 = vmul.f32 %v2005, %v2117
    %v2134 = vmul.f32 %v2006, %v2118
    %v2135 = vmul.f32 %v2007, %v2119
    %v2136 = vmul.f32 %v2008, %v2120
    %v2137 = vmul.f32 %v2009, %v2121
    %v2138 = vmul.f32 %v2010, %v2122
    %v2139 = vmul.f32 %v2011, %v2123
    %v2140 = vmul.f32 %v2012, %v2124
    %v2141 = vmul.f32 %v2013, %v2125
    %v2142 = vmul.f32 %v2014, %v2126
    %v2143 = vmul.f32 %v2015, %v2127
    %v2144 = vmul.f32 %v2016, %v2128
    %v2146 = vlaneseq
    %v2147 = vshrl.u32 %v2146, 7
    %v2148 = vsub.s32 0, %v2147
    %v2149 = vrot.slane %v1934, %v2148
    %v2151 = vmul.f32 %v2129, %v2149
    %v2152 = vmul.f32 %v2130, %v2149
    %v2153 = vmul.f32 %v2131, %v2149
    %v2154 = vmul.f32 %v2132, %v2149
    %v2155 = vmul.f32 %v2133, %v2149
    %v2156 = vmul.f32 %v2134, %v2149
    %v2157 = vmul.f32 %v2135, %v2149
    %v2158 = vmul.f32 %v2136, %v2149
    %v2159 = vmul.f32 %v2137, %v2149
    %v2160 = vmul.f32 %v2138, %v2149
    %v2161 = vmul.f32 %v2139, %v2149
    %v2162 = vmul.f32 %v2140, %v2149
    %v2163 = vmul.f32 %v2141, %v2149
    %v2164 = vmul.f32 %v2142, %v2149
    %v2165 = vmul.f32 %v2143, %v2149
    %v2166 = vmul.f32 %v2144, %v2149
    %v2168 = vlaneseq
    %v2169 = vshrl.u32 %v2168, 7
    %v2170 = vsub.s32 0, %v2169
    %v2171 = vrot.slane %v1935, %v2170
    %v2173 = vadd.f32 %v2151, %v2171
    %v2174 = vadd.f32 %v2152, %v2171
    %v2175 = vadd.f32 %v2153, %v2171
    %v2176 = vadd.f32 %v2154, %v2171
    %v2177 = vadd.f32 %v2155, %v2171
    %v2178 = vadd.f32 %v2156, %v2171
    %v2179 = vadd.f32 %v2157, %v2171
    %v2180 = vadd.f32 %v2158, %v2171
    %v2181 = vadd.f32 %v2159, %v2171
    %v2182 = vadd.f32 %v2160, %v2171
    %v2183 = vadd.f32 %v2161, %v2171
    %v2184 = vadd.f32 %v2162, %v2171
    %v2185 = vadd.f32 %v2163, %v2171
    %v2186 = vadd.f32 %v2164, %v2171
    %v2187 = vadd.f32 %v2165, %v2171
    %v2188 = vadd.f32 %v2166, %v2171
    %v2189 = vld [vmem:[%s7] sm:$0xff]
    %v2190 = vld [vmem:[%s7 + $0x8] sm:$0xff]
    %v2191 = vld [vmem:[%s7 + $0x10] sm:$0xff]
    %v2192 = vld [vmem:[%s7 + $0x18] sm:$0xff]
    %v2193 = vld [vmem:[%s7 + $0x20] sm:$0xff]
    %v2194 = vld [vmem:[%s7 + $0x28] sm:$0xff]
    %v2195 = vld [vmem:[%s7 + $0x30] sm:$0xff]
    %v2196 = vld [vmem:[%s7 + $0x38] sm:$0xff]
    %v2197 = vld [vmem:[%s7 + $0x40] sm:$0xff]
    %v2198 = vld [vmem:[%s7 + $0x48] sm:$0xff]
    %v2199 = vld [vmem:[%s7 + $0x50] sm:$0xff]
    %v2200 = vld [vmem:[%s7 + $0x58] sm:$0xff]
    %v2201 = vld [vmem:[%s7 + $0x60] sm:$0xff]
    %v2202 = vld [vmem:[%s7 + $0x68] sm:$0xff]
    %v2203 = vld [vmem:[%s7 + $0x70] sm:$0xff]
    %v2204 = vld [vmem:[%s7 + $0x78] sm:$0xff]
    %v2205 = vadd.f32 %v2173, %v2189
    %v2206 = vadd.f32 %v2174, %v2190
    %v2207 = vadd.f32 %v2175, %v2191
    %v2208 = vadd.f32 %v2176, %v2192
    %v2209 = vadd.f32 %v2177, %v2193
    %v2210 = vadd.f32 %v2178, %v2194
    %v2211 = vadd.f32 %v2179, %v2195
    %v2212 = vadd.f32 %v2180, %v2196
    %v2213 = vadd.f32 %v2181, %v2197
    %v2214 = vadd.f32 %v2182, %v2198
    %v2215 = vadd.f32 %v2183, %v2199
    %v2216 = vadd.f32 %v2184, %v2200
    %v2217 = vadd.f32 %v2185, %v2201
    %v2218 = vadd.f32 %v2186, %v2202
    %v2219 = vadd.f32 %v2187, %v2203
    %v2220 = vadd.f32 %v2188, %v2204
    %v2221 = vld [vmem:[%s8] sm:$0xff]
    %v2222 = vld [vmem:[%s8 + $0x8] sm:$0xff]
    %v2224 = vsel %vm311, %v2205, 0
    %v2227 = vsel %vm311, %v2206, 0
    %v2230 = vsel %vm311, %v2207, 0
    %v2233 = vsel %vm311, %v2208, 0
    %v2236 = vsel %vm311, %v2209, 0
    %v2239 = vsel %vm311, %v2210, 0
    %v2242 = vsel %vm311, %v2211, 0
    %v2245 = vsel %vm311, %v2212, 0
    %v2248 = vsel %vm311, %v2213, 0
    %v2251 = vsel %vm311, %v2214, 0
    %v2254 = vsel %vm311, %v2215, 0
    %v2257 = vsel %vm311, %v2216, 0
    %v2260 = vsel %vm311, %v2217, 0
    %v2263 = vsel %vm311, %v2218, 0
    %v2266 = vsel %vm311, %v2219, 0
    %v2269 = vsel %vm311, %v2220, 0
    %2271 = vmatprep.subr.mxu0 0.0
    %2272 = vmatpush1.msra.mxu0 %v2221
    %2273 = vmatprep.subr.mxu0 0.0
    %2274 = vmatpush1.msra.mxu0 %v2222
    %2275 = vmatprep.subr.mxu0 0.0
    %2276 = vmatpush1.msra.mxu0 0.0
    %2277 = vmatprep.subr.mxu0 0.0
    %2278 = vmatpush1.msra.mxu0 0.0
    %2279 = vmatprep.subr.mxu0 0.0
    %2280 = vmatpush1.msra.mxu0 0.0
    %2281 = vmatprep.subr.mxu0 0.0
    %2282 = vmatpush1.msra.mxu0 0.0
    %2283 = vmatprep.subr.mxu0 0.0
    %2284 = vmatpush1.msra.mxu0 0.0
    %2285 = vmatprep.subr.mxu0 0.0
    %2286 = vmatpush1.msra.mxu0 0.0
    %2287 = vmatprep.subr.mxu0 0.0
    %2288 = vmatpush1.msra.mxu0 0.0
    %2289 = vmatprep.subr.mxu0 0.0
    %2290 = vmatpush1.msra.mxu0 0.0
    %2291 = vmatprep.subr.mxu0 0.0
    %2292 = vmatpush1.msra.mxu0 0.0
    %2293 = vmatprep.subr.mxu0 0.0
    %2294 = vmatpush1.msra.mxu0 0.0
    %2295 = vmatprep.subr.mxu0 0.0
    %2296 = vmatpush1.msra.mxu0 0.0
    %2297 = vmatprep.subr.mxu0 0.0
    %2298 = vmatpush1.msra.mxu0 0.0
    %2299 = vmatprep.subr.mxu0 0.0
    %2300 = vmatpush1.msra.mxu0 0.0
    %2301 = vmatprep.subr.mxu0 0.0
    %2302 = vmatpush1.msra.mxu0 0.0
    %2303 = vmatprep.subr.mxu0 0.0
    %2304 = vmatpush1.msra.mxu0 0.0
    %2305 = vmatprep.subr.mxu0 0.0
    %2306 = vmatpush1.msra.mxu0 0.0
    %2307 = vmatprep.subr.mxu0 0.0
    %2308 = vmatpush1.msra.mxu0 0.0
    %2309 = vmatprep.subr.mxu0 0.0
    %2310 = vmatpush1.msra.mxu0 0.0
    %2311 = vmatprep.subr.mxu0 0.0
    %2312 = vmatpush1.msra.mxu0 0.0
    %2313 = vmatprep.subr.mxu0 0.0
    %2314 = vmatpush1.msra.mxu0 0.0
    %2315 = vmatprep.subr.mxu0 0.0
    %2316 = vmatpush1.msra.mxu0 0.0
    %2317 = vmatprep.subr.mxu0 0.0
    %2318 = vmatpush1.msra.mxu0 0.0
    %2319 = vmatprep.subr.mxu0 0.0
    %2320 = vmatpush1.msra.mxu0 0.0
    %2321 = vmatprep.subr.mxu0 0.0
    %2322 = vmatpush1.msra.mxu0 0.0
    %2323 = vmatprep.subr.mxu0 0.0
    %2324 = vmatpush1.msra.mxu0 0.0
    %2325 = vmatprep.subr.mxu0 0.0
    %2326 = vmatpush1.msra.mxu0 0.0
    %2327 = vmatprep.subr.mxu0 0.0
    %2328 = vmatpush1.msra.mxu0 0.0
    %2329 = vmatprep.subr.mxu0 0.0
    %2330 = vmatpush1.msra.mxu0 0.0
    %2331 = vmatprep.subr.mxu0 0.0
    %2332 = vmatpush1.msra.mxu0 0.0
    %2333 = vmatprep.subr.mxu0 0.0
    %2334 = vmatpush1.msra.mxu0 0.0
    %2335 = vmatprep.mubr.f32.mxu0 0.0
    %2336 = vmatmul.mubr.f32.gmra.mrb[0].mxu0 %v2224
    %v2337 = vpop.f32.mrb[0].mxu0
    %v2338 = vadd.f32 0.0, %v2337
    %v2339 = vpop.f32.mrb[0].mxu0
    %2340 = vmatprep.mubr.f32.mxu0 0.0
    %2341 = vmatmul.mubr.f32.gmra.mrb[0].mxu0 %v2227
    %v2342 = vpop.f32.mrb[0].mxu0
    %v2343 = vadd.f32 0.0, %v2342
    %v2344 = vpop.f32.mrb[0].mxu0
    %2345 = vmatprep.mubr.f32.mxu0 0.0
    %2346 = vmatmul.mubr.f32.gmra.mrb[0].mxu0 %v2230
    %v2347 = vpop.f32.mrb[0].mxu0
    %v2348 = vadd.f32 0.0, %v2347
    %v2349 = vpop.f32.mrb[0].mxu0
    %2350 = vmatprep.mubr.f32.mxu0 0.0
    %2351 = vmatmul.mubr.f32.gmra.mrb[0].mxu0 %v2233
    %v2352 = vpop.f32.mrb[0].mxu0
    %v2353 = vadd.f32 0.0, %v2352
    %v2354 = vpop.f32.mrb[0].mxu0
    %2355 = vmatprep.mubr.f32.mxu0 0.0
    %2356 = vmatmul.mubr.f32.gmra.mrb[0].mxu0 %v2236
    %v2357 = vpop.f32.mrb[0].mxu0
    %v2358 = vadd.f32 0.0, %v2357
    %v2359 = vpop.f32.mrb[0].mxu0
    %2360 = vmatprep.mubr.f32.mxu0 0.0
    %2361 = vmatmul.mubr.f32.gmra.mrb[0].mxu0 %v2239
    %v2362 = vpop.f32.mrb[0].mxu0
    %v2363 = vadd.f32 0.0, %v2362
    %v2364 = vpop.f32.mrb[0].mxu0
    %2365 = vmatprep.mubr.f32.mxu0 0.0
    %2366 = vmatmul.mubr.f32.gmra.mrb[0].mxu0 %v2242
    %v2367 = vpop.f32.mrb[0].mxu0
    %v2368 = vadd.f32 0.0, %v2367
    %v2369 = vpop.f32.mrb[0].mxu0
    %2370 = vmatprep.mubr.f32.mxu0 0.0
    %2371 = vmatmul.mubr.f32.gmra.mrb[0].mxu0 %v2245
    %v2372 = vpop.f32.mrb[0].mxu0
    %v2373 = vadd.f32 0.0, %v2372
    %v2374 = vpop.f32.mrb[0].mxu0
    %2375 = vmatprep.mubr.f32.mxu0 0.0
    %2376 = vmatmul.mubr.f32.gmra.mrb[0].mxu0 %v2248
    %v2377 = vpop.f32.mrb[0].mxu0
    %v2378 = vadd.f32 0.0, %v2377
    %v2379 = vpop.f32.mrb[0].mxu0
    %2380 = vmatprep.mubr.f32.mxu0 0.0
    %2381 = vmatmul.mubr.f32.gmra.mrb[0].mxu0 %v2251
    %v2382 = vpop.f32.mrb[0].mxu0
    %v2383 = vadd.f32 0.0, %v2382
    %v2384 = vpop.f32.mrb[0].mxu0
    %2385 = vmatprep.mubr.f32.mxu0 0.0
    %2386 = vmatmul.mubr.f32.gmra.mrb[0].mxu0 %v2254
    %v2387 = vpop.f32.mrb[0].mxu0
    %v2388 = vadd.f32 0.0, %v2387
    %v2389 = vpop.f32.mrb[0].mxu0
    %2390 = vmatprep.mubr.f32.mxu0 0.0
    %2391 = vmatmul.mubr.f32.gmra.mrb[0].mxu0 %v2257
    %v2392 = vpop.f32.mrb[0].mxu0
    %v2393 = vadd.f32 0.0, %v2392
    %v2394 = vpop.f32.mrb[0].mxu0
    %2395 = vmatprep.mubr.f32.mxu0 0.0
    %2396 = vmatmul.mubr.f32.gmra.mrb[0].mxu0 %v2260
    %v2397 = vpop.f32.mrb[0].mxu0
    %v2398 = vadd.f32 0.0, %v2397
    %v2399 = vpop.f32.mrb[0].mxu0
    %2400 = vmatprep.mubr.f32.mxu0 0.0
    %2401 = vmatmul.mubr.f32.gmra.mrb[0].mxu0 %v2263
    %v2402 = vpop.f32.mrb[0].mxu0
    %v2403 = vadd.f32 0.0, %v2402
    %v2404 = vpop.f32.mrb[0].mxu0
    %2405 = vmatprep.mubr.f32.mxu0 0.0
    %2406 = vmatmul.mubr.f32.gmra.mrb[0].mxu0 %v2266
    %v2407 = vpop.f32.mrb[0].mxu0
    %v2408 = vadd.f32 0.0, %v2407
    %v2409 = vpop.f32.mrb[0].mxu0
    %2410 = vmatprep.mubr.f32.mxu0 0.0
    %2411 = vmatmul.mubr.f32.gmra.mrb[0].mxu0 %v2269
    %v2412 = vpop.f32.mrb[0].mxu0
    %v2413 = vadd.f32 0.0, %v2412
    %v2414 = vpop.f32.mrb[0].mxu0
    %2415 = vdwg.mxu0
    %v2416 = vmul.f32 %v2338, 0.5
    %v2417 = vmul.f32 %v2343, 0.5
    %v2418 = vmul.f32 %v2348, 0.5
    %v2419 = vmul.f32 %v2353, 0.5
    %v2420 = vmul.f32 %v2358, 0.5
    %v2421 = vmul.f32 %v2363, 0.5
    %v2422 = vmul.f32 %v2368, 0.5
    %v2423 = vmul.f32 %v2373, 0.5
    %v2424 = vmul.f32 %v2378, 0.5
    %v2425 = vmul.f32 %v2383, 0.5
    %v2426 = vmul.f32 %v2388, 0.5
    %v2427 = vmul.f32 %v2393, 0.5
    %v2428 = vmul.f32 %v2398, 0.5
    %v2429 = vmul.f32 %v2403, 0.5
    %v2430 = vmul.f32 %v2408, 0.5
    %v2431 = vmul.f32 %v2413, 0.5
    %2440 = vrot.lane.b32.xlu0 %v2416, 124
    %v2441 = vpop.permute.xlu0 %2440
    %2442 = vrot.lane.b32.xlu0 %v2417, 124
    %v2443 = vpop.permute.xlu0 %2442
    %2444 = vrot.lane.b32.xlu0 %v2418, 124
    %v2445 = vpop.permute.xlu0 %2444
    %2446 = vrot.lane.b32.xlu0 %v2419, 124
    %v2447 = vpop.permute.xlu0 %2446
    %2448 = vrot.lane.b32.xlu0 %v2420, 124
    %v2449 = vpop.permute.xlu0 %2448
    %2450 = vrot.lane.b32.xlu0 %v2421, 124
    %v2451 = vpop.permute.xlu0 %2450
    %2452 = vrot.lane.b32.xlu0 %v2422, 124
    %v2453 = vpop.permute.xlu0 %2452
    %2454 = vrot.lane.b32.xlu0 %v2423, 124
    %v2455 = vpop.permute.xlu0 %2454
    %2456 = vrot.lane.b32.xlu0 %v2416, 120
    %v2457 = vpop.permute.xlu0 %2456
    %2458 = vrot.lane.b32.xlu0 %v2417, 120
    %v2459 = vpop.permute.xlu0 %2458
    %2460 = vrot.lane.b32.xlu0 %v2418, 120
    %v2461 = vpop.permute.xlu0 %2460
    %2462 = vrot.lane.b32.xlu0 %v2419, 120
    %v2463 = vpop.permute.xlu0 %2462
    %2464 = vrot.lane.b32.xlu0 %v2420, 120
    %v2465 = vpop.permute.xlu0 %2464
    %2466 = vrot.lane.b32.xlu0 %v2421, 120
    %v2467 = vpop.permute.xlu0 %2466
    %2468 = vrot.lane.b32.xlu0 %v2422, 120
    %v2469 = vpop.permute.xlu0 %2468
    %2470 = vrot.lane.b32.xlu0 %v2423, 120
    %v2471 = vpop.permute.xlu0 %2470
    %2472 = vrot.lane.b32.xlu0 %v2416, 116
    %v2473 = vpop.permute.xlu0 %2472
    %2474 = vrot.lane.b32.xlu0 %v2417, 116
    %v2475 = vpop.permute.xlu0 %2474
    %2476 = vrot.lane.b32.xlu0 %v2418, 116
    %v2477 = vpop.permute.xlu0 %2476
    %2478 = vrot.lane.b32.xlu0 %v2419, 116
    %v2479 = vpop.permute.xlu0 %2478
    %2480 = vrot.lane.b32.xlu0 %v2420, 116
    %v2481 = vpop.permute.xlu0 %2480
    %2482 = vrot.lane.b32.xlu0 %v2421, 116
    %v2483 = vpop.permute.xlu0 %2482
    %2484 = vrot.lane.b32.xlu0 %v2422, 116
    %v2485 = vpop.permute.xlu0 %2484
    %2486 = vrot.lane.b32.xlu0 %v2423, 116
    %v2487 = vpop.permute.xlu0 %2486
    %2496 = vrot.lane.b32.xlu0 %v2424, 124
    %v2497 = vpop.permute.xlu0 %2496
    %2498 = vrot.lane.b32.xlu0 %v2425, 124
    %v2499 = vpop.permute.xlu0 %2498
    %2500 = vrot.lane.b32.xlu0 %v2426, 124
    %v2501 = vpop.permute.xlu0 %2500
    %2502 = vrot.lane.b32.xlu0 %v2427, 124
    %v2503 = vpop.permute.xlu0 %2502
    %2504 = vrot.lane.b32.xlu0 %v2428, 124
    %v2505 = vpop.permute.xlu0 %2504
    %2506 = vrot.lane.b32.xlu0 %v2429, 124
    %v2507 = vpop.permute.xlu0 %2506
    %2508 = vrot.lane.b32.xlu0 %v2430, 124
    %v2509 = vpop.permute.xlu0 %2508
    %2510 = vrot.lane.b32.xlu0 %v2431, 124
    %v2511 = vpop.permute.xlu0 %2510
    %2512 = vrot.lane.b32.xlu0 %v2424, 120
    %v2513 = vpop.permute.xlu0 %2512
    %2514 = vrot.lane.b32.xlu0 %v2425, 120
    %v2515 = vpop.permute.xlu0 %2514
    %2516 = vrot.lane.b32.xlu0 %v2426, 120
    %v2517 = vpop.permute.xlu0 %2516
    %2518 = vrot.lane.b32.xlu0 %v2427, 120
    %v2519 = vpop.permute.xlu0 %2518
    %2520 = vrot.lane.b32.xlu0 %v2428, 120
    %v2521 = vpop.permute.xlu0 %2520
    %2522 = vrot.lane.b32.xlu0 %v2429, 120
    %v2523 = vpop.permute.xlu0 %2522
    %2524 = vrot.lane.b32.xlu0 %v2430, 120
    %v2525 = vpop.permute.xlu0 %2524
    %2526 = vrot.lane.b32.xlu0 %v2431, 120
    %v2527 = vpop.permute.xlu0 %2526
    %2528 = vrot.lane.b32.xlu0 %v2424, 116
    %v2529 = vpop.permute.xlu0 %2528
    %2530 = vrot.lane.b32.xlu0 %v2425, 116
    %v2531 = vpop.permute.xlu0 %2530
    %2532 = vrot.lane.b32.xlu0 %v2426, 116
    %v2533 = vpop.permute.xlu0 %2532
    %2534 = vrot.lane.b32.xlu0 %v2427, 116
    %v2535 = vpop.permute.xlu0 %2534
    %2536 = vrot.lane.b32.xlu0 %v2428, 116
    %v2537 = vpop.permute.xlu0 %2536
    %2538 = vrot.lane.b32.xlu0 %v2429, 116
    %v2539 = vpop.permute.xlu0 %2538
    %2540 = vrot.lane.b32.xlu0 %v2430, 116
    %v2541 = vpop.permute.xlu0 %2540
    %2542 = vrot.lane.b32.xlu0 %v2431, 116
    %v2543 = vpop.permute.xlu0 %2542
    %2552 = vrot.lane.b32.xlu0 %v2338, 124
    %v2553 = vpop.permute.xlu0 %2552
    %2554 = vrot.lane.b32.xlu0 %v2343, 124
    %v2555 = vpop.permute.xlu0 %2554
    %2556 = vrot.lane.b32.xlu0 %v2348, 124
    %v2557 = vpop.permute.xlu0 %2556
    %2558 = vrot.lane.b32.xlu0 %v2353, 124
    %v2559 = vpop.permute.xlu0 %2558
    %2560 = vrot.lane.b32.xlu0 %v2358, 124
    %v2561 = vpop.permute.xlu0 %2560
    %2562 = vrot.lane.b32.xlu0 %v2363, 124
    %v2563 = vpop.permute.xlu0 %2562
    %2564 = vrot.lane.b32.xlu0 %v2368, 124
    %v2565 = vpop.permute.xlu0 %2564
    %2566 = vrot.lane.b32.xlu0 %v2373, 124
    %v2567 = vpop.permute.xlu0 %2566
    %2568 = vrot.lane.b32.xlu0 %v2338, 120
    %v2569 = vpop.permute.xlu0 %2568
    %2570 = vrot.lane.b32.xlu0 %v2343, 120
    %v2571 = vpop.permute.xlu0 %2570
    %2572 = vrot.lane.b32.xlu0 %v2348, 120
    %v2573 = vpop.permute.xlu0 %2572
    %2574 = vrot.lane.b32.xlu0 %v2353, 120
    %v2575 = vpop.permute.xlu0 %2574
    %2576 = vrot.lane.b32.xlu0 %v2358, 120
    %v2577 = vpop.permute.xlu0 %2576
    %2578 = vrot.lane.b32.xlu0 %v2363, 120
    %v2579 = vpop.permute.xlu0 %2578
    %2580 = vrot.lane.b32.xlu0 %v2368, 120
    %v2581 = vpop.permute.xlu0 %2580
    %2582 = vrot.lane.b32.xlu0 %v2373, 120
    %v2583 = vpop.permute.xlu0 %2582
    %2584 = vrot.lane.b32.xlu0 %v2338, 116
    %v2585 = vpop.permute.xlu0 %2584
    %2586 = vrot.lane.b32.xlu0 %v2343, 116
    %v2587 = vpop.permute.xlu0 %2586
    %2588 = vrot.lane.b32.xlu0 %v2348, 116
    %v2589 = vpop.permute.xlu0 %2588
    %2590 = vrot.lane.b32.xlu0 %v2353, 116
    %v2591 = vpop.permute.xlu0 %2590
    %2592 = vrot.lane.b32.xlu0 %v2358, 116
    %v2593 = vpop.permute.xlu0 %2592
    %2594 = vrot.lane.b32.xlu0 %v2363, 116
    %v2595 = vpop.permute.xlu0 %2594
    %2596 = vrot.lane.b32.xlu0 %v2368, 116
    %v2597 = vpop.permute.xlu0 %2596
    %2598 = vrot.lane.b32.xlu0 %v2373, 116
    %v2599 = vpop.permute.xlu0 %2598
    %2608 = vrot.lane.b32.xlu0 %v2378, 124
    %v2609 = vpop.permute.xlu0 %2608
    %2610 = vrot.lane.b32.xlu0 %v2383, 124
    %v2611 = vpop.permute.xlu0 %2610
    %2612 = vrot.lane.b32.xlu0 %v2388, 124
    %v2613 = vpop.permute.xlu0 %2612
    %2614 = vrot.lane.b32.xlu0 %v2393, 124
    %v2615 = vpop.permute.xlu0 %2614
    %2616 = vrot.lane.b32.xlu0 %v2398, 124
    %v2617 = vpop.permute.xlu0 %2616
    %2618 = vrot.lane.b32.xlu0 %v2403, 124
    %v2619 = vpop.permute.xlu0 %2618
    %2620 = vrot.lane.b32.xlu0 %v2408, 124
    %v2621 = vpop.permute.xlu0 %2620
    %2622 = vrot.lane.b32.xlu0 %v2413, 124
    %v2623 = vpop.permute.xlu0 %2622
    %2624 = vrot.lane.b32.xlu0 %v2378, 120
    %v2625 = vpop.permute.xlu0 %2624
    %2626 = vrot.lane.b32.xlu0 %v2383, 120
    %v2627 = vpop.permute.xlu0 %2626
    %2628 = vrot.lane.b32.xlu0 %v2388, 120
    %v2629 = vpop.permute.xlu0 %2628
    %2630 = vrot.lane.b32.xlu0 %v2393, 120
    %v2631 = vpop.permute.xlu0 %2630
    %2632 = vrot.lane.b32.xlu0 %v2398, 120
    %v2633 = vpop.permute.xlu0 %2632
    %2634 = vrot.lane.b32.xlu0 %v2403, 120
    %v2635 = vpop.permute.xlu0 %2634
    %2636 = vrot.lane.b32.xlu0 %v2408, 120
    %v2637 = vpop.permute.xlu0 %2636
    %2638 = vrot.lane.b32.xlu0 %v2413, 120
    %v2639 = vpop.permute.xlu0 %2638
    %2640 = vrot.lane.b32.xlu0 %v2378, 116
    %v2641 = vpop.permute.xlu0 %2640
    %2642 = vrot.lane.b32.xlu0 %v2383, 116
    %v2643 = vpop.permute.xlu0 %2642
    %2644 = vrot.lane.b32.xlu0 %v2388, 116
    %v2645 = vpop.permute.xlu0 %2644
    %2646 = vrot.lane.b32.xlu0 %v2393, 116
    %v2647 = vpop.permute.xlu0 %2646
    %2648 = vrot.lane.b32.xlu0 %v2398, 116
    %v2649 = vpop.permute.xlu0 %2648
    %2650 = vrot.lane.b32.xlu0 %v2403, 116
    %v2651 = vpop.permute.xlu0 %2650
    %2652 = vrot.lane.b32.xlu0 %v2408, 116
    %v2653 = vpop.permute.xlu0 %2652
    %2654 = vrot.lane.b32.xlu0 %v2413, 116
    %v2655 = vpop.permute.xlu0 %2654
    %2656 = vrot.lane.b32.xlu0 %v2416, 96
    %v2657 = vpop.permute.xlu0 %2656
    %2658 = vrot.lane.b32.xlu0 %v2417, 96
    %v2659 = vpop.permute.xlu0 %2658
    %2660 = vrot.lane.b32.xlu0 %v2418, 96
    %v2661 = vpop.permute.xlu0 %2660
    %2662 = vrot.lane.b32.xlu0 %v2419, 96
    %v2663 = vpop.permute.xlu0 %2662
    %2664 = vrot.lane.b32.xlu0 %v2420, 96
    %v2665 = vpop.permute.xlu0 %2664
    %2666 = vrot.lane.b32.xlu0 %v2421, 96
    %v2667 = vpop.permute.xlu0 %2666
    %2668 = vrot.lane.b32.xlu0 %v2422, 96
    %v2669 = vpop.permute.xlu0 %2668
    %2670 = vrot.lane.b32.xlu0 %v2423, 96
    %v2671 = vpop.permute.xlu0 %2670
    %vm2672 = vcmask 31744
    %v2673 = vsel %vm2672, %v2657, 0
    %v2675 = vsel %vm2672, %v2659, 0
    %v2677 = vsel %vm2672, %v2661, 0
    %v2679 = vsel %vm2672, %v2663, 0
    %v2681 = vsel %vm2672, %v2665, 0
    %v2683 = vsel %vm2672, %v2667, 0
    %v2685 = vsel %vm2672, %v2669, 0
    %v2687 = vsel %vm2672, %v2671, 0
    %v2689 = vsel %vm2672, %v2338, 0
    %v2691 = vsel %vm2672, %v2343, 0
    %v2693 = vsel %vm2672, %v2348, 0
    %v2695 = vsel %vm2672, %v2353, 0
    %v2697 = vsel %vm2672, %v2358, 0
    %v2699 = vsel %vm2672, %v2363, 0
    %v2701 = vsel %vm2672, %v2368, 0
    %v2703 = vsel %vm2672, %v2373, 0
    %2705 = vmatprep.subr.mxu0 0.0
    %2706 = vmatpush1.xpose.msra.mxu0 %v2689
    %2707 = vmatprep.subr.mxu0 0.0
    %2708 = vmatpush1.xpose.msra.mxu0 %v2691
    %2709 = vmatprep.subr.mxu0 0.0
    %2710 = vmatpush1.xpose.msra.mxu0 %v2693
    %2711 = vmatprep.subr.mxu0 0.0
    %2712 = vmatpush1.xpose.msra.mxu0 %v2695
    %2713 = vmatprep.subr.mxu0 0.0
    %2714 = vmatpush1.xpose.msra.mxu0 %v2697
    %2715 = vmatprep.subr.mxu0 0.0
    %2716 = vmatpush1.xpose.msra.mxu0 %v2699
    %2717 = vmatprep.subr.mxu0 0.0
    %2718 = vmatpush1.xpose.msra.mxu0 %v2701
    %2719 = vmatprep.subr.mxu0 0.0
    %2720 = vmatpush1.xpose.msra.mxu0 %v2703
    %2721 = vmatprep.subr.mxu0 0.0
    %2722 = vmatpush1.xpose.msra.mxu0 0.0
    %2723 = vmatprep.subr.mxu0 0.0
    %2724 = vmatpush1.xpose.msra.mxu0 0.0
    %2725 = vmatprep.subr.mxu0 0.0
    %2726 = vmatpush1.xpose.msra.mxu0 0.0
    %2727 = vmatprep.subr.mxu0 0.0
    %2728 = vmatpush1.xpose.msra.mxu0 0.0
    %2729 = vmatprep.subr.mxu0 0.0
    %2730 = vmatpush1.xpose.msra.mxu0 0.0
    %2731 = vmatprep.subr.mxu0 0.0
    %2732 = vmatpush1.xpose.msra.mxu0 0.0
    %2733 = vmatprep.subr.mxu0 0.0
    %2734 = vmatpush1.xpose.msra.mxu0 0.0
    %2735 = vmatprep.subr.mxu0 0.0
    %2736 = vmatpush1.xpose.msra.mxu0 0.0
    %2737 = vmatprep.subr.mxu0 0.0
    %2738 = vmatpush1.xpose.msra.mxu0 0.0
    %2739 = vmatprep.subr.mxu0 0.0
    %2740 = vmatpush1.xpose.msra.mxu0 0.0
    %2741 = vmatprep.subr.mxu0 0.0
    %2742 = vmatpush1.xpose.msra.mxu0 0.0
    %2743 = vmatprep.subr.mxu0 0.0
    %2744 = vmatpush1.xpose.msra.mxu0 0.0
    %2745 = vmatprep.subr.mxu0 0.0
    %2746 = vmatpush1.xpose.msra.mxu0 0.0
    %2747 = vmatprep.subr.mxu0 0.0
    %2748 = vmatpush1.xpose.msra.mxu0 0.0
    %2749 = vmatprep.subr.mxu0 0.0
    %2750 = vmatpush1.xpose.msra.mxu0 0.0
    %2751 = vmatprep.subr.mxu0 0.0
    %2752 = vmatpush1.xpose.msra.mxu0 0.0
    %2753 = vmatprep.subr.mxu0 0.0
    %2754 = vmatpush1.xpose.msra.mxu0 0.0
    %2755 = vmatprep.subr.mxu0 0.0
    %2756 = vmatpush1.xpose.msra.mxu0 0.0
    %2757 = vmatprep.subr.mxu0 0.0
    %2758 = vmatpush1.xpose.msra.mxu0 0.0
    %2759 = vmatprep.subr.mxu0 0.0
    %2760 = vmatpush1.xpose.msra.mxu0 0.0
    %2761 = vmatprep.subr.mxu0 0.0
    %2762 = vmatpush1.xpose.msra.mxu0 0.0
    %2763 = vmatprep.subr.mxu0 0.0
    %2764 = vmatpush1.xpose.msra.mxu0 0.0
    %2765 = vmatprep.subr.mxu0 0.0
    %2766 = vmatpush1.xpose.msra.mxu0 0.0
    %2767 = vmatprep.subr.mxu0 0.0
    %2768 = vmatpush1.xpose.msra.mxu0 0.0
    %2769 = vmatprep.mubr.f32.mxu0 0.0
    %2770 = vmatmul.mubr.f32.gmra.mrb[0].mxu0 %v2673
    %v2771 = vpop.f32.mrb[0].mxu0
    %v2772 = vadd.f32 0.0, %v2771
    %v2773 = vpop.f32.mrb[0].mxu0
    %2774 = vmatprep.mubr.f32.mxu0 0.0
    %2775 = vmatmul.mubr.f32.gmra.mrb[0].mxu0 %v2675
    %v2776 = vpop.f32.mrb[0].mxu0
    %v2777 = vadd.f32 0.0, %v2776
    %v2778 = vpop.f32.mrb[0].mxu0
    %2779 = vmatprep.mubr.f32.mxu0 0.0
    %2780 = vmatmul.mubr.f32.gmra.mrb[0].mxu0 %v2677
    %v2781 = vpop.f32.mrb[0].mxu0
    %v2782 = vadd.f32 0.0, %v2781
    %v2783 = vpop.f32.mrb[0].mxu0
    %2784 = vmatprep.mubr.f32.mxu0 0.0
    %2785 = vmatmul.mubr.f32.gmra.mrb[0].mxu0 %v2679
    %v2786 = vpop.f32.mrb[0].mxu0
    %v2787 = vadd.f32 0.0, %v2786
    %v2788 = vpop.f32.mrb[0].mxu0
    %2789 = vmatprep.mubr.f32.mxu0 0.0
    %2790 = vmatmul.mubr.f32.gmra.mrb[0].mxu0 %v2681
    %v2791 = vpop.f32.mrb[0].mxu0
    %v2792 = vadd.f32 0.0, %v2791
    %v2793 = vpop.f32.mrb[0].mxu0
    %2794 = vmatprep.mubr.f32.mxu0 0.0
    %2795 = vmatmul.mubr.f32.gmra.mrb[0].mxu0 %v2683
    %v2796 = vpop.f32.mrb[0].mxu0
    %v2797 = vadd.f32 0.0, %v2796
    %v2798 = vpop.f32.mrb[0].mxu0
    %2799 = vmatprep.mubr.f32.mxu0 0.0
    %2800 = vmatmul.mubr.f32.gmra.mrb[0].mxu0 %v2685
    %v2801 = vpop.f32.mrb[0].mxu0
    %v2802 = vadd.f32 0.0, %v2801
    %v2803 = vpop.f32.mrb[0].mxu0
    %2804 = vmatprep.mubr.f32.mxu0 0.0
    %2805 = vmatmul.mubr.f32.gmra.mrb[0].mxu0 %v2687
    %v2806 = vpop.f32.mrb[0].mxu0
    %v2807 = vadd.f32 0.0, %v2806
    %v2808 = vpop.f32.mrb[0].mxu0
    %2809 = vdwg.mxu0
    %2810 = vrot.lane.b32.xlu0 %v2441, 96
    %v2811 = vpop.permute.xlu0 %2810
    %2812 = vrot.lane.b32.xlu0 %v2443, 96
    %v2813 = vpop.permute.xlu0 %2812
    %2814 = vrot.lane.b32.xlu0 %v2445, 96
    %v2815 = vpop.permute.xlu0 %2814
    %2816 = vrot.lane.b32.xlu0 %v2447, 96
    %v2817 = vpop.permute.xlu0 %2816
    %2818 = vrot.lane.b32.xlu0 %v2449, 96
    %v2819 = vpop.permute.xlu0 %2818
    %2820 = vrot.lane.b32.xlu0 %v2451, 96
    %v2821 = vpop.permute.xlu0 %2820
    %2822 = vrot.lane.b32.xlu0 %v2453, 96
    %v2823 = vpop.permute.xlu0 %2822
    %2824 = vrot.lane.b32.xlu0 %v2455, 96
    %v2825 = vpop.permute.xlu0 %2824
    %v2826 = vsel %vm2672, %v2811, 0
    %v2828 = vsel %vm2672, %v2813, 0
    %v2830 = vsel %vm2672, %v2815, 0
    %v2832 = vsel %vm2672, %v2817, 0
    %v2834 = vsel %vm2672, %v2819, 0
    %v2836 = vsel %vm2672, %v2821, 0
    %v2838 = vsel %vm2672, %v2823, 0
    %v2840 = vsel %vm2672, %v2825, 0
    %v2842 = vsel %vm2672, %v2553, 0
    %v2844 = vsel %vm2672, %v2555, 0
    %v2846 = vsel %vm2672, %v2557, 0
    %v2848 = vsel %vm2672, %v2559, 0
    %v2850 = vsel %vm2672, %v2561, 0
    %v2852 = vsel %vm2672, %v2563, 0
    %v2854 = vsel %vm2672, %v2565, 0
    %v2856 = vsel %vm2672, %v2567, 0
    %2858 = vmatprep.subr.mxu0 0.0
    %2859 = vmatpush1.xpose.msra.mxu0 %v2842
    %2860 = vmatprep.subr.mxu0 0.0
    %2861 = vmatpush1.xpose.msra.mxu0 %v2844
    %2862 = vmatprep.subr.mxu0 0.0
    %2863 = vmatpush1.xpose.msra.mxu0 %v2846
    %2864 = vmatprep.subr.mxu0 0.0
    %2865 = vmatpush1.xpose.msra.mxu0 %v2848
    %2866 = vmatprep.subr.mxu0 0.0
    %2867 = vmatpush1.xpose.msra.mxu0 %v2850
    %2868 = vmatprep.subr.mxu0 0.0
    %2869 = vmatpush1.xpose.msra.mxu0 %v2852
    %2870 = vmatprep.subr.mxu0 0.0
    %2871 = vmatpush1.xpose.msra.mxu0 %v2854
    %2872 = vmatprep.subr.mxu0 0.0
    %2873 = vmatpush1.xpose.msra.mxu0 %v2856
    %2874 = vmatprep.subr.mxu0 0.0
    %2875 = vmatpush1.xpose.msra.mxu0 0.0
    %2876 = vmatprep.subr.mxu0 0.0
    %2877 = vmatpush1.xpose.msra.mxu0 0.0
    %2878 = vmatprep.subr.mxu0 0.0
    %2879 = vmatpush1.xpose.msra.mxu0 0.0
    %2880 = vmatprep.subr.mxu0 0.0
    %2881 = vmatpush1.xpose.msra.mxu0 0.0
    %2882 = vmatprep.subr.mxu0 0.0
    %2883 = vmatpush1.xpose.msra.mxu0 0.0
    %2884 = vmatprep.subr.mxu0 0.0
    %2885 = vmatpush1.xpose.msra.mxu0 0.0
    %2886 = vmatprep.subr.mxu0 0.0
    %2887 = vmatpush1.xpose.msra.mxu0 0.0
    %2888 = vmatprep.subr.mxu0 0.0
    %2889 = vmatpush1.xpose.msra.mxu0 0.0
    %2890 = vmatprep.subr.mxu0 0.0
    %2891 = vmatpush1.xpose.msra.mxu0 0.0
    %2892 = vmatprep.subr.mxu0 0.0
    %2893 = vmatpush1.xpose.msra.mxu0 0.0
    %2894 = vmatprep.subr.mxu0 0.0
    %2895 = vmatpush1.xpose.msra.mxu0 0.0
    %2896 = vmatprep.subr.mxu0 0.0
    %2897 = vmatpush1.xpose.msra.mxu0 0.0
    %2898 = vmatprep.subr.mxu0 0.0
    %2899 = vmatpush1.xpose.msra.mxu0 0.0
    %2900 = vmatprep.subr.mxu0 0.0
    %2901 = vmatpush1.xpose.msra.mxu0 0.0
    %2902 = vmatprep.subr.mxu0 0.0
    %2903 = vmatpush1.xpose.msra.mxu0 0.0
    %2904 = vmatprep.subr.mxu0 0.0
    %2905 = vmatpush1.xpose.msra.mxu0 0.0
    %2906 = vmatprep.subr.mxu0 0.0
    %2907 = vmatpush1.xpose.msra.mxu0 0.0
    %2908 = vmatprep.subr.mxu0 0.0
    %2909 = vmatpush1.xpose.msra.mxu0 0.0
    %2910 = vmatprep.subr.mxu0 0.0
    %2911 = vmatpush1.xpose.msra.mxu0 0.0
    %2912 = vmatprep.subr.mxu0 0.0
    %2913 = vmatpush1.xpose.msra.mxu0 0.0
    %2914 = vmatprep.subr.mxu0 0.0
    %2915 = vmatpush1.xpose.msra.mxu0 0.0
    %2916 = vmatprep.subr.mxu0 0.0
    %2917 = vmatpush1.xpose.msra.mxu0 0.0
    %2918 = vmatprep.subr.mxu0 0.0
    %2919 = vmatpush1.xpose.msra.mxu0 0.0
    %2920 = vmatprep.subr.mxu0 0.0
    %2921 = vmatpush1.xpose.msra.mxu0 0.0
    %2922 = vmatprep.mubr.f32.mxu0 0.0
    %2923 = vmatmul.mubr.f32.gmra.mrb[0].mxu0 %v2826
    %v2924 = vpop.f32.mrb[0].mxu0
    %v2925 = vadd.f32 0.0, %v2924
    %v2926 = vpop.f32.mrb[0].mxu0
    %2927 = vmatprep.mubr.f32.mxu0 0.0
    %2928 = vmatmul.mubr.f32.gmra.mrb[0].mxu0 %v2828
    %v2929 = vpop.f32.mrb[0].mxu0
    %v2930 = vadd.f32 0.0, %v2929
    %v2931 = vpop.f32.mrb[0].mxu0
    %2932 = vmatprep.mubr.f32.mxu0 0.0
    %2933 = vmatmul.mubr.f32.gmra.mrb[0].mxu0 %v2830
    %v2934 = vpop.f32.mrb[0].mxu0
    %v2935 = vadd.f32 0.0, %v2934
    %v2936 = vpop.f32.mrb[0].mxu0
    %2937 = vmatprep.mubr.f32.mxu0 0.0
    %2938 = vmatmul.mubr.f32.gmra.mrb[0].mxu0 %v2832
    %v2939 = vpop.f32.mrb[0].mxu0
    %v2940 = vadd.f32 0.0, %v2939
    %v2941 = vpop.f32.mrb[0].mxu0
    %2942 = vmatprep.mubr.f32.mxu0 0.0
    %2943 = vmatmul.mubr.f32.gmra.mrb[0].mxu0 %v2834
    %v2944 = vpop.f32.mrb[0].mxu0
    %v2945 = vadd.f32 0.0, %v2944
    %v2946 = vpop.f32.mrb[0].mxu0
    %2947 = vmatprep.mubr.f32.mxu0 0.0
    %2948 = vmatmul.mubr.f32.gmra.mrb[0].mxu0 %v2836
    %v2949 = vpop.f32.mrb[0].mxu0
    %v2950 = vadd.f32 0.0, %v2949
    %v2951 = vpop.f32.mrb[0].mxu0
    %2952 = vmatprep.mubr.f32.mxu0 0.0
    %2953 = vmatmul.mubr.f32.gmra.mrb[0].mxu0 %v2838
    %v2954 = vpop.f32.mrb[0].mxu0
    %v2955 = vadd.f32 0.0, %v2954
    %v2956 = vpop.f32.mrb[0].mxu0
    %2957 = vmatprep.mubr.f32.mxu0 0.0
    %2958 = vmatmul.mubr.f32.gmra.mrb[0].mxu0 %v2840
    %v2959 = vpop.f32.mrb[0].mxu0
    %v2960 = vadd.f32 0.0, %v2959
    %v2961 = vpop.f32.mrb[0].mxu0
    %2962 = vdwg.mxu0
    %2963 = vrot.lane.b32.xlu0 %v2457, 96
    %v2964 = vpop.permute.xlu0 %2963
    %2965 = vrot.lane.b32.xlu0 %v2459, 96
    %v2966 = vpop.permute.xlu0 %2965
    %2967 = vrot.lane.b32.xlu0 %v2461, 96
    %v2968 = vpop.permute.xlu0 %2967
    %2969 = vrot.lane.b32.xlu0 %v2463, 96
    %v2970 = vpop.permute.xlu0 %2969
    %2971 = vrot.lane.b32.xlu0 %v2465, 96
    %v2972 = vpop.permute.xlu0 %2971
    %2973 = vrot.lane.b32.xlu0 %v2467, 96
    %v2974 = vpop.permute.xlu0 %2973
    %2975 = vrot.lane.b32.xlu0 %v2469, 96
    %v2976 = vpop.permute.xlu0 %2975
    %2977 = vrot.lane.b32.xlu0 %v2471, 96
    %v2978 = vpop.permute.xlu0 %2977
    %v2979 = vsel %vm2672, %v2964, 0
    %v2981 = vsel %vm2672, %v2966, 0
    %v2983 = vsel %vm2672, %v2968, 0
    %v2985 = vsel %vm2672, %v2970, 0
    %v2987 = vsel %vm2672, %v2972, 0
    %v2989 = vsel %vm2672, %v2974, 0
    %v2991 = vsel %vm2672, %v2976, 0
    %v2993 = vsel %vm2672, %v2978, 0
    %v2995 = vsel %vm2672, %v2569, 0
    %v2997 = vsel %vm2672, %v2571, 0
    %v2999 = vsel %vm2672, %v2573, 0
    %v3001 = vsel %vm2672, %v2575, 0
    %v3003 = vsel %vm2672, %v2577, 0
    %v3005 = vsel %vm2672, %v2579, 0
    %v3007 = vsel %vm2672, %v2581, 0
    %v3009 = vsel %vm2672, %v2583, 0
    %3011 = vmatprep.subr.mxu0 0.0
    %3012 = vmatpush1.xpose.msra.mxu0 %v2995
    %3013 = vmatprep.subr.mxu0 0.0
    %3014 = vmatpush1.xpose.msra.mxu0 %v2997
    %3015 = vmatprep.subr.mxu0 0.0
    %3016 = vmatpush1.xpose.msra.mxu0 %v2999
    %3017 = vmatprep.subr.mxu0 0.0
    %3018 = vmatpush1.xpose.msra.mxu0 %v3001
    %3019 = vmatprep.subr.mxu0 0.0
    %3020 = vmatpush1.xpose.msra.mxu0 %v3003
    %3021 = vmatprep.subr.mxu0 0.0
    %3022 = vmatpush1.xpose.msra.mxu0 %v3005
    %3023 = vmatprep.subr.mxu0 0.0
    %3024 = vmatpush1.xpose.msra.mxu0 %v3007
    %3025 = vmatprep.subr.mxu0 0.0
    %3026 = vmatpush1.xpose.msra.mxu0 %v3009
    %3027 = vmatprep.subr.mxu0 0.0
    %3028 = vmatpush1.xpose.msra.mxu0 0.0
    %3029 = vmatprep.subr.mxu0 0.0
    %3030 = vmatpush1.xpose.msra.mxu0 0.0
    %3031 = vmatprep.subr.mxu0 0.0
    %3032 = vmatpush1.xpose.msra.mxu0 0.0
    %3033 = vmatprep.subr.mxu0 0.0
    %3034 = vmatpush1.xpose.msra.mxu0 0.0
    %3035 = vmatprep.subr.mxu0 0.0
    %3036 = vmatpush1.xpose.msra.mxu0 0.0
    %3037 = vmatprep.subr.mxu0 0.0
    %3038 = vmatpush1.xpose.msra.mxu0 0.0
    %3039 = vmatprep.subr.mxu0 0.0
    %3040 = vmatpush1.xpose.msra.mxu0 0.0
    %3041 = vmatprep.subr.mxu0 0.0
    %3042 = vmatpush1.xpose.msra.mxu0 0.0
    %3043 = vmatprep.subr.mxu0 0.0
    %3044 = vmatpush1.xpose.msra.mxu0 0.0
    %3045 = vmatprep.subr.mxu0 0.0
    %3046 = vmatpush1.xpose.msra.mxu0 0.0
    %3047 = vmatprep.subr.mxu0 0.0
    %3048 = vmatpush1.xpose.msra.mxu0 0.0
    %3049 = vmatprep.subr.mxu0 0.0
    %3050 = vmatpush1.xpose.msra.mxu0 0.0
    %3051 = vmatprep.subr.mxu0 0.0
    %3052 = vmatpush1.xpose.msra.mxu0 0.0
    %3053 = vmatprep.subr.mxu0 0.0
    %3054 = vmatpush1.xpose.msra.mxu0 0.0
    %3055 = vmatprep.subr.mxu0 0.0
    %3056 = vmatpush1.xpose.msra.mxu0 0.0
    %3057 = vmatprep.subr.mxu0 0.0
    %3058 = vmatpush1.xpose.msra.mxu0 0.0
    %3059 = vmatprep.subr.mxu0 0.0
    %3060 = vmatpush1.xpose.msra.mxu0 0.0
    %3061 = vmatprep.subr.mxu0 0.0
    %3062 = vmatpush1.xpose.msra.mxu0 0.0
    %3063 = vmatprep.subr.mxu0 0.0
    %3064 = vmatpush1.xpose.msra.mxu0 0.0
    %3065 = vmatprep.subr.mxu0 0.0
    %3066 = vmatpush1.xpose.msra.mxu0 0.0
    %3067 = vmatprep.subr.mxu0 0.0
    %3068 = vmatpush1.xpose.msra.mxu0 0.0
    %3069 = vmatprep.subr.mxu0 0.0
    %3070 = vmatpush1.xpose.msra.mxu0 0.0
    %3071 = vmatprep.subr.mxu0 0.0
    %3072 = vmatpush1.xpose.msra.mxu0 0.0
    %3073 = vmatprep.subr.mxu0 0.0
    %3074 = vmatpush1.xpose.msra.mxu0 0.0
    %3075 = vmatprep.mubr.f32.mxu0 0.0
    %3076 = vmatmul.mubr.f32.gmra.mrb[0].mxu0 %v2979
    %v3077 = vpop.f32.mrb[0].mxu0
    %v3078 = vadd.f32 0.0, %v3077
    %v3079 = vpop.f32.mrb[0].mxu0
    %3080 = vmatprep.mubr.f32.mxu0 0.0
    %3081 = vmatmul.mubr.f32.gmra.mrb[0].mxu0 %v2981
    %v3082 = vpop.f32.mrb[0].mxu0
    %v3083 = vadd.f32 0.0, %v3082
    %v3084 = vpop.f32.mrb[0].mxu0
    %3085 = vmatprep.mubr.f32.mxu0 0.0
    %3086 = vmatmul.mubr.f32.gmra.mrb[0].mxu0 %v2983
    %v3087 = vpop.f32.mrb[0].mxu0
    %v3088 = vadd.f32 0.0, %v3087
    %v3089 = vpop.f32.mrb[0].mxu0
    %3090 = vmatprep.mubr.f32.mxu0 0.0
    %3091 = vmatmul.mubr.f32.gmra.mrb[0].mxu0 %v2985
    %v3092 = vpop.f32.mrb[0].mxu0
    %v3093 = vadd.f32 0.0, %v3092
    %v3094 = vpop.f32.mrb[0].mxu0
    %3095 = vmatprep.mubr.f32.mxu0 0.0
    %3096 = vmatmul.mubr.f32.gmra.mrb[0].mxu0 %v2987
    %v3097 = vpop.f32.mrb[0].mxu0
    %v3098 = vadd.f32 0.0, %v3097
    %v3099 = vpop.f32.mrb[0].mxu0
    %3100 = vmatprep.mubr.f32.mxu0 0.0
    %3101 = vmatmul.mubr.f32.gmra.mrb[0].mxu0 %v2989
    %v3102 = vpop.f32.mrb[0].mxu0
    %v3103 = vadd.f32 0.0, %v3102
    %v3104 = vpop.f32.mrb[0].mxu0
    %3105 = vmatprep.mubr.f32.mxu0 0.0
    %3106 = vmatmul.mubr.f32.gmra.mrb[0].mxu0 %v2991
    %v3107 = vpop.f32.mrb[0].mxu0
    %v3108 = vadd.f32 0.0, %v3107
    %v3109 = vpop.f32.mrb[0].mxu0
    %3110 = vmatprep.mubr.f32.mxu0 0.0
    %3111 = vmatmul.mubr.f32.gmra.mrb[0].mxu0 %v2993
    %v3112 = vpop.f32.mrb[0].mxu0
    %v3113 = vadd.f32 0.0, %v3112
    %v3114 = vpop.f32.mrb[0].mxu0
    %3115 = vdwg.mxu0
    %3116 = vrot.lane.b32.xlu0 %v2473, 96
    %v3117 = vpop.permute.xlu0 %3116
    %3118 = vrot.lane.b32.xlu0 %v2475, 96
    %v3119 = vpop.permute.xlu0 %3118
    %3120 = vrot.lane.b32.xlu0 %v2477, 96
    %v3121 = vpop.permute.xlu0 %3120
    %3122 = vrot.lane.b32.xlu0 %v2479, 96
    %v3123 = vpop.permute.xlu0 %3122
    %3124 = vrot.lane.b32.xlu0 %v2481, 96
    %v3125 = vpop.permute.xlu0 %3124
    %3126 = vrot.lane.b32.xlu0 %v2483, 96
    %v3127 = vpop.permute.xlu0 %3126
    %3128 = vrot.lane.b32.xlu0 %v2485, 96
    %v3129 = vpop.permute.xlu0 %3128
    %3130 = vrot.lane.b32.xlu0 %v2487, 96
    %v3131 = vpop.permute.xlu0 %3130
    %v3132 = vsel %vm2672, %v3117, 0
    %v3134 = vsel %vm2672, %v3119, 0
    %v3136 = vsel %vm2672, %v3121, 0
    %v3138 = vsel %vm2672, %v3123, 0
    %v3140 = vsel %vm2672, %v3125, 0
    %v3142 = vsel %vm2672, %v3127, 0
    %v3144 = vsel %vm2672, %v3129, 0
    %v3146 = vsel %vm2672, %v3131, 0
    %v3148 = vsel %vm2672, %v2585, 0
    %v3150 = vsel %vm2672, %v2587, 0
    %v3152 = vsel %vm2672, %v2589, 0
    %v3154 = vsel %vm2672, %v2591, 0
    %v3156 = vsel %vm2672, %v2593, 0
    %v3158 = vsel %vm2672, %v2595, 0
    %v3160 = vsel %vm2672, %v2597, 0
    %v3162 = vsel %vm2672, %v2599, 0
    %3164 = vmatprep.subr.mxu0 0.0
    %3165 = vmatpush1.xpose.msra.mxu0 %v3148
    %3166 = vmatprep.subr.mxu0 0.0
    %3167 = vmatpush1.xpose.msra.mxu0 %v3150
    %3168 = vmatprep.subr.mxu0 0.0
    %3169 = vmatpush1.xpose.msra.mxu0 %v3152
    %3170 = vmatprep.subr.mxu0 0.0
    %3171 = vmatpush1.xpose.msra.mxu0 %v3154
    %3172 = vmatprep.subr.mxu0 0.0
    %3173 = vmatpush1.xpose.msra.mxu0 %v3156
    %3174 = vmatprep.subr.mxu0 0.0
    %3175 = vmatpush1.xpose.msra.mxu0 %v3158
    %3176 = vmatprep.subr.mxu0 0.0
    %3177 = vmatpush1.xpose.msra.mxu0 %v3160
    %3178 = vmatprep.subr.mxu0 0.0
    %3179 = vmatpush1.xpose.msra.mxu0 %v3162
    %3180 = vmatprep.subr.mxu0 0.0
    %3181 = vmatpush1.xpose.msra.mxu0 0.0
    %3182 = vmatprep.subr.mxu0 0.0
    %3183 = vmatpush1.xpose.msra.mxu0 0.0
    %3184 = vmatprep.subr.mxu0 0.0
    %3185 = vmatpush1.xpose.msra.mxu0 0.0
    %3186 = vmatprep.subr.mxu0 0.0
    %3187 = vmatpush1.xpose.msra.mxu0 0.0
    %3188 = vmatprep.subr.mxu0 0.0
    %3189 = vmatpush1.xpose.msra.mxu0 0.0
    %3190 = vmatprep.subr.mxu0 0.0
    %3191 = vmatpush1.xpose.msra.mxu0 0.0
    %3192 = vmatprep.subr.mxu0 0.0
    %3193 = vmatpush1.xpose.msra.mxu0 0.0
    %3194 = vmatprep.subr.mxu0 0.0
    %3195 = vmatpush1.xpose.msra.mxu0 0.0
    %3196 = vmatprep.subr.mxu0 0.0
    %3197 = vmatpush1.xpose.msra.mxu0 0.0
    %3198 = vmatprep.subr.mxu0 0.0
    %3199 = vmatpush1.xpose.msra.mxu0 0.0
    %3200 = vmatprep.subr.mxu0 0.0
    %3201 = vmatpush1.xpose.msra.mxu0 0.0
    %3202 = vmatprep.subr.mxu0 0.0
    %3203 = vmatpush1.xpose.msra.mxu0 0.0
    %3204 = vmatprep.subr.mxu0 0.0
    %3205 = vmatpush1.xpose.msra.mxu0 0.0
    %3206 = vmatprep.subr.mxu0 0.0
    %3207 = vmatpush1.xpose.msra.mxu0 0.0
    %3208 = vmatprep.subr.mxu0 0.0
    %3209 = vmatpush1.xpose.msra.mxu0 0.0
    %3210 = vmatprep.subr.mxu0 0.0
    %3211 = vmatpush1.xpose.msra.mxu0 0.0
    %3212 = vmatprep.subr.mxu0 0.0
    %3213 = vmatpush1.xpose.msra.mxu0 0.0
    %3214 = vmatprep.subr.mxu0 0.0
    %3215 = vmatpush1.xpose.msra.mxu0 0.0
    %3216 = vmatprep.subr.mxu0 0.0
    %3217 = vmatpush1.xpose.msra.mxu0 0.0
    %3218 = vmatprep.subr.mxu0 0.0
    %3219 = vmatpush1.xpose.msra.mxu0 0.0
    %3220 = vmatprep.subr.mxu0 0.0
    %3221 = vmatpush1.xpose.msra.mxu0 0.0
    %3222 = vmatprep.subr.mxu0 0.0
    %3223 = vmatpush1.xpose.msra.mxu0 0.0
    %3224 = vmatprep.subr.mxu0 0.0
    %3225 = vmatpush1.xpose.msra.mxu0 0.0
    %3226 = vmatprep.subr.mxu0 0.0
    %3227 = vmatpush1.xpose.msra.mxu0 0.0
    %3228 = vmatprep.mubr.f32.mxu0 0.0
    %3229 = vmatmul.mubr.f32.gmra.mrb[0].mxu0 %v3132
    %v3230 = vpop.f32.mrb[0].mxu0
    %v3231 = vadd.f32 0.0, %v3230
    %v3232 = vpop.f32.mrb[0].mxu0
    %3233 = vmatprep.mubr.f32.mxu0 0.0
    %3234 = vmatmul.mubr.f32.gmra.mrb[0].mxu0 %v3134
    %v3235 = vpop.f32.mrb[0].mxu0
    %v3236 = vadd.f32 0.0, %v3235
    %v3237 = vpop.f32.mrb[0].mxu0
    %3238 = vmatprep.mubr.f32.mxu0 0.0
    %3239 = vmatmul.mubr.f32.gmra.mrb[0].mxu0 %v3136
    %v3240 = vpop.f32.mrb[0].mxu0
    %v3241 = vadd.f32 0.0, %v3240
    %v3242 = vpop.f32.mrb[0].mxu0
    %3243 = vmatprep.mubr.f32.mxu0 0.0
    %3244 = vmatmul.mubr.f32.gmra.mrb[0].mxu0 %v3138
    %v3245 = vpop.f32.mrb[0].mxu0
    %v3246 = vadd.f32 0.0, %v3245
    %v3247 = vpop.f32.mrb[0].mxu0
    %3248 = vmatprep.mubr.f32.mxu0 0.0
    %3249 = vmatmul.mubr.f32.gmra.mrb[0].mxu0 %v3140
    %v3250 = vpop.f32.mrb[0].mxu0
    %v3251 = vadd.f32 0.0, %v3250
    %v3252 = vpop.f32.mrb[0].mxu0
    %3253 = vmatprep.mubr.f32.mxu0 0.0
    %3254 = vmatmul.mubr.f32.gmra.mrb[0].mxu0 %v3142
    %v3255 = vpop.f32.mrb[0].mxu0
    %v3256 = vadd.f32 0.0, %v3255
    %v3257 = vpop.f32.mrb[0].mxu0
    %3258 = vmatprep.mubr.f32.mxu0 0.0
    %3259 = vmatmul.mubr.f32.gmra.mrb[0].mxu0 %v3144
    %v3260 = vpop.f32.mrb[0].mxu0
    %v3261 = vadd.f32 0.0, %v3260
    %v3262 = vpop.f32.mrb[0].mxu0
    %3263 = vmatprep.mubr.f32.mxu0 0.0
    %3264 = vmatmul.mubr.f32.gmra.mrb[0].mxu0 %v3146
    %v3265 = vpop.f32.mrb[0].mxu0
    %v3266 = vadd.f32 0.0, %v3265
    %v3267 = vpop.f32.mrb[0].mxu0
    %3268 = vdwg.mxu0
    %3269 = vrot.lane.b32.xlu0 %v2424, 96
    %v3270 = vpop.permute.xlu0 %3269
    %3271 = vrot.lane.b32.xlu0 %v2425, 96
    %v3272 = vpop.permute.xlu0 %3271
    %3273 = vrot.lane.b32.xlu0 %v2426, 96
    %v3274 = vpop.permute.xlu0 %3273
    %3275 = vrot.lane.b32.xlu0 %v2427, 96
    %v3276 = vpop.permute.xlu0 %3275
    %3277 = vrot.lane.b32.xlu0 %v2428, 96
    %v3278 = vpop.permute.xlu0 %3277
    %3279 = vrot.lane.b32.xlu0 %v2429, 96
    %v3280 = vpop.permute.xlu0 %3279
    %3281 = vrot.lane.b32.xlu0 %v2430, 96
    %v3282 = vpop.permute.xlu0 %3281
    %3283 = vrot.lane.b32.xlu0 %v2431, 96
    %v3284 = vpop.permute.xlu0 %3283
    %v3285 = vsel %vm2672, %v3270, 0
    %v3287 = vsel %vm2672, %v3272, 0
    %v3289 = vsel %vm2672, %v3274, 0
    %v3291 = vsel %vm2672, %v3276, 0
    %v3293 = vsel %vm2672, %v3278, 0
    %v3295 = vsel %vm2672, %v3280, 0
    %v3297 = vsel %vm2672, %v3282, 0
    %v3299 = vsel %vm2672, %v3284, 0
    %v3301 = vsel %vm2672, %v2378, 0
    %v3303 = vsel %vm2672, %v2383, 0
    %v3305 = vsel %vm2672, %v2388, 0
    %v3307 = vsel %vm2672, %v2393, 0
    %v3309 = vsel %vm2672, %v2398, 0
    %v3311 = vsel %vm2672, %v2403, 0
    %v3313 = vsel %vm2672, %v2408, 0
    %v3315 = vsel %vm2672, %v2413, 0
    %3317 = vmatprep.subr.mxu0 0.0
    %3318 = vmatpush1.xpose.msra.mxu0 %v3301
    %3319 = vmatprep.subr.mxu0 0.0
    %3320 = vmatpush1.xpose.msra.mxu0 %v3303
    %3321 = vmatprep.subr.mxu0 0.0
    %3322 = vmatpush1.xpose.msra.mxu0 %v3305
    %3323 = vmatprep.subr.mxu0 0.0
    %3324 = vmatpush1.xpose.msra.mxu0 %v3307
    %3325 = vmatprep.subr.mxu0 0.0
    %3326 = vmatpush1.xpose.msra.mxu0 %v3309
    %3327 = vmatprep.subr.mxu0 0.0
    %3328 = vmatpush1.xpose.msra.mxu0 %v3311
    %3329 = vmatprep.subr.mxu0 0.0
    %3330 = vmatpush1.xpose.msra.mxu0 %v3313
    %3331 = vmatprep.subr.mxu0 0.0
    %3332 = vmatpush1.xpose.msra.mxu0 %v3315
    %3333 = vmatprep.subr.mxu0 0.0
    %3334 = vmatpush1.xpose.msra.mxu0 0.0
    %3335 = vmatprep.subr.mxu0 0.0
    %3336 = vmatpush1.xpose.msra.mxu0 0.0
    %3337 = vmatprep.subr.mxu0 0.0
    %3338 = vmatpush1.xpose.msra.mxu0 0.0
    %3339 = vmatprep.subr.mxu0 0.0
    %3340 = vmatpush1.xpose.msra.mxu0 0.0
    %3341 = vmatprep.subr.mxu0 0.0
    %3342 = vmatpush1.xpose.msra.mxu0 0.0
    %3343 = vmatprep.subr.mxu0 0.0
    %3344 = vmatpush1.xpose.msra.mxu0 0.0
    %3345 = vmatprep.subr.mxu0 0.0
    %3346 = vmatpush1.xpose.msra.mxu0 0.0
    %3347 = vmatprep.subr.mxu0 0.0
    %3348 = vmatpush1.xpose.msra.mxu0 0.0
    %3349 = vmatprep.subr.mxu0 0.0
    %3350 = vmatpush1.xpose.msra.mxu0 0.0
    %3351 = vmatprep.subr.mxu0 0.0
    %3352 = vmatpush1.xpose.msra.mxu0 0.0
    %3353 = vmatprep.subr.mxu0 0.0
    %3354 = vmatpush1.xpose.msra.mxu0 0.0
    %3355 = vmatprep.subr.mxu0 0.0
    %3356 = vmatpush1.xpose.msra.mxu0 0.0
    %3357 = vmatprep.subr.mxu0 0.0
    %3358 = vmatpush1.xpose.msra.mxu0 0.0
    %3359 = vmatprep.subr.mxu0 0.0
    %3360 = vmatpush1.xpose.msra.mxu0 0.0
    %3361 = vmatprep.subr.mxu0 0.0
    %3362 = vmatpush1.xpose.msra.mxu0 0.0
    %3363 = vmatprep.subr.mxu0 0.0
    %3364 = vmatpush1.xpose.msra.mxu0 0.0
    %3365 = vmatprep.subr.mxu0 0.0
    %3366 = vmatpush1.xpose.msra.mxu0 0.0
    %3367 = vmatprep.subr.mxu0 0.0
    %3368 = vmatpush1.xpose.msra.mxu0 0.0
    %3369 = vmatprep.subr.mxu0 0.0
    %3370 = vmatpush1.xpose.msra.mxu0 0.0
    %3371 = vmatprep.subr.mxu0 0.0
    %3372 = vmatpush1.xpose.msra.mxu0 0.0
    %3373 = vmatprep.subr.mxu0 0.0
    %3374 = vmatpush1.xpose.msra.mxu0 0.0
    %3375 = vmatprep.subr.mxu0 0.0
    %3376 = vmatpush1.xpose.msra.mxu0 0.0
    %3377 = vmatprep.subr.mxu0 0.0
    %3378 = vmatpush1.xpose.msra.mxu0 0.0
    %3379 = vmatprep.subr.mxu0 0.0
    %3380 = vmatpush1.xpose.msra.mxu0 0.0
    %3381 = vmatprep.mubr.f32.mxu0 0.0
    %3382 = vmatmul.mubr.f32.gmra.mrb[0].mxu0 %v3285
    %v3383 = vpop.f32.mrb[0].mxu0
    %v3384 = vadd.f32 0.0, %v3383
    %v3385 = vpop.f32.mrb[0].mxu0
    %3386 = vmatprep.mubr.f32.mxu0 0.0
    %3387 = vmatmul.mubr.f32.gmra.mrb[0].mxu0 %v3287
    %v3388 = vpop.f32.mrb[0].mxu0
    %v3389 = vadd.f32 0.0, %v3388
    %v3390 = vpop.f32.mrb[0].mxu0
    %3391 = vmatprep.mubr.f32.mxu0 0.0
    %3392 = vmatmul.mubr.f32.gmra.mrb[0].mxu0 %v3289
    %v3393 = vpop.f32.mrb[0].mxu0
    %v3394 = vadd.f32 0.0, %v3393
    %v3395 = vpop.f32.mrb[0].mxu0
    %3396 = vmatprep.mubr.f32.mxu0 0.0
    %3397 = vmatmul.mubr.f32.gmra.mrb[0].mxu0 %v3291
    %v3398 = vpop.f32.mrb[0].mxu0
    %v3399 = vadd.f32 0.0, %v3398
    %v3400 = vpop.f32.mrb[0].mxu0
    %3401 = vmatprep.mubr.f32.mxu0 0.0
    %3402 = vmatmul.mubr.f32.gmra.mrb[0].mxu0 %v3293
    %v3403 = vpop.f32.mrb[0].mxu0
    %v3404 = vadd.f32 0.0, %v3403
    %v3405 = vpop.f32.mrb[0].mxu0
    %3406 = vmatprep.mubr.f32.mxu0 0.0
    %3407 = vmatmul.mubr.f32.gmra.mrb[0].mxu0 %v3295
    %v3408 = vpop.f32.mrb[0].mxu0
    %v3409 = vadd.f32 0.0, %v3408
    %v3410 = vpop.f32.mrb[0].mxu0
    %3411 = vmatprep.mubr.f32.mxu0 0.0
    %3412 = vmatmul.mubr.f32.gmra.mrb[0].mxu0 %v3297
    %v3413 = vpop.f32.mrb[0].mxu0
    %v3414 = vadd.f32 0.0, %v3413
    %v3415 = vpop.f32.mrb[0].mxu0
    %3416 = vmatprep.mubr.f32.mxu0 0.0
    %3417 = vmatmul.mubr.f32.gmra.mrb[0].mxu0 %v3299
    %v3418 = vpop.f32.mrb[0].mxu0
    %v3419 = vadd.f32 0.0, %v3418
    %v3420 = vpop.f32.mrb[0].mxu0
    %3421 = vdwg.mxu0
    %3422 = vrot.lane.b32.xlu0 %v2497, 96
    %v3423 = vpop.permute.xlu0 %3422
    %3424 = vrot.lane.b32.xlu0 %v2499, 96
    %v3425 = vpop.permute.xlu0 %3424
    %3426 = vrot.lane.b32.xlu0 %v2501, 96
    %v3427 = vpop.permute.xlu0 %3426
    %3428 = vrot.lane.b32.xlu0 %v2503, 96
    %v3429 = vpop.permute.xlu0 %3428
    %3430 = vrot.lane.b32.xlu0 %v2505, 96
    %v3431 = vpop.permute.xlu0 %3430
    %3432 = vrot.lane.b32.xlu0 %v2507, 96
    %v3433 = vpop.permute.xlu0 %3432
    %3434 = vrot.lane.b32.xlu0 %v2509, 96
    %v3435 = vpop.permute.xlu0 %3434
    %3436 = vrot.lane.b32.xlu0 %v2511, 96
    %v3437 = vpop.permute.xlu0 %3436
    %v3438 = vsel %vm2672, %v3423, 0
    %v3440 = vsel %vm2672, %v3425, 0
    %v3442 = vsel %vm2672, %v3427, 0
    %v3444 = vsel %vm2672, %v3429, 0
    %v3446 = vsel %vm2672, %v3431, 0
    %v3448 = vsel %vm2672, %v3433, 0
    %v3450 = vsel %vm2672, %v3435, 0
    %v3452 = vsel %vm2672, %v3437, 0
    %v3454 = vsel %vm2672, %v2609, 0
    %v3456 = vsel %vm2672, %v2611, 0
    %v3458 = vsel %vm2672, %v2613, 0
    %v3460 = vsel %vm2672, %v2615, 0
    %v3462 = vsel %vm2672, %v2617, 0
    %v3464 = vsel %vm2672, %v2619, 0
    %v3466 = vsel %vm2672, %v2621, 0
    %v3468 = vsel %vm2672, %v2623, 0
    %3470 = vmatprep.subr.mxu0 0.0
    %3471 = vmatpush1.xpose.msra.mxu0 %v3454
    %3472 = vmatprep.subr.mxu0 0.0
    %3473 = vmatpush1.xpose.msra.mxu0 %v3456
    %3474 = vmatprep.subr.mxu0 0.0
    %3475 = vmatpush1.xpose.msra.mxu0 %v3458
    %3476 = vmatprep.subr.mxu0 0.0
    %3477 = vmatpush1.xpose.msra.mxu0 %v3460
    %3478 = vmatprep.subr.mxu0 0.0
    %3479 = vmatpush1.xpose.msra.mxu0 %v3462
    %3480 = vmatprep.subr.mxu0 0.0
    %3481 = vmatpush1.xpose.msra.mxu0 %v3464
    %3482 = vmatprep.subr.mxu0 0.0
    %3483 = vmatpush1.xpose.msra.mxu0 %v3466
    %3484 = vmatprep.subr.mxu0 0.0
    %3485 = vmatpush1.xpose.msra.mxu0 %v3468
    %3486 = vmatprep.subr.mxu0 0.0
    %3487 = vmatpush1.xpose.msra.mxu0 0.0
    %3488 = vmatprep.subr.mxu0 0.0
    %3489 = vmatpush1.xpose.msra.mxu0 0.0
    %3490 = vmatprep.subr.mxu0 0.0
    %3491 = vmatpush1.xpose.msra.mxu0 0.0
    %3492 = vmatprep.subr.mxu0 0.0
    %3493 = vmatpush1.xpose.msra.mxu0 0.0
    %3494 = vmatprep.subr.mxu0 0.0
    %3495 = vmatpush1.xpose.msra.mxu0 0.0
    %3496 = vmatprep.subr.mxu0 0.0
    %3497 = vmatpush1.xpose.msra.mxu0 0.0
    %3498 = vmatprep.subr.mxu0 0.0
    %3499 = vmatpush1.xpose.msra.mxu0 0.0
    %3500 = vmatprep.subr.mxu0 0.0
    %3501 = vmatpush1.xpose.msra.mxu0 0.0
    %3502 = vmatprep.subr.mxu0 0.0
    %3503 = vmatpush1.xpose.msra.mxu0 0.0
    %3504 = vmatprep.subr.mxu0 0.0
    %3505 = vmatpush1.xpose.msra.mxu0 0.0
    %3506 = vmatprep.subr.mxu0 0.0
    %3507 = vmatpush1.xpose.msra.mxu0 0.0
    %3508 = vmatprep.subr.mxu0 0.0
    %3509 = vmatpush1.xpose.msra.mxu0 0.0
    %3510 = vmatprep.subr.mxu0 0.0
    %3511 = vmatpush1.xpose.msra.mxu0 0.0
    %3512 = vmatprep.subr.mxu0 0.0
    %3513 = vmatpush1.xpose.msra.mxu0 0.0
    %3514 = vmatprep.subr.mxu0 0.0
    %3515 = vmatpush1.xpose.msra.mxu0 0.0
    %3516 = vmatprep.subr.mxu0 0.0
    %3517 = vmatpush1.xpose.msra.mxu0 0.0
    %3518 = vmatprep.subr.mxu0 0.0
    %3519 = vmatpush1.xpose.msra.mxu0 0.0
    %3520 = vmatprep.subr.mxu0 0.0
    %3521 = vmatpush1.xpose.msra.mxu0 0.0
    %3522 = vmatprep.subr.mxu0 0.0
    %3523 = vmatpush1.xpose.msra.mxu0 0.0
    %3524 = vmatprep.subr.mxu0 0.0
    %3525 = vmatpush1.xpose.msra.mxu0 0.0
    %3526 = vmatprep.subr.mxu0 0.0
    %3527 = vmatpush1.xpose.msra.mxu0 0.0
    %3528 = vmatprep.subr.mxu0 0.0
    %3529 = vmatpush1.xpose.msra.mxu0 0.0
    %3530 = vmatprep.subr.mxu0 0.0
    %3531 = vmatpush1.xpose.msra.mxu0 0.0
    %3532 = vmatprep.subr.mxu0 0.0
    %3533 = vmatpush1.xpose.msra.mxu0 0.0
    %3534 = vmatprep.mubr.f32.mxu0 0.0
    %3535 = vmatmul.mubr.f32.gmra.mrb[0].mxu0 %v3438
    %v3536 = vpop.f32.mrb[0].mxu0
    %v3537 = vadd.f32 0.0, %v3536
    %v3538 = vpop.f32.mrb[0].mxu0
    %3539 = vmatprep.mubr.f32.mxu0 0.0
    %3540 = vmatmul.mubr.f32.gmra.mrb[0].mxu0 %v3440
    %v3541 = vpop.f32.mrb[0].mxu0
    %v3542 = vadd.f32 0.0, %v3541
    %v3543 = vpop.f32.mrb[0].mxu0
    %3544 = vmatprep.mubr.f32.mxu0 0.0
    %3545 = vmatmul.mubr.f32.gmra.mrb[0].mxu0 %v3442
    %v3546 = vpop.f32.mrb[0].mxu0
    %v3547 = vadd.f32 0.0, %v3546
    %v3548 = vpop.f32.mrb[0].mxu0
    %3549 = vmatprep.mubr.f32.mxu0 0.0
    %3550 = vmatmul.mubr.f32.gmra.mrb[0].mxu0 %v3444
    %v3551 = vpop.f32.mrb[0].mxu0
    %v3552 = vadd.f32 0.0, %v3551
    %v3553 = vpop.f32.mrb[0].mxu0
    %3554 = vmatprep.mubr.f32.mxu0 0.0
    %3555 = vmatmul.mubr.f32.gmra.mrb[0].mxu0 %v3446
    %v3556 = vpop.f32.mrb[0].mxu0
    %v3557 = vadd.f32 0.0, %v3556
    %v3558 = vpop.f32.mrb[0].mxu0
    %3559 = vmatprep.mubr.f32.mxu0 0.0
    %3560 = vmatmul.mubr.f32.gmra.mrb[0].mxu0 %v3448
    %v3561 = vpop.f32.mrb[0].mxu0
    %v3562 = vadd.f32 0.0, %v3561
    %v3563 = vpop.f32.mrb[0].mxu0
    %3564 = vmatprep.mubr.f32.mxu0 0.0
    %3565 = vmatmul.mubr.f32.gmra.mrb[0].mxu0 %v3450
    %v3566 = vpop.f32.mrb[0].mxu0
    %v3567 = vadd.f32 0.0, %v3566
    %v3568 = vpop.f32.mrb[0].mxu0
    %3569 = vmatprep.mubr.f32.mxu0 0.0
    %3570 = vmatmul.mubr.f32.gmra.mrb[0].mxu0 %v3452
    %v3571 = vpop.f32.mrb[0].mxu0
    %v3572 = vadd.f32 0.0, %v3571
    %v3573 = vpop.f32.mrb[0].mxu0
    %3574 = vdwg.mxu0
    %3575 = vrot.lane.b32.xlu0 %v2513, 96
    %v3576 = vpop.permute.xlu0 %3575
    %3577 = vrot.lane.b32.xlu0 %v2515, 96
    %v3578 = vpop.permute.xlu0 %3577
    %3579 = vrot.lane.b32.xlu0 %v2517, 96
    %v3580 = vpop.permute.xlu0 %3579
    %3581 = vrot.lane.b32.xlu0 %v2519, 96
    %v3582 = vpop.permute.xlu0 %3581
    %3583 = vrot.lane.b32.xlu0 %v2521, 96
    %v3584 = vpop.permute.xlu0 %3583
    %3585 = vrot.lane.b32.xlu0 %v2523, 96
    %v3586 = vpop.permute.xlu0 %3585
    %3587 = vrot.lane.b32.xlu0 %v2525, 96
    %v3588 = vpop.permute.xlu0 %3587
    %3589 = vrot.lane.b32.xlu0 %v2527, 96
    %v3590 = vpop.permute.xlu0 %3589
    %v3591 = vsel %vm2672, %v3576, 0
    %v3593 = vsel %vm2672, %v3578, 0
    %v3595 = vsel %vm2672, %v3580, 0
    %v3597 = vsel %vm2672, %v3582, 0
    %v3599 = vsel %vm2672, %v3584, 0
    %v3601 = vsel %vm2672, %v3586, 0
    %v3603 = vsel %vm2672, %v3588, 0
    %v3605 = vsel %vm2672, %v3590, 0
    %v3607 = vsel %vm2672, %v2625, 0
    %v3609 = vsel %vm2672, %v2627, 0
    %v3611 = vsel %vm2672, %v2629, 0
    %v3613 = vsel %vm2672, %v2631, 0
    %v3615 = vsel %vm2672, %v2633, 0
    %v3617 = vsel %vm2672, %v2635, 0
    %v3619 = vsel %vm2672, %v2637, 0
    %v3621 = vsel %vm2672, %v2639, 0
    %3623 = vmatprep.subr.mxu0 0.0
    %3624 = vmatpush1.xpose.msra.mxu0 %v3607
    %3625 = vmatprep.subr.mxu0 0.0
    %3626 = vmatpush1.xpose.msra.mxu0 %v3609
    %3627 = vmatprep.subr.mxu0 0.0
    %3628 = vmatpush1.xpose.msra.mxu0 %v3611
    %3629 = vmatprep.subr.mxu0 0.0
    %3630 = vmatpush1.xpose.msra.mxu0 %v3613
    %3631 = vmatprep.subr.mxu0 0.0
    %3632 = vmatpush1.xpose.msra.mxu0 %v3615
    %3633 = vmatprep.subr.mxu0 0.0
    %3634 = vmatpush1.xpose.msra.mxu0 %v3617
    %3635 = vmatprep.subr.mxu0 0.0
    %3636 = vmatpush1.xpose.msra.mxu0 %v3619
    %3637 = vmatprep.subr.mxu0 0.0
    %3638 = vmatpush1.xpose.msra.mxu0 %v3621
    %3639 = vmatprep.subr.mxu0 0.0
    %3640 = vmatpush1.xpose.msra.mxu0 0.0
    %3641 = vmatprep.subr.mxu0 0.0
    %3642 = vmatpush1.xpose.msra.mxu0 0.0
    %3643 = vmatprep.subr.mxu0 0.0
    %3644 = vmatpush1.xpose.msra.mxu0 0.0
    %3645 = vmatprep.subr.mxu0 0.0
    %3646 = vmatpush1.xpose.msra.mxu0 0.0
    %3647 = vmatprep.subr.mxu0 0.0
    %3648 = vmatpush1.xpose.msra.mxu0 0.0
    %3649 = vmatprep.subr.mxu0 0.0
    %3650 = vmatpush1.xpose.msra.mxu0 0.0
    %3651 = vmatprep.subr.mxu0 0.0
    %3652 = vmatpush1.xpose.msra.mxu0 0.0
    %3653 = vmatprep.subr.mxu0 0.0
    %3654 = vmatpush1.xpose.msra.mxu0 0.0
    %3655 = vmatprep.subr.mxu0 0.0
    %3656 = vmatpush1.xpose.msra.mxu0 0.0
    %3657 = vmatprep.subr.mxu0 0.0
    %3658 = vmatpush1.xpose.msra.mxu0 0.0
    %3659 = vmatprep.subr.mxu0 0.0
    %3660 = vmatpush1.xpose.msra.mxu0 0.0
    %3661 = vmatprep.subr.mxu0 0.0
    %3662 = vmatpush1.xpose.msra.mxu0 0.0
    %3663 = vmatprep.subr.mxu0 0.0
    %3664 = vmatpush1.xpose.msra.mxu0 0.0
    %3665 = vmatprep.subr.mxu0 0.0
    %3666 = vmatpush1.xpose.msra.mxu0 0.0
    %3667 = vmatprep.subr.mxu0 0.0
    %3668 = vmatpush1.xpose.msra.mxu0 0.0
    %3669 = vmatprep.subr.mxu0 0.0
    %3670 = vmatpush1.xpose.msra.mxu0 0.0
    %3671 = vmatprep.subr.mxu0 0.0
    %3672 = vmatpush1.xpose.msra.mxu0 0.0
    %3673 = vmatprep.subr.mxu0 0.0
    %3674 = vmatpush1.xpose.msra.mxu0 0.0
    %3675 = vmatprep.subr.mxu0 0.0
    %3676 = vmatpush1.xpose.msra.mxu0 0.0
    %3677 = vmatprep.subr.mxu0 0.0
    %3678 = vmatpush1.xpose.msra.mxu0 0.0
    %3679 = vmatprep.subr.mxu0 0.0
    %3680 = vmatpush1.xpose.msra.mxu0 0.0
    %3681 = vmatprep.subr.mxu0 0.0
    %3682 = vmatpush1.xpose.msra.mxu0 0.0
    %3683 = vmatprep.subr.mxu0 0.0
    %3684 = vmatpush1.xpose.msra.mxu0 0.0
    %3685 = vmatprep.subr.mxu0 0.0
    %3686 = vmatpush1.xpose.msra.mxu0 0.0
    %3687 = vmatprep.mubr.f32.mxu0 0.0
    %3688 = vmatmul.mubr.f32.gmra.mrb[0].mxu0 %v3591
    %v3689 = vpop.f32.mrb[0].mxu0
    %v3690 = vadd.f32 0.0, %v3689
    %v3691 = vpop.f32.mrb[0].mxu0
    %3692 = vmatprep.mubr.f32.mxu0 0.0
    %3693 = vmatmul.mubr.f32.gmra.mrb[0].mxu0 %v3593
    %v3694 = vpop.f32.mrb[0].mxu0
    %v3695 = vadd.f32 0.0, %v3694
    %v3696 = vpop.f32.mrb[0].mxu0
    %3697 = vmatprep.mubr.f32.mxu0 0.0
    %3698 = vmatmul.mubr.f32.gmra.mrb[0].mxu0 %v3595
    %v3699 = vpop.f32.mrb[0].mxu0
    %v3700 = vadd.f32 0.0, %v3699
    %v3701 = vpop.f32.mrb[0].mxu0
    %3702 = vmatprep.mubr.f32.mxu0 0.0
    %3703 = vmatmul.mubr.f32.gmra.mrb[0].mxu0 %v3597
    %v3704 = vpop.f32.mrb[0].mxu0
    %v3705 = vadd.f32 0.0, %v3704
    %v3706 = vpop.f32.mrb[0].mxu0
    %3707 = vmatprep.mubr.f32.mxu0 0.0
    %3708 = vmatmul.mubr.f32.gmra.mrb[0].mxu0 %v3599
    %v3709 = vpop.f32.mrb[0].mxu0
    %v3710 = vadd.f32 0.0, %v3709
    %v3711 = vpop.f32.mrb[0].mxu0
    %3712 = vmatprep.mubr.f32.mxu0 0.0
    %3713 = vmatmul.mubr.f32.gmra.mrb[0].mxu0 %v3601
    %v3714 = vpop.f32.mrb[0].mxu0
    %v3715 = vadd.f32 0.0, %v3714
    %v3716 = vpop.f32.mrb[0].mxu0
    %3717 = vmatprep.mubr.f32.mxu0 0.0
    %3718 = vmatmul.mubr.f32.gmra.mrb[0].mxu0 %v3603
    %v3719 = vpop.f32.mrb[0].mxu0
    %v3720 = vadd.f32 0.0, %v3719
    %v3721 = vpop.f32.mrb[0].mxu0
    %3722 = vmatprep.mubr.f32.mxu0 0.0
    %3723 = vmatmul.mubr.f32.gmra.mrb[0].mxu0 %v3605
    %v3724 = vpop.f32.mrb[0].mxu0
    %v3725 = vadd.f32 0.0, %v3724
    %v3726 = vpop.f32.mrb[0].mxu0
    %3727 = vdwg.mxu0
    %3728 = vrot.lane.b32.xlu0 %v2529, 96
    %v3729 = vpop.permute.xlu0 %3728
    %3730 = vrot.lane.b32.xlu0 %v2531, 96
    %v3731 = vpop.permute.xlu0 %3730
    %3732 = vrot.lane.b32.xlu0 %v2533, 96
    %v3733 = vpop.permute.xlu0 %3732
    %3734 = vrot.lane.b32.xlu0 %v2535, 96
    %v3735 = vpop.permute.xlu0 %3734
    %3736 = vrot.lane.b32.xlu0 %v2537, 96
    %v3737 = vpop.permute.xlu0 %3736
    %3738 = vrot.lane.b32.xlu0 %v2539, 96
    %v3739 = vpop.permute.xlu0 %3738
    %3740 = vrot.lane.b32.xlu0 %v2541, 96
    %v3741 = vpop.permute.xlu0 %3740
    %3742 = vrot.lane.b32.xlu0 %v2543, 96
    %v3743 = vpop.permute.xlu0 %3742
    %v3744 = vsel %vm2672, %v3729, 0
    %v3746 = vsel %vm2672, %v3731, 0
    %v3748 = vsel %vm2672, %v3733, 0
    %v3750 = vsel %vm2672, %v3735, 0
    %v3752 = vsel %vm2672, %v3737, 0
    %v3754 = vsel %vm2672, %v3739, 0
    %v3756 = vsel %vm2672, %v3741, 0
    %v3758 = vsel %vm2672, %v3743, 0
    %v3760 = vsel %vm2672, %v2641, 0
    %v3762 = vsel %vm2672, %v2643, 0
    %v3764 = vsel %vm2672, %v2645, 0
    %v3766 = vsel %vm2672, %v2647, 0
    %v3768 = vsel %vm2672, %v2649, 0
    %v3770 = vsel %vm2672, %v2651, 0
    %v3772 = vsel %vm2672, %v2653, 0
    %v3774 = vsel %vm2672, %v2655, 0
    %3776 = vmatprep.subr.mxu0 0.0
    %3777 = vmatpush1.xpose.msra.mxu0 %v3760
    %3778 = vmatprep.subr.mxu0 0.0
    %3779 = vmatpush1.xpose.msra.mxu0 %v3762
    %3780 = vmatprep.subr.mxu0 0.0
    %3781 = vmatpush1.xpose.msra.mxu0 %v3764
    %3782 = vmatprep.subr.mxu0 0.0
    %3783 = vmatpush1.xpose.msra.mxu0 %v3766
    %3784 = vmatprep.subr.mxu0 0.0
    %3785 = vmatpush1.xpose.msra.mxu0 %v3768
    %3786 = vmatprep.subr.mxu0 0.0
    %3787 = vmatpush1.xpose.msra.mxu0 %v3770
    %3788 = vmatprep.subr.mxu0 0.0
    %3789 = vmatpush1.xpose.msra.mxu0 %v3772
    %3790 = vmatprep.subr.mxu0 0.0
    %3791 = vmatpush1.xpose.msra.mxu0 %v3774
    %3792 = vmatprep.subr.mxu0 0.0
    %3793 = vmatpush1.xpose.msra.mxu0 0.0
    %3794 = vmatprep.subr.mxu0 0.0
    %3795 = vmatpush1.xpose.msra.mxu0 0.0
    %3796 = vmatprep.subr.mxu0 0.0
    %3797 = vmatpush1.xpose.msra.mxu0 0.0
    %3798 = vmatprep.subr.mxu0 0.0
    %3799 = vmatpush1.xpose.msra.mxu0 0.0
    %3800 = vmatprep.subr.mxu0 0.0
    %3801 = vmatpush1.xpose.msra.mxu0 0.0
    %3802 = vmatprep.subr.mxu0 0.0
    %3803 = vmatpush1.xpose.msra.mxu0 0.0
    %3804 = vmatprep.subr.mxu0 0.0
    %3805 = vmatpush1.xpose.msra.mxu0 0.0
    %3806 = vmatprep.subr.mxu0 0.0
    %3807 = vmatpush1.xpose.msra.mxu0 0.0
    %3808 = vmatprep.subr.mxu0 0.0
    %3809 = vmatpush1.xpose.msra.mxu0 0.0
    %3810 = vmatprep.subr.mxu0 0.0
    %3811 = vmatpush1.xpose.msra.mxu0 0.0
    %3812 = vmatprep.subr.mxu0 0.0
    %3813 = vmatpush1.xpose.msra.mxu0 0.0
    %3814 = vmatprep.subr.mxu0 0.0
    %3815 = vmatpush1.xpose.msra.mxu0 0.0
    %3816 = vmatprep.subr.mxu0 0.0
    %3817 = vmatpush1.xpose.msra.mxu0 0.0
    %3818 = vmatprep.subr.mxu0 0.0
    %3819 = vmatpush1.xpose.msra.mxu0 0.0
    %3820 = vmatprep.subr.mxu0 0.0
    %3821 = vmatpush1.xpose.msra.mxu0 0.0
    %3822 = vmatprep.subr.mxu0 0.0
    %3823 = vmatpush1.xpose.msra.mxu0 0.0
    %3824 = vmatprep.subr.mxu0 0.0
    %3825 = vmatpush1.xpose.msra.mxu0 0.0
    %3826 = vmatprep.subr.mxu0 0.0
    %3827 = vmatpush1.xpose.msra.mxu0 0.0
    %3828 = vmatprep.subr.mxu0 0.0
    %3829 = vmatpush1.xpose.msra.mxu0 0.0
    %3830 = vmatprep.subr.mxu0 0.0
    %3831 = vmatpush1.xpose.msra.mxu0 0.0
    %3832 = vmatprep.subr.mxu0 0.0
    %3833 = vmatpush1.xpose.msra.mxu0 0.0
    %3834 = vmatprep.subr.mxu0 0.0
    %3835 = vmatpush1.xpose.msra.mxu0 0.0
    %3836 = vmatprep.subr.mxu0 0.0
    %3837 = vmatpush1.xpose.msra.mxu0 0.0
    %3838 = vmatprep.subr.mxu0 0.0
    %3839 = vmatpush1.xpose.msra.mxu0 0.0
    %3840 = vmatprep.mubr.f32.mxu0 0.0
    %3841 = vmatmul.mubr.f32.gmra.mrb[0].mxu0 %v3744
    %v3842 = vpop.f32.mrb[0].mxu0
    %v3843 = vadd.f32 0.0, %v3842
    %v3844 = vpop.f32.mrb[0].mxu0
    %3845 = vmatprep.mubr.f32.mxu0 0.0
    %3846 = vmatmul.mubr.f32.gmra.mrb[0].mxu0 %v3746
    %v3847 = vpop.f32.mrb[0].mxu0
    %v3848 = vadd.f32 0.0, %v3847
    %v3849 = vpop.f32.mrb[0].mxu0
    %3850 = vmatprep.mubr.f32.mxu0 0.0
    %3851 = vmatmul.mubr.f32.gmra.mrb[0].mxu0 %v3748
    %v3852 = vpop.f32.mrb[0].mxu0
    %v3853 = vadd.f32 0.0, %v3852
    %v3854 = vpop.f32.mrb[0].mxu0
    %3855 = vmatprep.mubr.f32.mxu0 0.0
    %3856 = vmatmul.mubr.f32.gmra.mrb[0].mxu0 %v3750
    %v3857 = vpop.f32.mrb[0].mxu0
    %v3858 = vadd.f32 0.0, %v3857
    %v3859 = vpop.f32.mrb[0].mxu0
    %3860 = vmatprep.mubr.f32.mxu0 0.0
    %3861 = vmatmul.mubr.f32.gmra.mrb[0].mxu0 %v3752
    %v3862 = vpop.f32.mrb[0].mxu0
    %v3863 = vadd.f32 0.0, %v3862
    %v3864 = vpop.f32.mrb[0].mxu0
    %3865 = vmatprep.mubr.f32.mxu0 0.0
    %3866 = vmatmul.mubr.f32.gmra.mrb[0].mxu0 %v3754
    %v3867 = vpop.f32.mrb[0].mxu0
    %v3868 = vadd.f32 0.0, %v3867
    %v3869 = vpop.f32.mrb[0].mxu0
    %3870 = vmatprep.mubr.f32.mxu0 0.0
    %3871 = vmatmul.mubr.f32.gmra.mrb[0].mxu0 %v3756
    %v3872 = vpop.f32.mrb[0].mxu0
    %v3873 = vadd.f32 0.0, %v3872
    %v3874 = vpop.f32.mrb[0].mxu0
    %3875 = vmatprep.mubr.f32.mxu0 0.0
    %3876 = vmatmul.mubr.f32.gmra.mrb[0].mxu0 %v3758
    %v3877 = vpop.f32.mrb[0].mxu0
    %v3878 = vadd.f32 0.0, %v3877
    %v3879 = vpop.f32.mrb[0].mxu0
    %3880 = vdwg.mxu0
    %v3881 = vsel %vm867, %v2772, -inf
    %3882 = vmax.xlane.f32.xlu0 %v3881
    %v3883 = vpop.xlane.xlu0 %3882
    %v3884 = vsel %vm867, %v2777, -inf
    %3885 = vmax.xlane.f32.xlu0 %v3884
    %v3886 = vpop.xlane.xlu0 %3885
    %v3887 = vsel %vm867, %v2782, -inf
    %3888 = vmax.xlane.f32.xlu0 %v3887
    %v3889 = vpop.xlane.xlu0 %3888
    %v3890 = vsel %vm867, %v2787, -inf
    %3891 = vmax.xlane.f32.xlu0 %v3890
    %v3892 = vpop.xlane.xlu0 %3891
    %v3893 = vsel %vm867, %v2792, -inf
    %3894 = vmax.xlane.f32.xlu0 %v3893
    %v3895 = vpop.xlane.xlu0 %3894
    %v3896 = vsel %vm867, %v2797, -inf
    %3897 = vmax.xlane.f32.xlu0 %v3896
    %v3898 = vpop.xlane.xlu0 %3897
    %v3899 = vsel %vm867, %v2802, -inf
    %3900 = vmax.xlane.f32.xlu0 %v3899
    %v3901 = vpop.xlane.xlu0 %3900
    %v3902 = vsel %vm867, %v2807, -inf
    %3903 = vmax.xlane.f32.xlu0 %v3902
    %v3904 = vpop.xlane.xlu0 %3903
    %v3905 = vsel %vm867, %v2925, -inf
    %3906 = vmax.xlane.f32.xlu0 %v3905
    %v3907 = vpop.xlane.xlu0 %3906
    %v3908 = vsel %vm867, %v2930, -inf
    %3909 = vmax.xlane.f32.xlu0 %v3908
    %v3910 = vpop.xlane.xlu0 %3909
    %v3911 = vsel %vm867, %v2935, -inf
    %3912 = vmax.xlane.f32.xlu0 %v3911
    %v3913 = vpop.xlane.xlu0 %3912
    %v3914 = vsel %vm867, %v2940, -inf
    %3915 = vmax.xlane.f32.xlu0 %v3914
    %v3916 = vpop.xlane.xlu0 %3915
    %v3917 = vsel %vm867, %v2945, -inf
    %3918 = vmax.xlane.f32.xlu0 %v3917
    %v3919 = vpop.xlane.xlu0 %3918
    %v3920 = vsel %vm867, %v2950, -inf
    %3921 = vmax.xlane.f32.xlu0 %v3920
    %v3922 = vpop.xlane.xlu0 %3921
    %v3923 = vsel %vm867, %v2955, -inf
    %3924 = vmax.xlane.f32.xlu0 %v3923
    %v3925 = vpop.xlane.xlu0 %3924
    %v3926 = vsel %vm867, %v2960, -inf
    %3927 = vmax.xlane.f32.xlu0 %v3926
    %v3928 = vpop.xlane.xlu0 %3927
    %v3929 = vsel %vm867, %v3078, -inf
    %3930 = vmax.xlane.f32.xlu0 %v3929
    %v3931 = vpop.xlane.xlu0 %3930
    %v3932 = vsel %vm867, %v3083, -inf
    %3933 = vmax.xlane.f32.xlu0 %v3932
    %v3934 = vpop.xlane.xlu0 %3933
    %v3935 = vsel %vm867, %v3088, -inf
    %3936 = vmax.xlane.f32.xlu0 %v3935
    %v3937 = vpop.xlane.xlu0 %3936
    %v3938 = vsel %vm867, %v3093, -inf
    %3939 = vmax.xlane.f32.xlu0 %v3938
    %v3940 = vpop.xlane.xlu0 %3939
    %v3941 = vsel %vm867, %v3098, -inf
    %3942 = vmax.xlane.f32.xlu0 %v3941
    %v3943 = vpop.xlane.xlu0 %3942
    %v3944 = vsel %vm867, %v3103, -inf
    %3945 = vmax.xlane.f32.xlu0 %v3944
    %v3946 = vpop.xlane.xlu0 %3945
    %v3947 = vsel %vm867, %v3108, -inf
    %3948 = vmax.xlane.f32.xlu0 %v3947
    %v3949 = vpop.xlane.xlu0 %3948
    %v3950 = vsel %vm867, %v3113, -inf
    %3951 = vmax.xlane.f32.xlu0 %v3950
    %v3952 = vpop.xlane.xlu0 %3951
    %v3953 = vsel %vm867, %v3231, -inf
    %3954 = vmax.xlane.f32.xlu0 %v3953
    %v3955 = vpop.xlane.xlu0 %3954
    %v3956 = vsel %vm867, %v3236, -inf
    %3957 = vmax.xlane.f32.xlu0 %v3956
    %v3958 = vpop.xlane.xlu0 %3957
    %v3959 = vsel %vm867, %v3241, -inf
    %3960 = vmax.xlane.f32.xlu0 %v3959
    %v3961 = vpop.xlane.xlu0 %3960
    %v3962 = vsel %vm867, %v3246, -inf
    %3963 = vmax.xlane.f32.xlu0 %v3962
    %v3964 = vpop.xlane.xlu0 %3963
    %v3965 = vsel %vm867, %v3251, -inf
    %3966 = vmax.xlane.f32.xlu0 %v3965
    %v3967 = vpop.xlane.xlu0 %3966
    %v3968 = vsel %vm867, %v3256, -inf
    %3969 = vmax.xlane.f32.xlu0 %v3968
    %v3970 = vpop.xlane.xlu0 %3969
    %v3971 = vsel %vm867, %v3261, -inf
    %3972 = vmax.xlane.f32.xlu0 %v3971
    %v3973 = vpop.xlane.xlu0 %3972
    %v3974 = vsel %vm867, %v3266, -inf
    %3975 = vmax.xlane.f32.xlu0 %v3974
    %v3976 = vpop.xlane.xlu0 %3975
    %v3977 = vsel %vm867, %v3384, -inf
    %3978 = vmax.xlane.f32.xlu0 %v3977
    %v3979 = vpop.xlane.xlu0 %3978
    %v3980 = vsel %vm867, %v3389, -inf
    %3981 = vmax.xlane.f32.xlu0 %v3980
    %v3982 = vpop.xlane.xlu0 %3981
    %v3983 = vsel %vm867, %v3394, -inf
    %3984 = vmax.xlane.f32.xlu0 %v3983
    %v3985 = vpop.xlane.xlu0 %3984
    %v3986 = vsel %vm867, %v3399, -inf
    %3987 = vmax.xlane.f32.xlu0 %v3986
    %v3988 = vpop.xlane.xlu0 %3987
    %v3989 = vsel %vm867, %v3404, -inf
    %3990 = vmax.xlane.f32.xlu0 %v3989
    %v3991 = vpop.xlane.xlu0 %3990
    %v3992 = vsel %vm867, %v3409, -inf
    %3993 = vmax.xlane.f32.xlu0 %v3992
    %v3994 = vpop.xlane.xlu0 %3993
    %v3995 = vsel %vm867, %v3414, -inf
    %3996 = vmax.xlane.f32.xlu0 %v3995
    %v3997 = vpop.xlane.xlu0 %3996
    %v3998 = vsel %vm867, %v3419, -inf
    %3999 = vmax.xlane.f32.xlu0 %v3998
    %v4000 = vpop.xlane.xlu0 %3999
    %v4001 = vsel %vm867, %v3537, -inf
    %4002 = vmax.xlane.f32.xlu0 %v4001
    %v4003 = vpop.xlane.xlu0 %4002
    %v4004 = vsel %vm867, %v3542, -inf
    %4005 = vmax.xlane.f32.xlu0 %v4004
    %v4006 = vpop.xlane.xlu0 %4005
    %v4007 = vsel %vm867, %v3547, -inf
    %4008 = vmax.xlane.f32.xlu0 %v4007
    %v4009 = vpop.xlane.xlu0 %4008
    %v4010 = vsel %vm867, %v3552, -inf
    %4011 = vmax.xlane.f32.xlu0 %v4010
    %v4012 = vpop.xlane.xlu0 %4011
    %v4013 = vsel %vm867, %v3557, -inf
    %4014 = vmax.xlane.f32.xlu0 %v4013
    %v4015 = vpop.xlane.xlu0 %4014
    %v4016 = vsel %vm867, %v3562, -inf
    %4017 = vmax.xlane.f32.xlu0 %v4016
    %v4018 = vpop.xlane.xlu0 %4017
    %v4019 = vsel %vm867, %v3567, -inf
    %4020 = vmax.xlane.f32.xlu0 %v4019
    %v4021 = vpop.xlane.xlu0 %4020
    %v4022 = vsel %vm867, %v3572, -inf
    %4023 = vmax.xlane.f32.xlu0 %v4022
    %v4024 = vpop.xlane.xlu0 %4023
    %v4025 = vsel %vm867, %v3690, -inf
    %4026 = vmax.xlane.f32.xlu0 %v4025
    %v4027 = vpop.xlane.xlu0 %4026
    %v4028 = vsel %vm867, %v3695, -inf
    %4029 = vmax.xlane.f32.xlu0 %v4028
    %v4030 = vpop.xlane.xlu0 %4029
    %v4031 = vsel %vm867, %v3700, -inf
    %4032 = vmax.xlane.f32.xlu0 %v4031
    %v4033 = vpop.xlane.xlu0 %4032
    %v4034 = vsel %vm867, %v3705, -inf
    %4035 = vmax.xlane.f32.xlu0 %v4034
    %v4036 = vpop.xlane.xlu0 %4035
    %v4037 = vsel %vm867, %v3710, -inf
    %4038 = vmax.xlane.f32.xlu0 %v4037
    %v4039 = vpop.xlane.xlu0 %4038
    %v4040 = vsel %vm867, %v3715, -inf
    %4041 = vmax.xlane.f32.xlu0 %v4040
    %v4042 = vpop.xlane.xlu0 %4041
    %v4043 = vsel %vm867, %v3720, -inf
    %4044 = vmax.xlane.f32.xlu0 %v4043
    %v4045 = vpop.xlane.xlu0 %4044
    %v4046 = vsel %vm867, %v3725, -inf
    %4047 = vmax.xlane.f32.xlu0 %v4046
    %v4048 = vpop.xlane.xlu0 %4047
    %v4049 = vsel %vm867, %v3843, -inf
    %4050 = vmax.xlane.f32.xlu0 %v4049
    %v4051 = vpop.xlane.xlu0 %4050
    %v4052 = vsel %vm867, %v3848, -inf
    %4053 = vmax.xlane.f32.xlu0 %v4052
    %v4054 = vpop.xlane.xlu0 %4053
    %v4055 = vsel %vm867, %v3853, -inf
    %4056 = vmax.xlane.f32.xlu0 %v4055
    %v4057 = vpop.xlane.xlu0 %4056
    %v4058 = vsel %vm867, %v3858, -inf
    %4059 = vmax.xlane.f32.xlu0 %v4058
    %v4060 = vpop.xlane.xlu0 %4059
    %v4061 = vsel %vm867, %v3863, -inf
    %4062 = vmax.xlane.f32.xlu0 %v4061
    %v4063 = vpop.xlane.xlu0 %4062
    %v4064 = vsel %vm867, %v3868, -inf
    %4065 = vmax.xlane.f32.xlu0 %v4064
    %v4066 = vpop.xlane.xlu0 %4065
    %v4067 = vsel %vm867, %v3873, -inf
    %4068 = vmax.xlane.f32.xlu0 %v4067
    %v4069 = vpop.xlane.xlu0 %4068
    %v4070 = vsel %vm867, %v3878, -inf
    %4071 = vmax.xlane.f32.xlu0 %v4070
    %v4072 = vpop.xlane.xlu0 %4071
    %v4073 = vsub.f32 %v2772, %v3883
    %v4074 = vsub.f32 %v2777, %v3886
    %v4075 = vsub.f32 %v2782, %v3889
    %v4076 = vsub.f32 %v2787, %v3892
    %v4077 = vsub.f32 %v2792, %v3895
    %v4078 = vsub.f32 %v2797, %v3898
    %v4079 = vsub.f32 %v2802, %v3901
    %v4080 = vsub.f32 %v2807, %v3904
    %v4081 = vsub.f32 %v2925, %v3907
    %v4082 = vsub.f32 %v2930, %v3910
    %v4083 = vsub.f32 %v2935, %v3913
    %v4084 = vsub.f32 %v2940, %v3916
    %v4085 = vsub.f32 %v2945, %v3919
    %v4086 = vsub.f32 %v2950, %v3922
    %v4087 = vsub.f32 %v2955, %v3925
    %v4088 = vsub.f32 %v2960, %v3928
    %v4089 = vsub.f32 %v3078, %v3931
    %v4090 = vsub.f32 %v3083, %v3934
    %v4091 = vsub.f32 %v3088, %v3937
    %v4092 = vsub.f32 %v3093, %v3940
    %v4093 = vsub.f32 %v3098, %v3943
    %v4094 = vsub.f32 %v3103, %v3946
    %v4095 = vsub.f32 %v3108, %v3949
    %v4096 = vsub.f32 %v3113, %v3952
    %v4097 = vsub.f32 %v3231, %v3955
    %v4098 = vsub.f32 %v3236, %v3958
    %v4099 = vsub.f32 %v3241, %v3961
    %v4100 = vsub.f32 %v3246, %v3964
    %v4101 = vsub.f32 %v3251, %v3967
    %v4102 = vsub.f32 %v3256, %v3970
    %v4103 = vsub.f32 %v3261, %v3973
    %v4104 = vsub.f32 %v3266, %v3976
    %v4105 = vsub.f32 %v3384, %v3979
    %v4106 = vsub.f32 %v3389, %v3982
    %v4107 = vsub.f32 %v3394, %v3985
    %v4108 = vsub.f32 %v3399, %v3988
    %v4109 = vsub.f32 %v3404, %v3991
    %v4110 = vsub.f32 %v3409, %v3994
    %v4111 = vsub.f32 %v3414, %v3997
    %v4112 = vsub.f32 %v3419, %v4000
    %v4113 = vsub.f32 %v3537, %v4003
    %v4114 = vsub.f32 %v3542, %v4006
    %v4115 = vsub.f32 %v3547, %v4009
    %v4116 = vsub.f32 %v3552, %v4012
    %v4117 = vsub.f32 %v3557, %v4015
    %v4118 = vsub.f32 %v3562, %v4018
    %v4119 = vsub.f32 %v3567, %v4021
    %v4120 = vsub.f32 %v3572, %v4024
    %v4121 = vsub.f32 %v3690, %v4027
    %v4122 = vsub.f32 %v3695, %v4030
    %v4123 = vsub.f32 %v3700, %v4033
    %v4124 = vsub.f32 %v3705, %v4036
    %v4125 = vsub.f32 %v3710, %v4039
    %v4126 = vsub.f32 %v3715, %v4042
    %v4127 = vsub.f32 %v3720, %v4045
    %v4128 = vsub.f32 %v3725, %v4048
    %v4129 = vsub.f32 %v3843, %v4051
    %v4130 = vsub.f32 %v3848, %v4054
    %v4131 = vsub.f32 %v3853, %v4057
    %v4132 = vsub.f32 %v3858, %v4060
    %v4133 = vsub.f32 %v3863, %v4063
    %v4134 = vsub.f32 %v3868, %v4066
    %v4135 = vsub.f32 %v3873, %v4069
    %v4136 = vsub.f32 %v3878, %v4072
    %v4137 = vmul.f32 %v4073, 1.442695
    %v4138 = vpow.pop %v4137
    %v4139 = vmul.f32 %v4074, 1.442695
    %v4140 = vpow.pop %v4139
    %v4141 = vmul.f32 %v4075, 1.442695
    %v4142 = vpow.pop %v4141
    %v4143 = vmul.f32 %v4076, 1.442695
    %v4144 = vpow.pop %v4143
    %v4145 = vmul.f32 %v4077, 1.442695
    %v4146 = vpow.pop %v4145
    %v4147 = vmul.f32 %v4078, 1.442695
    %v4148 = vpow.pop %v4147
    %v4149 = vmul.f32 %v4079, 1.442695
    %v4150 = vpow.pop %v4149
    %v4151 = vmul.f32 %v4080, 1.442695
    %v4152 = vpow.pop %v4151
    %v4153 = vmul.f32 %v4081, 1.442695
    %v4154 = vpow.pop %v4153
    %v4155 = vmul.f32 %v4082, 1.442695
    %v4156 = vpow.pop %v4155
    %v4157 = vmul.f32 %v4083, 1.442695
    %v4158 = vpow.pop %v4157
    %v4159 = vmul.f32 %v4084, 1.442695
    %v4160 = vpow.pop %v4159
    %v4161 = vmul.f32 %v4085, 1.442695
    %v4162 = vpow.pop %v4161
    %v4163 = vmul.f32 %v4086, 1.442695
    %v4164 = vpow.pop %v4163
    %v4165 = vmul.f32 %v4087, 1.442695
    %v4166 = vpow.pop %v4165
    %v4167 = vmul.f32 %v4088, 1.442695
    %v4168 = vpow.pop %v4167
    %v4169 = vmul.f32 %v4089, 1.442695
    %v4170 = vpow.pop %v4169
    %v4171 = vmul.f32 %v4090, 1.442695
    %v4172 = vpow.pop %v4171
    %v4173 = vmul.f32 %v4091, 1.442695
    %v4174 = vpow.pop %v4173
    %v4175 = vmul.f32 %v4092, 1.442695
    %v4176 = vpow.pop %v4175
    %v4177 = vmul.f32 %v4093, 1.442695
    %v4178 = vpow.pop %v4177
    %v4179 = vmul.f32 %v4094, 1.442695
    %v4180 = vpow.pop %v4179
    %v4181 = vmul.f32 %v4095, 1.442695
    %v4182 = vpow.pop %v4181
    %v4183 = vmul.f32 %v4096, 1.442695
    %v4184 = vpow.pop %v4183
    %v4185 = vmul.f32 %v4097, 1.442695
    %v4186 = vpow.pop %v4185
    %v4187 = vmul.f32 %v4098, 1.442695
    %v4188 = vpow.pop %v4187
    %v4189 = vmul.f32 %v4099, 1.442695
    %v4190 = vpow.pop %v4189
    %v4191 = vmul.f32 %v4100, 1.442695
    %v4192 = vpow.pop %v4191
    %v4193 = vmul.f32 %v4101, 1.442695
    %v4194 = vpow.pop %v4193
    %v4195 = vmul.f32 %v4102, 1.442695
    %v4196 = vpow.pop %v4195
    %v4197 = vmul.f32 %v4103, 1.442695
    %v4198 = vpow.pop %v4197
    %v4199 = vmul.f32 %v4104, 1.442695
    %v4200 = vpow.pop %v4199
    %v4201 = vmul.f32 %v4105, 1.442695
    %v4202 = vpow.pop %v4201
    %v4203 = vmul.f32 %v4106, 1.442695
    %v4204 = vpow.pop %v4203
    %v4205 = vmul.f32 %v4107, 1.442695
    %v4206 = vpow.pop %v4205
    %v4207 = vmul.f32 %v4108, 1.442695
    %v4208 = vpow.pop %v4207
    %v4209 = vmul.f32 %v4109, 1.442695
    %v4210 = vpow.pop %v4209
    %v4211 = vmul.f32 %v4110, 1.442695
    %v4212 = vpow.pop %v4211
    %v4213 = vmul.f32 %v4111, 1.442695
    %v4214 = vpow.pop %v4213
    %v4215 = vmul.f32 %v4112, 1.442695
    %v4216 = vpow.pop %v4215
    %v4217 = vmul.f32 %v4113, 1.442695
    %v4218 = vpow.pop %v4217
    %v4219 = vmul.f32 %v4114, 1.442695
    %v4220 = vpow.pop %v4219
    %v4221 = vmul.f32 %v4115, 1.442695
    %v4222 = vpow.pop %v4221
    %v4223 = vmul.f32 %v4116, 1.442695
    %v4224 = vpow.pop %v4223
    %v4225 = vmul.f32 %v4117, 1.442695
    %v4226 = vpow.pop %v4225
    %v4227 = vmul.f32 %v4118, 1.442695
    %v4228 = vpow.pop %v4227
    %v4229 = vmul.f32 %v4119, 1.442695
    %v4230 = vpow.pop %v4229
    %v4231 = vmul.f32 %v4120, 1.442695
    %v4232 = vpow.pop %v4231
    %v4233 = vmul.f32 %v4121, 1.442695
    %v4234 = vpow.pop %v4233
    %v4235 = vmul.f32 %v4122, 1.442695
    %v4236 = vpow.pop %v4235
    %v4237 = vmul.f32 %v4123, 1.442695
    %v4238 = vpow.pop %v4237
    %v4239 = vmul.f32 %v4124, 1.442695
    %v4240 = vpow.pop %v4239
    %v4241 = vmul.f32 %v4125, 1.442695
    %v4242 = vpow.pop %v4241
    %v4243 = vmul.f32 %v4126, 1.442695
    %v4244 = vpow.pop %v4243
    %v4245 = vmul.f32 %v4127, 1.442695
    %v4246 = vpow.pop %v4245
    %v4247 = vmul.f32 %v4128, 1.442695
    %v4248 = vpow.pop %v4247
    %v4249 = vmul.f32 %v4129, 1.442695
    %v4250 = vpow.pop %v4249
    %v4251 = vmul.f32 %v4130, 1.442695
    %v4252 = vpow.pop %v4251
    %v4253 = vmul.f32 %v4131, 1.442695
    %v4254 = vpow.pop %v4253
    %v4255 = vmul.f32 %v4132, 1.442695
    %v4256 = vpow.pop %v4255
    %v4257 = vmul.f32 %v4133, 1.442695
    %v4258 = vpow.pop %v4257
    %v4259 = vmul.f32 %v4134, 1.442695
    %v4260 = vpow.pop %v4259
    %v4261 = vmul.f32 %v4135, 1.442695
    %v4262 = vpow.pop %v4261
    %v4263 = vmul.f32 %v4136, 1.442695
    %v4264 = vpow.pop %v4263
    %v4265 = vsel %vm867, %v4138, 0.0
    %4266 = vadd.xlane.f32.xlu0 %v4265
    %v4267 = vpop.xlane.xlu0 %4266
    %v4268 = vsel %vm867, %v4140, 0.0
    %4269 = vadd.xlane.f32.xlu0 %v4268
    %v4270 = vpop.xlane.xlu0 %4269
    %v4271 = vsel %vm867, %v4142, 0.0
    %4272 = vadd.xlane.f32.xlu0 %v4271
    %v4273 = vpop.xlane.xlu0 %4272
    %v4274 = vsel %vm867, %v4144, 0.0
    %4275 = vadd.xlane.f32.xlu0 %v4274
    %v4276 = vpop.xlane.xlu0 %4275
    %v4277 = vsel %vm867, %v4146, 0.0
    %4278 = vadd.xlane.f32.xlu0 %v4277
    %v4279 = vpop.xlane.xlu0 %4278
    %v4280 = vsel %vm867, %v4148, 0.0
    %4281 = vadd.xlane.f32.xlu0 %v4280
    %v4282 = vpop.xlane.xlu0 %4281
    %v4283 = vsel %vm867, %v4150, 0.0
    %4284 = vadd.xlane.f32.xlu0 %v4283
    %v4285 = vpop.xlane.xlu0 %4284
    %v4286 = vsel %vm867, %v4152, 0.0
    %4287 = vadd.xlane.f32.xlu0 %v4286
    %v4288 = vpop.xlane.xlu0 %4287
    %v4289 = vsel %vm867, %v4154, 0.0
    %4290 = vadd.xlane.f32.xlu0 %v4289
    %v4291 = vpop.xlane.xlu0 %4290
    %v4292 = vsel %vm867, %v4156, 0.0
    %4293 = vadd.xlane.f32.xlu0 %v4292
    %v4294 = vpop.xlane.xlu0 %4293
    %v4295 = vsel %vm867, %v4158, 0.0
    %4296 = vadd.xlane.f32.xlu0 %v4295
    %v4297 = vpop.xlane.xlu0 %4296
    %v4298 = vsel %vm867, %v4160, 0.0
    %4299 = vadd.xlane.f32.xlu0 %v4298
    %v4300 = vpop.xlane.xlu0 %4299
    %v4301 = vsel %vm867, %v4162, 0.0
    %4302 = vadd.xlane.f32.xlu0 %v4301
    %v4303 = vpop.xlane.xlu0 %4302
    %v4304 = vsel %vm867, %v4164, 0.0
    %4305 = vadd.xlane.f32.xlu0 %v4304
    %v4306 = vpop.xlane.xlu0 %4305
    %v4307 = vsel %vm867, %v4166, 0.0
    %4308 = vadd.xlane.f32.xlu0 %v4307
    %v4309 = vpop.xlane.xlu0 %4308
    %v4310 = vsel %vm867, %v4168, 0.0
    %4311 = vadd.xlane.f32.xlu0 %v4310
    %v4312 = vpop.xlane.xlu0 %4311
    %v4313 = vsel %vm867, %v4170, 0.0
    %4314 = vadd.xlane.f32.xlu0 %v4313
    %v4315 = vpop.xlane.xlu0 %4314
    %v4316 = vsel %vm867, %v4172, 0.0
    %4317 = vadd.xlane.f32.xlu0 %v4316
    %v4318 = vpop.xlane.xlu0 %4317
    %v4319 = vsel %vm867, %v4174, 0.0
    %4320 = vadd.xlane.f32.xlu0 %v4319
    %v4321 = vpop.xlane.xlu0 %4320
    %v4322 = vsel %vm867, %v4176, 0.0
    %4323 = vadd.xlane.f32.xlu0 %v4322
    %v4324 = vpop.xlane.xlu0 %4323
    %v4325 = vsel %vm867, %v4178, 0.0
    %4326 = vadd.xlane.f32.xlu0 %v4325
    %v4327 = vpop.xlane.xlu0 %4326
    %v4328 = vsel %vm867, %v4180, 0.0
    %4329 = vadd.xlane.f32.xlu0 %v4328
    %v4330 = vpop.xlane.xlu0 %4329
    %v4331 = vsel %vm867, %v4182, 0.0
    %4332 = vadd.xlane.f32.xlu0 %v4331
    %v4333 = vpop.xlane.xlu0 %4332
    %v4334 = vsel %vm867, %v4184, 0.0
    %4335 = vadd.xlane.f32.xlu0 %v4334
    %v4336 = vpop.xlane.xlu0 %4335
    %v4337 = vsel %vm867, %v4186, 0.0
    %4338 = vadd.xlane.f32.xlu0 %v4337
    %v4339 = vpop.xlane.xlu0 %4338
    %v4340 = vsel %vm867, %v4188, 0.0
    %4341 = vadd.xlane.f32.xlu0 %v4340
    %v4342 = vpop.xlane.xlu0 %4341
    %v4343 = vsel %vm867, %v4190, 0.0
    %4344 = vadd.xlane.f32.xlu0 %v4343
    %v4345 = vpop.xlane.xlu0 %4344
    %v4346 = vsel %vm867, %v4192, 0.0
    %4347 = vadd.xlane.f32.xlu0 %v4346
    %v4348 = vpop.xlane.xlu0 %4347
    %v4349 = vsel %vm867, %v4194, 0.0
    %4350 = vadd.xlane.f32.xlu0 %v4349
    %v4351 = vpop.xlane.xlu0 %4350
    %v4352 = vsel %vm867, %v4196, 0.0
    %4353 = vadd.xlane.f32.xlu0 %v4352
    %v4354 = vpop.xlane.xlu0 %4353
    %v4355 = vsel %vm867, %v4198, 0.0
    %4356 = vadd.xlane.f32.xlu0 %v4355
    %v4357 = vpop.xlane.xlu0 %4356
    %v4358 = vsel %vm867, %v4200, 0.0
    %4359 = vadd.xlane.f32.xlu0 %v4358
    %v4360 = vpop.xlane.xlu0 %4359
    %v4361 = vsel %vm867, %v4202, 0.0
    %4362 = vadd.xlane.f32.xlu0 %v4361
    %v4363 = vpop.xlane.xlu0 %4362
    %v4364 = vsel %vm867, %v4204, 0.0
    %4365 = vadd.xlane.f32.xlu0 %v4364
    %v4366 = vpop.xlane.xlu0 %4365
    %v4367 = vsel %vm867, %v4206, 0.0
    %4368 = vadd.xlane.f32.xlu0 %v4367
    %v4369 = vpop.xlane.xlu0 %4368
    %v4370 = vsel %vm867, %v4208, 0.0
    %4371 = vadd.xlane.f32.xlu0 %v4370
    %v4372 = vpop.xlane.xlu0 %4371
    %v4373 = vsel %vm867, %v4210, 0.0
    %4374 = vadd.xlane.f32.xlu0 %v4373
    %v4375 = vpop.xlane.xlu0 %4374
    %v4376 = vsel %vm867, %v4212, 0.0
    %4377 = vadd.xlane.f32.xlu0 %v4376
    %v4378 = vpop.xlane.xlu0 %4377
    %v4379 = vsel %vm867, %v4214, 0.0
    %4380 = vadd.xlane.f32.xlu0 %v4379
    %v4381 = vpop.xlane.xlu0 %4380
    %v4382 = vsel %vm867, %v4216, 0.0
    %4383 = vadd.xlane.f32.xlu0 %v4382
    %v4384 = vpop.xlane.xlu0 %4383
    %v4385 = vsel %vm867, %v4218, 0.0
    %4386 = vadd.xlane.f32.xlu0 %v4385
    %v4387 = vpop.xlane.xlu0 %4386
    %v4388 = vsel %vm867, %v4220, 0.0
    %4389 = vadd.xlane.f32.xlu0 %v4388
    %v4390 = vpop.xlane.xlu0 %4389
    %v4391 = vsel %vm867, %v4222, 0.0
    %4392 = vadd.xlane.f32.xlu0 %v4391
    %v4393 = vpop.xlane.xlu0 %4392
    %v4394 = vsel %vm867, %v4224, 0.0
    %4395 = vadd.xlane.f32.xlu0 %v4394
    %v4396 = vpop.xlane.xlu0 %4395
    %v4397 = vsel %vm867, %v4226, 0.0
    %4398 = vadd.xlane.f32.xlu0 %v4397
    %v4399 = vpop.xlane.xlu0 %4398
    %v4400 = vsel %vm867, %v4228, 0.0
    %4401 = vadd.xlane.f32.xlu0 %v4400
    %v4402 = vpop.xlane.xlu0 %4401
    %v4403 = vsel %vm867, %v4230, 0.0
    %4404 = vadd.xlane.f32.xlu0 %v4403
    %v4405 = vpop.xlane.xlu0 %4404
    %v4406 = vsel %vm867, %v4232, 0.0
    %4407 = vadd.xlane.f32.xlu0 %v4406
    %v4408 = vpop.xlane.xlu0 %4407
    %v4409 = vsel %vm867, %v4234, 0.0
    %4410 = vadd.xlane.f32.xlu0 %v4409
    %v4411 = vpop.xlane.xlu0 %4410
    %v4412 = vsel %vm867, %v4236, 0.0
    %4413 = vadd.xlane.f32.xlu0 %v4412
    %v4414 = vpop.xlane.xlu0 %4413
    %v4415 = vsel %vm867, %v4238, 0.0
    %4416 = vadd.xlane.f32.xlu0 %v4415
    %v4417 = vpop.xlane.xlu0 %4416
    %v4418 = vsel %vm867, %v4240, 0.0
    %4419 = vadd.xlane.f32.xlu0 %v4418
    %v4420 = vpop.xlane.xlu0 %4419
    %v4421 = vsel %vm867, %v4242, 0.0
    %4422 = vadd.xlane.f32.xlu0 %v4421
    %v4423 = vpop.xlane.xlu0 %4422
    %v4424 = vsel %vm867, %v4244, 0.0
    %4425 = vadd.xlane.f32.xlu0 %v4424
    %v4426 = vpop.xlane.xlu0 %4425
    %v4427 = vsel %vm867, %v4246, 0.0
    %4428 = vadd.xlane.f32.xlu0 %v4427
    %v4429 = vpop.xlane.xlu0 %4428
    %v4430 = vsel %vm867, %v4248, 0.0
    %4431 = vadd.xlane.f32.xlu0 %v4430
    %v4432 = vpop.xlane.xlu0 %4431
    %v4433 = vsel %vm867, %v4250, 0.0
    %4434 = vadd.xlane.f32.xlu0 %v4433
    %v4435 = vpop.xlane.xlu0 %4434
    %v4436 = vsel %vm867, %v4252, 0.0
    %4437 = vadd.xlane.f32.xlu0 %v4436
    %v4438 = vpop.xlane.xlu0 %4437
    %v4439 = vsel %vm867, %v4254, 0.0
    %4440 = vadd.xlane.f32.xlu0 %v4439
    %v4441 = vpop.xlane.xlu0 %4440
    %v4442 = vsel %vm867, %v4256, 0.0
    %4443 = vadd.xlane.f32.xlu0 %v4442
    %v4444 = vpop.xlane.xlu0 %4443
    %v4445 = vsel %vm867, %v4258, 0.0
    %4446 = vadd.xlane.f32.xlu0 %v4445
    %v4447 = vpop.xlane.xlu0 %4446
    %v4448 = vsel %vm867, %v4260, 0.0
    %4449 = vadd.xlane.f32.xlu0 %v4448
    %v4450 = vpop.xlane.xlu0 %4449
    %v4451 = vsel %vm867, %v4262, 0.0
    %4452 = vadd.xlane.f32.xlu0 %v4451
    %v4453 = vpop.xlane.xlu0 %4452
    %v4454 = vsel %vm867, %v4264, 0.0
    %4455 = vadd.xlane.f32.xlu0 %v4454
    %v4456 = vpop.xlane.xlu0 %4455
    %v4457 = vrcp.pop %v4267
    %v4458 = vrcp.pop %v4270
    %v4459 = vrcp.pop %v4273
    %v4460 = vrcp.pop %v4276
    %v4461 = vrcp.pop %v4279
    %v4462 = vrcp.pop %v4282
    %v4463 = vrcp.pop %v4285
    %v4464 = vrcp.pop %v4288
    %v4465 = vrcp.pop %v4291
    %v4466 = vrcp.pop %v4294
    %v4467 = vrcp.pop %v4297
    %v4468 = vrcp.pop %v4300
    %v4469 = vrcp.pop %v4303
    %v4470 = vrcp.pop %v4306
    %v4471 = vrcp.pop %v4309
    %v4472 = vrcp.pop %v4312
    %v4473 = vrcp.pop %v4315
    %v4474 = vrcp.pop %v4318
    %v4475 = vrcp.pop %v4321
    %v4476 = vrcp.pop %v4324
    %v4477 = vrcp.pop %v4327
    %v4478 = vrcp.pop %v4330
    %v4479 = vrcp.pop %v4333
    %v4480 = vrcp.pop %v4336
    %v4481 = vrcp.pop %v4339
    %v4482 = vrcp.pop %v4342
    %v4483 = vrcp.pop %v4345
    %v4484 = vrcp.pop %v4348
    %v4485 = vrcp.pop %v4351
    %v4486 = vrcp.pop %v4354
    %v4487 = vrcp.pop %v4357
    %v4488 = vrcp.pop %v4360
    %v4489 = vrcp.pop %v4363
    %v4490 = vrcp.pop %v4366
    %v4491 = vrcp.pop %v4369
    %v4492 = vrcp.pop %v4372
    %v4493 = vrcp.pop %v4375
    %v4494 = vrcp.pop %v4378
    %v4495 = vrcp.pop %v4381
    %v4496 = vrcp.pop %v4384
    %v4497 = vrcp.pop %v4387
    %v4498 = vrcp.pop %v4390
    %v4499 = vrcp.pop %v4393
    %v4500 = vrcp.pop %v4396
    %v4501 = vrcp.pop %v4399
    %v4502 = vrcp.pop %v4402
    %v4503 = vrcp.pop %v4405
    %v4504 = vrcp.pop %v4408
    %v4505 = vrcp.pop %v4411
    %v4506 = vrcp.pop %v4414
    %v4507 = vrcp.pop %v4417
    %v4508 = vrcp.pop %v4420
    %v4509 = vrcp.pop %v4423
    %v4510 = vrcp.pop %v4426
    %v4511 = vrcp.pop %v4429
    %v4512 = vrcp.pop %v4432
    %v4513 = vrcp.pop %v4435
    %v4514 = vrcp.pop %v4438
    %v4515 = vrcp.pop %v4441
    %v4516 = vrcp.pop %v4444
    %v4517 = vrcp.pop %v4447
    %v4518 = vrcp.pop %v4450
    %v4519 = vrcp.pop %v4453
    %v4520 = vrcp.pop %v4456
    %v4521 = vmul.f32 %v4138, %v4457
    %v4522 = vmul.f32 %v4140, %v4458
    %v4523 = vmul.f32 %v4142, %v4459
    %v4524 = vmul.f32 %v4144, %v4460
    %v4525 = vmul.f32 %v4146, %v4461
    %v4526 = vmul.f32 %v4148, %v4462
    %v4527 = vmul.f32 %v4150, %v4463
    %v4528 = vmul.f32 %v4152, %v4464
    %v4529 = vmul.f32 %v4154, %v4465
    %v4530 = vmul.f32 %v4156, %v4466
    %v4531 = vmul.f32 %v4158, %v4467
    %v4532 = vmul.f32 %v4160, %v4468
    %v4533 = vmul.f32 %v4162, %v4469
    %v4534 = vmul.f32 %v4164, %v4470
    %v4535 = vmul.f32 %v4166, %v4471
    %v4536 = vmul.f32 %v4168, %v4472
    %v4537 = vmul.f32 %v4170, %v4473
    %v4538 = vmul.f32 %v4172, %v4474
    %v4539 = vmul.f32 %v4174, %v4475
    %v4540 = vmul.f32 %v4176, %v4476
    %v4541 = vmul.f32 %v4178, %v4477
    %v4542 = vmul.f32 %v4180, %v4478
    %v4543 = vmul.f32 %v4182, %v4479
    %v4544 = vmul.f32 %v4184, %v4480
    %v4545 = vmul.f32 %v4186, %v4481
    %v4546 = vmul.f32 %v4188, %v4482
    %v4547 = vmul.f32 %v4190, %v4483
    %v4548 = vmul.f32 %v4192, %v4484
    %v4549 = vmul.f32 %v4194, %v4485
    %v4550 = vmul.f32 %v4196, %v4486
    %v4551 = vmul.f32 %v4198, %v4487
    %v4552 = vmul.f32 %v4200, %v4488
    %v4553 = vmul.f32 %v4202, %v4489
    %v4554 = vmul.f32 %v4204, %v4490
    %v4555 = vmul.f32 %v4206, %v4491
    %v4556 = vmul.f32 %v4208, %v4492
    %v4557 = vmul.f32 %v4210, %v4493
    %v4558 = vmul.f32 %v4212, %v4494
    %v4559 = vmul.f32 %v4214, %v4495
    %v4560 = vmul.f32 %v4216, %v4496
    %v4561 = vmul.f32 %v4218, %v4497
    %v4562 = vmul.f32 %v4220, %v4498
    %v4563 = vmul.f32 %v4222, %v4499
    %v4564 = vmul.f32 %v4224, %v4500
    %v4565 = vmul.f32 %v4226, %v4501
    %v4566 = vmul.f32 %v4228, %v4502
    %v4567 = vmul.f32 %v4230, %v4503
    %v4568 = vmul.f32 %v4232, %v4504
    %v4569 = vmul.f32 %v4234, %v4505
    %v4570 = vmul.f32 %v4236, %v4506
    %v4571 = vmul.f32 %v4238, %v4507
    %v4572 = vmul.f32 %v4240, %v4508
    %v4573 = vmul.f32 %v4242, %v4509
    %v4574 = vmul.f32 %v4244, %v4510
    %v4575 = vmul.f32 %v4246, %v4511
    %v4576 = vmul.f32 %v4248, %v4512
    %v4577 = vmul.f32 %v4250, %v4513
    %v4578 = vmul.f32 %v4252, %v4514
    %v4579 = vmul.f32 %v4254, %v4515
    %v4580 = vmul.f32 %v4256, %v4516
    %v4581 = vmul.f32 %v4258, %v4517
    %v4582 = vmul.f32 %v4260, %v4518
    %v4583 = vmul.f32 %v4262, %v4519
    %v4584 = vmul.f32 %v4264, %v4520
    %4585 = vrot.lane.b32.xlu0 %v2338, 112
    %v4586 = vpop.permute.xlu0 %4585
    %4587 = vrot.lane.b32.xlu0 %v2343, 112
    %v4588 = vpop.permute.xlu0 %4587
    %4589 = vrot.lane.b32.xlu0 %v2348, 112
    %v4590 = vpop.permute.xlu0 %4589
    %4591 = vrot.lane.b32.xlu0 %v2353, 112
    %v4592 = vpop.permute.xlu0 %4591
    %4593 = vrot.lane.b32.xlu0 %v2358, 112
    %v4594 = vpop.permute.xlu0 %4593
    %4595 = vrot.lane.b32.xlu0 %v2363, 112
    %v4596 = vpop.permute.xlu0 %4595
    %4597 = vrot.lane.b32.xlu0 %v2368, 112
    %v4598 = vpop.permute.xlu0 %4597
    %4599 = vrot.lane.b32.xlu0 %v2373, 112
    %v4600 = vpop.permute.xlu0 %4599
    %v4610 = vsel %vm867, %v4521, 0
    %v4613 = vsel %vm867, %v4522, 0
    %v4616 = vsel %vm867, %v4523, 0
    %v4619 = vsel %vm867, %v4524, 0
    %v4622 = vsel %vm867, %v4525, 0
    %v4625 = vsel %vm867, %v4526, 0
    %v4628 = vsel %vm867, %v4527, 0
    %v4631 = vsel %vm867, %v4528, 0
    %4633 = vmatprep.subr.mxu0 0.0
    %4634 = vmatpush1.msra.mxu0 %v4586
    %4635 = vmatprep.subr.mxu0 0.0
    %4636 = vmatpush1.msra.mxu0 %v4588
    %4637 = vmatprep.subr.mxu0 0.0
    %4638 = vmatpush1.msra.mxu0 %v4590
    %4639 = vmatprep.subr.mxu0 0.0
    %4640 = vmatpush1.msra.mxu0 %v4592
    %4641 = vmatprep.subr.mxu0 0.0
    %4642 = vmatpush1.msra.mxu0 %v4594
    %4643 = vmatprep.subr.mxu0 0.0
    %4644 = vmatpush1.msra.mxu0 %v4596
    %4645 = vmatprep.subr.mxu0 0.0
    %4646 = vmatpush1.msra.mxu0 %v4598
    %4647 = vmatprep.subr.mxu0 0.0
    %4648 = vmatpush1.msra.mxu0 %v4600
    %4649 = vmatprep.subr.mxu0 0.0
    %4650 = vmatpush1.msra.mxu0 0.0
    %4651 = vmatprep.subr.mxu0 0.0
    %4652 = vmatpush1.msra.mxu0 0.0
    %4653 = vmatprep.subr.mxu0 0.0
    %4654 = vmatpush1.msra.mxu0 0.0
    %4655 = vmatprep.subr.mxu0 0.0
    %4656 = vmatpush1.msra.mxu0 0.0
    %4657 = vmatprep.subr.mxu0 0.0
    %4658 = vmatpush1.msra.mxu0 0.0
    %4659 = vmatprep.subr.mxu0 0.0
    %4660 = vmatpush1.msra.mxu0 0.0
    %4661 = vmatprep.subr.mxu0 0.0
    %4662 = vmatpush1.msra.mxu0 0.0
    %4663 = vmatprep.subr.mxu0 0.0
    %4664 = vmatpush1.msra.mxu0 0.0
    %4665 = vmatprep.subr.mxu0 0.0
    %4666 = vmatpush1.msra.mxu0 0.0
    %4667 = vmatprep.subr.mxu0 0.0
    %4668 = vmatpush1.msra.mxu0 0.0
    %4669 = vmatprep.subr.mxu0 0.0
    %4670 = vmatpush1.msra.mxu0 0.0
    %4671 = vmatprep.subr.mxu0 0.0
    %4672 = vmatpush1.msra.mxu0 0.0
    %4673 = vmatprep.subr.mxu0 0.0
    %4674 = vmatpush1.msra.mxu0 0.0
    %4675 = vmatprep.subr.mxu0 0.0
    %4676 = vmatpush1.msra.mxu0 0.0
    %4677 = vmatprep.subr.mxu0 0.0
    %4678 = vmatpush1.msra.mxu0 0.0
    %4679 = vmatprep.subr.mxu0 0.0
    %4680 = vmatpush1.msra.mxu0 0.0
    %4681 = vmatprep.subr.mxu0 0.0
    %4682 = vmatpush1.msra.mxu0 0.0
    %4683 = vmatprep.subr.mxu0 0.0
    %4684 = vmatpush1.msra.mxu0 0.0
    %4685 = vmatprep.subr.mxu0 0.0
    %4686 = vmatpush1.msra.mxu0 0.0
    %4687 = vmatprep.subr.mxu0 0.0
    %4688 = vmatpush1.msra.mxu0 0.0
    %4689 = vmatprep.subr.mxu0 0.0
    %4690 = vmatpush1.msra.mxu0 0.0
    %4691 = vmatprep.subr.mxu0 0.0
    %4692 = vmatpush1.msra.mxu0 0.0
    %4693 = vmatprep.subr.mxu0 0.0
    %4694 = vmatpush1.msra.mxu0 0.0
    %4695 = vmatprep.subr.mxu0 0.0
    %4696 = vmatpush1.msra.mxu0 0.0
    %4697 = vmatprep.mubr.f32.mxu0 0.0
    %4698 = vmatmul.mubr.f32.gmra.mrb[0].mxu0 %v4610
    %v4699 = vpop.f32.mrb[0].mxu0
    %v4700 = vadd.f32 0.0, %v4699
    %v4701 = vpop.f32.mrb[0].mxu0
    %4702 = vmatprep.mubr.f32.mxu0 0.0
    %4703 = vmatmul.mubr.f32.gmra.mrb[0].mxu0 %v4613
    %v4704 = vpop.f32.mrb[0].mxu0
    %v4705 = vadd.f32 0.0, %v4704
    %v4706 = vpop.f32.mrb[0].mxu0
    %4707 = vmatprep.mubr.f32.mxu0 0.0
    %4708 = vmatmul.mubr.f32.gmra.mrb[0].mxu0 %v4616
    %v4709 = vpop.f32.mrb[0].mxu0
    %v4710 = vadd.f32 0.0, %v4709
    %v4711 = vpop.f32.mrb[0].mxu0
    %4712 = vmatprep.mubr.f32.mxu0 0.0
    %4713 = vmatmul.mubr.f32.gmra.mrb[0].mxu0 %v4619
    %v4714 = vpop.f32.mrb[0].mxu0
    %v4715 = vadd.f32 0.0, %v4714
    %v4716 = vpop.f32.mrb[0].mxu0
    %4717 = vmatprep.mubr.f32.mxu0 0.0
    %4718 = vmatmul.mubr.f32.gmra.mrb[0].mxu0 %v4622
    %v4719 = vpop.f32.mrb[0].mxu0
    %v4720 = vadd.f32 0.0, %v4719
    %v4721 = vpop.f32.mrb[0].mxu0
    %4722 = vmatprep.mubr.f32.mxu0 0.0
    %4723 = vmatmul.mubr.f32.gmra.mrb[0].mxu0 %v4625
    %v4724 = vpop.f32.mrb[0].mxu0
    %v4725 = vadd.f32 0.0, %v4724
    %v4726 = vpop.f32.mrb[0].mxu0
    %4727 = vmatprep.mubr.f32.mxu0 0.0
    %4728 = vmatmul.mubr.f32.gmra.mrb[0].mxu0 %v4628
    %v4729 = vpop.f32.mrb[0].mxu0
    %v4730 = vadd.f32 0.0, %v4729
    %v4731 = vpop.f32.mrb[0].mxu0
    %4732 = vmatprep.mubr.f32.mxu0 0.0
    %4733 = vmatmul.mubr.f32.gmra.mrb[0].mxu0 %v4631
    %v4734 = vpop.f32.mrb[0].mxu0
    %v4735 = vadd.f32 0.0, %v4734
    %v4736 = vpop.f32.mrb[0].mxu0
    %4737 = vdwg.mxu0
    %4738 = vrot.lane.b32.xlu0 %v2553, 112
    %v4739 = vpop.permute.xlu0 %4738
    %4740 = vrot.lane.b32.xlu0 %v2555, 112
    %v4741 = vpop.permute.xlu0 %4740
    %4742 = vrot.lane.b32.xlu0 %v2557, 112
    %v4743 = vpop.permute.xlu0 %4742
    %4744 = vrot.lane.b32.xlu0 %v2559, 112
    %v4745 = vpop.permute.xlu0 %4744
    %4746 = vrot.lane.b32.xlu0 %v2561, 112
    %v4747 = vpop.permute.xlu0 %4746
    %4748 = vrot.lane.b32.xlu0 %v2563, 112
    %v4749 = vpop.permute.xlu0 %4748
    %4750 = vrot.lane.b32.xlu0 %v2565, 112
    %v4751 = vpop.permute.xlu0 %4750
    %4752 = vrot.lane.b32.xlu0 %v2567, 112
    %v4753 = vpop.permute.xlu0 %4752
    %v4763 = vsel %vm867, %v4529, 0
    %v4766 = vsel %vm867, %v4530, 0
    %v4769 = vsel %vm867, %v4531, 0
    %v4772 = vsel %vm867, %v4532, 0
    %v4775 = vsel %vm867, %v4533, 0
    %v4778 = vsel %vm867, %v4534, 0
    %v4781 = vsel %vm867, %v4535, 0
    %v4784 = vsel %vm867, %v4536, 0
    %4786 = vmatprep.subr.mxu0 0.0
    %4787 = vmatpush1.msra.mxu0 %v4739
    %4788 = vmatprep.subr.mxu0 0.0
    %4789 = vmatpush1.msra.mxu0 %v4741
    %4790 = vmatprep.subr.mxu0 0.0
    %4791 = vmatpush1.msra.mxu0 %v4743
    %4792 = vmatprep.subr.mxu0 0.0
    %4793 = vmatpush1.msra.mxu0 %v4745
    %4794 = vmatprep.subr.mxu0 0.0
    %4795 = vmatpush1.msra.mxu0 %v4747
    %4796 = vmatprep.subr.mxu0 0.0
    %4797 = vmatpush1.msra.mxu0 %v4749
    %4798 = vmatprep.subr.mxu0 0.0
    %4799 = vmatpush1.msra.mxu0 %v4751
    %4800 = vmatprep.subr.mxu0 0.0
    %4801 = vmatpush1.msra.mxu0 %v4753
    %4802 = vmatprep.subr.mxu0 0.0
    %4803 = vmatpush1.msra.mxu0 0.0
    %4804 = vmatprep.subr.mxu0 0.0
    %4805 = vmatpush1.msra.mxu0 0.0
    %4806 = vmatprep.subr.mxu0 0.0
    %4807 = vmatpush1.msra.mxu0 0.0
    %4808 = vmatprep.subr.mxu0 0.0
    %4809 = vmatpush1.msra.mxu0 0.0
    %4810 = vmatprep.subr.mxu0 0.0
    %4811 = vmatpush1.msra.mxu0 0.0
    %4812 = vmatprep.subr.mxu0 0.0
    %4813 = vmatpush1.msra.mxu0 0.0
    %4814 = vmatprep.subr.mxu0 0.0
    %4815 = vmatpush1.msra.mxu0 0.0
    %4816 = vmatprep.subr.mxu0 0.0
    %4817 = vmatpush1.msra.mxu0 0.0
    %4818 = vmatprep.subr.mxu0 0.0
    %4819 = vmatpush1.msra.mxu0 0.0
    %4820 = vmatprep.subr.mxu0 0.0
    %4821 = vmatpush1.msra.mxu0 0.0
    %4822 = vmatprep.subr.mxu0 0.0
    %4823 = vmatpush1.msra.mxu0 0.0
    %4824 = vmatprep.subr.mxu0 0.0
    %4825 = vmatpush1.msra.mxu0 0.0
    %4826 = vmatprep.subr.mxu0 0.0
    %4827 = vmatpush1.msra.mxu0 0.0
    %4828 = vmatprep.subr.mxu0 0.0
    %4829 = vmatpush1.msra.mxu0 0.0
    %4830 = vmatprep.subr.mxu0 0.0
    %4831 = vmatpush1.msra.mxu0 0.0
    %4832 = vmatprep.subr.mxu0 0.0
    %4833 = vmatpush1.msra.mxu0 0.0
    %4834 = vmatprep.subr.mxu0 0.0
    %4835 = vmatpush1.msra.mxu0 0.0
    %4836 = vmatprep.subr.mxu0 0.0
    %4837 = vmatpush1.msra.mxu0 0.0
    %4838 = vmatprep.subr.mxu0 0.0
    %4839 = vmatpush1.msra.mxu0 0.0
    %4840 = vmatprep.subr.mxu0 0.0
    %4841 = vmatpush1.msra.mxu0 0.0
    %4842 = vmatprep.subr.mxu0 0.0
    %4843 = vmatpush1.msra.mxu0 0.0
    %4844 = vmatprep.subr.mxu0 0.0
    %4845 = vmatpush1.msra.mxu0 0.0
    %4846 = vmatprep.subr.mxu0 0.0
    %4847 = vmatpush1.msra.mxu0 0.0
    %4848 = vmatprep.subr.mxu0 0.0
    %4849 = vmatpush1.msra.mxu0 0.0
    %4850 = vmatprep.mubr.f32.mxu0 0.0
    %4851 = vmatmul.mubr.f32.gmra.mrb[0].mxu0 %v4763
    %v4852 = vpop.f32.mrb[0].mxu0
    %v4853 = vadd.f32 0.0, %v4852
    %v4854 = vpop.f32.mrb[0].mxu0
    %4855 = vmatprep.mubr.f32.mxu0 0.0
    %4856 = vmatmul.mubr.f32.gmra.mrb[0].mxu0 %v4766
    %v4857 = vpop.f32.mrb[0].mxu0
    %v4858 = vadd.f32 0.0, %v4857
    %v4859 = vpop.f32.mrb[0].mxu0
    %4860 = vmatprep.mubr.f32.mxu0 0.0
    %4861 = vmatmul.mubr.f32.gmra.mrb[0].mxu0 %v4769
    %v4862 = vpop.f32.mrb[0].mxu0
    %v4863 = vadd.f32 0.0, %v4862
    %v4864 = vpop.f32.mrb[0].mxu0
    %4865 = vmatprep.mubr.f32.mxu0 0.0
    %4866 = vmatmul.mubr.f32.gmra.mrb[0].mxu0 %v4772
    %v4867 = vpop.f32.mrb[0].mxu0
    %v4868 = vadd.f32 0.0, %v4867
    %v4869 = vpop.f32.mrb[0].mxu0
    %4870 = vmatprep.mubr.f32.mxu0 0.0
    %4871 = vmatmul.mubr.f32.gmra.mrb[0].mxu0 %v4775
    %v4872 = vpop.f32.mrb[0].mxu0
    %v4873 = vadd.f32 0.0, %v4872
    %v4874 = vpop.f32.mrb[0].mxu0
    %4875 = vmatprep.mubr.f32.mxu0 0.0
    %4876 = vmatmul.mubr.f32.gmra.mrb[0].mxu0 %v4778
    %v4877 = vpop.f32.mrb[0].mxu0
    %v4878 = vadd.f32 0.0, %v4877
    %v4879 = vpop.f32.mrb[0].mxu0
    %4880 = vmatprep.mubr.f32.mxu0 0.0
    %4881 = vmatmul.mubr.f32.gmra.mrb[0].mxu0 %v4781
    %v4882 = vpop.f32.mrb[0].mxu0
    %v4883 = vadd.f32 0.0, %v4882
    %v4884 = vpop.f32.mrb[0].mxu0
    %4885 = vmatprep.mubr.f32.mxu0 0.0
    %4886 = vmatmul.mubr.f32.gmra.mrb[0].mxu0 %v4784
    %v4887 = vpop.f32.mrb[0].mxu0
    %v4888 = vadd.f32 0.0, %v4887
    %v4889 = vpop.f32.mrb[0].mxu0
    %4890 = vdwg.mxu0
    %4891 = vrot.lane.b32.xlu0 %v2569, 112
    %v4892 = vpop.permute.xlu0 %4891
    %4893 = vrot.lane.b32.xlu0 %v2571, 112
    %v4894 = vpop.permute.xlu0 %4893
    %4895 = vrot.lane.b32.xlu0 %v2573, 112
    %v4896 = vpop.permute.xlu0 %4895
    %4897 = vrot.lane.b32.xlu0 %v2575, 112
    %v4898 = vpop.permute.xlu0 %4897
    %4899 = vrot.lane.b32.xlu0 %v2577, 112
    %v4900 = vpop.permute.xlu0 %4899
    %4901 = vrot.lane.b32.xlu0 %v2579, 112
    %v4902 = vpop.permute.xlu0 %4901
    %4903 = vrot.lane.b32.xlu0 %v2581, 112
    %v4904 = vpop.permute.xlu0 %4903
    %4905 = vrot.lane.b32.xlu0 %v2583, 112
    %v4906 = vpop.permute.xlu0 %4905
    %v4916 = vsel %vm867, %v4537, 0
    %v4919 = vsel %vm867, %v4538, 0
    %v4922 = vsel %vm867, %v4539, 0
    %v4925 = vsel %vm867, %v4540, 0
    %v4928 = vsel %vm867, %v4541, 0
    %v4931 = vsel %vm867, %v4542, 0
    %v4934 = vsel %vm867, %v4543, 0
    %v4937 = vsel %vm867, %v4544, 0
    %4939 = vmatprep.subr.mxu0 0.0
    %4940 = vmatpush1.msra.mxu0 %v4892
    %4941 = vmatprep.subr.mxu0 0.0
    %4942 = vmatpush1.msra.mxu0 %v4894
    %4943 = vmatprep.subr.mxu0 0.0
    %4944 = vmatpush1.msra.mxu0 %v4896
    %4945 = vmatprep.subr.mxu0 0.0
    %4946 = vmatpush1.msra.mxu0 %v4898
    %4947 = vmatprep.subr.mxu0 0.0
    %4948 = vmatpush1.msra.mxu0 %v4900
    %4949 = vmatprep.subr.mxu0 0.0
    %4950 = vmatpush1.msra.mxu0 %v4902
    %4951 = vmatprep.subr.mxu0 0.0
    %4952 = vmatpush1.msra.mxu0 %v4904
    %4953 = vmatprep.subr.mxu0 0.0
    %4954 = vmatpush1.msra.mxu0 %v4906
    %4955 = vmatprep.subr.mxu0 0.0
    %4956 = vmatpush1.msra.mxu0 0.0
    %4957 = vmatprep.subr.mxu0 0.0
    %4958 = vmatpush1.msra.mxu0 0.0
    %4959 = vmatprep.subr.mxu0 0.0
    %4960 = vmatpush1.msra.mxu0 0.0
    %4961 = vmatprep.subr.mxu0 0.0
    %4962 = vmatpush1.msra.mxu0 0.0
    %4963 = vmatprep.subr.mxu0 0.0
    %4964 = vmatpush1.msra.mxu0 0.0
    %4965 = vmatprep.subr.mxu0 0.0
    %4966 = vmatpush1.msra.mxu0 0.0
    %4967 = vmatprep.subr.mxu0 0.0
    %4968 = vmatpush1.msra.mxu0 0.0
    %4969 = vmatprep.subr.mxu0 0.0
    %4970 = vmatpush1.msra.mxu0 0.0
    %4971 = vmatprep.subr.mxu0 0.0
    %4972 = vmatpush1.msra.mxu0 0.0
    %4973 = vmatprep.subr.mxu0 0.0
    %4974 = vmatpush1.msra.mxu0 0.0
    %4975 = vmatprep.subr.mxu0 0.0
    %4976 = vmatpush1.msra.mxu0 0.0
    %4977 = vmatprep.subr.mxu0 0.0
    %4978 = vmatpush1.msra.mxu0 0.0
    %4979 = vmatprep.subr.mxu0 0.0
    %4980 = vmatpush1.msra.mxu0 0.0
    %4981 = vmatprep.subr.mxu0 0.0
    %4982 = vmatpush1.msra.mxu0 0.0
    %4983 = vmatprep.subr.mxu0 0.0
    %4984 = vmatpush1.msra.mxu0 0.0
    %4985 = vmatprep.subr.mxu0 0.0
    %4986 = vmatpush1.msra.mxu0 0.0
    %4987 = vmatprep.subr.mxu0 0.0
    %4988 = vmatpush1.msra.mxu0 0.0
    %4989 = vmatprep.subr.mxu0 0.0
    %4990 = vmatpush1.msra.mxu0 0.0
    %4991 = vmatprep.subr.mxu0 0.0
    %4992 = vmatpush1.msra.mxu0 0.0
    %4993 = vmatprep.subr.mxu0 0.0
    %4994 = vmatpush1.msra.mxu0 0.0
    %4995 = vmatprep.subr.mxu0 0.0
    %4996 = vmatpush1.msra.mxu0 0.0
    %4997 = vmatprep.subr.mxu0 0.0
    %4998 = vmatpush1.msra.mxu0 0.0
    %4999 = vmatprep.subr.mxu0 0.0
    %5000 = vmatpush1.msra.mxu0 0.0
    %5001 = vmatprep.subr.mxu0 0.0
    %5002 = vmatpush1.msra.mxu0 0.0
    %5003 = vmatprep.mubr.f32.mxu0 0.0
    %5004 = vmatmul.mubr.f32.gmra.mrb[0].mxu0 %v4916
    %v5005 = vpop.f32.mrb[0].mxu0
    %v5006 = vadd.f32 0.0, %v5005
    %v5007 = vpop.f32.mrb[0].mxu0
    %5008 = vmatprep.mubr.f32.mxu0 0.0
    %5009 = vmatmul.mubr.f32.gmra.mrb[0].mxu0 %v4919
    %v5010 = vpop.f32.mrb[0].mxu0
    %v5011 = vadd.f32 0.0, %v5010
    %v5012 = vpop.f32.mrb[0].mxu0
    %5013 = vmatprep.mubr.f32.mxu0 0.0
    %5014 = vmatmul.mubr.f32.gmra.mrb[0].mxu0 %v4922
    %v5015 = vpop.f32.mrb[0].mxu0
    %v5016 = vadd.f32 0.0, %v5015
    %v5017 = vpop.f32.mrb[0].mxu0
    %5018 = vmatprep.mubr.f32.mxu0 0.0
    %5019 = vmatmul.mubr.f32.gmra.mrb[0].mxu0 %v4925
    %v5020 = vpop.f32.mrb[0].mxu0
    %v5021 = vadd.f32 0.0, %v5020
    %v5022 = vpop.f32.mrb[0].mxu0
    %5023 = vmatprep.mubr.f32.mxu0 0.0
    %5024 = vmatmul.mubr.f32.gmra.mrb[0].mxu0 %v4928
    %v5025 = vpop.f32.mrb[0].mxu0
    %v5026 = vadd.f32 0.0, %v5025
    %v5027 = vpop.f32.mrb[0].mxu0
    %5028 = vmatprep.mubr.f32.mxu0 0.0
    %5029 = vmatmul.mubr.f32.gmra.mrb[0].mxu0 %v4931
    %v5030 = vpop.f32.mrb[0].mxu0
    %v5031 = vadd.f32 0.0, %v5030
    %v5032 = vpop.f32.mrb[0].mxu0
    %5033 = vmatprep.mubr.f32.mxu0 0.0
    %5034 = vmatmul.mubr.f32.gmra.mrb[0].mxu0 %v4934
    %v5035 = vpop.f32.mrb[0].mxu0
    %v5036 = vadd.f32 0.0, %v5035
    %v5037 = vpop.f32.mrb[0].mxu0
    %5038 = vmatprep.mubr.f32.mxu0 0.0
    %5039 = vmatmul.mubr.f32.gmra.mrb[0].mxu0 %v4937
    %v5040 = vpop.f32.mrb[0].mxu0
    %v5041 = vadd.f32 0.0, %v5040
    %v5042 = vpop.f32.mrb[0].mxu0
    %5043 = vdwg.mxu0
    %5044 = vrot.lane.b32.xlu0 %v2585, 112
    %v5045 = vpop.permute.xlu0 %5044
    %5046 = vrot.lane.b32.xlu0 %v2587, 112
    %v5047 = vpop.permute.xlu0 %5046
    %5048 = vrot.lane.b32.xlu0 %v2589, 112
    %v5049 = vpop.permute.xlu0 %5048
    %5050 = vrot.lane.b32.xlu0 %v2591, 112
    %v5051 = vpop.permute.xlu0 %5050
    %5052 = vrot.lane.b32.xlu0 %v2593, 112
    %v5053 = vpop.permute.xlu0 %5052
    %5054 = vrot.lane.b32.xlu0 %v2595, 112
    %v5055 = vpop.permute.xlu0 %5054
    %5056 = vrot.lane.b32.xlu0 %v2597, 112
    %v5057 = vpop.permute.xlu0 %5056
    %5058 = vrot.lane.b32.xlu0 %v2599, 112
    %v5059 = vpop.permute.xlu0 %5058
    %v5069 = vsel %vm867, %v4545, 0
    %v5072 = vsel %vm867, %v4546, 0
    %v5075 = vsel %vm867, %v4547, 0
    %v5078 = vsel %vm867, %v4548, 0
    %v5081 = vsel %vm867, %v4549, 0
    %v5084 = vsel %vm867, %v4550, 0
    %v5087 = vsel %vm867, %v4551, 0
    %v5090 = vsel %vm867, %v4552, 0
    %5092 = vmatprep.subr.mxu0 0.0
    %5093 = vmatpush1.msra.mxu0 %v5045
    %5094 = vmatprep.subr.mxu0 0.0
    %5095 = vmatpush1.msra.mxu0 %v5047
    %5096 = vmatprep.subr.mxu0 0.0
    %5097 = vmatpush1.msra.mxu0 %v5049
    %5098 = vmatprep.subr.mxu0 0.0
    %5099 = vmatpush1.msra.mxu0 %v5051
    %5100 = vmatprep.subr.mxu0 0.0
    %5101 = vmatpush1.msra.mxu0 %v5053
    %5102 = vmatprep.subr.mxu0 0.0
    %5103 = vmatpush1.msra.mxu0 %v5055
    %5104 = vmatprep.subr.mxu0 0.0
    %5105 = vmatpush1.msra.mxu0 %v5057
    %5106 = vmatprep.subr.mxu0 0.0
    %5107 = vmatpush1.msra.mxu0 %v5059
    %5108 = vmatprep.subr.mxu0 0.0
    %5109 = vmatpush1.msra.mxu0 0.0
    %5110 = vmatprep.subr.mxu0 0.0
    %5111 = vmatpush1.msra.mxu0 0.0
    %5112 = vmatprep.subr.mxu0 0.0
    %5113 = vmatpush1.msra.mxu0 0.0
    %5114 = vmatprep.subr.mxu0 0.0
    %5115 = vmatpush1.msra.mxu0 0.0
    %5116 = vmatprep.subr.mxu0 0.0
    %5117 = vmatpush1.msra.mxu0 0.0
    %5118 = vmatprep.subr.mxu0 0.0
    %5119 = vmatpush1.msra.mxu0 0.0
    %5120 = vmatprep.subr.mxu0 0.0
    %5121 = vmatpush1.msra.mxu0 0.0
    %5122 = vmatprep.subr.mxu0 0.0
    %5123 = vmatpush1.msra.mxu0 0.0
    %5124 = vmatprep.subr.mxu0 0.0
    %5125 = vmatpush1.msra.mxu0 0.0
    %5126 = vmatprep.subr.mxu0 0.0
    %5127 = vmatpush1.msra.mxu0 0.0
    %5128 = vmatprep.subr.mxu0 0.0
    %5129 = vmatpush1.msra.mxu0 0.0
    %5130 = vmatprep.subr.mxu0 0.0
    %5131 = vmatpush1.msra.mxu0 0.0
    %5132 = vmatprep.subr.mxu0 0.0
    %5133 = vmatpush1.msra.mxu0 0.0
    %5134 = vmatprep.subr.mxu0 0.0
    %5135 = vmatpush1.msra.mxu0 0.0
    %5136 = vmatprep.subr.mxu0 0.0
    %5137 = vmatpush1.msra.mxu0 0.0
    %5138 = vmatprep.subr.mxu0 0.0
    %5139 = vmatpush1.msra.mxu0 0.0
    %5140 = vmatprep.subr.mxu0 0.0
    %5141 = vmatpush1.msra.mxu0 0.0
    %5142 = vmatprep.subr.mxu0 0.0
    %5143 = vmatpush1.msra.mxu0 0.0
    %5144 = vmatprep.subr.mxu0 0.0
    %5145 = vmatpush1.msra.mxu0 0.0
    %5146 = vmatprep.subr.mxu0 0.0
    %5147 = vmatpush1.msra.mxu0 0.0
    %5148 = vmatprep.subr.mxu0 0.0
    %5149 = vmatpush1.msra.mxu0 0.0
    %5150 = vmatprep.subr.mxu0 0.0
    %5151 = vmatpush1.msra.mxu0 0.0
    %5152 = vmatprep.subr.mxu0 0.0
    %5153 = vmatpush1.msra.mxu0 0.0
    %5154 = vmatprep.subr.mxu0 0.0
    %5155 = vmatpush1.msra.mxu0 0.0
    %5156 = vmatprep.mubr.f32.mxu0 0.0
    %5157 = vmatmul.mubr.f32.gmra.mrb[0].mxu0 %v5069
    %v5158 = vpop.f32.mrb[0].mxu0
    %v5159 = vadd.f32 0.0, %v5158
    %v5160 = vpop.f32.mrb[0].mxu0
    %5161 = vmatprep.mubr.f32.mxu0 0.0
    %5162 = vmatmul.mubr.f32.gmra.mrb[0].mxu0 %v5072
    %v5163 = vpop.f32.mrb[0].mxu0
    %v5164 = vadd.f32 0.0, %v5163
    %v5165 = vpop.f32.mrb[0].mxu0
    %5166 = vmatprep.mubr.f32.mxu0 0.0
    %5167 = vmatmul.mubr.f32.gmra.mrb[0].mxu0 %v5075
    %v5168 = vpop.f32.mrb[0].mxu0
    %v5169 = vadd.f32 0.0, %v5168
    %v5170 = vpop.f32.mrb[0].mxu0
    %5171 = vmatprep.mubr.f32.mxu0 0.0
    %5172 = vmatmul.mubr.f32.gmra.mrb[0].mxu0 %v5078
    %v5173 = vpop.f32.mrb[0].mxu0
    %v5174 = vadd.f32 0.0, %v5173
    %v5175 = vpop.f32.mrb[0].mxu0
    %5176 = vmatprep.mubr.f32.mxu0 0.0
    %5177 = vmatmul.mubr.f32.gmra.mrb[0].mxu0 %v5081
    %v5178 = vpop.f32.mrb[0].mxu0
    %v5179 = vadd.f32 0.0, %v5178
    %v5180 = vpop.f32.mrb[0].mxu0
    %5181 = vmatprep.mubr.f32.mxu0 0.0
    %5182 = vmatmul.mubr.f32.gmra.mrb[0].mxu0 %v5084
    %v5183 = vpop.f32.mrb[0].mxu0
    %v5184 = vadd.f32 0.0, %v5183
    %v5185 = vpop.f32.mrb[0].mxu0
    %5186 = vmatprep.mubr.f32.mxu0 0.0
    %5187 = vmatmul.mubr.f32.gmra.mrb[0].mxu0 %v5087
    %v5188 = vpop.f32.mrb[0].mxu0
    %v5189 = vadd.f32 0.0, %v5188
    %v5190 = vpop.f32.mrb[0].mxu0
    %5191 = vmatprep.mubr.f32.mxu0 0.0
    %5192 = vmatmul.mubr.f32.gmra.mrb[0].mxu0 %v5090
    %v5193 = vpop.f32.mrb[0].mxu0
    %v5194 = vadd.f32 0.0, %v5193
    %v5195 = vpop.f32.mrb[0].mxu0
    %5196 = vdwg.mxu0
    %5197 = vrot.lane.b32.xlu0 %v2378, 112
    %v5198 = vpop.permute.xlu0 %5197
    %5199 = vrot.lane.b32.xlu0 %v2383, 112
    %v5200 = vpop.permute.xlu0 %5199
    %5201 = vrot.lane.b32.xlu0 %v2388, 112
    %v5202 = vpop.permute.xlu0 %5201
    %5203 = vrot.lane.b32.xlu0 %v2393, 112
    %v5204 = vpop.permute.xlu0 %5203
    %5205 = vrot.lane.b32.xlu0 %v2398, 112
    %v5206 = vpop.permute.xlu0 %5205
    %5207 = vrot.lane.b32.xlu0 %v2403, 112
    %v5208 = vpop.permute.xlu0 %5207
    %5209 = vrot.lane.b32.xlu0 %v2408, 112
    %v5210 = vpop.permute.xlu0 %5209
    %5211 = vrot.lane.b32.xlu0 %v2413, 112
    %v5212 = vpop.permute.xlu0 %5211
    %v5222 = vsel %vm867, %v4553, 0
    %v5225 = vsel %vm867, %v4554, 0
    %v5228 = vsel %vm867, %v4555, 0
    %v5231 = vsel %vm867, %v4556, 0
    %v5234 = vsel %vm867, %v4557, 0
    %v5237 = vsel %vm867, %v4558, 0
    %v5240 = vsel %vm867, %v4559, 0
    %v5243 = vsel %vm867, %v4560, 0
    %5245 = vmatprep.subr.mxu0 0.0
    %5246 = vmatpush1.msra.mxu0 %v5198
    %5247 = vmatprep.subr.mxu0 0.0
    %5248 = vmatpush1.msra.mxu0 %v5200
    %5249 = vmatprep.subr.mxu0 0.0
    %5250 = vmatpush1.msra.mxu0 %v5202
    %5251 = vmatprep.subr.mxu0 0.0
    %5252 = vmatpush1.msra.mxu0 %v5204
    %5253 = vmatprep.subr.mxu0 0.0
    %5254 = vmatpush1.msra.mxu0 %v5206
    %5255 = vmatprep.subr.mxu0 0.0
    %5256 = vmatpush1.msra.mxu0 %v5208
    %5257 = vmatprep.subr.mxu0 0.0
    %5258 = vmatpush1.msra.mxu0 %v5210
    %5259 = vmatprep.subr.mxu0 0.0
    %5260 = vmatpush1.msra.mxu0 %v5212
    %5261 = vmatprep.subr.mxu0 0.0
    %5262 = vmatpush1.msra.mxu0 0.0
    %5263 = vmatprep.subr.mxu0 0.0
    %5264 = vmatpush1.msra.mxu0 0.0
    %5265 = vmatprep.subr.mxu0 0.0
    %5266 = vmatpush1.msra.mxu0 0.0
    %5267 = vmatprep.subr.mxu0 0.0
    %5268 = vmatpush1.msra.mxu0 0.0
    %5269 = vmatprep.subr.mxu0 0.0
    %5270 = vmatpush1.msra.mxu0 0.0
    %5271 = vmatprep.subr.mxu0 0.0
    %5272 = vmatpush1.msra.mxu0 0.0
    %5273 = vmatprep.subr.mxu0 0.0
    %5274 = vmatpush1.msra.mxu0 0.0
    %5275 = vmatprep.subr.mxu0 0.0
    %5276 = vmatpush1.msra.mxu0 0.0
    %5277 = vmatprep.subr.mxu0 0.0
    %5278 = vmatpush1.msra.mxu0 0.0
    %5279 = vmatprep.subr.mxu0 0.0
    %5280 = vmatpush1.msra.mxu0 0.0
    %5281 = vmatprep.subr.mxu0 0.0
    %5282 = vmatpush1.msra.mxu0 0.0
    %5283 = vmatprep.subr.mxu0 0.0
    %5284 = vmatpush1.msra.mxu0 0.0
    %5285 = vmatprep.subr.mxu0 0.0
    %5286 = vmatpush1.msra.mxu0 0.0
    %5287 = vmatprep.subr.mxu0 0.0
    %5288 = vmatpush1.msra.mxu0 0.0
    %5289 = vmatprep.subr.mxu0 0.0
    %5290 = vmatpush1.msra.mxu0 0.0
    %5291 = vmatprep.subr.mxu0 0.0
    %5292 = vmatpush1.msra.mxu0 0.0
    %5293 = vmatprep.subr.mxu0 0.0
    %5294 = vmatpush1.msra.mxu0 0.0
    %5295 = vmatprep.subr.mxu0 0.0
    %5296 = vmatpush1.msra.mxu0 0.0
    %5297 = vmatprep.subr.mxu0 0.0
    %5298 = vmatpush1.msra.mxu0 0.0
    %5299 = vmatprep.subr.mxu0 0.0
    %5300 = vmatpush1.msra.mxu0 0.0
    %5301 = vmatprep.subr.mxu0 0.0
    %5302 = vmatpush1.msra.mxu0 0.0
    %5303 = vmatprep.subr.mxu0 0.0
    %5304 = vmatpush1.msra.mxu0 0.0
    %5305 = vmatprep.subr.mxu0 0.0
    %5306 = vmatpush1.msra.mxu0 0.0
    %5307 = vmatprep.subr.mxu0 0.0
    %5308 = vmatpush1.msra.mxu0 0.0
    %5309 = vmatprep.mubr.f32.mxu0 0.0
    %5310 = vmatmul.mubr.f32.gmra.mrb[0].mxu0 %v5222
    %v5311 = vpop.f32.mrb[0].mxu0
    %v5312 = vadd.f32 0.0, %v5311
    %v5313 = vpop.f32.mrb[0].mxu0
    %5314 = vmatprep.mubr.f32.mxu0 0.0
    %5315 = vmatmul.mubr.f32.gmra.mrb[0].mxu0 %v5225
    %v5316 = vpop.f32.mrb[0].mxu0
    %v5317 = vadd.f32 0.0, %v5316
    %v5318 = vpop.f32.mrb[0].mxu0
    %5319 = vmatprep.mubr.f32.mxu0 0.0
    %5320 = vmatmul.mubr.f32.gmra.mrb[0].mxu0 %v5228
    %v5321 = vpop.f32.mrb[0].mxu0
    %v5322 = vadd.f32 0.0, %v5321
    %v5323 = vpop.f32.mrb[0].mxu0
    %5324 = vmatprep.mubr.f32.mxu0 0.0
    %5325 = vmatmul.mubr.f32.gmra.mrb[0].mxu0 %v5231
    %v5326 = vpop.f32.mrb[0].mxu0
    %v5327 = vadd.f32 0.0, %v5326
    %v5328 = vpop.f32.mrb[0].mxu0
    %5329 = vmatprep.mubr.f32.mxu0 0.0
    %5330 = vmatmul.mubr.f32.gmra.mrb[0].mxu0 %v5234
    %v5331 = vpop.f32.mrb[0].mxu0
    %v5332 = vadd.f32 0.0, %v5331
    %v5333 = vpop.f32.mrb[0].mxu0
    %5334 = vmatprep.mubr.f32.mxu0 0.0
    %5335 = vmatmul.mubr.f32.gmra.mrb[0].mxu0 %v5237
    %v5336 = vpop.f32.mrb[0].mxu0
    %v5337 = vadd.f32 0.0, %v5336
    %v5338 = vpop.f32.mrb[0].mxu0
    %5339 = vmatprep.mubr.f32.mxu0 0.0
    %5340 = vmatmul.mubr.f32.gmra.mrb[0].mxu0 %v5240
    %v5341 = vpop.f32.mrb[0].mxu0
    %v5342 = vadd.f32 0.0, %v5341
    %v5343 = vpop.f32.mrb[0].mxu0
    %5344 = vmatprep.mubr.f32.mxu0 0.0
    %5345 = vmatmul.mubr.f32.gmra.mrb[0].mxu0 %v5243
    %v5346 = vpop.f32.mrb[0].mxu0
    %v5347 = vadd.f32 0.0, %v5346
    %v5348 = vpop.f32.mrb[0].mxu0
    %5349 = vdwg.mxu0
    %5350 = vrot.lane.b32.xlu0 %v2609, 112
    %v5351 = vpop.permute.xlu0 %5350
    %5352 = vrot.lane.b32.xlu0 %v2611, 112
    %v5353 = vpop.permute.xlu0 %5352
    %5354 = vrot.lane.b32.xlu0 %v2613, 112
    %v5355 = vpop.permute.xlu0 %5354
    %5356 = vrot.lane.b32.xlu0 %v2615, 112
    %v5357 = vpop.permute.xlu0 %5356
    %5358 = vrot.lane.b32.xlu0 %v2617, 112
    %v5359 = vpop.permute.xlu0 %5358
    %5360 = vrot.lane.b32.xlu0 %v2619, 112
    %v5361 = vpop.permute.xlu0 %5360
    %5362 = vrot.lane.b32.xlu0 %v2621, 112
    %v5363 = vpop.permute.xlu0 %5362
    %5364 = vrot.lane.b32.xlu0 %v2623, 112
    %v5365 = vpop.permute.xlu0 %5364
    %v5375 = vsel %vm867, %v4561, 0
    %v5378 = vsel %vm867, %v4562, 0
    %v5381 = vsel %vm867, %v4563, 0
    %v5384 = vsel %vm867, %v4564, 0
    %v5387 = vsel %vm867, %v4565, 0
    %v5390 = vsel %vm867, %v4566, 0
    %v5393 = vsel %vm867, %v4567, 0
    %v5396 = vsel %vm867, %v4568, 0
    %5398 = vmatprep.subr.mxu0 0.0
    %5399 = vmatpush1.msra.mxu0 %v5351
    %5400 = vmatprep.subr.mxu0 0.0
    %5401 = vmatpush1.msra.mxu0 %v5353
    %5402 = vmatprep.subr.mxu0 0.0
    %5403 = vmatpush1.msra.mxu0 %v5355
    %5404 = vmatprep.subr.mxu0 0.0
    %5405 = vmatpush1.msra.mxu0 %v5357
    %5406 = vmatprep.subr.mxu0 0.0
    %5407 = vmatpush1.msra.mxu0 %v5359
    %5408 = vmatprep.subr.mxu0 0.0
    %5409 = vmatpush1.msra.mxu0 %v5361
    %5410 = vmatprep.subr.mxu0 0.0
    %5411 = vmatpush1.msra.mxu0 %v5363
    %5412 = vmatprep.subr.mxu0 0.0
    %5413 = vmatpush1.msra.mxu0 %v5365
    %5414 = vmatprep.subr.mxu0 0.0
    %5415 = vmatpush1.msra.mxu0 0.0
    %5416 = vmatprep.subr.mxu0 0.0
    %5417 = vmatpush1.msra.mxu0 0.0
    %5418 = vmatprep.subr.mxu0 0.0
    %5419 = vmatpush1.msra.mxu0 0.0
    %5420 = vmatprep.subr.mxu0 0.0
    %5421 = vmatpush1.msra.mxu0 0.0
    %5422 = vmatprep.subr.mxu0 0.0
    %5423 = vmatpush1.msra.mxu0 0.0
    %5424 = vmatprep.subr.mxu0 0.0
    %5425 = vmatpush1.msra.mxu0 0.0
    %5426 = vmatprep.subr.mxu0 0.0
    %5427 = vmatpush1.msra.mxu0 0.0
    %5428 = vmatprep.subr.mxu0 0.0
    %5429 = vmatpush1.msra.mxu0 0.0
    %5430 = vmatprep.subr.mxu0 0.0
    %5431 = vmatpush1.msra.mxu0 0.0
    %5432 = vmatprep.subr.mxu0 0.0
    %5433 = vmatpush1.msra.mxu0 0.0
    %5434 = vmatprep.subr.mxu0 0.0
    %5435 = vmatpush1.msra.mxu0 0.0
    %5436 = vmatprep.subr.mxu0 0.0
    %5437 = vmatpush1.msra.mxu0 0.0
    %5438 = vmatprep.subr.mxu0 0.0
    %5439 = vmatpush1.msra.mxu0 0.0
    %5440 = vmatprep.subr.mxu0 0.0
    %5441 = vmatpush1.msra.mxu0 0.0
    %5442 = vmatprep.subr.mxu0 0.0
    %5443 = vmatpush1.msra.mxu0 0.0
    %5444 = vmatprep.subr.mxu0 0.0
    %5445 = vmatpush1.msra.mxu0 0.0
    %5446 = vmatprep.subr.mxu0 0.0
    %5447 = vmatpush1.msra.mxu0 0.0
    %5448 = vmatprep.subr.mxu0 0.0
    %5449 = vmatpush1.msra.mxu0 0.0
    %5450 = vmatprep.subr.mxu0 0.0
    %5451 = vmatpush1.msra.mxu0 0.0
    %5452 = vmatprep.subr.mxu0 0.0
    %5453 = vmatpush1.msra.mxu0 0.0
    %5454 = vmatprep.subr.mxu0 0.0
    %5455 = vmatpush1.msra.mxu0 0.0
    %5456 = vmatprep.subr.mxu0 0.0
    %5457 = vmatpush1.msra.mxu0 0.0
    %5458 = vmatprep.subr.mxu0 0.0
    %5459 = vmatpush1.msra.mxu0 0.0
    %5460 = vmatprep.subr.mxu0 0.0
    %5461 = vmatpush1.msra.mxu0 0.0
    %5462 = vmatprep.mubr.f32.mxu0 0.0
    %5463 = vmatmul.mubr.f32.gmra.mrb[0].mxu0 %v5375
    %v5464 = vpop.f32.mrb[0].mxu0
    %v5465 = vadd.f32 0.0, %v5464
    %v5466 = vpop.f32.mrb[0].mxu0
    %5467 = vmatprep.mubr.f32.mxu0 0.0
    %5468 = vmatmul.mubr.f32.gmra.mrb[0].mxu0 %v5378
    %v5469 = vpop.f32.mrb[0].mxu0
    %v5470 = vadd.f32 0.0, %v5469
    %v5471 = vpop.f32.mrb[0].mxu0
    %5472 = vmatprep.mubr.f32.mxu0 0.0
    %5473 = vmatmul.mubr.f32.gmra.mrb[0].mxu0 %v5381
    %v5474 = vpop.f32.mrb[0].mxu0
    %v5475 = vadd.f32 0.0, %v5474
    %v5476 = vpop.f32.mrb[0].mxu0
    %5477 = vmatprep.mubr.f32.mxu0 0.0
    %5478 = vmatmul.mubr.f32.gmra.mrb[0].mxu0 %v5384
    %v5479 = vpop.f32.mrb[0].mxu0
    %v5480 = vadd.f32 0.0, %v5479
    %v5481 = vpop.f32.mrb[0].mxu0
    %5482 = vmatprep.mubr.f32.mxu0 0.0
    %5483 = vmatmul.mubr.f32.gmra.mrb[0].mxu0 %v5387
    %v5484 = vpop.f32.mrb[0].mxu0
    %v5485 = vadd.f32 0.0, %v5484
    %v5486 = vpop.f32.mrb[0].mxu0
    %5487 = vmatprep.mubr.f32.mxu0 0.0
    %5488 = vmatmul.mubr.f32.gmra.mrb[0].mxu0 %v5390
    %v5489 = vpop.f32.mrb[0].mxu0
    %v5490 = vadd.f32 0.0, %v5489
    %v5491 = vpop.f32.mrb[0].mxu0
    %5492 = vmatprep.mubr.f32.mxu0 0.0
    %5493 = vmatmul.mubr.f32.gmra.mrb[0].mxu0 %v5393
    %v5494 = vpop.f32.mrb[0].mxu0
    %v5495 = vadd.f32 0.0, %v5494
    %v5496 = vpop.f32.mrb[0].mxu0
    %5497 = vmatprep.mubr.f32.mxu0 0.0
    %5498 = vmatmul.mubr.f32.gmra.mrb[0].mxu0 %v5396
    %v5499 = vpop.f32.mrb[0].mxu0
    %v5500 = vadd.f32 0.0, %v5499
    %v5501 = vpop.f32.mrb[0].mxu0
    %5502 = vdwg.mxu0
    %5503 = vrot.lane.b32.xlu0 %v2625, 112
    %v5504 = vpop.permute.xlu0 %5503
    %5505 = vrot.lane.b32.xlu0 %v2627, 112
    %v5506 = vpop.permute.xlu0 %5505
    %5507 = vrot.lane.b32.xlu0 %v2629, 112
    %v5508 = vpop.permute.xlu0 %5507
    %5509 = vrot.lane.b32.xlu0 %v2631, 112
    %v5510 = vpop.permute.xlu0 %5509
    %5511 = vrot.lane.b32.xlu0 %v2633, 112
    %v5512 = vpop.permute.xlu0 %5511
    %5513 = vrot.lane.b32.xlu0 %v2635, 112
    %v5514 = vpop.permute.xlu0 %5513
    %5515 = vrot.lane.b32.xlu0 %v2637, 112
    %v5516 = vpop.permute.xlu0 %5515
    %5517 = vrot.lane.b32.xlu0 %v2639, 112
    %v5518 = vpop.permute.xlu0 %5517
    %v5528 = vsel %vm867, %v4569, 0
    %v5531 = vsel %vm867, %v4570, 0
    %v5534 = vsel %vm867, %v4571, 0
    %v5537 = vsel %vm867, %v4572, 0
    %v5540 = vsel %vm867, %v4573, 0
    %v5543 = vsel %vm867, %v4574, 0
    %v5546 = vsel %vm867, %v4575, 0
    %v5549 = vsel %vm867, %v4576, 0
    %5551 = vmatprep.subr.mxu0 0.0
    %5552 = vmatpush1.msra.mxu0 %v5504
    %5553 = vmatprep.subr.mxu0 0.0
    %5554 = vmatpush1.msra.mxu0 %v5506
    %5555 = vmatprep.subr.mxu0 0.0
    %5556 = vmatpush1.msra.mxu0 %v5508
    %5557 = vmatprep.subr.mxu0 0.0
    %5558 = vmatpush1.msra.mxu0 %v5510
    %5559 = vmatprep.subr.mxu0 0.0
    %5560 = vmatpush1.msra.mxu0 %v5512
    %5561 = vmatprep.subr.mxu0 0.0
    %5562 = vmatpush1.msra.mxu0 %v5514
    %5563 = vmatprep.subr.mxu0 0.0
    %5564 = vmatpush1.msra.mxu0 %v5516
    %5565 = vmatprep.subr.mxu0 0.0
    %5566 = vmatpush1.msra.mxu0 %v5518
    %5567 = vmatprep.subr.mxu0 0.0
    %5568 = vmatpush1.msra.mxu0 0.0
    %5569 = vmatprep.subr.mxu0 0.0
    %5570 = vmatpush1.msra.mxu0 0.0
    %5571 = vmatprep.subr.mxu0 0.0
    %5572 = vmatpush1.msra.mxu0 0.0
    %5573 = vmatprep.subr.mxu0 0.0
    %5574 = vmatpush1.msra.mxu0 0.0
    %5575 = vmatprep.subr.mxu0 0.0
    %5576 = vmatpush1.msra.mxu0 0.0
    %5577 = vmatprep.subr.mxu0 0.0
    %5578 = vmatpush1.msra.mxu0 0.0
    %5579 = vmatprep.subr.mxu0 0.0
    %5580 = vmatpush1.msra.mxu0 0.0
    %5581 = vmatprep.subr.mxu0 0.0
    %5582 = vmatpush1.msra.mxu0 0.0
    %5583 = vmatprep.subr.mxu0 0.0
    %5584 = vmatpush1.msra.mxu0 0.0
    %5585 = vmatprep.subr.mxu0 0.0
    %5586 = vmatpush1.msra.mxu0 0.0
    %5587 = vmatprep.subr.mxu0 0.0
    %5588 = vmatpush1.msra.mxu0 0.0
    %5589 = vmatprep.subr.mxu0 0.0
    %5590 = vmatpush1.msra.mxu0 0.0
    %5591 = vmatprep.subr.mxu0 0.0
    %5592 = vmatpush1.msra.mxu0 0.0
    %5593 = vmatprep.subr.mxu0 0.0
    %5594 = vmatpush1.msra.mxu0 0.0
    %5595 = vmatprep.subr.mxu0 0.0
    %5596 = vmatpush1.msra.mxu0 0.0
    %5597 = vmatprep.subr.mxu0 0.0
    %5598 = vmatpush1.msra.mxu0 0.0
    %5599 = vmatprep.subr.mxu0 0.0
    %5600 = vmatpush1.msra.mxu0 0.0
    %5601 = vmatprep.subr.mxu0 0.0
    %5602 = vmatpush1.msra.mxu0 0.0
    %5603 = vmatprep.subr.mxu0 0.0
    %5604 = vmatpush1.msra.mxu0 0.0
    %5605 = vmatprep.subr.mxu0 0.0
    %5606 = vmatpush1.msra.mxu0 0.0
    %5607 = vmatprep.subr.mxu0 0.0
    %5608 = vmatpush1.msra.mxu0 0.0
    %5609 = vmatprep.subr.mxu0 0.0
    %5610 = vmatpush1.msra.mxu0 0.0
    %5611 = vmatprep.subr.mxu0 0.0
    %5612 = vmatpush1.msra.mxu0 0.0
    %5613 = vmatprep.subr.mxu0 0.0
    %5614 = vmatpush1.msra.mxu0 0.0
    %5615 = vmatprep.mubr.f32.mxu0 0.0
    %5616 = vmatmul.mubr.f32.gmra.mrb[0].mxu0 %v5528
    %v5617 = vpop.f32.mrb[0].mxu0
    %v5618 = vadd.f32 0.0, %v5617
    %v5619 = vpop.f32.mrb[0].mxu0
    %5620 = vmatprep.mubr.f32.mxu0 0.0
    %5621 = vmatmul.mubr.f32.gmra.mrb[0].mxu0 %v5531
    %v5622 = vpop.f32.mrb[0].mxu0
    %v5623 = vadd.f32 0.0, %v5622
    %v5624 = vpop.f32.mrb[0].mxu0
    %5625 = vmatprep.mubr.f32.mxu0 0.0
    %5626 = vmatmul.mubr.f32.gmra.mrb[0].mxu0 %v5534
    %v5627 = vpop.f32.mrb[0].mxu0
    %v5628 = vadd.f32 0.0, %v5627
    %v5629 = vpop.f32.mrb[0].mxu0
    %5630 = vmatprep.mubr.f32.mxu0 0.0
    %5631 = vmatmul.mubr.f32.gmra.mrb[0].mxu0 %v5537
    %v5632 = vpop.f32.mrb[0].mxu0
    %v5633 = vadd.f32 0.0, %v5632
    %v5634 = vpop.f32.mrb[0].mxu0
    %5635 = vmatprep.mubr.f32.mxu0 0.0
    %5636 = vmatmul.mubr.f32.gmra.mrb[0].mxu0 %v5540
    %v5637 = vpop.f32.mrb[0].mxu0
    %v5638 = vadd.f32 0.0, %v5637
    %v5639 = vpop.f32.mrb[0].mxu0
    %5640 = vmatprep.mubr.f32.mxu0 0.0
    %5641 = vmatmul.mubr.f32.gmra.mrb[0].mxu0 %v5543
    %v5642 = vpop.f32.mrb[0].mxu0
    %v5643 = vadd.f32 0.0, %v5642
    %v5644 = vpop.f32.mrb[0].mxu0
    %5645 = vmatprep.mubr.f32.mxu0 0.0
    %5646 = vmatmul.mubr.f32.gmra.mrb[0].mxu0 %v5546
    %v5647 = vpop.f32.mrb[0].mxu0
    %v5648 = vadd.f32 0.0, %v5647
    %v5649 = vpop.f32.mrb[0].mxu0
    %5650 = vmatprep.mubr.f32.mxu0 0.0
    %5651 = vmatmul.mubr.f32.gmra.mrb[0].mxu0 %v5549
    %v5652 = vpop.f32.mrb[0].mxu0
    %v5653 = vadd.f32 0.0, %v5652
    %v5654 = vpop.f32.mrb[0].mxu0
    %5655 = vdwg.mxu0
    %5656 = vrot.lane.b32.xlu0 %v2641, 112
    %v5657 = vpop.permute.xlu0 %5656
    %5658 = vrot.lane.b32.xlu0 %v2643, 112
    %v5659 = vpop.permute.xlu0 %5658
    %5660 = vrot.lane.b32.xlu0 %v2645, 112
    %v5661 = vpop.permute.xlu0 %5660
    %5662 = vrot.lane.b32.xlu0 %v2647, 112
    %v5663 = vpop.permute.xlu0 %5662
    %5664 = vrot.lane.b32.xlu0 %v2649, 112
    %v5665 = vpop.permute.xlu0 %5664
    %5666 = vrot.lane.b32.xlu0 %v2651, 112
    %v5667 = vpop.permute.xlu0 %5666
    %5668 = vrot.lane.b32.xlu0 %v2653, 112
    %v5669 = vpop.permute.xlu0 %5668
    %5670 = vrot.lane.b32.xlu0 %v2655, 112
    %v5671 = vpop.permute.xlu0 %5670
    %v5681 = vsel %vm867, %v4577, 0
    %v5684 = vsel %vm867, %v4578, 0
    %v5687 = vsel %vm867, %v4579, 0
    %v5690 = vsel %vm867, %v4580, 0
    %v5693 = vsel %vm867, %v4581, 0
    %v5696 = vsel %vm867, %v4582, 0
    %v5699 = vsel %vm867, %v4583, 0
    %v5702 = vsel %vm867, %v4584, 0
    %5704 = vmatprep.subr.mxu0 0.0
    %5705 = vmatpush1.msra.mxu0 %v5657
    %5706 = vmatprep.subr.mxu0 0.0
    %5707 = vmatpush1.msra.mxu0 %v5659
    %5708 = vmatprep.subr.mxu0 0.0
    %5709 = vmatpush1.msra.mxu0 %v5661
    %5710 = vmatprep.subr.mxu0 0.0
    %5711 = vmatpush1.msra.mxu0 %v5663
    %5712 = vmatprep.subr.mxu0 0.0
    %5713 = vmatpush1.msra.mxu0 %v5665
    %5714 = vmatprep.subr.mxu0 0.0
    %5715 = vmatpush1.msra.mxu0 %v5667
    %5716 = vmatprep.subr.mxu0 0.0
    %5717 = vmatpush1.msra.mxu0 %v5669
    %5718 = vmatprep.subr.mxu0 0.0
    %5719 = vmatpush1.msra.mxu0 %v5671
    %5720 = vmatprep.subr.mxu0 0.0
    %5721 = vmatpush1.msra.mxu0 0.0
    %5722 = vmatprep.subr.mxu0 0.0
    %5723 = vmatpush1.msra.mxu0 0.0
    %5724 = vmatprep.subr.mxu0 0.0
    %5725 = vmatpush1.msra.mxu0 0.0
    %5726 = vmatprep.subr.mxu0 0.0
    %5727 = vmatpush1.msra.mxu0 0.0
    %5728 = vmatprep.subr.mxu0 0.0
    %5729 = vmatpush1.msra.mxu0 0.0
    %5730 = vmatprep.subr.mxu0 0.0
    %5731 = vmatpush1.msra.mxu0 0.0
    %5732 = vmatprep.subr.mxu0 0.0
    %5733 = vmatpush1.msra.mxu0 0.0
    %5734 = vmatprep.subr.mxu0 0.0
    %5735 = vmatpush1.msra.mxu0 0.0
    %5736 = vmatprep.subr.mxu0 0.0
    %5737 = vmatpush1.msra.mxu0 0.0
    %5738 = vmatprep.subr.mxu0 0.0
    %5739 = vmatpush1.msra.mxu0 0.0
    %5740 = vmatprep.subr.mxu0 0.0
    %5741 = vmatpush1.msra.mxu0 0.0
    %5742 = vmatprep.subr.mxu0 0.0
    %5743 = vmatpush1.msra.mxu0 0.0
    %5744 = vmatprep.subr.mxu0 0.0
    %5745 = vmatpush1.msra.mxu0 0.0
    %5746 = vmatprep.subr.mxu0 0.0
    %5747 = vmatpush1.msra.mxu0 0.0
    %5748 = vmatprep.subr.mxu0 0.0
    %5749 = vmatpush1.msra.mxu0 0.0
    %5750 = vmatprep.subr.mxu0 0.0
    %5751 = vmatpush1.msra.mxu0 0.0
    %5752 = vmatprep.subr.mxu0 0.0
    %5753 = vmatpush1.msra.mxu0 0.0
    %5754 = vmatprep.subr.mxu0 0.0
    %5755 = vmatpush1.msra.mxu0 0.0
    %5756 = vmatprep.subr.mxu0 0.0
    %5757 = vmatpush1.msra.mxu0 0.0
    %5758 = vmatprep.subr.mxu0 0.0
    %5759 = vmatpush1.msra.mxu0 0.0
    %5760 = vmatprep.subr.mxu0 0.0
    %5761 = vmatpush1.msra.mxu0 0.0
    %5762 = vmatprep.subr.mxu0 0.0
    %5763 = vmatpush1.msra.mxu0 0.0
    %5764 = vmatprep.subr.mxu0 0.0
    %5765 = vmatpush1.msra.mxu0 0.0
    %5766 = vmatprep.subr.mxu0 0.0
    %5767 = vmatpush1.msra.mxu0 0.0
    %5768 = vmatprep.mubr.f32.mxu0 0.0
    %5769 = vmatmul.mubr.f32.gmra.mrb[0].mxu0 %v5681
    %v5770 = vpop.f32.mrb[0].mxu0
    %v5771 = vadd.f32 0.0, %v5770
    %v5772 = vpop.f32.mrb[0].mxu0
    %5773 = vmatprep.mubr.f32.mxu0 0.0
    %5774 = vmatmul.mubr.f32.gmra.mrb[0].mxu0 %v5684
    %v5775 = vpop.f32.mrb[0].mxu0
    %v5776 = vadd.f32 0.0, %v5775
    %v5777 = vpop.f32.mrb[0].mxu0
    %5778 = vmatprep.mubr.f32.mxu0 0.0
    %5779 = vmatmul.mubr.f32.gmra.mrb[0].mxu0 %v5687
    %v5780 = vpop.f32.mrb[0].mxu0
    %v5781 = vadd.f32 0.0, %v5780
    %v5782 = vpop.f32.mrb[0].mxu0
    %5783 = vmatprep.mubr.f32.mxu0 0.0
    %5784 = vmatmul.mubr.f32.gmra.mrb[0].mxu0 %v5690
    %v5785 = vpop.f32.mrb[0].mxu0
    %v5786 = vadd.f32 0.0, %v5785
    %v5787 = vpop.f32.mrb[0].mxu0
    %5788 = vmatprep.mubr.f32.mxu0 0.0
    %5789 = vmatmul.mubr.f32.gmra.mrb[0].mxu0 %v5693
    %v5790 = vpop.f32.mrb[0].mxu0
    %v5791 = vadd.f32 0.0, %v5790
    %v5792 = vpop.f32.mrb[0].mxu0
    %5793 = vmatprep.mubr.f32.mxu0 0.0
    %5794 = vmatmul.mubr.f32.gmra.mrb[0].mxu0 %v5696
    %v5795 = vpop.f32.mrb[0].mxu0
    %v5796 = vadd.f32 0.0, %v5795
    %v5797 = vpop.f32.mrb[0].mxu0
    %5798 = vmatprep.mubr.f32.mxu0 0.0
    %5799 = vmatmul.mubr.f32.gmra.mrb[0].mxu0 %v5699
    %v5800 = vpop.f32.mrb[0].mxu0
    %v5801 = vadd.f32 0.0, %v5800
    %v5802 = vpop.f32.mrb[0].mxu0
    %5803 = vmatprep.mubr.f32.mxu0 0.0
    %5804 = vmatmul.mubr.f32.gmra.mrb[0].mxu0 %v5702
    %v5805 = vpop.f32.mrb[0].mxu0
    %v5806 = vadd.f32 0.0, %v5805
    %v5807 = vpop.f32.mrb[0].mxu0
    %5808 = vdwg.mxu0
    %5817 = vrot.lane.b32.xlu0 %v4853, 4
    %v5818 = vpop.permute.xlu0 %5817
    %5819 = vrot.lane.b32.xlu0 %v4858, 4
    %v5820 = vpop.permute.xlu0 %5819
    %5821 = vrot.lane.b32.xlu0 %v4863, 4
    %v5822 = vpop.permute.xlu0 %5821
    %5823 = vrot.lane.b32.xlu0 %v4868, 4
    %v5824 = vpop.permute.xlu0 %5823
    %5825 = vrot.lane.b32.xlu0 %v4873, 4
    %v5826 = vpop.permute.xlu0 %5825
    %5827 = vrot.lane.b32.xlu0 %v4878, 4
    %v5828 = vpop.permute.xlu0 %5827
    %5829 = vrot.lane.b32.xlu0 %v4883, 4
    %v5830 = vpop.permute.xlu0 %5829
    %5831 = vrot.lane.b32.xlu0 %v4888, 4
    %v5832 = vpop.permute.xlu0 %5831
    %5849 = vrot.lane.b32.xlu0 %v5006, 8
    %v5850 = vpop.permute.xlu0 %5849
    %5851 = vrot.lane.b32.xlu0 %v5011, 8
    %v5852 = vpop.permute.xlu0 %5851
    %5853 = vrot.lane.b32.xlu0 %v5016, 8
    %v5854 = vpop.permute.xlu0 %5853
    %5855 = vrot.lane.b32.xlu0 %v5021, 8
    %v5856 = vpop.permute.xlu0 %5855
    %5857 = vrot.lane.b32.xlu0 %v5026, 8
    %v5858 = vpop.permute.xlu0 %5857
    %5859 = vrot.lane.b32.xlu0 %v5031, 8
    %v5860 = vpop.permute.xlu0 %5859
    %5861 = vrot.lane.b32.xlu0 %v5036, 8
    %v5862 = vpop.permute.xlu0 %5861
    %5863 = vrot.lane.b32.xlu0 %v5041, 8
    %v5864 = vpop.permute.xlu0 %5863
    %5881 = vrot.lane.b32.xlu0 %v5159, 12
    %v5882 = vpop.permute.xlu0 %5881
    %5883 = vrot.lane.b32.xlu0 %v5164, 12
    %v5884 = vpop.permute.xlu0 %5883
    %5885 = vrot.lane.b32.xlu0 %v5169, 12
    %v5886 = vpop.permute.xlu0 %5885
    %5887 = vrot.lane.b32.xlu0 %v5174, 12
    %v5888 = vpop.permute.xlu0 %5887
    %5889 = vrot.lane.b32.xlu0 %v5179, 12
    %v5890 = vpop.permute.xlu0 %5889
    %5891 = vrot.lane.b32.xlu0 %v5184, 12
    %v5892 = vpop.permute.xlu0 %5891
    %5893 = vrot.lane.b32.xlu0 %v5189, 12
    %v5894 = vpop.permute.xlu0 %5893
    %5895 = vrot.lane.b32.xlu0 %v5194, 12
    %v5896 = vpop.permute.xlu0 %5895
    %v5905 = vsel %vm2672, %v4700, %v5818
    %v5906 = vsel %vm2672, %v4705, %v5820
    %v5907 = vsel %vm2672, %v4710, %v5822
    %v5908 = vsel %vm2672, %v4715, %v5824
    %v5909 = vsel %vm2672, %v4720, %v5826
    %v5910 = vsel %vm2672, %v4725, %v5828
    %v5911 = vsel %vm2672, %v4730, %v5830
    %v5912 = vsel %vm2672, %v4735, %v5832
    %vm5913 = vcmask 64512
    %v5914 = vsel %vm5913, %v5905, %v5850
    %v5915 = vsel %vm5913, %v5906, %v5852
    %v5916 = vsel %vm5913, %v5907, %v5854
    %v5917 = vsel %vm5913, %v5908, %v5856
    %v5918 = vsel %vm5913, %v5909, %v5858
    %v5919 = vsel %vm5913, %v5910, %v5860
    %v5920 = vsel %vm5913, %v5911, %v5862
    %v5921 = vsel %vm5913, %v5912, %v5864
    %vm5922 = vcmask 97280
    %v5923 = vsel %vm5922, %v5914, %v5882
    %v5924 = vsel %vm5922, %v5915, %v5884
    %v5925 = vsel %vm5922, %v5916, %v5886
    %v5926 = vsel %vm5922, %v5917, %v5888
    %v5927 = vsel %vm5922, %v5918, %v5890
    %v5928 = vsel %vm5922, %v5919, %v5892
    %v5929 = vsel %vm5922, %v5920, %v5894
    %v5930 = vsel %vm5922, %v5921, %v5896
    %5939 = vrot.lane.b32.xlu0 %v5465, 4
    %v5940 = vpop.permute.xlu0 %5939
    %5941 = vrot.lane.b32.xlu0 %v5470, 4
    %v5942 = vpop.permute.xlu0 %5941
    %5943 = vrot.lane.b32.xlu0 %v5475, 4
    %v5944 = vpop.permute.xlu0 %5943
    %5945 = vrot.lane.b32.xlu0 %v5480, 4
    %v5946 = vpop.permute.xlu0 %5945
    %5947 = vrot.lane.b32.xlu0 %v5485, 4
    %v5948 = vpop.permute.xlu0 %5947
    %5949 = vrot.lane.b32.xlu0 %v5490, 4
    %v5950 = vpop.permute.xlu0 %5949
    %5951 = vrot.lane.b32.xlu0 %v5495, 4
    %v5952 = vpop.permute.xlu0 %5951
    %5953 = vrot.lane.b32.xlu0 %v5500, 4
    %v5954 = vpop.permute.xlu0 %5953
    %5971 = vrot.lane.b32.xlu0 %v5618, 8
    %v5972 = vpop.permute.xlu0 %5971
    %5973 = vrot.lane.b32.xlu0 %v5623, 8
    %v5974 = vpop.permute.xlu0 %5973
    %5975 = vrot.lane.b32.xlu0 %v5628, 8
    %v5976 = vpop.permute.xlu0 %5975
    %5977 = vrot.lane.b32.xlu0 %v5633, 8
    %v5978 = vpop.permute.xlu0 %5977
    %5979 = vrot.lane.b32.xlu0 %v5638, 8
    %v5980 = vpop.permute.xlu0 %5979
    %5981 = vrot.lane.b32.xlu0 %v5643, 8
    %v5982 = vpop.permute.xlu0 %5981
    %5983 = vrot.lane.b32.xlu0 %v5648, 8
    %v5984 = vpop.permute.xlu0 %5983
    %5985 = vrot.lane.b32.xlu0 %v5653, 8
    %v5986 = vpop.permute.xlu0 %5985
    %6003 = vrot.lane.b32.xlu0 %v5771, 12
    %v6004 = vpop.permute.xlu0 %6003
    %6005 = vrot.lane.b32.xlu0 %v5776, 12
    %v6006 = vpop.permute.xlu0 %6005
    %6007 = vrot.lane.b32.xlu0 %v5781, 12
    %v6008 = vpop.permute.xlu0 %6007
    %6009 = vrot.lane.b32.xlu0 %v5786, 12
    %v6010 = vpop.permute.xlu0 %6009
    %6011 = vrot.lane.b32.xlu0 %v5791, 12
    %v6012 = vpop.permute.xlu0 %6011
    %6013 = vrot.lane.b32.xlu0 %v5796, 12
    %v6014 = vpop.permute.xlu0 %6013
    %6015 = vrot.lane.b32.xlu0 %v5801, 12
    %v6016 = vpop.permute.xlu0 %6015
    %6017 = vrot.lane.b32.xlu0 %v5806, 12
    %v6018 = vpop.permute.xlu0 %6017
    %v6027 = vsel %vm2672, %v5312, %v5940
    %v6028 = vsel %vm2672, %v5317, %v5942
    %v6029 = vsel %vm2672, %v5322, %v5944
    %v6030 = vsel %vm2672, %v5327, %v5946
    %v6031 = vsel %vm2672, %v5332, %v5948
    %v6032 = vsel %vm2672, %v5337, %v5950
    %v6033 = vsel %vm2672, %v5342, %v5952
    %v6034 = vsel %vm2672, %v5347, %v5954
    %v6035 = vsel %vm5913, %v6027, %v5972
    %v6036 = vsel %vm5913, %v6028, %v5974
    %v6037 = vsel %vm5913, %v6029, %v5976
    %v6038 = vsel %vm5913, %v6030, %v5978
    %v6039 = vsel %vm5913, %v6031, %v5980
    %v6040 = vsel %vm5913, %v6032, %v5982
    %v6041 = vsel %vm5913, %v6033, %v5984
    %v6042 = vsel %vm5913, %v6034, %v5986
    %v6043 = vsel %vm5922, %v6035, %v6004
    %v6044 = vsel %vm5922, %v6036, %v6006
    %v6045 = vsel %vm5922, %v6037, %v6008
    %v6046 = vsel %vm5922, %v6038, %v6010
    %v6047 = vsel %vm5922, %v6039, %v6012
    %v6048 = vsel %vm5922, %v6040, %v6014
    %v6049 = vsel %vm5922, %v6041, %v6016
    %v6050 = vsel %vm5922, %v6042, %v6018
    %v6051 = vld [vmem:[%s9] sm:$0xff]
    %v6052 = vld [vmem:[%s9 + $0x8] sm:$0xff]
    %v6053 = vld [vmem:[%s10] sm:$0x1]
    %v6055 = vlaneseq
    %v6056 = vshrl.u32 %v6055, 7
    %v6057 = vsub.s32 0, %v6056
    %v6058 = vrot.slane %v6053, %v6057
    %v6061 = vsel %vm311, %v5923, 0
    %v6064 = vsel %vm311, %v5924, 0
    %v6067 = vsel %vm311, %v5925, 0
    %v6070 = vsel %vm311, %v5926, 0
    %v6073 = vsel %vm311, %v5927, 0
    %v6076 = vsel %vm311, %v5928, 0
    %v6079 = vsel %vm311, %v5929, 0
    %v6082 = vsel %vm311, %v5930, 0
    %v6085 = vsel %vm311, %v6043, 0
    %v6088 = vsel %vm311, %v6044, 0
    %v6091 = vsel %vm311, %v6045, 0
    %v6094 = vsel %vm311, %v6046, 0
    %v6097 = vsel %vm311, %v6047, 0
    %v6100 = vsel %vm311, %v6048, 0
    %v6103 = vsel %vm311, %v6049, 0
    %v6106 = vsel %vm311, %v6050, 0
    %6108 = vmatprep.subr.mxu0 0.0
    %6109 = vmatpush1.msra.mxu0 %v6051
    %6110 = vmatprep.subr.mxu0 0.0
    %6111 = vmatpush1.msra.mxu0 %v6052
    %6112 = vmatprep.subr.mxu0 0.0
    %6113 = vmatpush1.msra.mxu0 0.0
    %6114 = vmatprep.subr.mxu0 0.0
    %6115 = vmatpush1.msra.mxu0 0.0
    %6116 = vmatprep.subr.mxu0 0.0
    %6117 = vmatpush1.msra.mxu0 0.0
    %6118 = vmatprep.subr.mxu0 0.0
    %6119 = vmatpush1.msra.mxu0 0.0
    %6120 = vmatprep.subr.mxu0 0.0
    %6121 = vmatpush1.msra.mxu0 0.0
    %6122 = vmatprep.subr.mxu0 0.0
    %6123 = vmatpush1.msra.mxu0 0.0
    %6124 = vmatprep.subr.mxu0 0.0
    %6125 = vmatpush1.msra.mxu0 0.0
    %6126 = vmatprep.subr.mxu0 0.0
    %6127 = vmatpush1.msra.mxu0 0.0
    %6128 = vmatprep.subr.mxu0 0.0
    %6129 = vmatpush1.msra.mxu0 0.0
    %6130 = vmatprep.subr.mxu0 0.0
    %6131 = vmatpush1.msra.mxu0 0.0
    %6132 = vmatprep.subr.mxu0 0.0
    %6133 = vmatpush1.msra.mxu0 0.0
    %6134 = vmatprep.subr.mxu0 0.0
    %6135 = vmatpush1.msra.mxu0 0.0
    %6136 = vmatprep.subr.mxu0 0.0
    %6137 = vmatpush1.msra.mxu0 0.0
    %6138 = vmatprep.subr.mxu0 0.0
    %6139 = vmatpush1.msra.mxu0 0.0
    %6140 = vmatprep.subr.mxu0 0.0
    %6141 = vmatpush1.msra.mxu0 0.0
    %6142 = vmatprep.subr.mxu0 0.0
    %6143 = vmatpush1.msra.mxu0 0.0
    %6144 = vmatprep.subr.mxu0 0.0
    %6145 = vmatpush1.msra.mxu0 0.0
    %6146 = vmatprep.subr.mxu0 0.0
    %6147 = vmatpush1.msra.mxu0 0.0
    %6148 = vmatprep.subr.mxu0 0.0
    %6149 = vmatpush1.msra.mxu0 0.0
    %6150 = vmatprep.subr.mxu0 0.0
    %6151 = vmatpush1.msra.mxu0 0.0
    %6152 = vmatprep.subr.mxu0 0.0
    %6153 = vmatpush1.msra.mxu0 0.0
    %6154 = vmatprep.subr.mxu0 0.0
    %6155 = vmatpush1.msra.mxu0 0.0
    %6156 = vmatprep.subr.mxu0 0.0
    %6157 = vmatpush1.msra.mxu0 0.0
    %6158 = vmatprep.subr.mxu0 0.0
    %6159 = vmatpush1.msra.mxu0 0.0
    %6160 = vmatprep.subr.mxu0 0.0
    %6161 = vmatpush1.msra.mxu0 0.0
    %6162 = vmatprep.subr.mxu0 0.0
    %6163 = vmatpush1.msra.mxu0 0.0
    %6164 = vmatprep.subr.mxu0 0.0
    %6165 = vmatpush1.msra.mxu0 0.0
    %6166 = vmatprep.subr.mxu0 0.0
    %6167 = vmatpush1.msra.mxu0 0.0
    %6168 = vmatprep.subr.mxu0 0.0
    %6169 = vmatpush1.msra.mxu0 0.0
    %6170 = vmatprep.subr.mxu0 0.0
    %6171 = vmatpush1.msra.mxu0 0.0
    %6172 = vmatprep.mubr.f32.mxu0 0.0
    %6173 = vmatmul.mubr.f32.gmra.mrb[0].mxu0 %v6061
    %v6174 = vpop.f32.mrb[0].mxu0
    %v6175 = vadd.f32 %v6058, %v6174
    %v6176 = vpop.f32.mrb[0].mxu0
    %6177 = vmatprep.mubr.f32.mxu0 0.0
    %6178 = vmatmul.mubr.f32.gmra.mrb[0].mxu0 %v6064
    %v6179 = vpop.f32.mrb[0].mxu0
    %v6180 = vadd.f32 %v6058, %v6179
    %v6181 = vpop.f32.mrb[0].mxu0
    %6182 = vmatprep.mubr.f32.mxu0 0.0
    %6183 = vmatmul.mubr.f32.gmra.mrb[0].mxu0 %v6067
    %v6184 = vpop.f32.mrb[0].mxu0
    %v6185 = vadd.f32 %v6058, %v6184
    %v6186 = vpop.f32.mrb[0].mxu0
    %6187 = vmatprep.mubr.f32.mxu0 0.0
    %6188 = vmatmul.mubr.f32.gmra.mrb[0].mxu0 %v6070
    %v6189 = vpop.f32.mrb[0].mxu0
    %v6190 = vadd.f32 %v6058, %v6189
    %v6191 = vpop.f32.mrb[0].mxu0
    %6192 = vmatprep.mubr.f32.mxu0 0.0
    %6193 = vmatmul.mubr.f32.gmra.mrb[0].mxu0 %v6073
    %v6194 = vpop.f32.mrb[0].mxu0
    %v6195 = vadd.f32 %v6058, %v6194
    %v6196 = vpop.f32.mrb[0].mxu0
    %6197 = vmatprep.mubr.f32.mxu0 0.0
    %6198 = vmatmul.mubr.f32.gmra.mrb[0].mxu0 %v6076
    %v6199 = vpop.f32.mrb[0].mxu0
    %v6200 = vadd.f32 %v6058, %v6199
    %v6201 = vpop.f32.mrb[0].mxu0
    %6202 = vmatprep.mubr.f32.mxu0 0.0
    %6203 = vmatmul.mubr.f32.gmra.mrb[0].mxu0 %v6079
    %v6204 = vpop.f32.mrb[0].mxu0
    %v6205 = vadd.f32 %v6058, %v6204
    %v6206 = vpop.f32.mrb[0].mxu0
    %6207 = vmatprep.mubr.f32.mxu0 0.0
    %6208 = vmatmul.mubr.f32.gmra.mrb[0].mxu0 %v6082
    %v6209 = vpop.f32.mrb[0].mxu0
    %v6210 = vadd.f32 %v6058, %v6209
    %v6211 = vpop.f32.mrb[0].mxu0
    %6212 = vmatprep.mubr.f32.mxu0 0.0
    %6213 = vmatmul.mubr.f32.gmra.mrb[0].mxu0 %v6085
    %v6214 = vpop.f32.mrb[0].mxu0
    %v6215 = vadd.f32 %v6058, %v6214
    %v6216 = vpop.f32.mrb[0].mxu0
    %6217 = vmatprep.mubr.f32.mxu0 0.0
    %6218 = vmatmul.mubr.f32.gmra.mrb[0].mxu0 %v6088
    %v6219 = vpop.f32.mrb[0].mxu0
    %v6220 = vadd.f32 %v6058, %v6219
    %v6221 = vpop.f32.mrb[0].mxu0
    %6222 = vmatprep.mubr.f32.mxu0 0.0
    %6223 = vmatmul.mubr.f32.gmra.mrb[0].mxu0 %v6091
    %v6224 = vpop.f32.mrb[0].mxu0
    %v6225 = vadd.f32 %v6058, %v6224
    %v6226 = vpop.f32.mrb[0].mxu0
    %6227 = vmatprep.mubr.f32.mxu0 0.0
    %6228 = vmatmul.mubr.f32.gmra.mrb[0].mxu0 %v6094
    %v6229 = vpop.f32.mrb[0].mxu0
    %v6230 = vadd.f32 %v6058, %v6229
    %v6231 = vpop.f32.mrb[0].mxu0
    %6232 = vmatprep.mubr.f32.mxu0 0.0
    %6233 = vmatmul.mubr.f32.gmra.mrb[0].mxu0 %v6097
    %v6234 = vpop.f32.mrb[0].mxu0
    %v6235 = vadd.f32 %v6058, %v6234
    %v6236 = vpop.f32.mrb[0].mxu0
    %6237 = vmatprep.mubr.f32.mxu0 0.0
    %6238 = vmatmul.mubr.f32.gmra.mrb[0].mxu0 %v6100
    %v6239 = vpop.f32.mrb[0].mxu0
    %v6240 = vadd.f32 %v6058, %v6239
    %v6241 = vpop.f32.mrb[0].mxu0
    %6242 = vmatprep.mubr.f32.mxu0 0.0
    %6243 = vmatmul.mubr.f32.gmra.mrb[0].mxu0 %v6103
    %v6244 = vpop.f32.mrb[0].mxu0
    %v6245 = vadd.f32 %v6058, %v6244
    %v6246 = vpop.f32.mrb[0].mxu0
    %6247 = vmatprep.mubr.f32.mxu0 0.0
    %6248 = vmatmul.mubr.f32.gmra.mrb[0].mxu0 %v6106
    %v6249 = vpop.f32.mrb[0].mxu0
    %v6250 = vadd.f32 %v6058, %v6249
    %v6251 = vpop.f32.mrb[0].mxu0
    %6252 = vdwg.mxu0
    %v6253 = vxor.u32 %v6175, 2147483648
    %v6254 = vxor.u32 %v6180, 2147483648
    %v6255 = vxor.u32 %v6185, 2147483648
    %v6256 = vxor.u32 %v6190, 2147483648
    %v6257 = vxor.u32 %v6195, 2147483648
    %v6258 = vxor.u32 %v6200, 2147483648
    %v6259 = vxor.u32 %v6205, 2147483648
    %v6260 = vxor.u32 %v6210, 2147483648
    %v6261 = vxor.u32 %v6215, 2147483648
    %v6262 = vxor.u32 %v6220, 2147483648
    %v6263 = vxor.u32 %v6225, 2147483648
    %v6264 = vxor.u32 %v6230, 2147483648
    %v6265 = vxor.u32 %v6235, 2147483648
    %v6266 = vxor.u32 %v6240, 2147483648
    %v6267 = vxor.u32 %v6245, 2147483648
    %v6268 = vxor.u32 %v6250, 2147483648
    %v6269 = vmul.f32 %v6253, 1.442695
    %v6270 = vpow.pop %v6269
    %v6271 = vmul.f32 %v6254, 1.442695
    %v6272 = vpow.pop %v6271
    %v6273 = vmul.f32 %v6255, 1.442695
    %v6274 = vpow.pop %v6273
    %v6275 = vmul.f32 %v6256, 1.442695
    %v6276 = vpow.pop %v6275
    %v6277 = vmul.f32 %v6257, 1.442695
    %v6278 = vpow.pop %v6277
    %v6279 = vmul.f32 %v6258, 1.442695
    %v6280 = vpow.pop %v6279
    %v6281 = vmul.f32 %v6259, 1.442695
    %v6282 = vpow.pop %v6281
    %v6283 = vmul.f32 %v6260, 1.442695
    %v6284 = vpow.pop %v6283
    %v6285 = vmul.f32 %v6261, 1.442695
    %v6286 = vpow.pop %v6285
    %v6287 = vmul.f32 %v6262, 1.442695
    %v6288 = vpow.pop %v6287
    %v6289 = vmul.f32 %v6263, 1.442695
    %v6290 = vpow.pop %v6289
    %v6291 = vmul.f32 %v6264, 1.442695
    %v6292 = vpow.pop %v6291
    %v6293 = vmul.f32 %v6265, 1.442695
    %v6294 = vpow.pop %v6293
    %v6295 = vmul.f32 %v6266, 1.442695
    %v6296 = vpow.pop %v6295
    %v6297 = vmul.f32 %v6267, 1.442695
    %v6298 = vpow.pop %v6297
    %v6299 = vmul.f32 %v6268, 1.442695
    %v6300 = vpow.pop %v6299
    %v6301 = vadd.f32 %v6270, 1.0
    %v6302 = vadd.f32 %v6272, 1.0
    %v6303 = vadd.f32 %v6274, 1.0
    %v6304 = vadd.f32 %v6276, 1.0
    %v6305 = vadd.f32 %v6278, 1.0
    %v6306 = vadd.f32 %v6280, 1.0
    %v6307 = vadd.f32 %v6282, 1.0
    %v6308 = vadd.f32 %v6284, 1.0
    %v6309 = vadd.f32 %v6286, 1.0
    %v6310 = vadd.f32 %v6288, 1.0
    %v6311 = vadd.f32 %v6290, 1.0
    %v6312 = vadd.f32 %v6292, 1.0
    %v6313 = vadd.f32 %v6294, 1.0
    %v6314 = vadd.f32 %v6296, 1.0
    %v6315 = vadd.f32 %v6298, 1.0
    %v6316 = vadd.f32 %v6300, 1.0
    %v6317 = vrcp.pop %v6301
    %v6318 = vmul.f32 1.0, %v6317
    %v6319 = vrcp.pop %v6302
    %v6320 = vmul.f32 1.0, %v6319
    %v6321 = vrcp.pop %v6303
    %v6322 = vmul.f32 1.0, %v6321
    %v6323 = vrcp.pop %v6304
    %v6324 = vmul.f32 1.0, %v6323
    %v6325 = vrcp.pop %v6305
    %v6326 = vmul.f32 1.0, %v6325
    %v6327 = vrcp.pop %v6306
    %v6328 = vmul.f32 1.0, %v6327
    %v6329 = vrcp.pop %v6307
    %v6330 = vmul.f32 1.0, %v6329
    %v6331 = vrcp.pop %v6308
    %v6332 = vmul.f32 1.0, %v6331
    %v6333 = vrcp.pop %v6309
    %v6334 = vmul.f32 1.0, %v6333
    %v6335 = vrcp.pop %v6310
    %v6336 = vmul.f32 1.0, %v6335
    %v6337 = vrcp.pop %v6311
    %v6338 = vmul.f32 1.0, %v6337
    %v6339 = vrcp.pop %v6312
    %v6340 = vmul.f32 1.0, %v6339
    %v6341 = vrcp.pop %v6313
    %v6342 = vmul.f32 1.0, %v6341
    %v6343 = vrcp.pop %v6314
    %v6344 = vmul.f32 1.0, %v6343
    %v6345 = vrcp.pop %v6315
    %v6346 = vmul.f32 1.0, %v6345
    %v6347 = vrcp.pop %v6316
    %v6348 = vmul.f32 1.0, %v6347
    %6365 = vrot.lane.b32.xlu0 %v6318, 112
    %v6366 = vpop.permute.xlu0 %6365
    %6367 = vrot.lane.b32.xlu0 %v6320, 112
    %v6368 = vpop.permute.xlu0 %6367
    %6369 = vrot.lane.b32.xlu0 %v6322, 112
    %v6370 = vpop.permute.xlu0 %6369
    %6371 = vrot.lane.b32.xlu0 %v6324, 112
    %v6372 = vpop.permute.xlu0 %6371
    %6373 = vrot.lane.b32.xlu0 %v6326, 112
    %v6374 = vpop.permute.xlu0 %6373
    %6375 = vrot.lane.b32.xlu0 %v6328, 112
    %v6376 = vpop.permute.xlu0 %6375
    %6377 = vrot.lane.b32.xlu0 %v6330, 112
    %v6378 = vpop.permute.xlu0 %6377
    %6379 = vrot.lane.b32.xlu0 %v6332, 112
    %v6380 = vpop.permute.xlu0 %6379
    %6381 = vrot.lane.b32.xlu0 %v6334, 112
    %v6382 = vpop.permute.xlu0 %6381
    %6383 = vrot.lane.b32.xlu0 %v6336, 112
    %v6384 = vpop.permute.xlu0 %6383
    %6385 = vrot.lane.b32.xlu0 %v6338, 112
    %v6386 = vpop.permute.xlu0 %6385
    %6387 = vrot.lane.b32.xlu0 %v6340, 112
    %v6388 = vpop.permute.xlu0 %6387
    %6389 = vrot.lane.b32.xlu0 %v6342, 112
    %v6390 = vpop.permute.xlu0 %6389
    %6391 = vrot.lane.b32.xlu0 %v6344, 112
    %v6392 = vpop.permute.xlu0 %6391
    %6393 = vrot.lane.b32.xlu0 %v6346, 112
    %v6394 = vpop.permute.xlu0 %6393
    %6395 = vrot.lane.b32.xlu0 %v6348, 112
    %v6396 = vpop.permute.xlu0 %6395
    %v6413 = vmul.f32 %v6175, %v6366
    %v6414 = vmul.f32 %v6180, %v6368
    %v6415 = vmul.f32 %v6185, %v6370
    %v6416 = vmul.f32 %v6190, %v6372
    %v6417 = vmul.f32 %v6195, %v6374
    %v6418 = vmul.f32 %v6200, %v6376
    %v6419 = vmul.f32 %v6205, %v6378
    %v6420 = vmul.f32 %v6210, %v6380
    %v6421 = vmul.f32 %v6215, %v6382
    %v6422 = vmul.f32 %v6220, %v6384
    %v6423 = vmul.f32 %v6225, %v6386
    %v6424 = vmul.f32 %v6230, %v6388
    %v6425 = vmul.f32 %v6235, %v6390
    %v6426 = vmul.f32 %v6240, %v6392
    %v6427 = vmul.f32 %v6245, %v6394
    %v6428 = vmul.f32 %v6250, %v6396
    %v6429 = vadd.f32 %v6413, %v2173
    %v6430 = vadd.f32 %v6414, %v2174
    %v6431 = vadd.f32 %v6415, %v2175
    %v6432 = vadd.f32 %v6416, %v2176
    %v6433 = vadd.f32 %v6417, %v2177
    %v6434 = vadd.f32 %v6418, %v2178
    %v6435 = vadd.f32 %v6419, %v2179
    %v6436 = vadd.f32 %v6420, %v2180
    %v6437 = vadd.f32 %v6421, %v2181
    %v6438 = vadd.f32 %v6422, %v2182
    %v6439 = vadd.f32 %v6423, %v2183
    %v6440 = vadd.f32 %v6424, %v2184
    %v6441 = vadd.f32 %v6425, %v2185
    %v6442 = vadd.f32 %v6426, %v2186
    %v6443 = vadd.f32 %v6427, %v2187
    %v6444 = vadd.f32 %v6428, %v2188
    %v6445 = vld [vmem:[%s11] sm:$0x1]
    %v6446 = vld [vmem:[%s12] sm:$0x1]
    %v6447 = vsel %vm311, %v6429, 0.0
    %6448 = vadd.xlane.f32.xlu0 %v6447
    %v6449 = vpop.xlane.xlu0 %6448
    %v6450 = vsel %vm311, %v6430, 0.0
    %6451 = vadd.xlane.f32.xlu0 %v6450
    %v6452 = vpop.xlane.xlu0 %6451
    %v6453 = vsel %vm311, %v6431, 0.0
    %6454 = vadd.xlane.f32.xlu0 %v6453
    %v6455 = vpop.xlane.xlu0 %6454
    %v6456 = vsel %vm311, %v6432, 0.0
    %6457 = vadd.xlane.f32.xlu0 %v6456
    %v6458 = vpop.xlane.xlu0 %6457
    %v6459 = vsel %vm311, %v6433, 0.0
    %6460 = vadd.xlane.f32.xlu0 %v6459
    %v6461 = vpop.xlane.xlu0 %6460
    %v6462 = vsel %vm311, %v6434, 0.0
    %6463 = vadd.xlane.f32.xlu0 %v6462
    %v6464 = vpop.xlane.xlu0 %6463
    %v6465 = vsel %vm311, %v6435, 0.0
    %6466 = vadd.xlane.f32.xlu0 %v6465
    %v6467 = vpop.xlane.xlu0 %6466
    %v6468 = vsel %vm311, %v6436, 0.0
    %6469 = vadd.xlane.f32.xlu0 %v6468
    %v6470 = vpop.xlane.xlu0 %6469
    %v6471 = vsel %vm311, %v6437, 0.0
    %6472 = vadd.xlane.f32.xlu0 %v6471
    %v6473 = vpop.xlane.xlu0 %6472
    %v6474 = vsel %vm311, %v6438, 0.0
    %6475 = vadd.xlane.f32.xlu0 %v6474
    %v6476 = vpop.xlane.xlu0 %6475
    %v6477 = vsel %vm311, %v6439, 0.0
    %6478 = vadd.xlane.f32.xlu0 %v6477
    %v6479 = vpop.xlane.xlu0 %6478
    %v6480 = vsel %vm311, %v6440, 0.0
    %6481 = vadd.xlane.f32.xlu0 %v6480
    %v6482 = vpop.xlane.xlu0 %6481
    %v6483 = vsel %vm311, %v6441, 0.0
    %6484 = vadd.xlane.f32.xlu0 %v6483
    %v6485 = vpop.xlane.xlu0 %6484
    %v6486 = vsel %vm311, %v6442, 0.0
    %6487 = vadd.xlane.f32.xlu0 %v6486
    %v6488 = vpop.xlane.xlu0 %6487
    %v6489 = vsel %vm311, %v6443, 0.0
    %6490 = vadd.xlane.f32.xlu0 %v6489
    %v6491 = vpop.xlane.xlu0 %6490
    %v6492 = vsel %vm311, %v6444, 0.0
    %6493 = vadd.xlane.f32.xlu0 %v6492
    %v6494 = vpop.xlane.xlu0 %6493
    %v6495 = vmul.f32 %v6449, %v1984
    %v6496 = vmul.f32 %v6452, %v1984
    %v6497 = vmul.f32 %v6455, %v1984
    %v6498 = vmul.f32 %v6458, %v1984
    %v6499 = vmul.f32 %v6461, %v1984
    %v6500 = vmul.f32 %v6464, %v1984
    %v6501 = vmul.f32 %v6467, %v1984
    %v6502 = vmul.f32 %v6470, %v1984
    %v6503 = vmul.f32 %v6473, %v1984
    %v6504 = vmul.f32 %v6476, %v1984
    %v6505 = vmul.f32 %v6479, %v1984
    %v6506 = vmul.f32 %v6482, %v1984
    %v6507 = vmul.f32 %v6485, %v1984
    %v6508 = vmul.f32 %v6488, %v1984
    %v6509 = vmul.f32 %v6491, %v1984
    %v6510 = vmul.f32 %v6494, %v1984
    %v6511 = vsub.f32 %v6429, %v6495
    %v6512 = vsub.f32 %v6430, %v6496
    %v6513 = vsub.f32 %v6431, %v6497
    %v6514 = vsub.f32 %v6432, %v6498
    %v6515 = vsub.f32 %v6433, %v6499
    %v6516 = vsub.f32 %v6434, %v6500
    %v6517 = vsub.f32 %v6435, %v6501
    %v6518 = vsub.f32 %v6436, %v6502
    %v6519 = vsub.f32 %v6437, %v6503
    %v6520 = vsub.f32 %v6438, %v6504
    %v6521 = vsub.f32 %v6439, %v6505
    %v6522 = vsub.f32 %v6440, %v6506
    %v6523 = vsub.f32 %v6441, %v6507
    %v6524 = vsub.f32 %v6442, %v6508
    %v6525 = vsub.f32 %v6443, %v6509
    %v6526 = vsub.f32 %v6444, %v6510
    %v6527 = vmul.f32 %v6511, %v6511
    %v6528 = vmul.f32 %v6512, %v6512
    %v6529 = vmul.f32 %v6513, %v6513
    %v6530 = vmul.f32 %v6514, %v6514
    %v6531 = vmul.f32 %v6515, %v6515
    %v6532 = vmul.f32 %v6516, %v6516
    %v6533 = vmul.f32 %v6517, %v6517
    %v6534 = vmul.f32 %v6518, %v6518
    %v6535 = vmul.f32 %v6519, %v6519
    %v6536 = vmul.f32 %v6520, %v6520
    %v6537 = vmul.f32 %v6521, %v6521
    %v6538 = vmul.f32 %v6522, %v6522
    %v6539 = vmul.f32 %v6523, %v6523
    %v6540 = vmul.f32 %v6524, %v6524
    %v6541 = vmul.f32 %v6525, %v6525
    %v6542 = vmul.f32 %v6526, %v6526
    %v6543 = vsel %vm311, %v6527, 0.0
    %6544 = vadd.xlane.f32.xlu0 %v6543
    %v6545 = vpop.xlane.xlu0 %6544
    %v6546 = vsel %vm311, %v6528, 0.0
    %6547 = vadd.xlane.f32.xlu0 %v6546
    %v6548 = vpop.xlane.xlu0 %6547
    %v6549 = vsel %vm311, %v6529, 0.0
    %6550 = vadd.xlane.f32.xlu0 %v6549
    %v6551 = vpop.xlane.xlu0 %6550
    %v6552 = vsel %vm311, %v6530, 0.0
    %6553 = vadd.xlane.f32.xlu0 %v6552
    %v6554 = vpop.xlane.xlu0 %6553
    %v6555 = vsel %vm311, %v6531, 0.0
    %6556 = vadd.xlane.f32.xlu0 %v6555
    %v6557 = vpop.xlane.xlu0 %6556
    %v6558 = vsel %vm311, %v6532, 0.0
    %6559 = vadd.xlane.f32.xlu0 %v6558
    %v6560 = vpop.xlane.xlu0 %6559
    %v6561 = vsel %vm311, %v6533, 0.0
    %6562 = vadd.xlane.f32.xlu0 %v6561
    %v6563 = vpop.xlane.xlu0 %6562
    %v6564 = vsel %vm311, %v6534, 0.0
    %6565 = vadd.xlane.f32.xlu0 %v6564
    %v6566 = vpop.xlane.xlu0 %6565
    %v6567 = vsel %vm311, %v6535, 0.0
    %6568 = vadd.xlane.f32.xlu0 %v6567
    %v6569 = vpop.xlane.xlu0 %6568
    %v6570 = vsel %vm311, %v6536, 0.0
    %6571 = vadd.xlane.f32.xlu0 %v6570
    %v6572 = vpop.xlane.xlu0 %6571
    %v6573 = vsel %vm311, %v6537, 0.0
    %6574 = vadd.xlane.f32.xlu0 %v6573
    %v6575 = vpop.xlane.xlu0 %6574
    %v6576 = vsel %vm311, %v6538, 0.0
    %6577 = vadd.xlane.f32.xlu0 %v6576
    %v6578 = vpop.xlane.xlu0 %6577
    %v6579 = vsel %vm311, %v6539, 0.0
    %6580 = vadd.xlane.f32.xlu0 %v6579
    %v6581 = vpop.xlane.xlu0 %6580
    %v6582 = vsel %vm311, %v6540, 0.0
    %6583 = vadd.xlane.f32.xlu0 %v6582
    %v6584 = vpop.xlane.xlu0 %6583
    %v6585 = vsel %vm311, %v6541, 0.0
    %6586 = vadd.xlane.f32.xlu0 %v6585
    %v6587 = vpop.xlane.xlu0 %6586
    %v6588 = vsel %vm311, %v6542, 0.0
    %6589 = vadd.xlane.f32.xlu0 %v6588
    %v6590 = vpop.xlane.xlu0 %6589
    %v6591 = vmul.f32 %v6545, %v1984
    %v6592 = vmul.f32 %v6548, %v1984
    %v6593 = vmul.f32 %v6551, %v1984
    %v6594 = vmul.f32 %v6554, %v1984
    %v6595 = vmul.f32 %v6557, %v1984
    %v6596 = vmul.f32 %v6560, %v1984
    %v6597 = vmul.f32 %v6563, %v1984
    %v6598 = vmul.f32 %v6566, %v1984
    %v6599 = vmul.f32 %v6569, %v1984
    %v6600 = vmul.f32 %v6572, %v1984
    %v6601 = vmul.f32 %v6575, %v1984
    %v6602 = vmul.f32 %v6578, %v1984
    %v6603 = vmul.f32 %v6581, %v1984
    %v6604 = vmul.f32 %v6584, %v1984
    %v6605 = vmul.f32 %v6587, %v1984
    %v6606 = vmul.f32 %v6590, %v1984
    %v6607 = vadd.f32 %v6591, 1e-05
    %v6608 = vadd.f32 %v6592, 1e-05
    %v6609 = vadd.f32 %v6593, 1e-05
    %v6610 = vadd.f32 %v6594, 1e-05
    %v6611 = vadd.f32 %v6595, 1e-05
    %v6612 = vadd.f32 %v6596, 1e-05
    %v6613 = vadd.f32 %v6597, 1e-05
    %v6614 = vadd.f32 %v6598, 1e-05
    %v6615 = vadd.f32 %v6599, 1e-05
    %v6616 = vadd.f32 %v6600, 1e-05
    %v6617 = vadd.f32 %v6601, 1e-05
    %v6618 = vadd.f32 %v6602, 1e-05
    %v6619 = vadd.f32 %v6603, 1e-05
    %v6620 = vadd.f32 %v6604, 1e-05
    %v6621 = vadd.f32 %v6605, 1e-05
    %v6622 = vadd.f32 %v6606, 1e-05
    %v6623 = vrsqrt.pop %v6607
    %v6624 = vrsqrt.pop %v6608
    %v6625 = vrsqrt.pop %v6609
    %v6626 = vrsqrt.pop %v6610
    %v6627 = vrsqrt.pop %v6611
    %v6628 = vrsqrt.pop %v6612
    %v6629 = vrsqrt.pop %v6613
    %v6630 = vrsqrt.pop %v6614
    %v6631 = vrsqrt.pop %v6615
    %v6632 = vrsqrt.pop %v6616
    %v6633 = vrsqrt.pop %v6617
    %v6634 = vrsqrt.pop %v6618
    %v6635 = vrsqrt.pop %v6619
    %v6636 = vrsqrt.pop %v6620
    %v6637 = vrsqrt.pop %v6621
    %v6638 = vrsqrt.pop %v6622
    %v6639 = vmul.f32 %v6511, %v6623
    %v6640 = vmul.f32 %v6512, %v6624
    %v6641 = vmul.f32 %v6513, %v6625
    %v6642 = vmul.f32 %v6514, %v6626
    %v6643 = vmul.f32 %v6515, %v6627
    %v6644 = vmul.f32 %v6516, %v6628
    %v6645 = vmul.f32 %v6517, %v6629
    %v6646 = vmul.f32 %v6518, %v6630
    %v6647 = vmul.f32 %v6519, %v6631
    %v6648 = vmul.f32 %v6520, %v6632
    %v6649 = vmul.f32 %v6521, %v6633
    %v6650 = vmul.f32 %v6522, %v6634
    %v6651 = vmul.f32 %v6523, %v6635
    %v6652 = vmul.f32 %v6524, %v6636
    %v6653 = vmul.f32 %v6525, %v6637
    %v6654 = vmul.f32 %v6526, %v6638
    %v6656 = vlaneseq
    %v6657 = vshrl.u32 %v6656, 7
    %v6658 = vsub.s32 0, %v6657
    %v6659 = vrot.slane %v6445, %v6658
    %v6661 = vmul.f32 %v6639, %v6659
    %v6662 = vmul.f32 %v6640, %v6659
    %v6663 = vmul.f32 %v6641, %v6659
    %v6664 = vmul.f32 %v6642, %v6659
    %v6665 = vmul.f32 %v6643, %v6659
    %v6666 = vmul.f32 %v6644, %v6659
    %v6667 = vmul.f32 %v6645, %v6659
    %v6668 = vmul.f32 %v6646, %v6659
    %v6669 = vmul.f32 %v6647, %v6659
    %v6670 = vmul.f32 %v6648, %v6659
    %v6671 = vmul.f32 %v6649, %v6659
    %v6672 = vmul.f32 %v6650, %v6659
    %v6673 = vmul.f32 %v6651, %v6659
    %v6674 = vmul.f32 %v6652, %v6659
    %v6675 = vmul.f32 %v6653, %v6659
    %v6676 = vmul.f32 %v6654, %v6659
    %v6678 = vlaneseq
    %v6679 = vshrl.u32 %v6678, 7
    %v6680 = vsub.s32 0, %v6679
    %v6681 = vrot.slane %v6446, %v6680
    %v6683 = vadd.f32 %v6661, %v6681
    %v6684 = vadd.f32 %v6662, %v6681
    %v6685 = vadd.f32 %v6663, %v6681
    %v6686 = vadd.f32 %v6664, %v6681
    %v6687 = vadd.f32 %v6665, %v6681
    %v6688 = vadd.f32 %v6666, %v6681
    %v6689 = vadd.f32 %v6667, %v6681
    %v6690 = vadd.f32 %v6668, %v6681
    %v6691 = vadd.f32 %v6669, %v6681
    %v6692 = vadd.f32 %v6670, %v6681
    %v6693 = vadd.f32 %v6671, %v6681
    %v6694 = vadd.f32 %v6672, %v6681
    %v6695 = vadd.f32 %v6673, %v6681
    %v6696 = vadd.f32 %v6674, %v6681
    %v6697 = vadd.f32 %v6675, %v6681
    %v6698 = vadd.f32 %v6676, %v6681
    %v6715 = vrot.slane %v6684, 7
    %vm6716 = vcmask 1041409
    %v6717 = vsel %vm6716, %v6715, %v6683
    %v6718 = vrot.slane %v6685, 6
    %vm6719 = vcmask 1042434
    %v6720 = vsel %vm6719, %v6718, %v6717
    %v6721 = vrot.slane %v6686, 5
    %vm6722 = vcmask 1043459
    %v6723 = vsel %vm6722, %v6721, %v6720
    %v6724 = vrot.slane %v6687, 4
    %vm6725 = vcmask 1044484
    %v6726 = vsel %vm6725, %v6724, %v6723
    %v6727 = vrot.slane %v6688, 3
    %vm6728 = vcmask 1045509
    %v6729 = vsel %vm6728, %v6727, %v6726
    %v6730 = vrot.slane %v6689, 2
    %vm6731 = vcmask 1046534
    %v6732 = vsel %vm6731, %v6730, %v6729
    %v6733 = vrot.slane %v6690, 1
    %vm6734 = vcmask 1047559
    %v6735 = vsel %vm6734, %v6733, %v6732
    %v6736 = vrot.slane %v6692, 7
    %v6737 = vsel %vm6716, %v6736, %v6691
    %v6738 = vrot.slane %v6693, 6
    %v6739 = vsel %vm6719, %v6738, %v6737
    %v6740 = vrot.slane %v6694, 5
    %v6741 = vsel %vm6722, %v6740, %v6739
    %v6742 = vrot.slane %v6695, 4
    %v6743 = vsel %vm6725, %v6742, %v6741
    %v6744 = vrot.slane %v6696, 3
    %v6745 = vsel %vm6728, %v6744, %v6743
    %v6746 = vrot.slane %v6697, 2
    %v6747 = vsel %vm6731, %v6746, %v6745
    %v6748 = vrot.slane %v6698, 1
    %v6749 = vsel %vm6734, %v6748, %v6747
    %v6752 = vrot.slane %v6683, 1
    %v6753 = vsel %vm6716, %v6684, %v6752
    %v6754 = vrot.slane %v6685, 7
    %v6755 = vsel %vm6719, %v6754, %v6753
    %v6756 = vrot.slane %v6686, 6
    %v6757 = vsel %vm6722, %v6756, %v6755
    %v6758 = vrot.slane %v6687, 5
    %v6759 = vsel %vm6725, %v6758, %v6757
    %v6760 = vrot.slane %v6688, 4
    %v6761 = vsel %vm6728, %v6760, %v6759
    %v6762 = vrot.slane %v6689, 3
    %v6763 = vsel %vm6731, %v6762, %v6761
    %v6764 = vrot.slane %v6690, 2
    %v6765 = vsel %vm6734, %v6764, %v6763
    %v6766 = vrot.slane %v6691, 1
    %v6767 = vsel %vm6716, %v6692, %v6766
    %v6768 = vrot.slane %v6693, 7
    %v6769 = vsel %vm6719, %v6768, %v6767
    %v6770 = vrot.slane %v6694, 6
    %v6771 = vsel %vm6722, %v6770, %v6769
    %v6772 = vrot.slane %v6695, 5
    %v6773 = vsel %vm6725, %v6772, %v6771
    %v6774 = vrot.slane %v6696, 4
    %v6775 = vsel %vm6728, %v6774, %v6773
    %v6776 = vrot.slane %v6697, 3
    %v6777 = vsel %vm6731, %v6776, %v6775
    %v6778 = vrot.slane %v6698, 2
    %v6779 = vsel %vm6734, %v6778, %v6777
    %6780 = vrot.lane.b32.xlu0 %v6765, 16
    %v6781 = vpop.permute.xlu0 %6780
    %6782 = vrot.lane.b32.xlu0 %v6779, 16
    %v6783 = vpop.permute.xlu0 %6782
    %v6786 = vrot.slane %v6683, 2
    %v6787 = vrot.slane %v6684, 1
    %v6788 = vsel %vm6716, %v6787, %v6786
    %v6789 = vsel %vm6719, %v6685, %v6788
    %v6790 = vrot.slane %v6686, 7
    %v6791 = vsel %vm6722, %v6790, %v6789
    %v6792 = vrot.slane %v6687, 6
    %v6793 = vsel %vm6725, %v6792, %v6791
    %v6794 = vrot.slane %v6688, 5
    %v6795 = vsel %vm6728, %v6794, %v6793
    %v6796 = vrot.slane %v6689, 4
    %v6797 = vsel %vm6731, %v6796, %v6795
    %v6798 = vrot.slane %v6690, 3
    %v6799 = vsel %vm6734, %v6798, %v6797
    %v6800 = vrot.slane %v6691, 2
    %v6801 = vrot.slane %v6692, 1
    %v6802 = vsel %vm6716, %v6801, %v6800
    %v6803 = vsel %vm6719, %v6693, %v6802
    %v6804 = vrot.slane %v6694, 7
    %v6805 = vsel %vm6722, %v6804, %v6803
    %v6806 = vrot.slane %v6695, 6
    %v6807 = vsel %vm6725, %v6806, %v6805
    %v6808 = vrot.slane %v6696, 5
    %v6809 = vsel %vm6728, %v6808, %v6807
    %v6810 = vrot.slane %v6697, 4
    %v6811 = vsel %vm6731, %v6810, %v6809
    %v6812 = vrot.slane %v6698, 3
    %v6813 = vsel %vm6734, %v6812, %v6811
    %6814 = vrot.lane.b32.xlu0 %v6799, 32
    %v6815 = vpop.permute.xlu0 %6814
    %6816 = vrot.lane.b32.xlu0 %v6813, 32
    %v6817 = vpop.permute.xlu0 %6816
    %v6820 = vrot.slane %v6683, 3
    %v6821 = vrot.slane %v6684, 2
    %v6822 = vsel %vm6716, %v6821, %v6820
    %v6823 = vrot.slane %v6685, 1
    %v6824 = vsel %vm6719, %v6823, %v6822
    %v6825 = vsel %vm6722, %v6686, %v6824
    %v6826 = vrot.slane %v6687, 7
    %v6827 = vsel %vm6725, %v6826, %v6825
    %v6828 = vrot.slane %v6688, 6
    %v6829 = vsel %vm6728, %v6828, %v6827
    %v6830 = vrot.slane %v6689, 5
    %v6831 = vsel %vm6731, %v6830, %v6829
    %v6832 = vrot.slane %v6690, 4
    %v6833 = vsel %vm6734, %v6832, %v6831
    %v6834 = vrot.slane %v6691, 3
    %v6835 = vrot.slane %v6692, 2
    %v6836 = vsel %vm6716, %v6835, %v6834
    %v6837 = vrot.slane %v6693, 1
    %v6838 = vsel %vm6719, %v6837, %v6836
    %v6839 = vsel %vm6722, %v6694, %v6838
    %v6840 = vrot.slane %v6695, 7
    %v6841 = vsel %vm6725, %v6840, %v6839
    %v6842 = vrot.slane %v6696, 6
    %v6843 = vsel %vm6728, %v6842, %v6841
    %v6844 = vrot.slane %v6697, 5
    %v6845 = vsel %vm6731, %v6844, %v6843
    %v6846 = vrot.slane %v6698, 4
    %v6847 = vsel %vm6734, %v6846, %v6845
    %6848 = vrot.lane.b32.xlu0 %v6833, 48
    %v6849 = vpop.permute.xlu0 %6848
    %6850 = vrot.lane.b32.xlu0 %v6847, 48
    %v6851 = vpop.permute.xlu0 %6850
    %v6854 = vrot.slane %v6683, 4
    %v6855 = vrot.slane %v6684, 3
    %v6856 = vsel %vm6716, %v6855, %v6854
    %v6857 = vrot.slane %v6685, 2
    %v6858 = vsel %vm6719, %v6857, %v6856
    %v6859 = vrot.slane %v6686, 1
    %v6860 = vsel %vm6722, %v6859, %v6858
    %v6861 = vsel %vm6725, %v6687, %v6860
    %v6862 = vrot.slane %v6688, 7
    %v6863 = vsel %vm6728, %v6862, %v6861
    %v6864 = vrot.slane %v6689, 6
    %v6865 = vsel %vm6731, %v6864, %v6863
    %v6866 = vrot.slane %v6690, 5
    %v6867 = vsel %vm6734, %v6866, %v6865
    %v6868 = vrot.slane %v6691, 4
    %v6869 = vrot.slane %v6692, 3
    %v6870 = vsel %vm6716, %v6869, %v6868
    %v6871 = vrot.slane %v6693, 2
    %v6872 = vsel %vm6719, %v6871, %v6870
    %v6873 = vrot.slane %v6694, 1
    %v6874 = vsel %vm6722, %v6873, %v6872
    %v6875 = vsel %vm6725, %v6695, %v6874
    %v6876 = vrot.slane %v6696, 7
    %v6877 = vsel %vm6728, %v6876, %v6875
    %v6878 = vrot.slane %v6697, 6
    %v6879 = vsel %vm6731, %v6878, %v6877
    %v6880 = vrot.slane %v6698, 5
    %v6881 = vsel %vm6734, %v6880, %v6879
    %6882 = vrot.lane.b32.xlu0 %v6867, 64
    %v6883 = vpop.permute.xlu0 %6882
    %6884 = vrot.lane.b32.xlu0 %v6881, 64
    %v6885 = vpop.permute.xlu0 %6884
    %v6888 = vrot.slane %v6683, 5
    %v6889 = vrot.slane %v6684, 4
    %v6890 = vsel %vm6716, %v6889, %v6888
    %v6891 = vrot.slane %v6685, 3
    %v6892 = vsel %vm6719, %v6891, %v6890
    %v6893 = vrot.slane %v6686, 2
    %v6894 = vsel %vm6722, %v6893, %v6892
    %v6895 = vrot.slane %v6687, 1
    %v6896 = vsel %vm6725, %v6895, %v6894
    %v6897 = vsel %vm6728, %v6688, %v6896
    %v6898 = vrot.slane %v6689, 7
    %v6899 = vsel %vm6731, %v6898, %v6897
    %v6900 = vrot.slane %v6690, 6
    %v6901 = vsel %vm6734, %v6900, %v6899
    %v6902 = vrot.slane %v6691, 5
    %v6903 = vrot.slane %v6692, 4
    %v6904 = vsel %vm6716, %v6903, %v6902
    %v6905 = vrot.slane %v6693, 3
    %v6906 = vsel %vm6719, %v6905, %v6904
    %v6907 = vrot.slane %v6694, 2
    %v6908 = vsel %vm6722, %v6907, %v6906
    %v6909 = vrot.slane %v6695, 1
    %v6910 = vsel %vm6725, %v6909, %v6908
    %v6911 = vsel %vm6728, %v6696, %v6910
    %v6912 = vrot.slane %v6697, 7
    %v6913 = vsel %vm6731, %v6912, %v6911
    %v6914 = vrot.slane %v6698, 6
    %v6915 = vsel %vm6734, %v6914, %v6913
    %6916 = vrot.lane.b32.xlu0 %v6901, 80
    %v6917 = vpop.permute.xlu0 %6916
    %6918 = vrot.lane.b32.xlu0 %v6915, 80
    %v6919 = vpop.permute.xlu0 %6918
    %v6922 = vrot.slane %v6683, 6
    %v6923 = vrot.slane %v6684, 5
    %v6924 = vsel %vm6716, %v6923, %v6922
    %v6925 = vrot.slane %v6685, 4
    %v6926 = vsel %vm6719, %v6925, %v6924
    %v6927 = vrot.slane %v6686, 3
    %v6928 = vsel %vm6722, %v6927, %v6926
    %v6929 = vrot.slane %v6687, 2
    %v6930 = vsel %vm6725, %v6929, %v6928
    %v6931 = vrot.slane %v6688, 1
    %v6932 = vsel %vm6728, %v6931, %v6930
    %v6933 = vsel %vm6731, %v6689, %v6932
    %v6934 = vrot.slane %v6690, 7
    %v6935 = vsel %vm6734, %v6934, %v6933
    %v6936 = vrot.slane %v6691, 6
    %v6937 = vrot.slane %v6692, 5
    %v6938 = vsel %vm6716, %v6937, %v6936
    %v6939 = vrot.slane %v6693, 4
    %v6940 = vsel %vm6719, %v6939, %v6938
    %v6941 = vrot.slane %v6694, 3
    %v6942 = vsel %vm6722, %v6941, %v6940
    %v6943 = vrot.slane %v6695, 2
    %v6944 = vsel %vm6725, %v6943, %v6942
    %v6945 = vrot.slane %v6696, 1
    %v6946 = vsel %vm6728, %v6945, %v6944
    %v6947 = vsel %vm6731, %v6697, %v6946
    %v6948 = vrot.slane %v6698, 7
    %v6949 = vsel %vm6734, %v6948, %v6947
    %6950 = vrot.lane.b32.xlu0 %v6935, 96
    %v6951 = vpop.permute.xlu0 %6950
    %6952 = vrot.lane.b32.xlu0 %v6949, 96
    %v6953 = vpop.permute.xlu0 %6952
    %v6956 = vrot.slane %v6683, 7
    %v6957 = vrot.slane %v6684, 6
    %v6958 = vsel %vm6716, %v6957, %v6956
    %v6959 = vrot.slane %v6685, 5
    %v6960 = vsel %vm6719, %v6959, %v6958
    %v6961 = vrot.slane %v6686, 4
    %v6962 = vsel %vm6722, %v6961, %v6960
    %v6963 = vrot.slane %v6687, 3
    %v6964 = vsel %vm6725, %v6963, %v6962
    %v6965 = vrot.slane %v6688, 2
    %v6966 = vsel %vm6728, %v6965, %v6964
    %v6967 = vrot.slane %v6689, 1
    %v6968 = vsel %vm6731, %v6967, %v6966
    %v6969 = vsel %vm6734, %v6690, %v6968
    %v6970 = vrot.slane %v6691, 7
    %v6971 = vrot.slane %v6692, 6
    %v6972 = vsel %vm6716, %v6971, %v6970
    %v6973 = vrot.slane %v6693, 5
    %v6974 = vsel %vm6719, %v6973, %v6972
    %v6975 = vrot.slane %v6694, 4
    %v6976 = vsel %vm6722, %v6975, %v6974
    %v6977 = vrot.slane %v6695, 3
    %v6978 = vsel %vm6725, %v6977, %v6976
    %v6979 = vrot.slane %v6696, 2
    %v6980 = vsel %vm6728, %v6979, %v6978
    %v6981 = vrot.slane %v6697, 1
    %v6982 = vsel %vm6731, %v6981, %v6980
    %v6983 = vsel %vm6734, %v6698, %v6982
    %6984 = vrot.lane.b32.xlu0 %v6969, 112
    %v6985 = vpop.permute.xlu0 %6984
    %6986 = vrot.lane.b32.xlu0 %v6983, 112
    %v6987 = vpop.permute.xlu0 %6986
    %v6990 = vsel %vm311, %v6735, %v6781
    %v6991 = vsel %vm311, %v6749, %v6783
    %v6992 = vsel %vm61, %v6990, %v6815
    %v6993 = vsel %vm61, %v6991, %v6817
    %vm6994 = vcmask 392192
    %v6995 = vsel %vm6994, %v6992, %v6849
    %v6996 = vsel %vm6994, %v6993, %v6851
    %v6997 = vsel %vm867, %v6995, %v6883
    %v6998 = vsel %vm867, %v6996, %v6885
    %vm6999 = vcmask 654336
    %v7000 = vsel %vm6999, %v6997, %v6917
    %v7001 = vsel %vm6999, %v6998, %v6919
    %v7002 = vsel %vm884, %v7000, %v6951
    %v7003 = vsel %vm884, %v7001, %v6953
    %vm7004 = vcmask 916480
    %v7005 = vsel %vm7004, %v7002, %v6985
    %v7006 = vsel %vm7004, %v7003, %v6987
    %7007 = vst [vmem:[#allocation3] sm:$0xff] %v7005
    %7008 = vst [vmem:[#allocation3 + $0x8] sm:$0xff] %v7006
    // Predicated region
    $region54: #{tpu_custom_call.1} parent=1 // pred_check
      _
    $region55: #{tpu_custom_call.1} parent=1 // pred_check_branch
      %7010 = sbr.rel (0) target = $region57
    $region56: #{tpu_custom_call.1} parent=1 // pred_region
      %s7012 = ssub.s32 256, 256
      %7013 = vsyncadd [#allocation4], %s7012
      %s7014 = sshll.u32 [#allocation3], 4
      %s7015 = int_to_ptr.vmem [resolvable:$true] %s7014
      %7020 = dma.vmem_to_hbm [thread:$0]  %s7015, 256, %s13, [#allocation4], 128, 128, 8
    $region57: #{tpu_custom_call.1} parent=1 // pred_fallthru
      _
    // Predicated region
    $region58: #{tpu_custom_call.1} parent=1 // pred_check
      _
    $region59: #{tpu_custom_call.1} parent=1 // pred_check_branch
      %7022 = sbr.rel (0) target = $region61
    $region60: #{tpu_custom_call.1} parent=1 // pred_region
      %7023 = dma.done [#allocation4], 256
    $region61: #{tpu_custom_call.1} parent=1 // pred_fallthru
      _
    %7024 = vsyncpa [#allocation4], 1

</llo_original>
